<compile_context>
chip_gen: v5e
topology: v5e:2x2
jax: 0.10.0
libtpu: 0.0.40
codegen_flags: <defaults>
</compile_context>

<pallas_src>
from functools import partial

import jax
import jax.numpy as jnp
from jax import lax
from jax.experimental import pallas as pl
from jax.experimental.pallas import tpu as pltpu


# Row offsets inside the packed parameter slab (see _pack_params).
_W1_ROW, _W2_ROW, _WF_ROW = 0, 8, 24
_B1_ROW, _B2_ROW, _BF_ROW = 56, 57, 58
_P_ROWS = 64
_NCLS_PAD = 128          # fc output padded to a full lane tile (lane-dense store)


# --------------------------- fused SimpleNet kernel --------------------------------------
def simplenet_kernel(x_ref, p_ref, o_ref, *, N, H, W, CIN, C1, C2):
    # x_ref: (M, CIN)   flattened NHWC input, rows in (n, h, w) order
    # p_ref: (64, 288)  packed parameter slab (w1/w2/wf + b1/b2/bf)
    # o_ref: (N, 128)   fc output padded to 128 classes
    M = N * H * W
    HW = H * W

    # Per-row (h, w) coordinates of the flattened M axis (exact in f32 at these sizes;
    # avoids integer div/mod on the VPU).
    row = lax.broadcasted_iota(jnp.int32, (M, 1), 0).astype(jnp.float32)
    rem = row - jnp.floor(row / HW) * HW            # pixel index within its image
    h_f = jnp.floor(rem / W)
    w_f = rem - h_f * W
    h_ok = {-1: h_f >= 1.0, 1: h_f <= H - 2}
    w_ok = {-1: w_f >= 1.0, 1: w_f <= W - 2}

    def conv3x3(taps, C):
        # taps: (M, 9*C); column block t = kh*3 + kw holds  act @ W[kh, kw].
        # out[m] = sum_t mask_t[m] * taps[m + (kh-1)*W + (kw-1), t*C:(t+1)*C]
        # Row shifts wrap circularly; every wrapped / cross-image row is killed by the
        # boundary masks, so the wrap is harmless.
        acc = taps[:, 4 * C:5 * C]                  # centre tap: no shift, no mask
        for kh in range(3):
            for kw in range(3):
                if kh == 1 and kw == 1:
                    continue
                dh, dw = kh - 1, kw - 1
                off = dh * W + dw
                t = kh * 3 + kw
                slab = taps[:, t * C:(t + 1) * C]
                slab = jnp.roll(slab, -off, axis=0)           # rolled[m] = slab[m + off]
                mask = h_ok[dh] if dh != 0 else None
                if dw != 0:
                    mask = w_ok[dw] if mask is None else jnp.logical_and(mask, w_ok[dw])
                acc = acc + jnp.where(mask, slab, 0.0)
        return acc

    # ---- conv1 + ReLU: one (M, CIN) x (CIN, 9*C1) matmul, then shift-add ----
    t1 = jnp.dot(x_ref[...], p_ref[_W1_ROW:_W1_ROW + CIN, 0:9 * C1],
                 preferred_element_type=jnp.float32)                       # (M, 9*C1)
    h1 = jnp.maximum(conv3x3(t1, C1) + p_ref[_B1_ROW:_B1_ROW + 1, 0:C1], 0.0)

    # ---- conv2 + ReLU: one (M, C1) x (C1, 9*C2) matmul, then shift-add ----
    t2 = jnp.dot(h1, p_ref[_W2_ROW:_W2_ROW + C1, 0:9 * C2],
                 preferred_element_type=jnp.float32)                       # (M, 9*C2)
    h2 = jnp.maximum(conv3x3(t2, C2) + p_ref[_B2_ROW:_B2_ROW + 1, 0:C2], 0.0)

    # ---- global average pool (1/(H*W) folded into wf) + fc, lane-dense output ----
    pooled = jnp.concatenate(
        [jnp.sum(h2[n * HW:(n + 1) * HW, :], axis=0, keepdims=True) for n in range(N)],
        axis=0)                                                            # (N, C2)
    o_ref[...] = (jnp.dot(pooled, p_ref[_WF_ROW:_WF_ROW + C2, 0:_NCLS_PAD],
                          preferred_element_type=jnp.float32)
                  + p_ref[_BF_ROW:_BF_ROW + 1, 0:_NCLS_PAD])


# --------------------------- wrapper --------------------------------------
def _pack_params(params, H, W):
    """Pack all weights/biases into one lane-padded (64, 288) f32 slab (one DMA)."""
    w1, b1, w2, b2, wf, bf = params                  # w1/w2 in HWIO, wf (C2, NCLS)
    CIN, C1 = w1.shape[2], w1.shape[3]
    C2 = w2.shape[3]
    NCLS = wf.shape[1]
    lanes = 9 * C2                                   # 288
    # (kh, kw, cin, cout) -> (cin, tap*cout), tap = kh*3 + kw (matches kernel slabs).
    w1f = jnp.transpose(w1, (2, 0, 1, 3)).reshape(CIN, 9 * C1)
    w2f = jnp.transpose(w2, (2, 0, 1, 3)).reshape(C1, 9 * C2)
    p = jnp.zeros((_P_ROWS, lanes), jnp.float32)
    p = p.at[_W1_ROW:_W1_ROW + CIN, 0:9 * C1].set(w1f)
    p = p.at[_W2_ROW:_W2_ROW + C1, 0:9 * C2].set(w2f)
    p = p.at[_WF_ROW:_WF_ROW + C2, 0:NCLS].set(wf / float(H * W))   # fold mean pooling
    p = p.at[_B1_ROW, 0:C1].set(b1)
    p = p.at[_B2_ROW, 0:C2].set(b2)
    p = p.at[_BF_ROW, 0:NCLS].set(bf)
    return p


def simplenet_forward(x_nchw, params):
    w1, b1, w2, b2, wf, bf = params
    N, CIN, H, W = x_nchw.shape
    C1, C2, NCLS = w1.shape[-1], w2.shape[-1], wf.shape[-1]
    M = N * H * W

    # Layout plumbing only: NCHW -> (N*H*W, CIN) rows in (n, h, w) order.
    x_flat = jnp.transpose(x_nchw, (0, 2, 3, 1)).reshape(M, CIN).astype(jnp.float32)
    p = _pack_params(params, H, W)

    flops = 2 * M * (CIN * 9 * C1 + C1 * 9 * C2) + 2 * N * C2 * _NCLS_PAD
    bytes_accessed = 4 * (x_flat.size + p.size + N * _NCLS_PAD)

    kernel = partial(simplenet_kernel, N=N, H=H, W=W, CIN=CIN, C1=C1, C2=C2)
    out = pl.pallas_call(
        kernel,
        out_shape=jax.ShapeDtypeStruct((N, _NCLS_PAD), jnp.float32),
        in_specs=[pl.BlockSpec(memory_space=pltpu.MemorySpace.VMEM)] * 2,
        out_specs=pl.BlockSpec(memory_space=pltpu.MemorySpace.VMEM),
        cost_estimate=pl.CostEstimate(flops=flops, transcendentals=0,
                                      bytes_accessed=bytes_accessed),
    )(x_flat, p)
    return out[:, :NCLS]                             # drop the zero class padding


if __name__ == "__main__":
    key = jax.random.PRNGKey(0)
    ks = jax.random.split(key, 7)

    # Deterministic synthetic parameters (shapes from SimpleNet.__init__), HWIO layout.
    x_nchw = jax.random.normal(ks[0], (2, 3, 16, 16), jnp.float32)
    w1 = jax.random.normal(ks[1], (3, 3, 3, 16), jnp.float32) * 0.1   # conv1: 3 -> 16
    b1 = jax.random.normal(ks[2], (16,), jnp.float32) * 0.1
    w2 = jax.random.normal(ks[3], (3, 3, 16, 32), jnp.float32) * 0.1  # conv2: 16 -> 32
    b2 = jax.random.normal(ks[4], (32,), jnp.float32) * 0.1
    wf = jax.random.normal(ks[5], (32, 10), jnp.float32) * 0.1        # fc: 32 -> 10
    bf = jax.random.normal(ks[6], (10,), jnp.float32) * 0.1
    params = (w1, b1, w2, b2, wf, bf)

    fwd = jax.jit(simplenet_forward)
    out = jax.block_until_ready(fwd(x_nchw, params))

    # Pure-JAX reference for correctness (same semantics as the PyTorch module).
    def ref_forward(x_nchw):
        x = jnp.transpose(x_nchw, (0, 2, 3, 1))
        dn = ("NHWC", "HWIO", "NHWC")
        h = lax.conv_general_dilated(x, w1, (1, 1), "SAME", dimension_numbers=dn) + b1
        h = jnp.maximum(h, 0.0)
        h = lax.conv_general_dilated(h, w2, (1, 1), "SAME", dimension_numbers=dn) + b2
        h = jnp.maximum(h, 0.0)
        return jnp.mean(h, axis=(1, 2)) @ wf + bf

    ref = ref_forward(x_nchw)
    assert out.shape == (2, 10)
    assert jnp.allclose(out, ref, atol=2e-4, rtol=2e-4), \
        float(jnp.max(jnp.abs(out - ref)))
    print("KERNEL_OK")
</pallas_src>

<mosaic_0001>
module attributes {stable_mosaic.version = 11 : i64} {
  func.func @simplenet_kernel(%arg0: memref<512x3xf32, #tpu.memory_space<vmem>>, %arg1: memref<64x288xf32, #tpu.memory_space<vmem>>, %arg2: memref<2x128xf32, #tpu.memory_space<vmem>>) attributes {dimension_semantics = [], scalar_prefetch = 0 : i64, scratch_operands = 0 : i64, tpu.core_type = #tpu.core_type<tc>} {
    %0 = tpu.iota {dimensions = array<i32: 0>} : vector<512x1xi32>
    %1 = arith.sitofp %0 : vector<512x1xi32> to vector<512x1xf32>
    %cst = arith.constant 2.560000e+02 : f32
    %2 = vector.broadcast %cst : f32 to vector<512x1xf32>
    %3 = arith.divf %1, %2 : vector<512x1xf32>
    %4 = math.floor %3 : vector<512x1xf32>
    %cst_0 = arith.constant 2.560000e+02 : f32
    %5 = vector.broadcast %cst_0 : f32 to vector<512x1xf32>
    %6 = arith.mulf %4, %5 : vector<512x1xf32>
    %7 = arith.subf %1, %6 : vector<512x1xf32>
    %cst_1 = arith.constant 1.600000e+01 : f32
    %8 = vector.broadcast %cst_1 : f32 to vector<512x1xf32>
    %9 = arith.divf %7, %8 : vector<512x1xf32>
    %10 = math.floor %9 : vector<512x1xf32>
    %cst_2 = arith.constant 1.600000e+01 : f32
    %11 = vector.broadcast %cst_2 : f32 to vector<512x1xf32>
    %12 = arith.mulf %10, %11 : vector<512x1xf32>
    %13 = arith.subf %7, %12 : vector<512x1xf32>
    %cst_3 = arith.constant 1.000000e+00 : f32
    %14 = vector.broadcast %cst_3 : f32 to vector<512x1xf32>
    %15 = arith.cmpf oge, %10, %14 : vector<512x1xf32>
    %cst_4 = arith.constant 1.400000e+01 : f32
    %16 = vector.broadcast %cst_4 : f32 to vector<512x1xf32>
    %17 = arith.cmpf ole, %10, %16 : vector<512x1xf32>
    %cst_5 = arith.constant 1.000000e+00 : f32
    %18 = vector.broadcast %cst_5 : f32 to vector<512x1xf32>
    %19 = arith.cmpf oge, %13, %18 : vector<512x1xf32>
    %cst_6 = arith.constant 1.400000e+01 : f32
    %20 = vector.broadcast %cst_6 : f32 to vector<512x1xf32>
    %21 = arith.cmpf ole, %13, %20 : vector<512x1xf32>
    %c0 = arith.constant 0 : index
    %c0_7 = arith.constant 0 : index
    %22 = vector.load %arg0[%c0, %c0_7] : memref<512x3xf32, #tpu.memory_space<vmem>>, vector<512x3xf32>
    %c0_8 = arith.constant 0 : index
    %c0_9 = arith.constant 0 : index
    %23 = vector.load %arg1[%c0_8, %c0_9] : memref<64x288xf32, #tpu.memory_space<vmem>>, vector<3x144xf32>
    %cst_10 = arith.constant dense<0.000000e+00> : vector<512x144xf32>
    %24 = tpu.matmul %22, %23, %cst_10 {dimension_numbers = #tpu.dot_dimension_numbers<[1], [0], [0], [1], [0, 0, 1, 1], [], []>} : vector<512x3xf32>, vector<3x144xf32>, vector<512x144xf32> -> vector<512x144xf32>
    %25 = vector.extract_strided_slice %24 {offsets = [0, 64], sizes = [512, 16], strides = [1, 1]} : vector<512x144xf32> to vector<512x16xf32>
    %26 = vector.extract_strided_slice %24 {offsets = [0, 0], sizes = [512, 16], strides = [1, 1]} : vector<512x144xf32> to vector<512x16xf32>
    %27 = vector.extract_strided_slice %26 {offsets = [495, 0], sizes = [17, 16], strides = [1, 1]} : vector<512x16xf32> to vector<17x16xf32>
    %28 = vector.extract_strided_slice %26 {offsets = [0, 0], sizes = [495, 16], strides = [1, 1]} : vector<512x16xf32> to vector<495x16xf32>
    %29 = tpu.concatenate %27, %28 in 0 : vector<17x16xf32>, vector<495x16xf32> -> vector<512x16xf32>
    %30 = arith.andi %15, %19 : vector<512x1xi1>
    %cst_11 = arith.constant 0.000000e+00 : f32
    %31 = vector.shape_cast %30 : vector<512x1xi1> to vector<512x1xi1>
    %32 = vector.broadcast %31 : vector<512x1xi1> to vector<512x16xi1>
    %33 = vector.broadcast %cst_11 : f32 to vector<512x16xf32>
    %34 = arith.select %32, %29, %33 : vector<512x16xi1>, vector<512x16xf32>
    %35 = arith.addf %25, %34 : vector<512x16xf32>
    %36 = vector.extract_strided_slice %24 {offsets = [0, 16], sizes = [512, 16], strides = [1, 1]} : vector<512x144xf32> to vector<512x16xf32>
    %37 = vector.extract_strided_slice %36 {offsets = [496, 0], sizes = [16, 16], strides = [1, 1]} : vector<512x16xf32> to vector<16x16xf32>
    %38 = vector.extract_strided_slice %36 {offsets = [0, 0], sizes = [496, 16], strides = [1, 1]} : vector<512x16xf32> to vector<496x16xf32>
    %39 = tpu.concatenate %37, %38 in 0 : vector<16x16xf32>, vector<496x16xf32> -> vector<512x16xf32>
    %cst_12 = arith.constant 0.000000e+00 : f32
    %40 = vector.shape_cast %15 : vector<512x1xi1> to vector<512x1xi1>
    %41 = vector.broadcast %40 : vector<512x1xi1> to vector<512x16xi1>
    %42 = vector.broadcast %cst_12 : f32 to vector<512x16xf32>
    %43 = arith.select %41, %39, %42 : vector<512x16xi1>, vector<512x16xf32>
    %44 = arith.addf %35, %43 : vector<512x16xf32>
    %45 = vector.extract_strided_slice %24 {offsets = [0, 32], sizes = [512, 16], strides = [1, 1]} : vector<512x144xf32> to vector<512x16xf32>
    %46 = vector.extract_strided_slice %45 {offsets = [497, 0], sizes = [15, 16], strides = [1, 1]} : vector<512x16xf32> to vector<15x16xf32>
    %47 = vector.extract_strided_slice %45 {offsets = [0, 0], sizes = [497, 16], strides = [1, 1]} : vector<512x16xf32> to vector<497x16xf32>
    %48 = tpu.concatenate %46, %47 in 0 : vector<15x16xf32>, vector<497x16xf32> -> vector<512x16xf32>
    %49 = arith.andi %15, %21 : vector<512x1xi1>
    %cst_13 = arith.constant 0.000000e+00 : f32
    %50 = vector.shape_cast %49 : vector<512x1xi1> to vector<512x1xi1>
    %51 = vector.broadcast %50 : vector<512x1xi1> to vector<512x16xi1>
    %52 = vector.broadcast %cst_13 : f32 to vector<512x16xf32>
    %53 = arith.select %51, %48, %52 : vector<512x16xi1>, vector<512x16xf32>
    %54 = arith.addf %44, %53 : vector<512x16xf32>
    %55 = vector.extract_strided_slice %24 {offsets = [0, 48], sizes = [512, 16], strides = [1, 1]} : vector<512x144xf32> to vector<512x16xf32>
    %56 = vector.extract_strided_slice %55 {offsets = [511, 0], sizes = [1, 16], strides = [1, 1]} : vector<512x16xf32> to vector<1x16xf32>
    %57 = vector.extract_strided_slice %55 {offsets = [0, 0], sizes = [511, 16], strides = [1, 1]} : vector<512x16xf32> to vector<511x16xf32>
    %58 = tpu.concatenate %56, %57 in 0 : vector<1x16xf32>, vector<511x16xf32> -> vector<512x16xf32>
    %cst_14 = arith.constant 0.000000e+00 : f32
    %59 = vector.shape_cast %19 : vector<512x1xi1> to vector<512x1xi1>
    %60 = vector.broadcast %59 : vector<512x1xi1> to vector<512x16xi1>
    %61 = vector.broadcast %cst_14 : f32 to vector<512x16xf32>
    %62 = arith.select %60, %58, %61 : vector<512x16xi1>, vector<512x16xf32>
    %63 = arith.addf %54, %62 : vector<512x16xf32>
    %64 = vector.extract_strided_slice %24 {offsets = [0, 80], sizes = [512, 16], strides = [1, 1]} : vector<512x144xf32> to vector<512x16xf32>
    %65 = vector.extract_strided_slice %64 {offsets = [1, 0], sizes = [511, 16], strides = [1, 1]} : vector<512x16xf32> to vector<511x16xf32>
    %66 = vector.extract_strided_slice %64 {offsets = [0, 0], sizes = [1, 16], strides = [1, 1]} : vector<512x16xf32> to vector<1x16xf32>
    %67 = tpu.concatenate %65, %66 in 0 : vector<511x16xf32>, vector<1x16xf32> -> vector<512x16xf32>
    %cst_15 = arith.constant 0.000000e+00 : f32
    %68 = vector.shape_cast %21 : vector<512x1xi1> to vector<512x1xi1>
    %69 = vector.broadcast %68 : vector<512x1xi1> to vector<512x16xi1>
    %70 = vector.broadcast %cst_15 : f32 to vector<512x16xf32>
    %71 = arith.select %69, %67, %70 : vector<512x16xi1>, vector<512x16xf32>
    %72 = arith.addf %63, %71 : vector<512x16xf32>
    %73 = vector.extract_strided_slice %24 {offsets = [0, 96], sizes = [512, 16], strides = [1, 1]} : vector<512x144xf32> to vector<512x16xf32>
    %74 = vector.extract_strided_slice %73 {offsets = [15, 0], sizes = [497, 16], strides = [1, 1]} : vector<512x16xf32> to vector<497x16xf32>
    %75 = vector.extract_strided_slice %73 {offsets = [0, 0], sizes = [15, 16], strides = [1, 1]} : vector<512x16xf32> to vector<15x16xf32>
    %76 = tpu.concatenate %74, %75 in 0 : vector<497x16xf32>, vector<15x16xf32> -> vector<512x16xf32>
    %77 = arith.andi %17, %19 : vector<512x1xi1>
    %cst_16 = arith.constant 0.000000e+00 : f32
    %78 = vector.shape_cast %77 : vector<512x1xi1> to vector<512x1xi1>
    %79 = vector.broadcast %78 : vector<512x1xi1> to vector<512x16xi1>
    %80 = vector.broadcast %cst_16 : f32 to vector<512x16xf32>
    %81 = arith.select %79, %76, %80 : vector<512x16xi1>, vector<512x16xf32>
    %82 = arith.addf %72, %81 : vector<512x16xf32>
    %83 = vector.extract_strided_slice %24 {offsets = [0, 112], sizes = [512, 16], strides = [1, 1]} : vector<512x144xf32> to vector<512x16xf32>
    %84 = vector.extract_strided_slice %83 {offsets = [16, 0], sizes = [496, 16], strides = [1, 1]} : vector<512x16xf32> to vector<496x16xf32>
    %85 = vector.extract_strided_slice %83 {offsets = [0, 0], sizes = [16, 16], strides = [1, 1]} : vector<512x16xf32> to vector<16x16xf32>
    %86 = tpu.concatenate %84, %85 in 0 : vector<496x16xf32>, vector<16x16xf32> -> vector<512x16xf32>
    %cst_17 = arith.constant 0.000000e+00 : f32
    %87 = vector.shape_cast %17 : vector<512x1xi1> to vector<512x1xi1>
    %88 = vector.broadcast %87 : vector<512x1xi1> to vector<512x16xi1>
    %89 = vector.broadcast %cst_17 : f32 to vector<512x16xf32>
    %90 = arith.select %88, %86, %89 : vector<512x16xi1>, vector<512x16xf32>
    %91 = arith.addf %82, %90 : vector<512x16xf32>
    %92 = vector.extract_strided_slice %24 {offsets = [0, 128], sizes = [512, 16], strides = [1, 1]} : vector<512x144xf32> to vector<512x16xf32>
    %93 = vector.extract_strided_slice %92 {offsets = [17, 0], sizes = [495, 16], strides = [1, 1]} : vector<512x16xf32> to vector<495x16xf32>
    %94 = vector.extract_strided_slice %92 {offsets = [0, 0], sizes = [17, 16], strides = [1, 1]} : vector<512x16xf32> to vector<17x16xf32>
    %95 = tpu.concatenate %93, %94 in 0 : vector<495x16xf32>, vector<17x16xf32> -> vector<512x16xf32>
    %96 = arith.andi %17, %21 : vector<512x1xi1>
    %cst_18 = arith.constant 0.000000e+00 : f32
    %97 = vector.shape_cast %96 : vector<512x1xi1> to vector<512x1xi1>
    %98 = vector.broadcast %97 : vector<512x1xi1> to vector<512x16xi1>
    %99 = vector.broadcast %cst_18 : f32 to vector<512x16xf32>
    %100 = arith.select %98, %95, %99 : vector<512x16xi1>, vector<512x16xf32>
    %101 = arith.addf %91, %100 : vector<512x16xf32>
    %c56 = arith.constant 56 : index
    %c0_19 = arith.constant 0 : index
    %102 = vector.load %arg1[%c56, %c0_19] : memref<64x288xf32, #tpu.memory_space<vmem>>, vector<1x16xf32>
    %103 = vector.broadcast %102 : vector<1x16xf32> to vector<512x16xf32>
    %104 = arith.addf %101, %103 : vector<512x16xf32>
    %cst_20 = arith.constant 0.000000e+00 : f32
    %105 = vector.broadcast %cst_20 : f32 to vector<512x16xf32>
    %106 = arith.maximumf %104, %105 : vector<512x16xf32>
    %c8 = arith.constant 8 : index
    %c0_21 = arith.constant 0 : index
    %107 = vector.load %arg1[%c8, %c0_21] : memref<64x288xf32, #tpu.memory_space<vmem>>, vector<16x288xf32>
    %cst_22 = arith.constant dense<0.000000e+00> : vector<512x288xf32>
    %108 = tpu.matmul %106, %107, %cst_22 {dimension_numbers = #tpu.dot_dimension_numbers<[1], [0], [0], [1], [0, 0, 1, 1], [], []>} : vector<512x16xf32>, vector<16x288xf32>, vector<512x288xf32> -> vector<512x288xf32>
    %109 = vector.extract_strided_slice %108 {offsets = [0, 128], sizes = [512, 32], strides = [1, 1]} : vector<512x288xf32> to vector<512x32xf32>
    %110 = vector.extract_strided_slice %108 {offsets = [0, 0], sizes = [512, 32], strides = [1, 1]} : vector<512x288xf32> to vector<512x32xf32>
    %111 = vector.extract_strided_slice %110 {offsets = [495, 0], sizes = [17, 32], strides = [1, 1]} : vector<512x32xf32> to vector<17x32xf32>
    %112 = vector.extract_strided_slice %110 {offsets = [0, 0], sizes = [495, 32], strides = [1, 1]} : vector<512x32xf32> to vector<495x32xf32>
    %113 = tpu.concatenate %111, %112 in 0 : vector<17x32xf32>, vector<495x32xf32> -> vector<512x32xf32>
    %114 = arith.andi %15, %19 : vector<512x1xi1>
    %cst_23 = arith.constant 0.000000e+00 : f32
    %115 = vector.shape_cast %114 : vector<512x1xi1> to vector<512x1xi1>
    %116 = vector.broadcast %115 : vector<512x1xi1> to vector<512x32xi1>
    %117 = vector.broadcast %cst_23 : f32 to vector<512x32xf32>
    %118 = arith.select %116, %113, %117 : vector<512x32xi1>, vector<512x32xf32>
    %119 = arith.addf %109, %118 : vector<512x32xf32>
    %120 = vector.extract_strided_slice %108 {offsets = [0, 32], sizes = [512, 32], strides = [1, 1]} : vector<512x288xf32> to vector<512x32xf32>
    %121 = vector.extract_strided_slice %120 {offsets = [496, 0], sizes = [16, 32], strides = [1, 1]} : vector<512x32xf32> to vector<16x32xf32>
    %122 = vector.extract_strided_slice %120 {offsets = [0, 0], sizes = [496, 32], strides = [1, 1]} : vector<512x32xf32> to vector<496x32xf32>
    %123 = tpu.concatenate %121, %122 in 0 : vector<16x32xf32>, vector<496x32xf32> -> vector<512x32xf32>
    %cst_24 = arith.constant 0.000000e+00 : f32
    %124 = vector.shape_cast %15 : vector<512x1xi1> to vector<512x1xi1>
    %125 = vector.broadcast %124 : vector<512x1xi1> to vector<512x32xi1>
    %126 = vector.broadcast %cst_24 : f32 to vector<512x32xf32>
    %127 = arith.select %125, %123, %126 : vector<512x32xi1>, vector<512x32xf32>
    %128 = arith.addf %119, %127 : vector<512x32xf32>
    %129 = vector.extract_strided_slice %108 {offsets = [0, 64], sizes = [512, 32], strides = [1, 1]} : vector<512x288xf32> to vector<512x32xf32>
    %130 = vector.extract_strided_slice %129 {offsets = [497, 0], sizes = [15, 32], strides = [1, 1]} : vector<512x32xf32> to vector<15x32xf32>
    %131 = vector.extract_strided_slice %129 {offsets = [0, 0], sizes = [497, 32], strides = [1, 1]} : vector<512x32xf32> to vector<497x32xf32>
    %132 = tpu.concatenate %130, %131 in 0 : vector<15x32xf32>, vector<497x32xf32> -> vector<512x32xf32>
    %133 = arith.andi %15, %21 : vector<512x1xi1>
    %cst_25 = arith.constant 0.000000e+00 : f32
    %134 = vector.shape_cast %133 : vector<512x1xi1> to vector<512x1xi1>
    %135 = vector.broadcast %134 : vector<512x1xi1> to vector<512x32xi1>
    %136 = vector.broadcast %cst_25 : f32 to vector<512x32xf32>
    %137 = arith.select %135, %132, %136 : vector<512x32xi1>, vector<512x32xf32>
    %138 = arith.addf %128, %137 : vector<512x32xf32>
    %139 = vector.extract_strided_slice %108 {offsets = [0, 96], sizes = [512, 32], strides = [1, 1]} : vector<512x288xf32> to vector<512x32xf32>
    %140 = vector.extract_strided_slice %139 {offsets = [511, 0], sizes = [1, 32], strides = [1, 1]} : vector<512x32xf32> to vector<1x32xf32>
    %141 = vector.extract_strided_slice %139 {offsets = [0, 0], sizes = [511, 32], strides = [1, 1]} : vector<512x32xf32> to vector<511x32xf32>
    %142 = tpu.concatenate %140, %141 in 0 : vector<1x32xf32>, vector<511x32xf32> -> vector<512x32xf32>
    %cst_26 = arith.constant 0.000000e+00 : f32
    %143 = vector.shape_cast %19 : vector<512x1xi1> to vector<512x1xi1>
    %144 = vector.broadcast %143 : vector<512x1xi1> to vector<512x32xi1>
    %145 = vector.broadcast %cst_26 : f32 to vector<512x32xf32>
    %146 = arith.select %144, %142, %145 : vector<512x32xi1>, vector<512x32xf32>
    %147 = arith.addf %138, %146 : vector<512x32xf32>
    %148 = vector.extract_strided_slice %108 {offsets = [0, 160], sizes = [512, 32], strides = [1, 1]} : vector<512x288xf32> to vector<512x32xf32>
    %149 = vector.extract_strided_slice %148 {offsets = [1, 0], sizes = [511, 32], strides = [1, 1]} : vector<512x32xf32> to vector<511x32xf32>
    %150 = vector.extract_strided_slice %148 {offsets = [0, 0], sizes = [1, 32], strides = [1, 1]} : vector<512x32xf32> to vector<1x32xf32>
    %151 = tpu.concatenate %149, %150 in 0 : vector<511x32xf32>, vector<1x32xf32> -> vector<512x32xf32>
    %cst_27 = arith.constant 0.000000e+00 : f32
    %152 = vector.shape_cast %21 : vector<512x1xi1> to vector<512x1xi1>
    %153 = vector.broadcast %152 : vector<512x1xi1> to vector<512x32xi1>
    %154 = vector.broadcast %cst_27 : f32 to vector<512x32xf32>
    %155 = arith.select %153, %151, %154 : vector<512x32xi1>, vector<512x32xf32>
    %156 = arith.addf %147, %155 : vector<512x32xf32>
    %157 = vector.extract_strided_slice %108 {offsets = [0, 192], sizes = [512, 32], strides = [1, 1]} : vector<512x288xf32> to vector<512x32xf32>
    %158 = vector.extract_strided_slice %157 {offsets = [15, 0], sizes = [497, 32], strides = [1, 1]} : vector<512x32xf32> to vector<497x32xf32>
    %159 = vector.extract_strided_slice %157 {offsets = [0, 0], sizes = [15, 32], strides = [1, 1]} : vector<512x32xf32> to vector<15x32xf32>
    %160 = tpu.concatenate %158, %159 in 0 : vector<497x32xf32>, vector<15x32xf32> -> vector<512x32xf32>
    %161 = arith.andi %17, %19 : vector<512x1xi1>
    %cst_28 = arith.constant 0.000000e+00 : f32
    %162 = vector.shape_cast %161 : vector<512x1xi1> to vector<512x1xi1>
    %163 = vector.broadcast %162 : vector<512x1xi1> to vector<512x32xi1>
    %164 = vector.broadcast %cst_28 : f32 to vector<512x32xf32>
    %165 = arith.select %163, %160, %164 : vector<512x32xi1>, vector<512x32xf32>
    %166 = arith.addf %156, %165 : vector<512x32xf32>
    %167 = vector.extract_strided_slice %108 {offsets = [0, 224], sizes = [512, 32], strides = [1, 1]} : vector<512x288xf32> to vector<512x32xf32>
    %168 = vector.extract_strided_slice %167 {offsets = [16, 0], sizes = [496, 32], strides = [1, 1]} : vector<512x32xf32> to vector<496x32xf32>
    %169 = vector.extract_strided_slice %167 {offsets = [0, 0], sizes = [16, 32], strides = [1, 1]} : vector<512x32xf32> to vector<16x32xf32>
    %170 = tpu.concatenate %168, %169 in 0 : vector<496x32xf32>, vector<16x32xf32> -> vector<512x32xf32>
    %cst_29 = arith.constant 0.000000e+00 : f32
    %171 = vector.shape_cast %17 : vector<512x1xi1> to vector<512x1xi1>
    %172 = vector.broadcast %171 : vector<512x1xi1> to vector<512x32xi1>
    %173 = vector.broadcast %cst_29 : f32 to vector<512x32xf32>
    %174 = arith.select %172, %170, %173 : vector<512x32xi1>, vector<512x32xf32>
    %175 = arith.addf %166, %174 : vector<512x32xf32>
    %176 = vector.extract_strided_slice %108 {offsets = [0, 256], sizes = [512, 32], strides = [1, 1]} : vector<512x288xf32> to vector<512x32xf32>
    %177 = vector.extract_strided_slice %176 {offsets = [17, 0], sizes = [495, 32], strides = [1, 1]} : vector<512x32xf32> to vector<495x32xf32>
    %178 = vector.extract_strided_slice %176 {offsets = [0, 0], sizes = [17, 32], strides = [1, 1]} : vector<512x32xf32> to vector<17x32xf32>
    %179 = tpu.concatenate %177, %178 in 0 : vector<495x32xf32>, vector<17x32xf32> -> vector<512x32xf32>
    %180 = arith.andi %17, %21 : vector<512x1xi1>
    %cst_30 = arith.constant 0.000000e+00 : f32
    %181 = vector.shape_cast %180 : vector<512x1xi1> to vector<512x1xi1>
    %182 = vector.broadcast %181 : vector<512x1xi1> to vector<512x32xi1>
    %183 = vector.broadcast %cst_30 : f32 to vector<512x32xf32>
    %184 = arith.select %182, %179, %183 : vector<512x32xi1>, vector<512x32xf32>
    %185 = arith.addf %175, %184 : vector<512x32xf32>
    %c57 = arith.constant 57 : index
    %c0_31 = arith.constant 0 : index
    %186 = vector.load %arg1[%c57, %c0_31] : memref<64x288xf32, #tpu.memory_space<vmem>>, vector<1x32xf32>
    %187 = vector.broadcast %186 : vector<1x32xf32> to vector<512x32xf32>
    %188 = arith.addf %185, %187 : vector<512x32xf32>
    %cst_32 = arith.constant 0.000000e+00 : f32
    %189 = vector.broadcast %cst_32 : f32 to vector<512x32xf32>
    %190 = arith.maximumf %188, %189 : vector<512x32xf32>
    %191 = vector.extract_strided_slice %190 {offsets = [0, 0], sizes = [256, 32], strides = [1, 1]} : vector<512x32xf32> to vector<256x32xf32>
    %cst_33 = arith.constant dense<0.000000e+00> : vector<32xf32>
    %192 = vector.multi_reduction <add>, %191, %cst_33 [0] : vector<256x32xf32> to vector<32xf32>
    %193 = vector.shape_cast %192 : vector<32xf32> to vector<1x32xf32>
    %194 = vector.extract_strided_slice %190 {offsets = [256, 0], sizes = [256, 32], strides = [1, 1]} : vector<512x32xf32> to vector<256x32xf32>
    %cst_34 = arith.constant dense<0.000000e+00> : vector<32xf32>
    %195 = vector.multi_reduction <add>, %194, %cst_34 [0] : vector<256x32xf32> to vector<32xf32>
    %196 = vector.shape_cast %195 : vector<32xf32> to vector<1x32xf32>
    %197 = tpu.concatenate %193, %196 in 0 : vector<1x32xf32>, vector<1x32xf32> -> vector<2x32xf32>
    %c24 = arith.constant 24 : index
    %c0_35 = arith.constant 0 : index
    %198 = vector.load %arg1[%c24, %c0_35] : memref<64x288xf32, #tpu.memory_space<vmem>>, vector<32x128xf32>
    %cst_36 = arith.constant dense<0.000000e+00> : vector<2x128xf32>
    %199 = tpu.matmul %197, %198, %cst_36 {dimension_numbers = #tpu.dot_dimension_numbers<[1], [0], [0], [1], [0, 0, 1, 1], [], []>} : vector<2x32xf32>, vector<32x128xf32>, vector<2x128xf32> -> vector<2x128xf32>
    %c58 = arith.constant 58 : index
    %c0_37 = arith.constant 0 : index
    %200 = vector.load %arg1[%c58, %c0_37] : memref<64x288xf32, #tpu.memory_space<vmem>>, vector<1x128xf32>
    %201 = vector.broadcast %200 : vector<1x128xf32> to vector<2x128xf32>
    %202 = arith.addf %199, %201 : vector<2x128xf32>
    %c0_38 = arith.constant 0 : index
    %c0_39 = arith.constant 0 : index
    %203 = vector.load %arg2[%c0_38, %c0_39] : memref<2x128xf32, #tpu.memory_space<vmem>>, vector<2x128xf32>
    tpu.vector_store %arg2[%c0_38, %c0_39], %202 {strides = array<i32>} : memref<2x128xf32, #tpu.memory_space<vmem>>, vector<2x128xf32>,
    return
  }
}

</mosaic_0001>

<llo_original>
// kernel: simplenet_forward.1
$region0: #{simplenet_forward.1}
  #allocation0 [shape = 'u32[]', space=smem, size = 0x4, offset = 0x4, fixed_abs, tag = 'smem constant byte address 0x4 - core index']
  #allocation1 [shape = 'u32[72,128]{1,0:T(1,128)}', space=vmem, size = 0x9000, scoped, tag = 'internal scratch']
  %s0 = inlined_call_operand.vmem [shape: f32[512,3], index: 0, kind: input, shape index: {}]
  %s1 = inlined_call_operand.vmem [shape: f32[64,288], index: 1, kind: input, shape index: {}]
  %s2 = inlined_call_operand.hbm [shape: f32[2,128], index: 2, kind: output, shape index: {}]
  %s3 = sld [smem:[#allocation0]]
  $region18: #{simplenet_forward.1} parent=0
    _
  %s5 = ssub.s32 1, %s3
  %s6 = scalar_select 0, %s5, %s3
  $region1: #{simplenet_forward.1} parent=0
    #allocation2 [shape = 'u8[1024]{0}', space=vmem, size = 0x400, scoped, tag = 'output window, operand 0, single buffered']
    #allocation3 [shape = 's32[1]{0}', space=sflag, size = 0x4, scoped, tag = 'scoped memory for simplenet_forward.1']
    %7 = vsyncpa [#allocation3], 0
    // Predicated region
    $region2: #{simplenet_forward.1} parent=1 // pred_check
      _
    $region3: #{simplenet_forward.1} parent=1 // pred_check_branch
      %9 = sbr.rel (0) target = $region5
    $region4: #{simplenet_forward.1} parent=1 // pred_region
      _
    $region5: #{simplenet_forward.1} parent=1 // pred_fallthru
      _
    // Predicated region
    $region6: #{simplenet_forward.1} parent=1 // pred_check
      _
    $region7: #{simplenet_forward.1} parent=1 // pred_check_branch
      %11 = sbr.rel (0) target = $region9
    $region8: #{simplenet_forward.1} parent=1 // pred_region
      _
    $region9: #{simplenet_forward.1} parent=1 // pred_fallthru
      _
    %v12 = vlaneseq
    %v13 = vshrl.u32 %v12, 7
    %v14 = vadd.s32 %v13, 8
    %v15 = vadd.s32 %v13, 16
    %v16 = vadd.s32 %v13, 24
    %v17 = vadd.s32 %v13, 32
    %v18 = vadd.s32 %v13, 40
    %v19 = vadd.s32 %v13, 48
    %v20 = vadd.s32 %v13, 56
    %v21 = vadd.s32 %v13, 64
    %v22 = vadd.s32 %v13, 72
    %v23 = vadd.s32 %v13, 80
    %v24 = vadd.s32 %v13, 88
    %v25 = vadd.s32 %v13, 96
    %v26 = vadd.s32 %v13, 104
    %v27 = vadd.s32 %v13, 112
    %v28 = vadd.s32 %v13, 120
    %v29 = vadd.s32 %v13, 128
    %v30 = vadd.s32 %v13, 136
    %v31 = vadd.s32 %v13, 144
    %v32 = vadd.s32 %v13, 152
    %v33 = vadd.s32 %v13, 160
    %v34 = vadd.s32 %v13, 168
    %v35 = vadd.s32 %v13, 176
    %v36 = vadd.s32 %v13, 184
    %v37 = vadd.s32 %v13, 192
    %v38 = vadd.s32 %v13, 200
    %v39 = vadd.s32 %v13, 208
    %v40 = vadd.s32 %v13, 216
    %v41 = vadd.s32 %v13, 224
    %v42 = vadd.s32 %v13, 232
    %v43 = vadd.s32 %v13, 240
    %v44 = vadd.s32 %v13, 248
    %v45 = vadd.s32 %v13, 256
    %v46 = vadd.s32 %v13, 264
    %v47 = vadd.s32 %v13, 272
    %v48 = vadd.s32 %v13, 280
    %v49 = vadd.s32 %v13, 288
    %v50 = vadd.s32 %v13, 296
    %v51 = vadd.s32 %v13, 304
    %v52 = vadd.s32 %v13, 312
    %v53 = vadd.s32 %v13, 320
    %v54 = vadd.s32 %v13, 328
    %v55 = vadd.s32 %v13, 336
    %v56 = vadd.s32 %v13, 344
    %v57 = vadd.s32 %v13, 352
    %v58 = vadd.s32 %v13, 360
    %v59 = vadd.s32 %v13, 368
    %v60 = vadd.s32 %v13, 376
    %v61 = vadd.s32 %v13, 384
    %v62 = vadd.s32 %v13, 392
    %v63 = vadd.s32 %v13, 400
    %v64 = vadd.s32 %v13, 408
    %v65 = vadd.s32 %v13, 416
    %v66 = vadd.s32 %v13, 424
    %v67 = vadd.s32 %v13, 432
    %v68 = vadd.s32 %v13, 440
    %v69 = vadd.s32 %v13, 448
    %v70 = vadd.s32 %v13, 456
    %v71 = vadd.s32 %v13, 464
    %v72 = vadd.s32 %v13, 472
    %v73 = vadd.s32 %v13, 480
    %v74 = vadd.s32 %v13, 488
    %v75 = vadd.s32 %v13, 496
    %v76 = vadd.s32 %v13, 504
    %v77 = vcvt.s32.f32 %v13
    %v78 = vcvt.s32.f32 %v14
    %v79 = vcvt.s32.f32 %v15
    %v80 = vcvt.s32.f32 %v16
    %v81 = vcvt.s32.f32 %v17
    %v82 = vcvt.s32.f32 %v18
    %v83 = vcvt.s32.f32 %v19
    %v84 = vcvt.s32.f32 %v20
    %v85 = vcvt.s32.f32 %v21
    %v86 = vcvt.s32.f32 %v22
    %v87 = vcvt.s32.f32 %v23
    %v88 = vcvt.s32.f32 %v24
    %v89 = vcvt.s32.f32 %v25
    %v90 = vcvt.s32.f32 %v26
    %v91 = vcvt.s32.f32 %v27
    %v92 = vcvt.s32.f32 %v28
    %v93 = vcvt.s32.f32 %v29
    %v94 = vcvt.s32.f32 %v30
    %v95 = vcvt.s32.f32 %v31
    %v96 = vcvt.s32.f32 %v32
    %v97 = vcvt.s32.f32 %v33
    %v98 = vcvt.s32.f32 %v34
    %v99 = vcvt.s32.f32 %v35
    %v100 = vcvt.s32.f32 %v36
    %v101 = vcvt.s32.f32 %v37
    %v102 = vcvt.s32.f32 %v38
    %v103 = vcvt.s32.f32 %v39
    %v104 = vcvt.s32.f32 %v40
    %v105 = vcvt.s32.f32 %v41
    %v106 = vcvt.s32.f32 %v42
    %v107 = vcvt.s32.f32 %v43
    %v108 = vcvt.s32.f32 %v44
    %v109 = vcvt.s32.f32 %v45
    %v110 = vcvt.s32.f32 %v46
    %v111 = vcvt.s32.f32 %v47
    %v112 = vcvt.s32.f32 %v48
    %v113 = vcvt.s32.f32 %v49
    %v114 = vcvt.s32.f32 %v50
    %v115 = vcvt.s32.f32 %v51
    %v116 = vcvt.s32.f32 %v52
    %v117 = vcvt.s32.f32 %v53
    %v118 = vcvt.s32.f32 %v54
    %v119 = vcvt.s32.f32 %v55
    %v120 = vcvt.s32.f32 %v56
    %v121 = vcvt.s32.f32 %v57
    %v122 = vcvt.s32.f32 %v58
    %v123 = vcvt.s32.f32 %v59
    %v124 = vcvt.s32.f32 %v60
    %v125 = vcvt.s32.f32 %v61
    %v126 = vcvt.s32.f32 %v62
    %v127 = vcvt.s32.f32 %v63
    %v128 = vcvt.s32.f32 %v64
    %v129 = vcvt.s32.f32 %v65
    %v130 = vcvt.s32.f32 %v66
    %v131 = vcvt.s32.f32 %v67
    %v132 = vcvt.s32.f32 %v68
    %v133 = vcvt.s32.f32 %v69
    %v134 = vcvt.s32.f32 %v70
    %v135 = vcvt.s32.f32 %v71
    %v136 = vcvt.s32.f32 %v72
    %v137 = vcvt.s32.f32 %v73
    %v138 = vcvt.s32.f32 %v74
    %v139 = vcvt.s32.f32 %v75
    %v140 = vcvt.s32.f32 %v76
    %v141 = vrcp.pop 256.0
    %v142 = vmul.f32 256.0, %v141
    %v143 = vsub.f32 1.0, %v142
    %v144 = vmul.f32 %v141, %v143
    %v145 = vadd.f32 %v141, %v144
    %vm146 = vweird.f32 %v141
    %v147 = vsel %vm146, %v141, %v145
    %v148 = vmul.f32 %v77, %v147
    %v149 = vmul.f32 %v78, %v147
    %v150 = vmul.f32 %v79, %v147
    %v151 = vmul.f32 %v80, %v147
    %v152 = vmul.f32 %v81, %v147
    %v153 = vmul.f32 %v82, %v147
    %v154 = vmul.f32 %v83, %v147
    %v155 = vmul.f32 %v84, %v147
    %v156 = vmul.f32 %v85, %v147
    %v157 = vmul.f32 %v86, %v147
    %v158 = vmul.f32 %v87, %v147
    %v159 = vmul.f32 %v88, %v147
    %v160 = vmul.f32 %v89, %v147
    %v161 = vmul.f32 %v90, %v147
    %v162 = vmul.f32 %v91, %v147
    %v163 = vmul.f32 %v92, %v147
    %v164 = vmul.f32 %v93, %v147
    %v165 = vmul.f32 %v94, %v147
    %v166 = vmul.f32 %v95, %v147
    %v167 = vmul.f32 %v96, %v147
    %v168 = vmul.f32 %v97, %v147
    %v169 = vmul.f32 %v98, %v147
    %v170 = vmul.f32 %v99, %v147
    %v171 = vmul.f32 %v100, %v147
    %v172 = vmul.f32 %v101, %v147
    %v173 = vmul.f32 %v102, %v147
    %v174 = vmul.f32 %v103, %v147
    %v175 = vmul.f32 %v104, %v147
    %v176 = vmul.f32 %v105, %v147
    %v177 = vmul.f32 %v106, %v147
    %v178 = vmul.f32 %v107, %v147
    %v179 = vmul.f32 %v108, %v147
    %v180 = vmul.f32 %v109, %v147
    %v181 = vmul.f32 %v110, %v147
    %v182 = vmul.f32 %v111, %v147
    %v183 = vmul.f32 %v112, %v147
    %v184 = vmul.f32 %v113, %v147
    %v185 = vmul.f32 %v114, %v147
    %v186 = vmul.f32 %v115, %v147
    %v187 = vmul.f32 %v116, %v147
    %v188 = vmul.f32 %v117, %v147
    %v189 = vmul.f32 %v118, %v147
    %v190 = vmul.f32 %v119, %v147
    %v191 = vmul.f32 %v120, %v147
    %v192 = vmul.f32 %v121, %v147
    %v193 = vmul.f32 %v122, %v147
    %v194 = vmul.f32 %v123, %v147
    %v195 = vmul.f32 %v124, %v147
    %v196 = vmul.f32 %v125, %v147
    %v197 = vmul.f32 %v126, %v147
    %v198 = vmul.f32 %v127, %v147
    %v199 = vmul.f32 %v128, %v147
    %v200 = vmul.f32 %v129, %v147
    %v201 = vmul.f32 %v130, %v147
    %v202 = vmul.f32 %v131, %v147
    %v203 = vmul.f32 %v132, %v147
    %v204 = vmul.f32 %v133, %v147
    %v205 = vmul.f32 %v134, %v147
    %v206 = vmul.f32 %v135, %v147
    %v207 = vmul.f32 %v136, %v147
    %v208 = vmul.f32 %v137, %v147
    %v209 = vmul.f32 %v138, %v147
    %v210 = vmul.f32 %v139, %v147
    %v211 = vmul.f32 %v140, %v147
    %v212 = vfloor.f32 %v148
    %v213 = vfloor.f32 %v149
    %v214 = vfloor.f32 %v150
    %v215 = vfloor.f32 %v151
    %v216 = vfloor.f32 %v152
    %v217 = vfloor.f32 %v153
    %v218 = vfloor.f32 %v154
    %v219 = vfloor.f32 %v155
    %v220 = vfloor.f32 %v156
    %v221 = vfloor.f32 %v157
    %v222 = vfloor.f32 %v158
    %v223 = vfloor.f32 %v159
    %v224 = vfloor.f32 %v160
    %v225 = vfloor.f32 %v161
    %v226 = vfloor.f32 %v162
    %v227 = vfloor.f32 %v163
    %v228 = vfloor.f32 %v164
    %v229 = vfloor.f32 %v165
    %v230 = vfloor.f32 %v166
    %v231 = vfloor.f32 %v167
    %v232 = vfloor.f32 %v168
    %v233 = vfloor.f32 %v169
    %v234 = vfloor.f32 %v170
    %v235 = vfloor.f32 %v171
    %v236 = vfloor.f32 %v172
    %v237 = vfloor.f32 %v173
    %v238 = vfloor.f32 %v174
    %v239 = vfloor.f32 %v175
    %v240 = vfloor.f32 %v176
    %v241 = vfloor.f32 %v177
    %v242 = vfloor.f32 %v178
    %v243 = vfloor.f32 %v179
    %v244 = vfloor.f32 %v180
    %v245 = vfloor.f32 %v181
    %v246 = vfloor.f32 %v182
    %v247 = vfloor.f32 %v183
    %v248 = vfloor.f32 %v184
    %v249 = vfloor.f32 %v185
    %v250 = vfloor.f32 %v186
    %v251 = vfloor.f32 %v187
    %v252 = vfloor.f32 %v188
    %v253 = vfloor.f32 %v189
    %v254 = vfloor.f32 %v190
    %v255 = vfloor.f32 %v191
    %v256 = vfloor.f32 %v192
    %v257 = vfloor.f32 %v193
    %v258 = vfloor.f32 %v194
    %v259 = vfloor.f32 %v195
    %v260 = vfloor.f32 %v196
    %v261 = vfloor.f32 %v197
    %v262 = vfloor.f32 %v198
    %v263 = vfloor.f32 %v199
    %v264 = vfloor.f32 %v200
    %v265 = vfloor.f32 %v201
    %v266 = vfloor.f32 %v202
    %v267 = vfloor.f32 %v203
    %v268 = vfloor.f32 %v204
    %v269 = vfloor.f32 %v205
    %v270 = vfloor.f32 %v206
    %v271 = vfloor.f32 %v207
    %v272 = vfloor.f32 %v208
    %v273 = vfloor.f32 %v209
    %v274 = vfloor.f32 %v210
    %v275 = vfloor.f32 %v211
    %v276 = vmul.f32 %v212, 256.0
    %v277 = vmul.f32 %v213, 256.0
    %v278 = vmul.f32 %v214, 256.0
    %v279 = vmul.f32 %v215, 256.0
    %v280 = vmul.f32 %v216, 256.0
    %v281 = vmul.f32 %v217, 256.0
    %v282 = vmul.f32 %v218, 256.0
    %v283 = vmul.f32 %v219, 256.0
    %v284 = vmul.f32 %v220, 256.0
    %v285 = vmul.f32 %v221, 256.0
    %v286 = vmul.f32 %v222, 256.0
    %v287 = vmul.f32 %v223, 256.0
    %v288 = vmul.f32 %v224, 256.0
    %v289 = vmul.f32 %v225, 256.0
    %v290 = vmul.f32 %v226, 256.0
    %v291 = vmul.f32 %v227, 256.0
    %v292 = vmul.f32 %v228, 256.0
    %v293 = vmul.f32 %v229, 256.0
    %v294 = vmul.f32 %v230, 256.0
    %v295 = vmul.f32 %v231, 256.0
    %v296 = vmul.f32 %v232, 256.0
    %v297 = vmul.f32 %v233, 256.0
    %v298 = vmul.f32 %v234, 256.0
    %v299 = vmul.f32 %v235, 256.0
    %v300 = vmul.f32 %v236, 256.0
    %v301 = vmul.f32 %v237, 256.0
    %v302 = vmul.f32 %v238, 256.0
    %v303 = vmul.f32 %v239, 256.0
    %v304 = vmul.f32 %v240, 256.0
    %v305 = vmul.f32 %v241, 256.0
    %v306 = vmul.f32 %v242, 256.0
    %v307 = vmul.f32 %v243, 256.0
    %v308 = vmul.f32 %v244, 256.0
    %v309 = vmul.f32 %v245, 256.0
    %v310 = vmul.f32 %v246, 256.0
    %v311 = vmul.f32 %v247, 256.0
    %v312 = vmul.f32 %v248, 256.0
    %v313 = vmul.f32 %v249, 256.0
    %v314 = vmul.f32 %v250, 256.0
    %v315 = vmul.f32 %v251, 256.0
    %v316 = vmul.f32 %v252, 256.0
    %v317 = vmul.f32 %v253, 256.0
    %v318 = vmul.f32 %v254, 256.0
    %v319 = vmul.f32 %v255, 256.0
    %v320 = vmul.f32 %v256, 256.0
    %v321 = vmul.f32 %v257, 256.0
    %v322 = vmul.f32 %v258, 256.0
    %v323 = vmul.f32 %v259, 256.0
    %v324 = vmul.f32 %v260, 256.0
    %v325 = vmul.f32 %v261, 256.0
    %v326 = vmul.f32 %v262, 256.0
    %v327 = vmul.f32 %v263, 256.0
    %v328 = vmul.f32 %v264, 256.0
    %v329 = vmul.f32 %v265, 256.0
    %v330 = vmul.f32 %v266, 256.0
    %v331 = vmul.f32 %v267, 256.0
    %v332 = vmul.f32 %v268, 256.0
    %v333 = vmul.f32 %v269, 256.0
    %v334 = vmul.f32 %v270, 256.0
    %v335 = vmul.f32 %v271, 256.0
    %v336 = vmul.f32 %v272, 256.0
    %v337 = vmul.f32 %v273, 256.0
    %v338 = vmul.f32 %v274, 256.0
    %v339 = vmul.f32 %v275, 256.0
    %v340 = vsub.f32 %v77, %v276
    %v341 = vsub.f32 %v78, %v277
    %v342 = vsub.f32 %v79, %v278
    %v343 = vsub.f32 %v80, %v279
    %v344 = vsub.f32 %v81, %v280
    %v345 = vsub.f32 %v82, %v281
    %v346 = vsub.f32 %v83, %v282
    %v347 = vsub.f32 %v84, %v283
    %v348 = vsub.f32 %v85, %v284
    %v349 = vsub.f32 %v86, %v285
    %v350 = vsub.f32 %v87, %v286
    %v351 = vsub.f32 %v88, %v287
    %v352 = vsub.f32 %v89, %v288
    %v353 = vsub.f32 %v90, %v289
    %v354 = vsub.f32 %v91, %v290
    %v355 = vsub.f32 %v92, %v291
    %v356 = vsub.f32 %v93, %v292
    %v357 = vsub.f32 %v94, %v293
    %v358 = vsub.f32 %v95, %v294
    %v359 = vsub.f32 %v96, %v295
    %v360 = vsub.f32 %v97, %v296
    %v361 = vsub.f32 %v98, %v297
    %v362 = vsub.f32 %v99, %v298
    %v363 = vsub.f32 %v100, %v299
    %v364 = vsub.f32 %v101, %v300
    %v365 = vsub.f32 %v102, %v301
    %v366 = vsub.f32 %v103, %v302
    %v367 = vsub.f32 %v104, %v303
    %v368 = vsub.f32 %v105, %v304
    %v369 = vsub.f32 %v106, %v305
    %v370 = vsub.f32 %v107, %v306
    %v371 = vsub.f32 %v108, %v307
    %v372 = vsub.f32 %v109, %v308
    %v373 = vsub.f32 %v110, %v309
    %v374 = vsub.f32 %v111, %v310
    %v375 = vsub.f32 %v112, %v311
    %v376 = vsub.f32 %v113, %v312
    %v377 = vsub.f32 %v114, %v313
    %v378 = vsub.f32 %v115, %v314
    %v379 = vsub.f32 %v116, %v315
    %v380 = vsub.f32 %v117, %v316
    %v381 = vsub.f32 %v118, %v317
    %v382 = vsub.f32 %v119, %v318
    %v383 = vsub.f32 %v120, %v319
    %v384 = vsub.f32 %v121, %v320
    %v385 = vsub.f32 %v122, %v321
    %v386 = vsub.f32 %v123, %v322
    %v387 = vsub.f32 %v124, %v323
    %v388 = vsub.f32 %v125, %v324
    %v389 = vsub.f32 %v126, %v325
    %v390 = vsub.f32 %v127, %v326
    %v391 = vsub.f32 %v128, %v327
    %v392 = vsub.f32 %v129, %v328
    %v393 = vsub.f32 %v130, %v329
    %v394 = vsub.f32 %v131, %v330
    %v395 = vsub.f32 %v132, %v331
    %v396 = vsub.f32 %v133, %v332
    %v397 = vsub.f32 %v134, %v333
    %v398 = vsub.f32 %v135, %v334
    %v399 = vsub.f32 %v136, %v335
    %v400 = vsub.f32 %v137, %v336
    %v401 = vsub.f32 %v138, %v337
    %v402 = vsub.f32 %v139, %v338
    %v403 = vsub.f32 %v140, %v339
    %v404 = vrcp.pop 16.0
    %v405 = vmul.f32 16.0, %v404
    %v406 = vsub.f32 1.0, %v405
    %v407 = vmul.f32 %v404, %v406
    %v408 = vadd.f32 %v404, %v407
    %vm409 = vweird.f32 %v404
    %v410 = vsel %vm409, %v404, %v408
    %v411 = vmul.f32 %v340, %v410
    %v412 = vmul.f32 %v341, %v410
    %v413 = vmul.f32 %v342, %v410
    %v414 = vmul.f32 %v343, %v410
    %v415 = vmul.f32 %v344, %v410
    %v416 = vmul.f32 %v345, %v410
    %v417 = vmul.f32 %v346, %v410
    %v418 = vmul.f32 %v347, %v410
    %v419 = vmul.f32 %v348, %v410
    %v420 = vmul.f32 %v349, %v410
    %v421 = vmul.f32 %v350, %v410
    %v422 = vmul.f32 %v351, %v410
    %v423 = vmul.f32 %v352, %v410
    %v424 = vmul.f32 %v353, %v410
    %v425 = vmul.f32 %v354, %v410
    %v426 = vmul.f32 %v355, %v410
    %v427 = vmul.f32 %v356, %v410
    %v428 = vmul.f32 %v357, %v410
    %v429 = vmul.f32 %v358, %v410
    %v430 = vmul.f32 %v359, %v410
    %v431 = vmul.f32 %v360, %v410
    %v432 = vmul.f32 %v361, %v410
    %v433 = vmul.f32 %v362, %v410
    %v434 = vmul.f32 %v363, %v410
    %v435 = vmul.f32 %v364, %v410
    %v436 = vmul.f32 %v365, %v410
    %v437 = vmul.f32 %v366, %v410
    %v438 = vmul.f32 %v367, %v410
    %v439 = vmul.f32 %v368, %v410
    %v440 = vmul.f32 %v369, %v410
    %v441 = vmul.f32 %v370, %v410
    %v442 = vmul.f32 %v371, %v410
    %v443 = vmul.f32 %v372, %v410
    %v444 = vmul.f32 %v373, %v410
    %v445 = vmul.f32 %v374, %v410
    %v446 = vmul.f32 %v375, %v410
    %v447 = vmul.f32 %v376, %v410
    %v448 = vmul.f32 %v377, %v410
    %v449 = vmul.f32 %v378, %v410
    %v450 = vmul.f32 %v379, %v410
    %v451 = vmul.f32 %v380, %v410
    %v452 = vmul.f32 %v381, %v410
    %v453 = vmul.f32 %v382, %v410
    %v454 = vmul.f32 %v383, %v410
    %v455 = vmul.f32 %v384, %v410
    %v456 = vmul.f32 %v385, %v410
    %v457 = vmul.f32 %v386, %v410
    %v458 = vmul.f32 %v387, %v410
    %v459 = vmul.f32 %v388, %v410
    %v460 = vmul.f32 %v389, %v410
    %v461 = vmul.f32 %v390, %v410
    %v462 = vmul.f32 %v391, %v410
    %v463 = vmul.f32 %v392, %v410
    %v464 = vmul.f32 %v393, %v410
    %v465 = vmul.f32 %v394, %v410
    %v466 = vmul.f32 %v395, %v410
    %v467 = vmul.f32 %v396, %v410
    %v468 = vmul.f32 %v397, %v410
    %v469 = vmul.f32 %v398, %v410
    %v470 = vmul.f32 %v399, %v410
    %v471 = vmul.f32 %v400, %v410
    %v472 = vmul.f32 %v401, %v410
    %v473 = vmul.f32 %v402, %v410
    %v474 = vmul.f32 %v403, %v410
    %v475 = vfloor.f32 %v411
    %v476 = vfloor.f32 %v412
    %v477 = vfloor.f32 %v413
    %v478 = vfloor.f32 %v414
    %v479 = vfloor.f32 %v415
    %v480 = vfloor.f32 %v416
    %v481 = vfloor.f32 %v417
    %v482 = vfloor.f32 %v418
    %v483 = vfloor.f32 %v419
    %v484 = vfloor.f32 %v420
    %v485 = vfloor.f32 %v421
    %v486 = vfloor.f32 %v422
    %v487 = vfloor.f32 %v423
    %v488 = vfloor.f32 %v424
    %v489 = vfloor.f32 %v425
    %v490 = vfloor.f32 %v426
    %v491 = vfloor.f32 %v427
    %v492 = vfloor.f32 %v428
    %v493 = vfloor.f32 %v429
    %v494 = vfloor.f32 %v430
    %v495 = vfloor.f32 %v431
    %v496 = vfloor.f32 %v432
    %v497 = vfloor.f32 %v433
    %v498 = vfloor.f32 %v434
    %v499 = vfloor.f32 %v435
    %v500 = vfloor.f32 %v436
    %v501 = vfloor.f32 %v437
    %v502 = vfloor.f32 %v438
    %v503 = vfloor.f32 %v439
    %v504 = vfloor.f32 %v440
    %v505 = vfloor.f32 %v441
    %v506 = vfloor.f32 %v442
    %v507 = vfloor.f32 %v443
    %v508 = vfloor.f32 %v444
    %v509 = vfloor.f32 %v445
    %v510 = vfloor.f32 %v446
    %v511 = vfloor.f32 %v447
    %v512 = vfloor.f32 %v448
    %v513 = vfloor.f32 %v449
    %v514 = vfloor.f32 %v450
    %v515 = vfloor.f32 %v451
    %v516 = vfloor.f32 %v452
    %v517 = vfloor.f32 %v453
    %v518 = vfloor.f32 %v454
    %v519 = vfloor.f32 %v455
    %v520 = vfloor.f32 %v456
    %v521 = vfloor.f32 %v457
    %v522 = vfloor.f32 %v458
    %v523 = vfloor.f32 %v459
    %v524 = vfloor.f32 %v460
    %v525 = vfloor.f32 %v461
    %v526 = vfloor.f32 %v462
    %v527 = vfloor.f32 %v463
    %v528 = vfloor.f32 %v464
    %v529 = vfloor.f32 %v465
    %v530 = vfloor.f32 %v466
    %v531 = vfloor.f32 %v467
    %v532 = vfloor.f32 %v468
    %v533 = vfloor.f32 %v469
    %v534 = vfloor.f32 %v470
    %v535 = vfloor.f32 %v471
    %v536 = vfloor.f32 %v472
    %v537 = vfloor.f32 %v473
    %v538 = vfloor.f32 %v474
    %v539 = vmul.f32 %v475, 16.0
    %v540 = vmul.f32 %v476, 16.0
    %v541 = vmul.f32 %v477, 16.0
    %v542 = vmul.f32 %v478, 16.0
    %v543 = vmul.f32 %v479, 16.0
    %v544 = vmul.f32 %v480, 16.0
    %v545 = vmul.f32 %v481, 16.0
    %v546 = vmul.f32 %v482, 16.0
    %v547 = vmul.f32 %v483, 16.0
    %v548 = vmul.f32 %v484, 16.0
    %v549 = vmul.f32 %v485, 16.0
    %v550 = vmul.f32 %v486, 16.0
    %v551 = vmul.f32 %v487, 16.0
    %v552 = vmul.f32 %v488, 16.0
    %v553 = vmul.f32 %v489, 16.0
    %v554 = vmul.f32 %v490, 16.0
    %v555 = vmul.f32 %v491, 16.0
    %v556 = vmul.f32 %v492, 16.0
    %v557 = vmul.f32 %v493, 16.0
    %v558 = vmul.f32 %v494, 16.0
    %v559 = vmul.f32 %v495, 16.0
    %v560 = vmul.f32 %v496, 16.0
    %v561 = vmul.f32 %v497, 16.0
    %v562 = vmul.f32 %v498, 16.0
    %v563 = vmul.f32 %v499, 16.0
    %v564 = vmul.f32 %v500, 16.0
    %v565 = vmul.f32 %v501, 16.0
    %v566 = vmul.f32 %v502, 16.0
    %v567 = vmul.f32 %v503, 16.0
    %v568 = vmul.f32 %v504, 16.0
    %v569 = vmul.f32 %v505, 16.0
    %v570 = vmul.f32 %v506, 16.0
    %v571 = vmul.f32 %v507, 16.0
    %v572 = vmul.f32 %v508, 16.0
    %v573 = vmul.f32 %v509, 16.0
    %v574 = vmul.f32 %v510, 16.0
    %v575 = vmul.f32 %v511, 16.0
    %v576 = vmul.f32 %v512, 16.0
    %v577 = vmul.f32 %v513, 16.0
    %v578 = vmul.f32 %v514, 16.0
    %v579 = vmul.f32 %v515, 16.0
    %v580 = vmul.f32 %v516, 16.0
    %v581 = vmul.f32 %v517, 16.0
    %v582 = vmul.f32 %v518, 16.0
    %v583 = vmul.f32 %v519, 16.0
    %v584 = vmul.f32 %v520, 16.0
    %v585 = vmul.f32 %v521, 16.0
    %v586 = vmul.f32 %v522, 16.0
    %v587 = vmul.f32 %v523, 16.0
    %v588 = vmul.f32 %v524, 16.0
    %v589 = vmul.f32 %v525, 16.0
    %v590 = vmul.f32 %v526, 16.0
    %v591 = vmul.f32 %v527, 16.0
    %v592 = vmul.f32 %v528, 16.0
    %v593 = vmul.f32 %v529, 16.0
    %v594 = vmul.f32 %v530, 16.0
    %v595 = vmul.f32 %v531, 16.0
    %v596 = vmul.f32 %v532, 16.0
    %v597 = vmul.f32 %v533, 16.0
    %v598 = vmul.f32 %v534, 16.0
    %v599 = vmul.f32 %v535, 16.0
    %v600 = vmul.f32 %v536, 16.0
    %v601 = vmul.f32 %v537, 16.0
    %v602 = vmul.f32 %v538, 16.0
    %v603 = vsub.f32 %v340, %v539
    %v604 = vsub.f32 %v341, %v540
    %v605 = vsub.f32 %v342, %v541
    %v606 = vsub.f32 %v343, %v542
    %v607 = vsub.f32 %v344, %v543
    %v608 = vsub.f32 %v345, %v544
    %v609 = vsub.f32 %v346, %v545
    %v610 = vsub.f32 %v347, %v546
    %v611 = vsub.f32 %v348, %v547
    %v612 = vsub.f32 %v349, %v548
    %v613 = vsub.f32 %v350, %v549
    %v614 = vsub.f32 %v351, %v550
    %v615 = vsub.f32 %v352, %v551
    %v616 = vsub.f32 %v353, %v552
    %v617 = vsub.f32 %v354, %v553
    %v618 = vsub.f32 %v355, %v554
    %v619 = vsub.f32 %v356, %v555
    %v620 = vsub.f32 %v357, %v556
    %v621 = vsub.f32 %v358, %v557
    %v622 = vsub.f32 %v359, %v558
    %v623 = vsub.f32 %v360, %v559
    %v624 = vsub.f32 %v361, %v560
    %v625 = vsub.f32 %v362, %v561
    %v626 = vsub.f32 %v363, %v562
    %v627 = vsub.f32 %v364, %v563
    %v628 = vsub.f32 %v365, %v564
    %v629 = vsub.f32 %v366, %v565
    %v630 = vsub.f32 %v367, %v566
    %v631 = vsub.f32 %v368, %v567
    %v632 = vsub.f32 %v369, %v568
    %v633 = vsub.f32 %v370, %v569
    %v634 = vsub.f32 %v371, %v570
    %v635 = vsub.f32 %v372, %v571
    %v636 = vsub.f32 %v373, %v572
    %v637 = vsub.f32 %v374, %v573
    %v638 = vsub.f32 %v375, %v574
    %v639 = vsub.f32 %v376, %v575
    %v640 = vsub.f32 %v377, %v576
    %v641 = vsub.f32 %v378, %v577
    %v642 = vsub.f32 %v379, %v578
    %v643 = vsub.f32 %v380, %v579
    %v644 = vsub.f32 %v381, %v580
    %v645 = vsub.f32 %v382, %v581
    %v646 = vsub.f32 %v383, %v582
    %v647 = vsub.f32 %v384, %v583
    %v648 = vsub.f32 %v385, %v584
    %v649 = vsub.f32 %v386, %v585
    %v650 = vsub.f32 %v387, %v586
    %v651 = vsub.f32 %v388, %v587
    %v652 = vsub.f32 %v389, %v588
    %v653 = vsub.f32 %v390, %v589
    %v654 = vsub.f32 %v391, %v590
    %v655 = vsub.f32 %v392, %v591
    %v656 = vsub.f32 %v393, %v592
    %v657 = vsub.f32 %v394, %v593
    %v658 = vsub.f32 %v395, %v594
    %v659 = vsub.f32 %v396, %v595
    %v660 = vsub.f32 %v397, %v596
    %v661 = vsub.f32 %v398, %v597
    %v662 = vsub.f32 %v399, %v598
    %v663 = vsub.f32 %v400, %v599
    %v664 = vsub.f32 %v401, %v600
    %v665 = vsub.f32 %v402, %v601
    %v666 = vsub.f32 %v403, %v602
    %vm667 = vcmp.ge.f32.partialorder %v475, 1.0
    %vm668 = vcmp.ge.f32.partialorder %v476, 1.0
    %vm669 = vcmp.ge.f32.partialorder %v477, 1.0
    %vm670 = vcmp.ge.f32.partialorder %v478, 1.0
    %vm671 = vcmp.ge.f32.partialorder %v479, 1.0
    %vm672 = vcmp.ge.f32.partialorder %v480, 1.0
    %vm673 = vcmp.ge.f32.partialorder %v481, 1.0
    %vm674 = vcmp.ge.f32.partialorder %v482, 1.0
    %vm675 = vcmp.ge.f32.partialorder %v483, 1.0
    %vm676 = vcmp.ge.f32.partialorder %v484, 1.0
    %vm677 = vcmp.ge.f32.partialorder %v485, 1.0
    %vm678 = vcmp.ge.f32.partialorder %v486, 1.0
    %vm679 = vcmp.ge.f32.partialorder %v487, 1.0
    %vm680 = vcmp.ge.f32.partialorder %v488, 1.0
    %vm681 = vcmp.ge.f32.partialorder %v489, 1.0
    %vm682 = vcmp.ge.f32.partialorder %v490, 1.0
    %vm683 = vcmp.ge.f32.partialorder %v491, 1.0
    %vm684 = vcmp.ge.f32.partialorder %v492, 1.0
    %vm685 = vcmp.ge.f32.partialorder %v493, 1.0
    %vm686 = vcmp.ge.f32.partialorder %v494, 1.0
    %vm687 = vcmp.ge.f32.partialorder %v495, 1.0
    %vm688 = vcmp.ge.f32.partialorder %v496, 1.0
    %vm689 = vcmp.ge.f32.partialorder %v497, 1.0
    %vm690 = vcmp.ge.f32.partialorder %v498, 1.0
    %vm691 = vcmp.ge.f32.partialorder %v499, 1.0
    %vm692 = vcmp.ge.f32.partialorder %v500, 1.0
    %vm693 = vcmp.ge.f32.partialorder %v501, 1.0
    %vm694 = vcmp.ge.f32.partialorder %v502, 1.0
    %vm695 = vcmp.ge.f32.partialorder %v503, 1.0
    %vm696 = vcmp.ge.f32.partialorder %v504, 1.0
    %vm697 = vcmp.ge.f32.partialorder %v505, 1.0
    %vm698 = vcmp.ge.f32.partialorder %v506, 1.0
    %vm699 = vcmp.ge.f32.partialorder %v507, 1.0
    %vm700 = vcmp.ge.f32.partialorder %v508, 1.0
    %vm701 = vcmp.ge.f32.partialorder %v509, 1.0
    %vm702 = vcmp.ge.f32.partialorder %v510, 1.0
    %vm703 = vcmp.ge.f32.partialorder %v511, 1.0
    %vm704 = vcmp.ge.f32.partialorder %v512, 1.0
    %vm705 = vcmp.ge.f32.partialorder %v513, 1.0
    %vm706 = vcmp.ge.f32.partialorder %v514, 1.0
    %vm707 = vcmp.ge.f32.partialorder %v515, 1.0
    %vm708 = vcmp.ge.f32.partialorder %v516, 1.0
    %vm709 = vcmp.ge.f32.partialorder %v517, 1.0
    %vm710 = vcmp.ge.f32.partialorder %v518, 1.0
    %vm711 = vcmp.ge.f32.partialorder %v519, 1.0
    %vm712 = vcmp.ge.f32.partialorder %v520, 1.0
    %vm713 = vcmp.ge.f32.partialorder %v521, 1.0
    %vm714 = vcmp.ge.f32.partialorder %v522, 1.0
    %vm715 = vcmp.ge.f32.partialorder %v523, 1.0
    %vm716 = vcmp.ge.f32.partialorder %v524, 1.0
    %vm717 = vcmp.ge.f32.partialorder %v525, 1.0
    %vm718 = vcmp.ge.f32.partialorder %v526, 1.0
    %vm719 = vcmp.ge.f32.partialorder %v527, 1.0
    %vm720 = vcmp.ge.f32.partialorder %v528, 1.0
    %vm721 = vcmp.ge.f32.partialorder %v529, 1.0
    %vm722 = vcmp.ge.f32.partialorder %v530, 1.0
    %vm723 = vcmp.ge.f32.partialorder %v531, 1.0
    %vm724 = vcmp.ge.f32.partialorder %v532, 1.0
    %vm725 = vcmp.ge.f32.partialorder %v533, 1.0
    %vm726 = vcmp.ge.f32.partialorder %v534, 1.0
    %vm727 = vcmp.ge.f32.partialorder %v535, 1.0
    %vm728 = vcmp.ge.f32.partialorder %v536, 1.0
    %vm729 = vcmp.ge.f32.partialorder %v537, 1.0
    %vm730 = vcmp.ge.f32.partialorder %v538, 1.0
    %vm731 = vcmp.le.f32.partialorder %v475, 14.0
    %vm732 = vcmp.le.f32.partialorder %v476, 14.0
    %vm733 = vcmp.le.f32.partialorder %v477, 14.0
    %vm734 = vcmp.le.f32.partialorder %v478, 14.0
    %vm735 = vcmp.le.f32.partialorder %v479, 14.0
    %vm736 = vcmp.le.f32.partialorder %v480, 14.0
    %vm737 = vcmp.le.f32.partialorder %v481, 14.0
    %vm738 = vcmp.le.f32.partialorder %v482, 14.0
    %vm739 = vcmp.le.f32.partialorder %v483, 14.0
    %vm740 = vcmp.le.f32.partialorder %v484, 14.0
    %vm741 = vcmp.le.f32.partialorder %v485, 14.0
    %vm742 = vcmp.le.f32.partialorder %v486, 14.0
    %vm743 = vcmp.le.f32.partialorder %v487, 14.0
    %vm744 = vcmp.le.f32.partialorder %v488, 14.0
    %vm745 = vcmp.le.f32.partialorder %v489, 14.0
    %vm746 = vcmp.le.f32.partialorder %v490, 14.0
    %vm747 = vcmp.le.f32.partialorder %v491, 14.0
    %vm748 = vcmp.le.f32.partialorder %v492, 14.0
    %vm749 = vcmp.le.f32.partialorder %v493, 14.0
    %vm750 = vcmp.le.f32.partialorder %v494, 14.0
    %vm751 = vcmp.le.f32.partialorder %v495, 14.0
    %vm752 = vcmp.le.f32.partialorder %v496, 14.0
    %vm753 = vcmp.le.f32.partialorder %v497, 14.0
    %vm754 = vcmp.le.f32.partialorder %v498, 14.0
    %vm755 = vcmp.le.f32.partialorder %v499, 14.0
    %vm756 = vcmp.le.f32.partialorder %v500, 14.0
    %vm757 = vcmp.le.f32.partialorder %v501, 14.0
    %vm758 = vcmp.le.f32.partialorder %v502, 14.0
    %vm759 = vcmp.le.f32.partialorder %v503, 14.0
    %vm760 = vcmp.le.f32.partialorder %v504, 14.0
    %vm761 = vcmp.le.f32.partialorder %v505, 14.0
    %vm762 = vcmp.le.f32.partialorder %v506, 14.0
    %vm763 = vcmp.le.f32.partialorder %v507, 14.0
    %vm764 = vcmp.le.f32.partialorder %v508, 14.0
    %vm765 = vcmp.le.f32.partialorder %v509, 14.0
    %vm766 = vcmp.le.f32.partialorder %v510, 14.0
    %vm767 = vcmp.le.f32.partialorder %v511, 14.0
    %vm768 = vcmp.le.f32.partialorder %v512, 14.0
    %vm769 = vcmp.le.f32.partialorder %v513, 14.0
    %vm770 = vcmp.le.f32.partialorder %v514, 14.0
    %vm771 = vcmp.le.f32.partialorder %v515, 14.0
    %vm772 = vcmp.le.f32.partialorder %v516, 14.0
    %vm773 = vcmp.le.f32.partialorder %v517, 14.0
    %vm774 = vcmp.le.f32.partialorder %v518, 14.0
    %vm775 = vcmp.le.f32.partialorder %v519, 14.0
    %vm776 = vcmp.le.f32.partialorder %v520, 14.0
    %vm777 = vcmp.le.f32.partialorder %v521, 14.0
    %vm778 = vcmp.le.f32.partialorder %v522, 14.0
    %vm779 = vcmp.le.f32.partialorder %v523, 14.0
    %vm780 = vcmp.le.f32.partialorder %v524, 14.0
    %vm781 = vcmp.le.f32.partialorder %v525, 14.0
    %vm782 = vcmp.le.f32.partialorder %v526, 14.0
    %vm783 = vcmp.le.f32.partialorder %v527, 14.0
    %vm784 = vcmp.le.f32.partialorder %v528, 14.0
    %vm785 = vcmp.le.f32.partialorder %v529, 14.0
    %vm786 = vcmp.le.f32.partialorder %v530, 14.0
    %vm787 = vcmp.le.f32.partialorder %v531, 14.0
    %vm788 = vcmp.le.f32.partialorder %v532, 14.0
    %vm789 = vcmp.le.f32.partialorder %v533, 14.0
    %vm790 = vcmp.le.f32.partialorder %v534, 14.0
    %vm791 = vcmp.le.f32.partialorder %v535, 14.0
    %vm792 = vcmp.le.f32.partialorder %v536, 14.0
    %vm793 = vcmp.le.f32.partialorder %v537, 14.0
    %vm794 = vcmp.le.f32.partialorder %v538, 14.0
    %vm795 = vcmp.ge.f32.partialorder %v603, 1.0
    %vm796 = vcmp.ge.f32.partialorder %v604, 1.0
    %vm797 = vcmp.ge.f32.partialorder %v605, 1.0
    %vm798 = vcmp.ge.f32.partialorder %v606, 1.0
    %vm799 = vcmp.ge.f32.partialorder %v607, 1.0
    %vm800 = vcmp.ge.f32.partialorder %v608, 1.0
    %vm801 = vcmp.ge.f32.partialorder %v609, 1.0
    %vm802 = vcmp.ge.f32.partialorder %v610, 1.0
    %vm803 = vcmp.ge.f32.partialorder %v611, 1.0
    %vm804 = vcmp.ge.f32.partialorder %v612, 1.0
    %vm805 = vcmp.ge.f32.partialorder %v613, 1.0
    %vm806 = vcmp.ge.f32.partialorder %v614, 1.0
    %vm807 = vcmp.ge.f32.partialorder %v615, 1.0
    %vm808 = vcmp.ge.f32.partialorder %v616, 1.0
    %vm809 = vcmp.ge.f32.partialorder %v617, 1.0
    %vm810 = vcmp.ge.f32.partialorder %v618, 1.0
    %vm811 = vcmp.ge.f32.partialorder %v619, 1.0
    %vm812 = vcmp.ge.f32.partialorder %v620, 1.0
    %vm813 = vcmp.ge.f32.partialorder %v621, 1.0
    %vm814 = vcmp.ge.f32.partialorder %v622, 1.0
    %vm815 = vcmp.ge.f32.partialorder %v623, 1.0
    %vm816 = vcmp.ge.f32.partialorder %v624, 1.0
    %vm817 = vcmp.ge.f32.partialorder %v625, 1.0
    %vm818 = vcmp.ge.f32.partialorder %v626, 1.0
    %vm819 = vcmp.ge.f32.partialorder %v627, 1.0
    %vm820 = vcmp.ge.f32.partialorder %v628, 1.0
    %vm821 = vcmp.ge.f32.partialorder %v629, 1.0
    %vm822 = vcmp.ge.f32.partialorder %v630, 1.0
    %vm823 = vcmp.ge.f32.partialorder %v631, 1.0
    %vm824 = vcmp.ge.f32.partialorder %v632, 1.0
    %vm825 = vcmp.ge.f32.partialorder %v633, 1.0
    %vm826 = vcmp.ge.f32.partialorder %v634, 1.0
    %vm827 = vcmp.ge.f32.partialorder %v635, 1.0
    %vm828 = vcmp.ge.f32.partialorder %v636, 1.0
    %vm829 = vcmp.ge.f32.partialorder %v637, 1.0
    %vm830 = vcmp.ge.f32.partialorder %v638, 1.0
    %vm831 = vcmp.ge.f32.partialorder %v639, 1.0
    %vm832 = vcmp.ge.f32.partialorder %v640, 1.0
    %vm833 = vcmp.ge.f32.partialorder %v641, 1.0
    %vm834 = vcmp.ge.f32.partialorder %v642, 1.0
    %vm835 = vcmp.ge.f32.partialorder %v643, 1.0
    %vm836 = vcmp.ge.f32.partialorder %v644, 1.0
    %vm837 = vcmp.ge.f32.partialorder %v645, 1.0
    %vm838 = vcmp.ge.f32.partialorder %v646, 1.0
    %vm839 = vcmp.ge.f32.partialorder %v647, 1.0
    %vm840 = vcmp.ge.f32.partialorder %v648, 1.0
    %vm841 = vcmp.ge.f32.partialorder %v649, 1.0
    %vm842 = vcmp.ge.f32.partialorder %v650, 1.0
    %vm843 = vcmp.ge.f32.partialorder %v651, 1.0
    %vm844 = vcmp.ge.f32.partialorder %v652, 1.0
    %vm845 = vcmp.ge.f32.partialorder %v653, 1.0
    %vm846 = vcmp.ge.f32.partialorder %v654, 1.0
    %vm847 = vcmp.ge.f32.partialorder %v655, 1.0
    %vm848 = vcmp.ge.f32.partialorder %v656, 1.0
    %vm849 = vcmp.ge.f32.partialorder %v657, 1.0
    %vm850 = vcmp.ge.f32.partialorder %v658, 1.0
    %vm851 = vcmp.ge.f32.partialorder %v659, 1.0
    %vm852 = vcmp.ge.f32.partialorder %v660, 1.0
    %vm853 = vcmp.ge.f32.partialorder %v661, 1.0
    %vm854 = vcmp.ge.f32.partialorder %v662, 1.0
    %vm855 = vcmp.ge.f32.partialorder %v663, 1.0
    %vm856 = vcmp.ge.f32.partialorder %v664, 1.0
    %vm857 = vcmp.ge.f32.partialorder %v665, 1.0
    %vm858 = vcmp.ge.f32.partialorder %v666, 1.0
    %vm859 = vcmp.le.f32.partialorder %v603, 14.0
    %vm860 = vcmp.le.f32.partialorder %v604, 14.0
    %vm861 = vcmp.le.f32.partialorder %v605, 14.0
    %vm862 = vcmp.le.f32.partialorder %v606, 14.0
    %vm863 = vcmp.le.f32.partialorder %v607, 14.0
    %vm864 = vcmp.le.f32.partialorder %v608, 14.0
    %vm865 = vcmp.le.f32.partialorder %v609, 14.0
    %vm866 = vcmp.le.f32.partialorder %v610, 14.0
    %vm867 = vcmp.le.f32.partialorder %v611, 14.0
    %vm868 = vcmp.le.f32.partialorder %v612, 14.0
    %vm869 = vcmp.le.f32.partialorder %v613, 14.0
    %vm870 = vcmp.le.f32.partialorder %v614, 14.0
    %vm871 = vcmp.le.f32.partialorder %v615, 14.0
    %vm872 = vcmp.le.f32.partialorder %v616, 14.0
    %vm873 = vcmp.le.f32.partialorder %v617, 14.0
    %vm874 = vcmp.le.f32.partialorder %v618, 14.0
    %vm875 = vcmp.le.f32.partialorder %v619, 14.0
    %vm876 = vcmp.le.f32.partialorder %v620, 14.0
    %vm877 = vcmp.le.f32.partialorder %v621, 14.0
    %vm878 = vcmp.le.f32.partialorder %v622, 14.0
    %vm879 = vcmp.le.f32.partialorder %v623, 14.0
    %vm880 = vcmp.le.f32.partialorder %v624, 14.0
    %vm881 = vcmp.le.f32.partialorder %v625, 14.0
    %vm882 = vcmp.le.f32.partialorder %v626, 14.0
    %vm883 = vcmp.le.f32.partialorder %v627, 14.0
    %vm884 = vcmp.le.f32.partialorder %v628, 14.0
    %vm885 = vcmp.le.f32.partialorder %v629, 14.0
    %vm886 = vcmp.le.f32.partialorder %v630, 14.0
    %vm887 = vcmp.le.f32.partialorder %v631, 14.0
    %vm888 = vcmp.le.f32.partialorder %v632, 14.0
    %vm889 = vcmp.le.f32.partialorder %v633, 14.0
    %vm890 = vcmp.le.f32.partialorder %v634, 14.0
    %vm891 = vcmp.le.f32.partialorder %v635, 14.0
    %vm892 = vcmp.le.f32.partialorder %v636, 14.0
    %vm893 = vcmp.le.f32.partialorder %v637, 14.0
    %vm894 = vcmp.le.f32.partialorder %v638, 14.0
    %vm895 = vcmp.le.f32.partialorder %v639, 14.0
    %vm896 = vcmp.le.f32.partialorder %v640, 14.0
    %vm897 = vcmp.le.f32.partialorder %v641, 14.0
    %vm898 = vcmp.le.f32.partialorder %v642, 14.0
    %vm899 = vcmp.le.f32.partialorder %v643, 14.0
    %vm900 = vcmp.le.f32.partialorder %v644, 14.0
    %vm901 = vcmp.le.f32.partialorder %v645, 14.0
    %vm902 = vcmp.le.f32.partialorder %v646, 14.0
    %vm903 = vcmp.le.f32.partialorder %v647, 14.0
    %vm904 = vcmp.le.f32.partialorder %v648, 14.0
    %vm905 = vcmp.le.f32.partialorder %v649, 14.0
    %vm906 = vcmp.le.f32.partialorder %v650, 14.0
    %vm907 = vcmp.le.f32.partialorder %v651, 14.0
    %vm908 = vcmp.le.f32.partialorder %v652, 14.0
    %vm909 = vcmp.le.f32.partialorder %v653, 14.0
    %vm910 = vcmp.le.f32.partialorder %v654, 14.0
    %vm911 = vcmp.le.f32.partialorder %v655, 14.0
    %vm912 = vcmp.le.f32.partialorder %v656, 14.0
    %vm913 = vcmp.le.f32.partialorder %v657, 14.0
    %vm914 = vcmp.le.f32.partialorder %v658, 14.0
    %vm915 = vcmp.le.f32.partialorder %v659, 14.0
    %vm916 = vcmp.le.f32.partialorder %v660, 14.0
    %vm917 = vcmp.le.f32.partialorder %v661, 14.0
    %vm918 = vcmp.le.f32.partialorder %v662, 14.0
    %vm919 = vcmp.le.f32.partialorder %v663, 14.0
    %vm920 = vcmp.le.f32.partialorder %v664, 14.0
    %vm921 = vcmp.le.f32.partialorder %v665, 14.0
    %vm922 = vcmp.le.f32.partialorder %v666, 14.0
    %v923 = vld [vmem:[%s0] sm:$0xff]
    %v924 = vld [vmem:[%s0 + $0x8] sm:$0xff]
    %v925 = vld [vmem:[%s0 + $0x10] sm:$0xff]
    %v926 = vld [vmem:[%s0 + $0x18] sm:$0xff]
    %v927 = vld [vmem:[%s0 + $0x20] sm:$0xff]
    %v928 = vld [vmem:[%s0 + $0x28] sm:$0xff]
    %v929 = vld [vmem:[%s0 + $0x30] sm:$0xff]
    %v930 = vld [vmem:[%s0 + $0x38] sm:$0xff]
    %v931 = vld [vmem:[%s0 + $0x40] sm:$0xff]
    %v932 = vld [vmem:[%s0 + $0x48] sm:$0xff]
    %v933 = vld [vmem:[%s0 + $0x50] sm:$0xff]
    %v934 = vld [vmem:[%s0 + $0x58] sm:$0xff]
    %v935 = vld [vmem:[%s0 + $0x60] sm:$0xff]
    %v936 = vld [vmem:[%s0 + $0x68] sm:$0xff]
    %v937 = vld [vmem:[%s0 + $0x70] sm:$0xff]
    %v938 = vld [vmem:[%s0 + $0x78] sm:$0xff]
    %v939 = vld [vmem:[%s0 + $0x80] sm:$0xff]
    %v940 = vld [vmem:[%s0 + $0x88] sm:$0xff]
    %v941 = vld [vmem:[%s0 + $0x90] sm:$0xff]
    %v942 = vld [vmem:[%s0 + $0x98] sm:$0xff]
    %v943 = vld [vmem:[%s0 + $0xa0] sm:$0xff]
    %v944 = vld [vmem:[%s0 + $0xa8] sm:$0xff]
    %v945 = vld [vmem:[%s0 + $0xb0] sm:$0xff]
    %v946 = vld [vmem:[%s0 + $0xb8] sm:$0xff]
    %v947 = vld [vmem:[%s0 + $0xc0] sm:$0xff]
    %v948 = vld [vmem:[%s0 + $0xc8] sm:$0xff]
    %v949 = vld [vmem:[%s0 + $0xd0] sm:$0xff]
    %v950 = vld [vmem:[%s0 + $0xd8] sm:$0xff]
    %v951 = vld [vmem:[%s0 + $0xe0] sm:$0xff]
    %v952 = vld [vmem:[%s0 + $0xe8] sm:$0xff]
    %v953 = vld [vmem:[%s0 + $0xf0] sm:$0xff]
    %v954 = vld [vmem:[%s0 + $0xf8] sm:$0xff]
    %v955 = vld [vmem:[%s0 + $0x100] sm:$0xff]
    %v956 = vld [vmem:[%s0 + $0x108] sm:$0xff]
    %v957 = vld [vmem:[%s0 + $0x110] sm:$0xff]
    %v958 = vld [vmem:[%s0 + $0x118] sm:$0xff]
    %v959 = vld [vmem:[%s0 + $0x120] sm:$0xff]
    %v960 = vld [vmem:[%s0 + $0x128] sm:$0xff]
    %v961 = vld [vmem:[%s0 + $0x130] sm:$0xff]
    %v962 = vld [vmem:[%s0 + $0x138] sm:$0xff]
    %v963 = vld [vmem:[%s0 + $0x140] sm:$0xff]
    %v964 = vld [vmem:[%s0 + $0x148] sm:$0xff]
    %v965 = vld [vmem:[%s0 + $0x150] sm:$0xff]
    %v966 = vld [vmem:[%s0 + $0x158] sm:$0xff]
    %v967 = vld [vmem:[%s0 + $0x160] sm:$0xff]
    %v968 = vld [vmem:[%s0 + $0x168] sm:$0xff]
    %v969 = vld [vmem:[%s0 + $0x170] sm:$0xff]
    %v970 = vld [vmem:[%s0 + $0x178] sm:$0xff]
    %v971 = vld [vmem:[%s0 + $0x180] sm:$0xff]
    %v972 = vld [vmem:[%s0 + $0x188] sm:$0xff]
    %v973 = vld [vmem:[%s0 + $0x190] sm:$0xff]
    %v974 = vld [vmem:[%s0 + $0x198] sm:$0xff]
    %v975 = vld [vmem:[%s0 + $0x1a0] sm:$0xff]
    %v976 = vld [vmem:[%s0 + $0x1a8] sm:$0xff]
    %v977 = vld [vmem:[%s0 + $0x1b0] sm:$0xff]
    %v978 = vld [vmem:[%s0 + $0x1b8] sm:$0xff]
    %v979 = vld [vmem:[%s0 + $0x1c0] sm:$0xff]
    %v980 = vld [vmem:[%s0 + $0x1c8] sm:$0xff]
    %v981 = vld [vmem:[%s0 + $0x1d0] sm:$0xff]
    %v982 = vld [vmem:[%s0 + $0x1d8] sm:$0xff]
    %v983 = vld [vmem:[%s0 + $0x1e0] sm:$0xff]
    %v984 = vld [vmem:[%s0 + $0x1e8] sm:$0xff]
    %v985 = vld [vmem:[%s0 + $0x1f0] sm:$0xff]
    %v986 = vld [vmem:[%s0 + $0x1f8] sm:$0xff]
    %v987 = vld [vmem:[%s1] sm:$0x7]
    %v988 = vld [vmem:[%s1 + $0x8] sm:$0x7]
    %vm989 = vcmask 23552
    %v991 = vsel %vm989, %v923, 0
    %v994 = vsel %vm989, %v924, 0
    %v997 = vsel %vm989, %v925, 0
    %v1000 = vsel %vm989, %v926, 0
    %v1003 = vsel %vm989, %v927, 0
    %v1006 = vsel %vm989, %v928, 0
    %v1009 = vsel %vm989, %v929, 0
    %v1012 = vsel %vm989, %v930, 0
    %v1015 = vsel %vm989, %v931, 0
    %v1018 = vsel %vm989, %v932, 0
    %v1021 = vsel %vm989, %v933, 0
    %v1024 = vsel %vm989, %v934, 0
    %v1027 = vsel %vm989, %v935, 0
    %v1030 = vsel %vm989, %v936, 0
    %v1033 = vsel %vm989, %v937, 0
    %v1036 = vsel %vm989, %v938, 0
    %v1039 = vsel %vm989, %v939, 0
    %v1042 = vsel %vm989, %v940, 0
    %v1045 = vsel %vm989, %v941, 0
    %v1048 = vsel %vm989, %v942, 0
    %v1051 = vsel %vm989, %v943, 0
    %v1054 = vsel %vm989, %v944, 0
    %v1057 = vsel %vm989, %v945, 0
    %v1060 = vsel %vm989, %v946, 0
    %v1063 = vsel %vm989, %v947, 0
    %v1066 = vsel %vm989, %v948, 0
    %v1069 = vsel %vm989, %v949, 0
    %v1072 = vsel %vm989, %v950, 0
    %v1075 = vsel %vm989, %v951, 0
    %v1078 = vsel %vm989, %v952, 0
    %v1081 = vsel %vm989, %v953, 0
    %v1084 = vsel %vm989, %v954, 0
    %v1087 = vsel %vm989, %v955, 0
    %v1090 = vsel %vm989, %v956, 0
    %v1093 = vsel %vm989, %v957, 0
    %v1096 = vsel %vm989, %v958, 0
    %v1099 = vsel %vm989, %v959, 0
    %v1102 = vsel %vm989, %v960, 0
    %v1105 = vsel %vm989, %v961, 0
    %v1108 = vsel %vm989, %v962, 0
    %v1111 = vsel %vm989, %v963, 0
    %v1114 = vsel %vm989, %v964, 0
    %v1117 = vsel %vm989, %v965, 0
    %v1120 = vsel %vm989, %v966, 0
    %v1123 = vsel %vm989, %v967, 0
    %v1126 = vsel %vm989, %v968, 0
    %v1129 = vsel %vm989, %v969, 0
    %v1132 = vsel %vm989, %v970, 0
    %v1135 = vsel %vm989, %v971, 0
    %v1138 = vsel %vm989, %v972, 0
    %v1141 = vsel %vm989, %v973, 0
    %v1144 = vsel %vm989, %v974, 0
    %v1147 = vsel %vm989, %v975, 0
    %v1150 = vsel %vm989, %v976, 0
    %v1153 = vsel %vm989, %v977, 0
    %v1156 = vsel %vm989, %v978, 0
    %v1159 = vsel %vm989, %v979, 0
    %v1162 = vsel %vm989, %v980, 0
    %v1165 = vsel %vm989, %v981, 0
    %v1168 = vsel %vm989, %v982, 0
    %v1171 = vsel %vm989, %v983, 0
    %v1174 = vsel %vm989, %v984, 0
    %v1177 = vsel %vm989, %v985, 0
    %v1180 = vsel %vm989, %v986, 0
    %vm1182 = vcmask 1042432
    %v1184 = vsel %vm1182, %v987, 0
    %v1187 = vsel %vm1182, %v988, 0
    %1189 = vmatpush.msra.mxu0 0.0
    %1190 = vmatpush.msra.mxu0 0.0
    %1191 = vmatpush.msra.mxu0 0.0
    %1192 = vmatpush.msra.mxu0 0.0
    %1193 = vmatpush.msra.mxu0 0.0
    %1194 = vmatpush.msra.mxu0 0.0
    %1195 = vmatpush.msra.mxu0 0.0
    %1196 = vmatpush.msra.mxu0 0.0
    %1197 = vmatpush.msra.mxu0 0.0
    %1198 = vmatpush.msra.mxu0 0.0
    %1199 = vmatpush.msra.mxu0 0.0
    %1200 = vmatpush.msra.mxu0 0.0
    %1201 = vmatpush.msra.mxu0 0.0
    %1202 = vmatpush.msra.mxu0 0.0
    %1203 = vmatpush.msra.mxu0 0.0
    %1204 = vmatpush.msra.mxu0 %v1184
    %1205 = vmatmul.f32.gmra.mxu0 %v991
    %v1206 = vpop.f32.mrf.mxu0
    %v1207 = vadd.f32 0.0, %v1206
    %1208 = vmatmul.f32.gmra.mxu0 %v994
    %v1209 = vpop.f32.mrf.mxu0
    %v1210 = vadd.f32 0.0, %v1209
    %1211 = vmatmul.f32.gmra.mxu0 %v997
    %v1212 = vpop.f32.mrf.mxu0
    %v1213 = vadd.f32 0.0, %v1212
    %1214 = vmatmul.f32.gmra.mxu0 %v1000
    %v1215 = vpop.f32.mrf.mxu0
    %v1216 = vadd.f32 0.0, %v1215
    %1217 = vmatmul.f32.gmra.mxu0 %v1003
    %v1218 = vpop.f32.mrf.mxu0
    %v1219 = vadd.f32 0.0, %v1218
    %1220 = vmatmul.f32.gmra.mxu0 %v1006
    %v1221 = vpop.f32.mrf.mxu0
    %v1222 = vadd.f32 0.0, %v1221
    %1223 = vmatmul.f32.gmra.mxu0 %v1009
    %v1224 = vpop.f32.mrf.mxu0
    %v1225 = vadd.f32 0.0, %v1224
    %1226 = vmatmul.f32.gmra.mxu0 %v1012
    %v1227 = vpop.f32.mrf.mxu0
    %v1228 = vadd.f32 0.0, %v1227
    %1229 = vmatmul.f32.gmra.mxu0 %v1015
    %v1230 = vpop.f32.mrf.mxu0
    %v1231 = vadd.f32 0.0, %v1230
    %1232 = vmatmul.f32.gmra.mxu0 %v1018
    %v1233 = vpop.f32.mrf.mxu0
    %v1234 = vadd.f32 0.0, %v1233
    %1235 = vmatmul.f32.gmra.mxu0 %v1021
    %v1236 = vpop.f32.mrf.mxu0
    %v1237 = vadd.f32 0.0, %v1236
    %1238 = vmatmul.f32.gmra.mxu0 %v1024
    %v1239 = vpop.f32.mrf.mxu0
    %v1240 = vadd.f32 0.0, %v1239
    %1241 = vmatmul.f32.gmra.mxu0 %v1027
    %v1242 = vpop.f32.mrf.mxu0
    %v1243 = vadd.f32 0.0, %v1242
    %1244 = vmatmul.f32.gmra.mxu0 %v1030
    %v1245 = vpop.f32.mrf.mxu0
    %v1246 = vadd.f32 0.0, %v1245
    %1247 = vmatmul.f32.gmra.mxu0 %v1033
    %v1248 = vpop.f32.mrf.mxu0
    %v1249 = vadd.f32 0.0, %v1248
    %1250 = vmatmul.f32.gmra.mxu0 %v1036
    %v1251 = vpop.f32.mrf.mxu0
    %v1252 = vadd.f32 0.0, %v1251
    %1253 = vmatmul.f32.gmra.mxu0 %v1039
    %v1254 = vpop.f32.mrf.mxu0
    %v1255 = vadd.f32 0.0, %v1254
    %1256 = vmatmul.f32.gmra.mxu0 %v1042
    %v1257 = vpop.f32.mrf.mxu0
    %v1258 = vadd.f32 0.0, %v1257
    %1259 = vmatmul.f32.gmra.mxu0 %v1045
    %v1260 = vpop.f32.mrf.mxu0
    %v1261 = vadd.f32 0.0, %v1260
    %1262 = vmatmul.f32.gmra.mxu0 %v1048
    %v1263 = vpop.f32.mrf.mxu0
    %v1264 = vadd.f32 0.0, %v1263
    %1265 = vmatmul.f32.gmra.mxu0 %v1051
    %v1266 = vpop.f32.mrf.mxu0
    %v1267 = vadd.f32 0.0, %v1266
    %1268 = vmatmul.f32.gmra.mxu0 %v1054
    %v1269 = vpop.f32.mrf.mxu0
    %v1270 = vadd.f32 0.0, %v1269
    %1271 = vmatmul.f32.gmra.mxu0 %v1057
    %v1272 = vpop.f32.mrf.mxu0
    %v1273 = vadd.f32 0.0, %v1272
    %1274 = vmatmul.f32.gmra.mxu0 %v1060
    %v1275 = vpop.f32.mrf.mxu0
    %v1276 = vadd.f32 0.0, %v1275
    %1277 = vmatmul.f32.gmra.mxu0 %v1063
    %v1278 = vpop.f32.mrf.mxu0
    %v1279 = vadd.f32 0.0, %v1278
    %1280 = vmatmul.f32.gmra.mxu0 %v1066
    %v1281 = vpop.f32.mrf.mxu0
    %v1282 = vadd.f32 0.0, %v1281
    %1283 = vmatmul.f32.gmra.mxu0 %v1069
    %v1284 = vpop.f32.mrf.mxu0
    %v1285 = vadd.f32 0.0, %v1284
    %1286 = vmatmul.f32.gmra.mxu0 %v1072
    %v1287 = vpop.f32.mrf.mxu0
    %v1288 = vadd.f32 0.0, %v1287
    %1289 = vmatmul.f32.gmra.mxu0 %v1075
    %v1290 = vpop.f32.mrf.mxu0
    %v1291 = vadd.f32 0.0, %v1290
    %1292 = vmatmul.f32.gmra.mxu0 %v1078
    %v1293 = vpop.f32.mrf.mxu0
    %v1294 = vadd.f32 0.0, %v1293
    %1295 = vmatmul.f32.gmra.mxu0 %v1081
    %v1296 = vpop.f32.mrf.mxu0
    %v1297 = vadd.f32 0.0, %v1296
    %1298 = vmatmul.f32.gmra.mxu0 %v1084
    %v1299 = vpop.f32.mrf.mxu0
    %v1300 = vadd.f32 0.0, %v1299
    %1301 = vmatmul.f32.gmra.mxu0 %v1087
    %v1302 = vpop.f32.mrf.mxu0
    %v1303 = vadd.f32 0.0, %v1302
    %1304 = vmatmul.f32.gmra.mxu0 %v1090
    %v1305 = vpop.f32.mrf.mxu0
    %v1306 = vadd.f32 0.0, %v1305
    %1307 = vmatmul.f32.gmra.mxu0 %v1093
    %v1308 = vpop.f32.mrf.mxu0
    %v1309 = vadd.f32 0.0, %v1308
    %1310 = vmatmul.f32.gmra.mxu0 %v1096
    %v1311 = vpop.f32.mrf.mxu0
    %v1312 = vadd.f32 0.0, %v1311
    %1313 = vmatmul.f32.gmra.mxu0 %v1099
    %v1314 = vpop.f32.mrf.mxu0
    %v1315 = vadd.f32 0.0, %v1314
    %1316 = vmatmul.f32.gmra.mxu0 %v1102
    %v1317 = vpop.f32.mrf.mxu0
    %v1318 = vadd.f32 0.0, %v1317
    %1319 = vmatmul.f32.gmra.mxu0 %v1105
    %v1320 = vpop.f32.mrf.mxu0
    %v1321 = vadd.f32 0.0, %v1320
    %1322 = vmatmul.f32.gmra.mxu0 %v1108
    %v1323 = vpop.f32.mrf.mxu0
    %v1324 = vadd.f32 0.0, %v1323
    %1325 = vmatmul.f32.gmra.mxu0 %v1111
    %v1326 = vpop.f32.mrf.mxu0
    %v1327 = vadd.f32 0.0, %v1326
    %1328 = vmatmul.f32.gmra.mxu0 %v1114
    %v1329 = vpop.f32.mrf.mxu0
    %v1330 = vadd.f32 0.0, %v1329
    %1331 = vmatmul.f32.gmra.mxu0 %v1117
    %v1332 = vpop.f32.mrf.mxu0
    %v1333 = vadd.f32 0.0, %v1332
    %1334 = vmatmul.f32.gmra.mxu0 %v1120
    %v1335 = vpop.f32.mrf.mxu0
    %v1336 = vadd.f32 0.0, %v1335
    %1337 = vmatmul.f32.gmra.mxu0 %v1123
    %v1338 = vpop.f32.mrf.mxu0
    %v1339 = vadd.f32 0.0, %v1338
    %1340 = vmatmul.f32.gmra.mxu0 %v1126
    %v1341 = vpop.f32.mrf.mxu0
    %v1342 = vadd.f32 0.0, %v1341
    %1343 = vmatmul.f32.gmra.mxu0 %v1129
    %v1344 = vpop.f32.mrf.mxu0
    %v1345 = vadd.f32 0.0, %v1344
    %1346 = vmatmul.f32.gmra.mxu0 %v1132
    %v1347 = vpop.f32.mrf.mxu0
    %v1348 = vadd.f32 0.0, %v1347
    %1349 = vmatmul.f32.gmra.mxu0 %v1135
    %v1350 = vpop.f32.mrf.mxu0
    %v1351 = vadd.f32 0.0, %v1350
    %1352 = vmatmul.f32.gmra.mxu0 %v1138
    %v1353 = vpop.f32.mrf.mxu0
    %v1354 = vadd.f32 0.0, %v1353
    %1355 = vmatmul.f32.gmra.mxu0 %v1141
    %v1356 = vpop.f32.mrf.mxu0
    %v1357 = vadd.f32 0.0, %v1356
    %1358 = vmatmul.f32.gmra.mxu0 %v1144
    %v1359 = vpop.f32.mrf.mxu0
    %v1360 = vadd.f32 0.0, %v1359
    %1361 = vmatmul.f32.gmra.mxu0 %v1147
    %v1362 = vpop.f32.mrf.mxu0
    %v1363 = vadd.f32 0.0, %v1362
    %1364 = vmatmul.f32.gmra.mxu0 %v1150
    %v1365 = vpop.f32.mrf.mxu0
    %v1366 = vadd.f32 0.0, %v1365
    %1367 = vmatmul.f32.gmra.mxu0 %v1153
    %v1368 = vpop.f32.mrf.mxu0
    %v1369 = vadd.f32 0.0, %v1368
    %1370 = vmatmul.f32.gmra.mxu0 %v1156
    %v1371 = vpop.f32.mrf.mxu0
    %v1372 = vadd.f32 0.0, %v1371
    %1373 = vmatmul.f32.gmra.mxu0 %v1159
    %v1374 = vpop.f32.mrf.mxu0
    %v1375 = vadd.f32 0.0, %v1374
    %1376 = vmatmul.f32.gmra.mxu0 %v1162
    %v1377 = vpop.f32.mrf.mxu0
    %v1378 = vadd.f32 0.0, %v1377
    %1379 = vmatmul.f32.gmra.mxu0 %v1165
    %v1380 = vpop.f32.mrf.mxu0
    %v1381 = vadd.f32 0.0, %v1380
    %1382 = vmatmul.f32.gmra.mxu0 %v1168
    %v1383 = vpop.f32.mrf.mxu0
    %v1384 = vadd.f32 0.0, %v1383
    %1385 = vmatmul.f32.gmra.mxu0 %v1171
    %v1386 = vpop.f32.mrf.mxu0
    %v1387 = vadd.f32 0.0, %v1386
    %1388 = vmatmul.f32.gmra.mxu0 %v1174
    %v1389 = vpop.f32.mrf.mxu0
    %v1390 = vadd.f32 0.0, %v1389
    %1391 = vmatmul.f32.gmra.mxu0 %v1177
    %v1392 = vpop.f32.mrf.mxu0
    %v1393 = vadd.f32 0.0, %v1392
    %1394 = vmatmul.f32.gmra.mxu0 %v1180
    %v1395 = vpop.f32.mrf.mxu0
    %v1396 = vadd.f32 0.0, %v1395
    %1397 = vdwg.mxu0
    %1398 = vmatpush.msra.mxu0 0.0
    %1399 = vmatpush.msra.mxu0 0.0
    %1400 = vmatpush.msra.mxu0 0.0
    %1401 = vmatpush.msra.mxu0 0.0
    %1402 = vmatpush.msra.mxu0 0.0
    %1403 = vmatpush.msra.mxu0 0.0
    %1404 = vmatpush.msra.mxu0 0.0
    %1405 = vmatpush.msra.mxu0 0.0
    %1406 = vmatpush.msra.mxu0 0.0
    %1407 = vmatpush.msra.mxu0 0.0
    %1408 = vmatpush.msra.mxu0 0.0
    %1409 = vmatpush.msra.mxu0 0.0
    %1410 = vmatpush.msra.mxu0 0.0
    %1411 = vmatpush.msra.mxu0 0.0
    %1412 = vmatpush.msra.mxu0 0.0
    %1413 = vmatpush.msra.mxu0 %v1187
    %1414 = vmatmul.f32.gmra.mxu0 %v991
    %v1415 = vpop.f32.mrf.mxu0
    %v1416 = vadd.f32 0.0, %v1415
    %1417 = vmatmul.f32.gmra.mxu0 %v994
    %v1418 = vpop.f32.mrf.mxu0
    %v1419 = vadd.f32 0.0, %v1418
    %1420 = vmatmul.f32.gmra.mxu0 %v997
    %v1421 = vpop.f32.mrf.mxu0
    %v1422 = vadd.f32 0.0, %v1421
    %1423 = vmatmul.f32.gmra.mxu0 %v1000
    %v1424 = vpop.f32.mrf.mxu0
    %v1425 = vadd.f32 0.0, %v1424
    %1426 = vmatmul.f32.gmra.mxu0 %v1003
    %v1427 = vpop.f32.mrf.mxu0
    %v1428 = vadd.f32 0.0, %v1427
    %1429 = vmatmul.f32.gmra.mxu0 %v1006
    %v1430 = vpop.f32.mrf.mxu0
    %v1431 = vadd.f32 0.0, %v1430
    %1432 = vmatmul.f32.gmra.mxu0 %v1009
    %v1433 = vpop.f32.mrf.mxu0
    %v1434 = vadd.f32 0.0, %v1433
    %1435 = vmatmul.f32.gmra.mxu0 %v1012
    %v1436 = vpop.f32.mrf.mxu0
    %v1437 = vadd.f32 0.0, %v1436
    %1438 = vmatmul.f32.gmra.mxu0 %v1015
    %v1439 = vpop.f32.mrf.mxu0
    %v1440 = vadd.f32 0.0, %v1439
    %1441 = vmatmul.f32.gmra.mxu0 %v1018
    %v1442 = vpop.f32.mrf.mxu0
    %v1443 = vadd.f32 0.0, %v1442
    %1444 = vmatmul.f32.gmra.mxu0 %v1021
    %v1445 = vpop.f32.mrf.mxu0
    %v1446 = vadd.f32 0.0, %v1445
    %1447 = vmatmul.f32.gmra.mxu0 %v1024
    %v1448 = vpop.f32.mrf.mxu0
    %v1449 = vadd.f32 0.0, %v1448
    %1450 = vmatmul.f32.gmra.mxu0 %v1027
    %v1451 = vpop.f32.mrf.mxu0
    %v1452 = vadd.f32 0.0, %v1451
    %1453 = vmatmul.f32.gmra.mxu0 %v1030
    %v1454 = vpop.f32.mrf.mxu0
    %v1455 = vadd.f32 0.0, %v1454
    %1456 = vmatmul.f32.gmra.mxu0 %v1033
    %v1457 = vpop.f32.mrf.mxu0
    %v1458 = vadd.f32 0.0, %v1457
    %1459 = vmatmul.f32.gmra.mxu0 %v1036
    %v1460 = vpop.f32.mrf.mxu0
    %v1461 = vadd.f32 0.0, %v1460
    %1462 = vmatmul.f32.gmra.mxu0 %v1039
    %v1463 = vpop.f32.mrf.mxu0
    %v1464 = vadd.f32 0.0, %v1463
    %1465 = vmatmul.f32.gmra.mxu0 %v1042
    %v1466 = vpop.f32.mrf.mxu0
    %v1467 = vadd.f32 0.0, %v1466
    %1468 = vmatmul.f32.gmra.mxu0 %v1045
    %v1469 = vpop.f32.mrf.mxu0
    %v1470 = vadd.f32 0.0, %v1469
    %1471 = vmatmul.f32.gmra.mxu0 %v1048
    %v1472 = vpop.f32.mrf.mxu0
    %v1473 = vadd.f32 0.0, %v1472
    %1474 = vmatmul.f32.gmra.mxu0 %v1051
    %v1475 = vpop.f32.mrf.mxu0
    %v1476 = vadd.f32 0.0, %v1475
    %1477 = vmatmul.f32.gmra.mxu0 %v1054
    %v1478 = vpop.f32.mrf.mxu0
    %v1479 = vadd.f32 0.0, %v1478
    %1480 = vmatmul.f32.gmra.mxu0 %v1057
    %v1481 = vpop.f32.mrf.mxu0
    %v1482 = vadd.f32 0.0, %v1481
    %1483 = vmatmul.f32.gmra.mxu0 %v1060
    %v1484 = vpop.f32.mrf.mxu0
    %v1485 = vadd.f32 0.0, %v1484
    %1486 = vmatmul.f32.gmra.mxu0 %v1063
    %v1487 = vpop.f32.mrf.mxu0
    %v1488 = vadd.f32 0.0, %v1487
    %1489 = vmatmul.f32.gmra.mxu0 %v1066
    %v1490 = vpop.f32.mrf.mxu0
    %v1491 = vadd.f32 0.0, %v1490
    %1492 = vmatmul.f32.gmra.mxu0 %v1069
    %v1493 = vpop.f32.mrf.mxu0
    %v1494 = vadd.f32 0.0, %v1493
    %1495 = vmatmul.f32.gmra.mxu0 %v1072
    %v1496 = vpop.f32.mrf.mxu0
    %v1497 = vadd.f32 0.0, %v1496
    %1498 = vmatmul.f32.gmra.mxu0 %v1075
    %v1499 = vpop.f32.mrf.mxu0
    %v1500 = vadd.f32 0.0, %v1499
    %1501 = vmatmul.f32.gmra.mxu0 %v1078
    %v1502 = vpop.f32.mrf.mxu0
    %v1503 = vadd.f32 0.0, %v1502
    %1504 = vmatmul.f32.gmra.mxu0 %v1081
    %v1505 = vpop.f32.mrf.mxu0
    %v1506 = vadd.f32 0.0, %v1505
    %1507 = vmatmul.f32.gmra.mxu0 %v1084
    %v1508 = vpop.f32.mrf.mxu0
    %v1509 = vadd.f32 0.0, %v1508
    %1510 = vmatmul.f32.gmra.mxu0 %v1087
    %v1511 = vpop.f32.mrf.mxu0
    %v1512 = vadd.f32 0.0, %v1511
    %1513 = vmatmul.f32.gmra.mxu0 %v1090
    %v1514 = vpop.f32.mrf.mxu0
    %v1515 = vadd.f32 0.0, %v1514
    %1516 = vmatmul.f32.gmra.mxu0 %v1093
    %v1517 = vpop.f32.mrf.mxu0
    %v1518 = vadd.f32 0.0, %v1517
    %1519 = vmatmul.f32.gmra.mxu0 %v1096
    %v1520 = vpop.f32.mrf.mxu0
    %v1521 = vadd.f32 0.0, %v1520
    %1522 = vmatmul.f32.gmra.mxu0 %v1099
    %v1523 = vpop.f32.mrf.mxu0
    %v1524 = vadd.f32 0.0, %v1523
    %1525 = vmatmul.f32.gmra.mxu0 %v1102
    %v1526 = vpop.f32.mrf.mxu0
    %v1527 = vadd.f32 0.0, %v1526
    %1528 = vmatmul.f32.gmra.mxu0 %v1105
    %v1529 = vpop.f32.mrf.mxu0
    %v1530 = vadd.f32 0.0, %v1529
    %1531 = vmatmul.f32.gmra.mxu0 %v1108
    %v1532 = vpop.f32.mrf.mxu0
    %v1533 = vadd.f32 0.0, %v1532
    %1534 = vmatmul.f32.gmra.mxu0 %v1111
    %v1535 = vpop.f32.mrf.mxu0
    %v1536 = vadd.f32 0.0, %v1535
    %1537 = vmatmul.f32.gmra.mxu0 %v1114
    %v1538 = vpop.f32.mrf.mxu0
    %v1539 = vadd.f32 0.0, %v1538
    %1540 = vmatmul.f32.gmra.mxu0 %v1117
    %v1541 = vpop.f32.mrf.mxu0
    %v1542 = vadd.f32 0.0, %v1541
    %1543 = vmatmul.f32.gmra.mxu0 %v1120
    %v1544 = vpop.f32.mrf.mxu0
    %v1545 = vadd.f32 0.0, %v1544
    %1546 = vmatmul.f32.gmra.mxu0 %v1123
    %v1547 = vpop.f32.mrf.mxu0
    %v1548 = vadd.f32 0.0, %v1547
    %1549 = vmatmul.f32.gmra.mxu0 %v1126
    %v1550 = vpop.f32.mrf.mxu0
    %v1551 = vadd.f32 0.0, %v1550
    %1552 = vmatmul.f32.gmra.mxu0 %v1129
    %v1553 = vpop.f32.mrf.mxu0
    %v1554 = vadd.f32 0.0, %v1553
    %1555 = vmatmul.f32.gmra.mxu0 %v1132
    %v1556 = vpop.f32.mrf.mxu0
    %v1557 = vadd.f32 0.0, %v1556
    %1558 = vmatmul.f32.gmra.mxu0 %v1135
    %v1559 = vpop.f32.mrf.mxu0
    %v1560 = vadd.f32 0.0, %v1559
    %1561 = vmatmul.f32.gmra.mxu0 %v1138
    %v1562 = vpop.f32.mrf.mxu0
    %v1563 = vadd.f32 0.0, %v1562
    %1564 = vmatmul.f32.gmra.mxu0 %v1141
    %v1565 = vpop.f32.mrf.mxu0
    %v1566 = vadd.f32 0.0, %v1565
    %1567 = vmatmul.f32.gmra.mxu0 %v1144
    %v1568 = vpop.f32.mrf.mxu0
    %v1569 = vadd.f32 0.0, %v1568
    %1570 = vmatmul.f32.gmra.mxu0 %v1147
    %v1571 = vpop.f32.mrf.mxu0
    %v1572 = vadd.f32 0.0, %v1571
    %1573 = vmatmul.f32.gmra.mxu0 %v1150
    %v1574 = vpop.f32.mrf.mxu0
    %v1575 = vadd.f32 0.0, %v1574
    %1576 = vmatmul.f32.gmra.mxu0 %v1153
    %v1577 = vpop.f32.mrf.mxu0
    %v1578 = vadd.f32 0.0, %v1577
    %1579 = vmatmul.f32.gmra.mxu0 %v1156
    %v1580 = vpop.f32.mrf.mxu0
    %v1581 = vadd.f32 0.0, %v1580
    %1582 = vmatmul.f32.gmra.mxu0 %v1159
    %v1583 = vpop.f32.mrf.mxu0
    %v1584 = vadd.f32 0.0, %v1583
    %1585 = vmatmul.f32.gmra.mxu0 %v1162
    %v1586 = vpop.f32.mrf.mxu0
    %v1587 = vadd.f32 0.0, %v1586
    %1588 = vmatmul.f32.gmra.mxu0 %v1165
    %v1589 = vpop.f32.mrf.mxu0
    %v1590 = vadd.f32 0.0, %v1589
    %1591 = vmatmul.f32.gmra.mxu0 %v1168
    %v1592 = vpop.f32.mrf.mxu0
    %v1593 = vadd.f32 0.0, %v1592
    %1594 = vmatmul.f32.gmra.mxu0 %v1171
    %v1595 = vpop.f32.mrf.mxu0
    %v1596 = vadd.f32 0.0, %v1595
    %1597 = vmatmul.f32.gmra.mxu0 %v1174
    %v1598 = vpop.f32.mrf.mxu0
    %v1599 = vadd.f32 0.0, %v1598
    %1600 = vmatmul.f32.gmra.mxu0 %v1177
    %v1601 = vpop.f32.mrf.mxu0
    %v1602 = vadd.f32 0.0, %v1601
    %1603 = vmatmul.f32.gmra.mxu0 %v1180
    %v1604 = vpop.f32.mrf.mxu0
    %v1605 = vadd.f32 0.0, %v1604
    %1606 = vdwg.mxu0
    %vm1610 = vcmask 1040384
    %v1611 = vrot.slane %v1390, 7
    %v1612 = vrot.slane %v1393, 7
    %v1613 = vsel %vm1610, %v1611, %v1612
    %v1614 = vrot.slane %v1396, 7
    %v1615 = vsel %vm1610, %v1612, %v1614
    %v1680 = vrot.slane %v1207, 7
    %v1681 = vrot.slane %v1210, 7
    %v1682 = vsel %vm1610, %v1680, %v1681
    %v1683 = vrot.slane %v1213, 7
    %v1684 = vsel %vm1610, %v1681, %v1683
    %v1685 = vrot.slane %v1216, 7
    %v1686 = vsel %vm1610, %v1683, %v1685
    %v1687 = vrot.slane %v1219, 7
    %v1688 = vsel %vm1610, %v1685, %v1687
    %v1689 = vrot.slane %v1222, 7
    %v1690 = vsel %vm1610, %v1687, %v1689
    %v1691 = vrot.slane %v1225, 7
    %v1692 = vsel %vm1610, %v1689, %v1691
    %v1693 = vrot.slane %v1228, 7
    %v1694 = vsel %vm1610, %v1691, %v1693
    %v1695 = vrot.slane %v1231, 7
    %v1696 = vsel %vm1610, %v1693, %v1695
    %v1697 = vrot.slane %v1234, 7
    %v1698 = vsel %vm1610, %v1695, %v1697
    %v1699 = vrot.slane %v1237, 7
    %v1700 = vsel %vm1610, %v1697, %v1699
    %v1701 = vrot.slane %v1240, 7
    %v1702 = vsel %vm1610, %v1699, %v1701
    %v1703 = vrot.slane %v1243, 7
    %v1704 = vsel %vm1610, %v1701, %v1703
    %v1705 = vrot.slane %v1246, 7
    %v1706 = vsel %vm1610, %v1703, %v1705
    %v1707 = vrot.slane %v1249, 7
    %v1708 = vsel %vm1610, %v1705, %v1707
    %v1709 = vrot.slane %v1252, 7
    %v1710 = vsel %vm1610, %v1707, %v1709
    %v1711 = vrot.slane %v1255, 7
    %v1712 = vsel %vm1610, %v1709, %v1711
    %v1713 = vrot.slane %v1258, 7
    %v1714 = vsel %vm1610, %v1711, %v1713
    %v1715 = vrot.slane %v1261, 7
    %v1716 = vsel %vm1610, %v1713, %v1715
    %v1717 = vrot.slane %v1264, 7
    %v1718 = vsel %vm1610, %v1715, %v1717
    %v1719 = vrot.slane %v1267, 7
    %v1720 = vsel %vm1610, %v1717, %v1719
    %v1721 = vrot.slane %v1270, 7
    %v1722 = vsel %vm1610, %v1719, %v1721
    %v1723 = vrot.slane %v1273, 7
    %v1724 = vsel %vm1610, %v1721, %v1723
    %v1725 = vrot.slane %v1276, 7
    %v1726 = vsel %vm1610, %v1723, %v1725
    %v1727 = vrot.slane %v1279, 7
    %v1728 = vsel %vm1610, %v1725, %v1727
    %v1729 = vrot.slane %v1282, 7
    %v1730 = vsel %vm1610, %v1727, %v1729
    %v1731 = vrot.slane %v1285, 7
    %v1732 = vsel %vm1610, %v1729, %v1731
    %v1733 = vrot.slane %v1288, 7
    %v1734 = vsel %vm1610, %v1731, %v1733
    %v1735 = vrot.slane %v1291, 7
    %v1736 = vsel %vm1610, %v1733, %v1735
    %v1737 = vrot.slane %v1294, 7
    %v1738 = vsel %vm1610, %v1735, %v1737
    %v1739 = vrot.slane %v1297, 7
    %v1740 = vsel %vm1610, %v1737, %v1739
    %v1741 = vrot.slane %v1300, 7
    %v1742 = vsel %vm1610, %v1739, %v1741
    %v1743 = vrot.slane %v1303, 7
    %v1744 = vsel %vm1610, %v1741, %v1743
    %v1745 = vrot.slane %v1306, 7
    %v1746 = vsel %vm1610, %v1743, %v1745
    %v1747 = vrot.slane %v1309, 7
    %v1748 = vsel %vm1610, %v1745, %v1747
    %v1749 = vrot.slane %v1312, 7
    %v1750 = vsel %vm1610, %v1747, %v1749
    %v1751 = vrot.slane %v1315, 7
    %v1752 = vsel %vm1610, %v1749, %v1751
    %v1753 = vrot.slane %v1318, 7
    %v1754 = vsel %vm1610, %v1751, %v1753
    %v1755 = vrot.slane %v1321, 7
    %v1756 = vsel %vm1610, %v1753, %v1755
    %v1757 = vrot.slane %v1324, 7
    %v1758 = vsel %vm1610, %v1755, %v1757
    %v1759 = vrot.slane %v1327, 7
    %v1760 = vsel %vm1610, %v1757, %v1759
    %v1761 = vrot.slane %v1330, 7
    %v1762 = vsel %vm1610, %v1759, %v1761
    %v1763 = vrot.slane %v1333, 7
    %v1764 = vsel %vm1610, %v1761, %v1763
    %v1765 = vrot.slane %v1336, 7
    %v1766 = vsel %vm1610, %v1763, %v1765
    %v1767 = vrot.slane %v1339, 7
    %v1768 = vsel %vm1610, %v1765, %v1767
    %v1769 = vrot.slane %v1342, 7
    %v1770 = vsel %vm1610, %v1767, %v1769
    %v1771 = vrot.slane %v1345, 7
    %v1772 = vsel %vm1610, %v1769, %v1771
    %v1773 = vrot.slane %v1348, 7
    %v1774 = vsel %vm1610, %v1771, %v1773
    %v1775 = vrot.slane %v1351, 7
    %v1776 = vsel %vm1610, %v1773, %v1775
    %v1777 = vrot.slane %v1354, 7
    %v1778 = vsel %vm1610, %v1775, %v1777
    %v1779 = vrot.slane %v1357, 7
    %v1780 = vsel %vm1610, %v1777, %v1779
    %v1781 = vrot.slane %v1360, 7
    %v1782 = vsel %vm1610, %v1779, %v1781
    %v1783 = vrot.slane %v1363, 7
    %v1784 = vsel %vm1610, %v1781, %v1783
    %v1785 = vrot.slane %v1366, 7
    %v1786 = vsel %vm1610, %v1783, %v1785
    %v1787 = vrot.slane %v1369, 7
    %v1788 = vsel %vm1610, %v1785, %v1787
    %v1789 = vrot.slane %v1372, 7
    %v1790 = vsel %vm1610, %v1787, %v1789
    %v1791 = vrot.slane %v1375, 7
    %v1792 = vsel %vm1610, %v1789, %v1791
    %v1793 = vrot.slane %v1378, 7
    %v1794 = vsel %vm1610, %v1791, %v1793
    %v1795 = vrot.slane %v1381, 7
    %v1796 = vsel %vm1610, %v1793, %v1795
    %v1797 = vrot.slane %v1384, 7
    %v1798 = vsel %vm1610, %v1795, %v1797
    %v1799 = vrot.slane %v1387, 7
    %v1800 = vsel %vm1610, %v1797, %v1799
    %v1801 = vsel %vm1610, %v1799, %v1611
    %v1864 = vsel %vm1610, %v1614, %v1680
    %vm1865 = vmand %vm667, %vm795
    %vm1866 = vmand %vm668, %vm796
    %vm1867 = vmand %vm669, %vm797
    %vm1868 = vmand %vm670, %vm798
    %vm1869 = vmand %vm671, %vm799
    %vm1870 = vmand %vm672, %vm800
    %vm1871 = vmand %vm673, %vm801
    %vm1872 = vmand %vm674, %vm802
    %vm1873 = vmand %vm675, %vm803
    %vm1874 = vmand %vm676, %vm804
    %vm1875 = vmand %vm677, %vm805
    %vm1876 = vmand %vm678, %vm806
    %vm1877 = vmand %vm679, %vm807
    %vm1878 = vmand %vm680, %vm808
    %vm1879 = vmand %vm681, %vm809
    %vm1880 = vmand %vm682, %vm810
    %vm1881 = vmand %vm683, %vm811
    %vm1882 = vmand %vm684, %vm812
    %vm1883 = vmand %vm685, %vm813
    %vm1884 = vmand %vm686, %vm814
    %vm1885 = vmand %vm687, %vm815
    %vm1886 = vmand %vm688, %vm816
    %vm1887 = vmand %vm689, %vm817
    %vm1888 = vmand %vm690, %vm818
    %vm1889 = vmand %vm691, %vm819
    %vm1890 = vmand %vm692, %vm820
    %vm1891 = vmand %vm693, %vm821
    %vm1892 = vmand %vm694, %vm822
    %vm1893 = vmand %vm695, %vm823
    %vm1894 = vmand %vm696, %vm824
    %vm1895 = vmand %vm697, %vm825
    %vm1896 = vmand %vm698, %vm826
    %vm1897 = vmand %vm699, %vm827
    %vm1898 = vmand %vm700, %vm828
    %vm1899 = vmand %vm701, %vm829
    %vm1900 = vmand %vm702, %vm830
    %vm1901 = vmand %vm703, %vm831
    %vm1902 = vmand %vm704, %vm832
    %vm1903 = vmand %vm705, %vm833
    %vm1904 = vmand %vm706, %vm834
    %vm1905 = vmand %vm707, %vm835
    %vm1906 = vmand %vm708, %vm836
    %vm1907 = vmand %vm709, %vm837
    %vm1908 = vmand %vm710, %vm838
    %vm1909 = vmand %vm711, %vm839
    %vm1910 = vmand %vm712, %vm840
    %vm1911 = vmand %vm713, %vm841
    %vm1912 = vmand %vm714, %vm842
    %vm1913 = vmand %vm715, %vm843
    %vm1914 = vmand %vm716, %vm844
    %vm1915 = vmand %vm717, %vm845
    %vm1916 = vmand %vm718, %vm846
    %vm1917 = vmand %vm719, %vm847
    %vm1918 = vmand %vm720, %vm848
    %vm1919 = vmand %vm721, %vm849
    %vm1920 = vmand %vm722, %vm850
    %vm1921 = vmand %vm723, %vm851
    %vm1922 = vmand %vm724, %vm852
    %vm1923 = vmand %vm725, %vm853
    %vm1924 = vmand %vm726, %vm854
    %vm1925 = vmand %vm727, %vm855
    %vm1926 = vmand %vm728, %vm856
    %vm1927 = vmand %vm729, %vm857
    %vm1928 = vmand %vm730, %vm858
    %v1929 = vsel %vm1865, 1, 0
    %v1930 = vsel %vm1866, 1, 0
    %v1931 = vsel %vm1867, 1, 0
    %v1932 = vsel %vm1868, 1, 0
    %v1933 = vsel %vm1869, 1, 0
    %v1934 = vsel %vm1870, 1, 0
    %v1935 = vsel %vm1871, 1, 0
    %v1936 = vsel %vm1872, 1, 0
    %v1937 = vsel %vm1873, 1, 0
    %v1938 = vsel %vm1874, 1, 0
    %v1939 = vsel %vm1875, 1, 0
    %v1940 = vsel %vm1876, 1, 0
    %v1941 = vsel %vm1877, 1, 0
    %v1942 = vsel %vm1878, 1, 0
    %v1943 = vsel %vm1879, 1, 0
    %v1944 = vsel %vm1880, 1, 0
    %v1945 = vsel %vm1881, 1, 0
    %v1946 = vsel %vm1882, 1, 0
    %v1947 = vsel %vm1883, 1, 0
    %v1948 = vsel %vm1884, 1, 0
    %v1949 = vsel %vm1885, 1, 0
    %v1950 = vsel %vm1886, 1, 0
    %v1951 = vsel %vm1887, 1, 0
    %v1952 = vsel %vm1888, 1, 0
    %v1953 = vsel %vm1889, 1, 0
    %v1954 = vsel %vm1890, 1, 0
    %v1955 = vsel %vm1891, 1, 0
    %v1956 = vsel %vm1892, 1, 0
    %v1957 = vsel %vm1893, 1, 0
    %v1958 = vsel %vm1894, 1, 0
    %v1959 = vsel %vm1895, 1, 0
    %v1960 = vsel %vm1896, 1, 0
    %v1961 = vsel %vm1897, 1, 0
    %v1962 = vsel %vm1898, 1, 0
    %v1963 = vsel %vm1899, 1, 0
    %v1964 = vsel %vm1900, 1, 0
    %v1965 = vsel %vm1901, 1, 0
    %v1966 = vsel %vm1902, 1, 0
    %v1967 = vsel %vm1903, 1, 0
    %v1968 = vsel %vm1904, 1, 0
    %v1969 = vsel %vm1905, 1, 0
    %v1970 = vsel %vm1906, 1, 0
    %v1971 = vsel %vm1907, 1, 0
    %v1972 = vsel %vm1908, 1, 0
    %v1973 = vsel %vm1909, 1, 0
    %v1974 = vsel %vm1910, 1, 0
    %v1975 = vsel %vm1911, 1, 0
    %v1976 = vsel %vm1912, 1, 0
    %v1977 = vsel %vm1913, 1, 0
    %v1978 = vsel %vm1914, 1, 0
    %v1979 = vsel %vm1915, 1, 0
    %v1980 = vsel %vm1916, 1, 0
    %v1981 = vsel %vm1917, 1, 0
    %v1982 = vsel %vm1918, 1, 0
    %v1983 = vsel %vm1919, 1, 0
    %v1984 = vsel %vm1920, 1, 0
    %v1985 = vsel %vm1921, 1, 0
    %v1986 = vsel %vm1922, 1, 0
    %v1987 = vsel %vm1923, 1, 0
    %v1988 = vsel %vm1924, 1, 0
    %v1989 = vsel %vm1925, 1, 0
    %v1990 = vsel %vm1926, 1, 0
    %v1991 = vsel %vm1927, 1, 0
    %v1992 = vsel %vm1928, 1, 0
    %vm1993 = vcmp.eq.s32.totalorder %v1929, 1
    %vm1994 = vcmp.eq.s32.totalorder %v1930, 1
    %vm1995 = vcmp.eq.s32.totalorder %v1931, 1
    %vm1996 = vcmp.eq.s32.totalorder %v1932, 1
    %vm1997 = vcmp.eq.s32.totalorder %v1933, 1
    %vm1998 = vcmp.eq.s32.totalorder %v1934, 1
    %vm1999 = vcmp.eq.s32.totalorder %v1935, 1
    %vm2000 = vcmp.eq.s32.totalorder %v1936, 1
    %vm2001 = vcmp.eq.s32.totalorder %v1937, 1
    %vm2002 = vcmp.eq.s32.totalorder %v1938, 1
    %vm2003 = vcmp.eq.s32.totalorder %v1939, 1
    %vm2004 = vcmp.eq.s32.totalorder %v1940, 1
    %vm2005 = vcmp.eq.s32.totalorder %v1941, 1
    %vm2006 = vcmp.eq.s32.totalorder %v1942, 1
    %vm2007 = vcmp.eq.s32.totalorder %v1943, 1
    %vm2008 = vcmp.eq.s32.totalorder %v1944, 1
    %vm2009 = vcmp.eq.s32.totalorder %v1945, 1
    %vm2010 = vcmp.eq.s32.totalorder %v1946, 1
    %vm2011 = vcmp.eq.s32.totalorder %v1947, 1
    %vm2012 = vcmp.eq.s32.totalorder %v1948, 1
    %vm2013 = vcmp.eq.s32.totalorder %v1949, 1
    %vm2014 = vcmp.eq.s32.totalorder %v1950, 1
    %vm2015 = vcmp.eq.s32.totalorder %v1951, 1
    %vm2016 = vcmp.eq.s32.totalorder %v1952, 1
    %vm2017 = vcmp.eq.s32.totalorder %v1953, 1
    %vm2018 = vcmp.eq.s32.totalorder %v1954, 1
    %vm2019 = vcmp.eq.s32.totalorder %v1955, 1
    %vm2020 = vcmp.eq.s32.totalorder %v1956, 1
    %vm2021 = vcmp.eq.s32.totalorder %v1957, 1
    %vm2022 = vcmp.eq.s32.totalorder %v1958, 1
    %vm2023 = vcmp.eq.s32.totalorder %v1959, 1
    %vm2024 = vcmp.eq.s32.totalorder %v1960, 1
    %vm2025 = vcmp.eq.s32.totalorder %v1961, 1
    %vm2026 = vcmp.eq.s32.totalorder %v1962, 1
    %vm2027 = vcmp.eq.s32.totalorder %v1963, 1
    %vm2028 = vcmp.eq.s32.totalorder %v1964, 1
    %vm2029 = vcmp.eq.s32.totalorder %v1965, 1
    %vm2030 = vcmp.eq.s32.totalorder %v1966, 1
    %vm2031 = vcmp.eq.s32.totalorder %v1967, 1
    %vm2032 = vcmp.eq.s32.totalorder %v1968, 1
    %vm2033 = vcmp.eq.s32.totalorder %v1969, 1
    %vm2034 = vcmp.eq.s32.totalorder %v1970, 1
    %vm2035 = vcmp.eq.s32.totalorder %v1971, 1
    %vm2036 = vcmp.eq.s32.totalorder %v1972, 1
    %vm2037 = vcmp.eq.s32.totalorder %v1973, 1
    %vm2038 = vcmp.eq.s32.totalorder %v1974, 1
    %vm2039 = vcmp.eq.s32.totalorder %v1975, 1
    %vm2040 = vcmp.eq.s32.totalorder %v1976, 1
    %vm2041 = vcmp.eq.s32.totalorder %v1977, 1
    %vm2042 = vcmp.eq.s32.totalorder %v1978, 1
    %vm2043 = vcmp.eq.s32.totalorder %v1979, 1
    %vm2044 = vcmp.eq.s32.totalorder %v1980, 1
    %vm2045 = vcmp.eq.s32.totalorder %v1981, 1
    %vm2046 = vcmp.eq.s32.totalorder %v1982, 1
    %vm2047 = vcmp.eq.s32.totalorder %v1983, 1
    %vm2048 = vcmp.eq.s32.totalorder %v1984, 1
    %vm2049 = vcmp.eq.s32.totalorder %v1985, 1
    %vm2050 = vcmp.eq.s32.totalorder %v1986, 1
    %vm2051 = vcmp.eq.s32.totalorder %v1987, 1
    %vm2052 = vcmp.eq.s32.totalorder %v1988, 1
    %vm2053 = vcmp.eq.s32.totalorder %v1989, 1
    %vm2054 = vcmp.eq.s32.totalorder %v1990, 1
    %vm2055 = vcmp.eq.s32.totalorder %v1991, 1
    %vm2056 = vcmp.eq.s32.totalorder %v1992, 1
    %v2057 = vsel %vm1993, %v1613, 0.0
    %v2058 = vsel %vm1994, %v1615, 0.0
    %v2059 = vsel %vm1995, %v1864, 0.0
    %v2060 = vsel %vm1996, %v1682, 0.0
    %v2061 = vsel %vm1997, %v1684, 0.0
    %v2062 = vsel %vm1998, %v1686, 0.0
    %v2063 = vsel %vm1999, %v1688, 0.0
    %v2064 = vsel %vm2000, %v1690, 0.0
    %v2065 = vsel %vm2001, %v1692, 0.0
    %v2066 = vsel %vm2002, %v1694, 0.0
    %v2067 = vsel %vm2003, %v1696, 0.0
    %v2068 = vsel %vm2004, %v1698, 0.0
    %v2069 = vsel %vm2005, %v1700, 0.0
    %v2070 = vsel %vm2006, %v1702, 0.0
    %v2071 = vsel %vm2007, %v1704, 0.0
    %v2072 = vsel %vm2008, %v1706, 0.0
    %v2073 = vsel %vm2009, %v1708, 0.0
    %v2074 = vsel %vm2010, %v1710, 0.0
    %v2075 = vsel %vm2011, %v1712, 0.0
    %v2076 = vsel %vm2012, %v1714, 0.0
    %v2077 = vsel %vm2013, %v1716, 0.0
    %v2078 = vsel %vm2014, %v1718, 0.0
    %v2079 = vsel %vm2015, %v1720, 0.0
    %v2080 = vsel %vm2016, %v1722, 0.0
    %v2081 = vsel %vm2017, %v1724, 0.0
    %v2082 = vsel %vm2018, %v1726, 0.0
    %v2083 = vsel %vm2019, %v1728, 0.0
    %v2084 = vsel %vm2020, %v1730, 0.0
    %v2085 = vsel %vm2021, %v1732, 0.0
    %v2086 = vsel %vm2022, %v1734, 0.0
    %v2087 = vsel %vm2023, %v1736, 0.0
    %v2088 = vsel %vm2024, %v1738, 0.0
    %v2089 = vsel %vm2025, %v1740, 0.0
    %v2090 = vsel %vm2026, %v1742, 0.0
    %v2091 = vsel %vm2027, %v1744, 0.0
    %v2092 = vsel %vm2028, %v1746, 0.0
    %v2093 = vsel %vm2029, %v1748, 0.0
    %v2094 = vsel %vm2030, %v1750, 0.0
    %v2095 = vsel %vm2031, %v1752, 0.0
    %v2096 = vsel %vm2032, %v1754, 0.0
    %v2097 = vsel %vm2033, %v1756, 0.0
    %v2098 = vsel %vm2034, %v1758, 0.0
    %v2099 = vsel %vm2035, %v1760, 0.0
    %v2100 = vsel %vm2036, %v1762, 0.0
    %v2101 = vsel %vm2037, %v1764, 0.0
    %v2102 = vsel %vm2038, %v1766, 0.0
    %v2103 = vsel %vm2039, %v1768, 0.0
    %v2104 = vsel %vm2040, %v1770, 0.0
    %v2105 = vsel %vm2041, %v1772, 0.0
    %v2106 = vsel %vm2042, %v1774, 0.0
    %v2107 = vsel %vm2043, %v1776, 0.0
    %v2108 = vsel %vm2044, %v1778, 0.0
    %v2109 = vsel %vm2045, %v1780, 0.0
    %v2110 = vsel %vm2046, %v1782, 0.0
    %v2111 = vsel %vm2047, %v1784, 0.0
    %v2112 = vsel %vm2048, %v1786, 0.0
    %v2113 = vsel %vm2049, %v1788, 0.0
    %v2114 = vsel %vm2050, %v1790, 0.0
    %v2115 = vsel %vm2051, %v1792, 0.0
    %v2116 = vsel %vm2052, %v1794, 0.0
    %v2117 = vsel %vm2053, %v1796, 0.0
    %v2118 = vsel %vm2054, %v1798, 0.0
    %v2119 = vsel %vm2055, %v1800, 0.0
    %v2120 = vsel %vm2056, %v1801, 0.0
    %2185 = vrot.lane.b32.xlu0 %v2057, 64
    %v2186 = vpop.permute.xlu0 %2185
    %2187 = vrot.lane.b32.xlu0 %v2058, 64
    %v2188 = vpop.permute.xlu0 %2187
    %2189 = vrot.lane.b32.xlu0 %v2059, 64
    %v2190 = vpop.permute.xlu0 %2189
    %2191 = vrot.lane.b32.xlu0 %v2060, 64
    %v2192 = vpop.permute.xlu0 %2191
    %2193 = vrot.lane.b32.xlu0 %v2061, 64
    %v2194 = vpop.permute.xlu0 %2193
    %2195 = vrot.lane.b32.xlu0 %v2062, 64
    %v2196 = vpop.permute.xlu0 %2195
    %2197 = vrot.lane.b32.xlu0 %v2063, 64
    %v2198 = vpop.permute.xlu0 %2197
    %2199 = vrot.lane.b32.xlu0 %v2064, 64
    %v2200 = vpop.permute.xlu0 %2199
    %2201 = vrot.lane.b32.xlu0 %v2065, 64
    %v2202 = vpop.permute.xlu0 %2201
    %2203 = vrot.lane.b32.xlu0 %v2066, 64
    %v2204 = vpop.permute.xlu0 %2203
    %2205 = vrot.lane.b32.xlu0 %v2067, 64
    %v2206 = vpop.permute.xlu0 %2205
    %2207 = vrot.lane.b32.xlu0 %v2068, 64
    %v2208 = vpop.permute.xlu0 %2207
    %2209 = vrot.lane.b32.xlu0 %v2069, 64
    %v2210 = vpop.permute.xlu0 %2209
    %2211 = vrot.lane.b32.xlu0 %v2070, 64
    %v2212 = vpop.permute.xlu0 %2211
    %2213 = vrot.lane.b32.xlu0 %v2071, 64
    %v2214 = vpop.permute.xlu0 %2213
    %2215 = vrot.lane.b32.xlu0 %v2072, 64
    %v2216 = vpop.permute.xlu0 %2215
    %2217 = vrot.lane.b32.xlu0 %v2073, 64
    %v2218 = vpop.permute.xlu0 %2217
    %2219 = vrot.lane.b32.xlu0 %v2074, 64
    %v2220 = vpop.permute.xlu0 %2219
    %2221 = vrot.lane.b32.xlu0 %v2075, 64
    %v2222 = vpop.permute.xlu0 %2221
    %2223 = vrot.lane.b32.xlu0 %v2076, 64
    %v2224 = vpop.permute.xlu0 %2223
    %2225 = vrot.lane.b32.xlu0 %v2077, 64
    %v2226 = vpop.permute.xlu0 %2225
    %2227 = vrot.lane.b32.xlu0 %v2078, 64
    %v2228 = vpop.permute.xlu0 %2227
    %2229 = vrot.lane.b32.xlu0 %v2079, 64
    %v2230 = vpop.permute.xlu0 %2229
    %2231 = vrot.lane.b32.xlu0 %v2080, 64
    %v2232 = vpop.permute.xlu0 %2231
    %2233 = vrot.lane.b32.xlu0 %v2081, 64
    %v2234 = vpop.permute.xlu0 %2233
    %2235 = vrot.lane.b32.xlu0 %v2082, 64
    %v2236 = vpop.permute.xlu0 %2235
    %2237 = vrot.lane.b32.xlu0 %v2083, 64
    %v2238 = vpop.permute.xlu0 %2237
    %2239 = vrot.lane.b32.xlu0 %v2084, 64
    %v2240 = vpop.permute.xlu0 %2239
    %2241 = vrot.lane.b32.xlu0 %v2085, 64
    %v2242 = vpop.permute.xlu0 %2241
    %2243 = vrot.lane.b32.xlu0 %v2086, 64
    %v2244 = vpop.permute.xlu0 %2243
    %2245 = vrot.lane.b32.xlu0 %v2087, 64
    %v2246 = vpop.permute.xlu0 %2245
    %2247 = vrot.lane.b32.xlu0 %v2088, 64
    %v2248 = vpop.permute.xlu0 %2247
    %2249 = vrot.lane.b32.xlu0 %v2089, 64
    %v2250 = vpop.permute.xlu0 %2249
    %2251 = vrot.lane.b32.xlu0 %v2090, 64
    %v2252 = vpop.permute.xlu0 %2251
    %2253 = vrot.lane.b32.xlu0 %v2091, 64
    %v2254 = vpop.permute.xlu0 %2253
    %2255 = vrot.lane.b32.xlu0 %v2092, 64
    %v2256 = vpop.permute.xlu0 %2255
    %2257 = vrot.lane.b32.xlu0 %v2093, 64
    %v2258 = vpop.permute.xlu0 %2257
    %2259 = vrot.lane.b32.xlu0 %v2094, 64
    %v2260 = vpop.permute.xlu0 %2259
    %2261 = vrot.lane.b32.xlu0 %v2095, 64
    %v2262 = vpop.permute.xlu0 %2261
    %2263 = vrot.lane.b32.xlu0 %v2096, 64
    %v2264 = vpop.permute.xlu0 %2263
    %2265 = vrot.lane.b32.xlu0 %v2097, 64
    %v2266 = vpop.permute.xlu0 %2265
    %2267 = vrot.lane.b32.xlu0 %v2098, 64
    %v2268 = vpop.permute.xlu0 %2267
    %2269 = vrot.lane.b32.xlu0 %v2099, 64
    %v2270 = vpop.permute.xlu0 %2269
    %2271 = vrot.lane.b32.xlu0 %v2100, 64
    %v2272 = vpop.permute.xlu0 %2271
    %2273 = vrot.lane.b32.xlu0 %v2101, 64
    %v2274 = vpop.permute.xlu0 %2273
    %2275 = vrot.lane.b32.xlu0 %v2102, 64
    %v2276 = vpop.permute.xlu0 %2275
    %2277 = vrot.lane.b32.xlu0 %v2103, 64
    %v2278 = vpop.permute.xlu0 %2277
    %2279 = vrot.lane.b32.xlu0 %v2104, 64
    %v2280 = vpop.permute.xlu0 %2279
    %2281 = vrot.lane.b32.xlu0 %v2105, 64
    %v2282 = vpop.permute.xlu0 %2281
    %2283 = vrot.lane.b32.xlu0 %v2106, 64
    %v2284 = vpop.permute.xlu0 %2283
    %2285 = vrot.lane.b32.xlu0 %v2107, 64
    %v2286 = vpop.permute.xlu0 %2285
    %2287 = vrot.lane.b32.xlu0 %v2108, 64
    %v2288 = vpop.permute.xlu0 %2287
    %2289 = vrot.lane.b32.xlu0 %v2109, 64
    %v2290 = vpop.permute.xlu0 %2289
    %2291 = vrot.lane.b32.xlu0 %v2110, 64
    %v2292 = vpop.permute.xlu0 %2291
    %2293 = vrot.lane.b32.xlu0 %v2111, 64
    %v2294 = vpop.permute.xlu0 %2293
    %2295 = vrot.lane.b32.xlu0 %v2112, 64
    %v2296 = vpop.permute.xlu0 %2295
    %2297 = vrot.lane.b32.xlu0 %v2113, 64
    %v2298 = vpop.permute.xlu0 %2297
    %2299 = vrot.lane.b32.xlu0 %v2114, 64
    %v2300 = vpop.permute.xlu0 %2299
    %2301 = vrot.lane.b32.xlu0 %v2115, 64
    %v2302 = vpop.permute.xlu0 %2301
    %2303 = vrot.lane.b32.xlu0 %v2116, 64
    %v2304 = vpop.permute.xlu0 %2303
    %2305 = vrot.lane.b32.xlu0 %v2117, 64
    %v2306 = vpop.permute.xlu0 %2305
    %2307 = vrot.lane.b32.xlu0 %v2118, 64
    %v2308 = vpop.permute.xlu0 %2307
    %2309 = vrot.lane.b32.xlu0 %v2119, 64
    %v2310 = vpop.permute.xlu0 %2309
    %2311 = vrot.lane.b32.xlu0 %v2120, 64
    %v2312 = vpop.permute.xlu0 %2311
    %v2377 = vadd.f32 %v1207, %v2186
    %v2378 = vadd.f32 %v1210, %v2188
    %v2379 = vadd.f32 %v1213, %v2190
    %v2380 = vadd.f32 %v1216, %v2192
    %v2381 = vadd.f32 %v1219, %v2194
    %v2382 = vadd.f32 %v1222, %v2196
    %v2383 = vadd.f32 %v1225, %v2198
    %v2384 = vadd.f32 %v1228, %v2200
    %v2385 = vadd.f32 %v1231, %v2202
    %v2386 = vadd.f32 %v1234, %v2204
    %v2387 = vadd.f32 %v1237, %v2206
    %v2388 = vadd.f32 %v1240, %v2208
    %v2389 = vadd.f32 %v1243, %v2210
    %v2390 = vadd.f32 %v1246, %v2212
    %v2391 = vadd.f32 %v1249, %v2214
    %v2392 = vadd.f32 %v1252, %v2216
    %v2393 = vadd.f32 %v1255, %v2218
    %v2394 = vadd.f32 %v1258, %v2220
    %v2395 = vadd.f32 %v1261, %v2222
    %v2396 = vadd.f32 %v1264, %v2224
    %v2397 = vadd.f32 %v1267, %v2226
    %v2398 = vadd.f32 %v1270, %v2228
    %v2399 = vadd.f32 %v1273, %v2230
    %v2400 = vadd.f32 %v1276, %v2232
    %v2401 = vadd.f32 %v1279, %v2234
    %v2402 = vadd.f32 %v1282, %v2236
    %v2403 = vadd.f32 %v1285, %v2238
    %v2404 = vadd.f32 %v1288, %v2240
    %v2405 = vadd.f32 %v1291, %v2242
    %v2406 = vadd.f32 %v1294, %v2244
    %v2407 = vadd.f32 %v1297, %v2246
    %v2408 = vadd.f32 %v1300, %v2248
    %v2409 = vadd.f32 %v1303, %v2250
    %v2410 = vadd.f32 %v1306, %v2252
    %v2411 = vadd.f32 %v1309, %v2254
    %v2412 = vadd.f32 %v1312, %v2256
    %v2413 = vadd.f32 %v1315, %v2258
    %v2414 = vadd.f32 %v1318, %v2260
    %v2415 = vadd.f32 %v1321, %v2262
    %v2416 = vadd.f32 %v1324, %v2264
    %v2417 = vadd.f32 %v1327, %v2266
    %v2418 = vadd.f32 %v1330, %v2268
    %v2419 = vadd.f32 %v1333, %v2270
    %v2420 = vadd.f32 %v1336, %v2272
    %v2421 = vadd.f32 %v1339, %v2274
    %v2422 = vadd.f32 %v1342, %v2276
    %v2423 = vadd.f32 %v1345, %v2278
    %v2424 = vadd.f32 %v1348, %v2280
    %v2425 = vadd.f32 %v1351, %v2282
    %v2426 = vadd.f32 %v1354, %v2284
    %v2427 = vadd.f32 %v1357, %v2286
    %v2428 = vadd.f32 %v1360, %v2288
    %v2429 = vadd.f32 %v1363, %v2290
    %v2430 = vadd.f32 %v1366, %v2292
    %v2431 = vadd.f32 %v1369, %v2294
    %v2432 = vadd.f32 %v1372, %v2296
    %v2433 = vadd.f32 %v1375, %v2298
    %v2434 = vadd.f32 %v1378, %v2300
    %v2435 = vadd.f32 %v1381, %v2302
    %v2436 = vadd.f32 %v1384, %v2304
    %v2437 = vadd.f32 %v1387, %v2306
    %v2438 = vadd.f32 %v1390, %v2308
    %v2439 = vadd.f32 %v1393, %v2310
    %v2440 = vadd.f32 %v1396, %v2312
    %v2441 = vsel %vm667, 1, 0
    %v2442 = vsel %vm668, 1, 0
    %v2443 = vsel %vm669, 1, 0
    %v2444 = vsel %vm670, 1, 0
    %v2445 = vsel %vm671, 1, 0
    %v2446 = vsel %vm672, 1, 0
    %v2447 = vsel %vm673, 1, 0
    %v2448 = vsel %vm674, 1, 0
    %v2449 = vsel %vm675, 1, 0
    %v2450 = vsel %vm676, 1, 0
    %v2451 = vsel %vm677, 1, 0
    %v2452 = vsel %vm678, 1, 0
    %v2453 = vsel %vm679, 1, 0
    %v2454 = vsel %vm680, 1, 0
    %v2455 = vsel %vm681, 1, 0
    %v2456 = vsel %vm682, 1, 0
    %v2457 = vsel %vm683, 1, 0
    %v2458 = vsel %vm684, 1, 0
    %v2459 = vsel %vm685, 1, 0
    %v2460 = vsel %vm686, 1, 0
    %v2461 = vsel %vm687, 1, 0
    %v2462 = vsel %vm688, 1, 0
    %v2463 = vsel %vm689, 1, 0
    %v2464 = vsel %vm690, 1, 0
    %v2465 = vsel %vm691, 1, 0
    %v2466 = vsel %vm692, 1, 0
    %v2467 = vsel %vm693, 1, 0
    %v2468 = vsel %vm694, 1, 0
    %v2469 = vsel %vm695, 1, 0
    %v2470 = vsel %vm696, 1, 0
    %v2471 = vsel %vm697, 1, 0
    %v2472 = vsel %vm698, 1, 0
    %v2473 = vsel %vm699, 1, 0
    %v2474 = vsel %vm700, 1, 0
    %v2475 = vsel %vm701, 1, 0
    %v2476 = vsel %vm702, 1, 0
    %v2477 = vsel %vm703, 1, 0
    %v2478 = vsel %vm704, 1, 0
    %v2479 = vsel %vm705, 1, 0
    %v2480 = vsel %vm706, 1, 0
    %v2481 = vsel %vm707, 1, 0
    %v2482 = vsel %vm708, 1, 0
    %v2483 = vsel %vm709, 1, 0
    %v2484 = vsel %vm710, 1, 0
    %v2485 = vsel %vm711, 1, 0
    %v2486 = vsel %vm712, 1, 0
    %v2487 = vsel %vm713, 1, 0
    %v2488 = vsel %vm714, 1, 0
    %v2489 = vsel %vm715, 1, 0
    %v2490 = vsel %vm716, 1, 0
    %v2491 = vsel %vm717, 1, 0
    %v2492 = vsel %vm718, 1, 0
    %v2493 = vsel %vm719, 1, 0
    %v2494 = vsel %vm720, 1, 0
    %v2495 = vsel %vm721, 1, 0
    %v2496 = vsel %vm722, 1, 0
    %v2497 = vsel %vm723, 1, 0
    %v2498 = vsel %vm724, 1, 0
    %v2499 = vsel %vm725, 1, 0
    %v2500 = vsel %vm726, 1, 0
    %v2501 = vsel %vm727, 1, 0
    %v2502 = vsel %vm728, 1, 0
    %v2503 = vsel %vm729, 1, 0
    %v2504 = vsel %vm730, 1, 0
    %vm2505 = vcmp.eq.s32.totalorder %v2441, 1
    %vm2506 = vcmp.eq.s32.totalorder %v2442, 1
    %vm2507 = vcmp.eq.s32.totalorder %v2443, 1
    %vm2508 = vcmp.eq.s32.totalorder %v2444, 1
    %vm2509 = vcmp.eq.s32.totalorder %v2445, 1
    %vm2510 = vcmp.eq.s32.totalorder %v2446, 1
    %vm2511 = vcmp.eq.s32.totalorder %v2447, 1
    %vm2512 = vcmp.eq.s32.totalorder %v2448, 1
    %vm2513 = vcmp.eq.s32.totalorder %v2449, 1
    %vm2514 = vcmp.eq.s32.totalorder %v2450, 1
    %vm2515 = vcmp.eq.s32.totalorder %v2451, 1
    %vm2516 = vcmp.eq.s32.totalorder %v2452, 1
    %vm2517 = vcmp.eq.s32.totalorder %v2453, 1
    %vm2518 = vcmp.eq.s32.totalorder %v2454, 1
    %vm2519 = vcmp.eq.s32.totalorder %v2455, 1
    %vm2520 = vcmp.eq.s32.totalorder %v2456, 1
    %vm2521 = vcmp.eq.s32.totalorder %v2457, 1
    %vm2522 = vcmp.eq.s32.totalorder %v2458, 1
    %vm2523 = vcmp.eq.s32.totalorder %v2459, 1
    %vm2524 = vcmp.eq.s32.totalorder %v2460, 1
    %vm2525 = vcmp.eq.s32.totalorder %v2461, 1
    %vm2526 = vcmp.eq.s32.totalorder %v2462, 1
    %vm2527 = vcmp.eq.s32.totalorder %v2463, 1
    %vm2528 = vcmp.eq.s32.totalorder %v2464, 1
    %vm2529 = vcmp.eq.s32.totalorder %v2465, 1
    %vm2530 = vcmp.eq.s32.totalorder %v2466, 1
    %vm2531 = vcmp.eq.s32.totalorder %v2467, 1
    %vm2532 = vcmp.eq.s32.totalorder %v2468, 1
    %vm2533 = vcmp.eq.s32.totalorder %v2469, 1
    %vm2534 = vcmp.eq.s32.totalorder %v2470, 1
    %vm2535 = vcmp.eq.s32.totalorder %v2471, 1
    %vm2536 = vcmp.eq.s32.totalorder %v2472, 1
    %vm2537 = vcmp.eq.s32.totalorder %v2473, 1
    %vm2538 = vcmp.eq.s32.totalorder %v2474, 1
    %vm2539 = vcmp.eq.s32.totalorder %v2475, 1
    %vm2540 = vcmp.eq.s32.totalorder %v2476, 1
    %vm2541 = vcmp.eq.s32.totalorder %v2477, 1
    %vm2542 = vcmp.eq.s32.totalorder %v2478, 1
    %vm2543 = vcmp.eq.s32.totalorder %v2479, 1
    %vm2544 = vcmp.eq.s32.totalorder %v2480, 1
    %vm2545 = vcmp.eq.s32.totalorder %v2481, 1
    %vm2546 = vcmp.eq.s32.totalorder %v2482, 1
    %vm2547 = vcmp.eq.s32.totalorder %v2483, 1
    %vm2548 = vcmp.eq.s32.totalorder %v2484, 1
    %vm2549 = vcmp.eq.s32.totalorder %v2485, 1
    %vm2550 = vcmp.eq.s32.totalorder %v2486, 1
    %vm2551 = vcmp.eq.s32.totalorder %v2487, 1
    %vm2552 = vcmp.eq.s32.totalorder %v2488, 1
    %vm2553 = vcmp.eq.s32.totalorder %v2489, 1
    %vm2554 = vcmp.eq.s32.totalorder %v2490, 1
    %vm2555 = vcmp.eq.s32.totalorder %v2491, 1
    %vm2556 = vcmp.eq.s32.totalorder %v2492, 1
    %vm2557 = vcmp.eq.s32.totalorder %v2493, 1
    %vm2558 = vcmp.eq.s32.totalorder %v2494, 1
    %vm2559 = vcmp.eq.s32.totalorder %v2495, 1
    %vm2560 = vcmp.eq.s32.totalorder %v2496, 1
    %vm2561 = vcmp.eq.s32.totalorder %v2497, 1
    %vm2562 = vcmp.eq.s32.totalorder %v2498, 1
    %vm2563 = vcmp.eq.s32.totalorder %v2499, 1
    %vm2564 = vcmp.eq.s32.totalorder %v2500, 1
    %vm2565 = vcmp.eq.s32.totalorder %v2501, 1
    %vm2566 = vcmp.eq.s32.totalorder %v2502, 1
    %vm2567 = vcmp.eq.s32.totalorder %v2503, 1
    %vm2568 = vcmp.eq.s32.totalorder %v2504, 1
    %v2569 = vsel %vm2505, %v1393, 0.0
    %v2570 = vsel %vm2506, %v1396, 0.0
    %v2571 = vsel %vm2507, %v1207, 0.0
    %v2572 = vsel %vm2508, %v1210, 0.0
    %v2573 = vsel %vm2509, %v1213, 0.0
    %v2574 = vsel %vm2510, %v1216, 0.0
    %v2575 = vsel %vm2511, %v1219, 0.0
    %v2576 = vsel %vm2512, %v1222, 0.0
    %v2577 = vsel %vm2513, %v1225, 0.0
    %v2578 = vsel %vm2514, %v1228, 0.0
    %v2579 = vsel %vm2515, %v1231, 0.0
    %v2580 = vsel %vm2516, %v1234, 0.0
    %v2581 = vsel %vm2517, %v1237, 0.0
    %v2582 = vsel %vm2518, %v1240, 0.0
    %v2583 = vsel %vm2519, %v1243, 0.0
    %v2584 = vsel %vm2520, %v1246, 0.0
    %v2585 = vsel %vm2521, %v1249, 0.0
    %v2586 = vsel %vm2522, %v1252, 0.0
    %v2587 = vsel %vm2523, %v1255, 0.0
    %v2588 = vsel %vm2524, %v1258, 0.0
    %v2589 = vsel %vm2525, %v1261, 0.0
    %v2590 = vsel %vm2526, %v1264, 0.0
    %v2591 = vsel %vm2527, %v1267, 0.0
    %v2592 = vsel %vm2528, %v1270, 0.0
    %v2593 = vsel %vm2529, %v1273, 0.0
    %v2594 = vsel %vm2530, %v1276, 0.0
    %v2595 = vsel %vm2531, %v1279, 0.0
    %v2596 = vsel %vm2532, %v1282, 0.0
    %v2597 = vsel %vm2533, %v1285, 0.0
    %v2598 = vsel %vm2534, %v1288, 0.0
    %v2599 = vsel %vm2535, %v1291, 0.0
    %v2600 = vsel %vm2536, %v1294, 0.0
    %v2601 = vsel %vm2537, %v1297, 0.0
    %v2602 = vsel %vm2538, %v1300, 0.0
    %v2603 = vsel %vm2539, %v1303, 0.0
    %v2604 = vsel %vm2540, %v1306, 0.0
    %v2605 = vsel %vm2541, %v1309, 0.0
    %v2606 = vsel %vm2542, %v1312, 0.0
    %v2607 = vsel %vm2543, %v1315, 0.0
    %v2608 = vsel %vm2544, %v1318, 0.0
    %v2609 = vsel %vm2545, %v1321, 0.0
    %v2610 = vsel %vm2546, %v1324, 0.0
    %v2611 = vsel %vm2547, %v1327, 0.0
    %v2612 = vsel %vm2548, %v1330, 0.0
    %v2613 = vsel %vm2549, %v1333, 0.0
    %v2614 = vsel %vm2550, %v1336, 0.0
    %v2615 = vsel %vm2551, %v1339, 0.0
    %v2616 = vsel %vm2552, %v1342, 0.0
    %v2617 = vsel %vm2553, %v1345, 0.0
    %v2618 = vsel %vm2554, %v1348, 0.0
    %v2619 = vsel %vm2555, %v1351, 0.0
    %v2620 = vsel %vm2556, %v1354, 0.0
    %v2621 = vsel %vm2557, %v1357, 0.0
    %v2622 = vsel %vm2558, %v1360, 0.0
    %v2623 = vsel %vm2559, %v1363, 0.0
    %v2624 = vsel %vm2560, %v1366, 0.0
    %v2625 = vsel %vm2561, %v1369, 0.0
    %v2626 = vsel %vm2562, %v1372, 0.0
    %v2627 = vsel %vm2563, %v1375, 0.0
    %v2628 = vsel %vm2564, %v1378, 0.0
    %v2629 = vsel %vm2565, %v1381, 0.0
    %v2630 = vsel %vm2566, %v1384, 0.0
    %v2631 = vsel %vm2567, %v1387, 0.0
    %v2632 = vsel %vm2568, %v1390, 0.0
    %2697 = vrot.lane.b32.xlu0 %v2569, 48
    %v2698 = vpop.permute.xlu0 %2697
    %2699 = vrot.lane.b32.xlu0 %v2570, 48
    %v2700 = vpop.permute.xlu0 %2699
    %2701 = vrot.lane.b32.xlu0 %v2571, 48
    %v2702 = vpop.permute.xlu0 %2701
    %2703 = vrot.lane.b32.xlu0 %v2572, 48
    %v2704 = vpop.permute.xlu0 %2703
    %2705 = vrot.lane.b32.xlu0 %v2573, 48
    %v2706 = vpop.permute.xlu0 %2705
    %2707 = vrot.lane.b32.xlu0 %v2574, 48
    %v2708 = vpop.permute.xlu0 %2707
    %2709 = vrot.lane.b32.xlu0 %v2575, 48
    %v2710 = vpop.permute.xlu0 %2709
    %2711 = vrot.lane.b32.xlu0 %v2576, 48
    %v2712 = vpop.permute.xlu0 %2711
    %2713 = vrot.lane.b32.xlu0 %v2577, 48
    %v2714 = vpop.permute.xlu0 %2713
    %2715 = vrot.lane.b32.xlu0 %v2578, 48
    %v2716 = vpop.permute.xlu0 %2715
    %2717 = vrot.lane.b32.xlu0 %v2579, 48
    %v2718 = vpop.permute.xlu0 %2717
    %2719 = vrot.lane.b32.xlu0 %v2580, 48
    %v2720 = vpop.permute.xlu0 %2719
    %2721 = vrot.lane.b32.xlu0 %v2581, 48
    %v2722 = vpop.permute.xlu0 %2721
    %2723 = vrot.lane.b32.xlu0 %v2582, 48
    %v2724 = vpop.permute.xlu0 %2723
    %2725 = vrot.lane.b32.xlu0 %v2583, 48
    %v2726 = vpop.permute.xlu0 %2725
    %2727 = vrot.lane.b32.xlu0 %v2584, 48
    %v2728 = vpop.permute.xlu0 %2727
    %2729 = vrot.lane.b32.xlu0 %v2585, 48
    %v2730 = vpop.permute.xlu0 %2729
    %2731 = vrot.lane.b32.xlu0 %v2586, 48
    %v2732 = vpop.permute.xlu0 %2731
    %2733 = vrot.lane.b32.xlu0 %v2587, 48
    %v2734 = vpop.permute.xlu0 %2733
    %2735 = vrot.lane.b32.xlu0 %v2588, 48
    %v2736 = vpop.permute.xlu0 %2735
    %2737 = vrot.lane.b32.xlu0 %v2589, 48
    %v2738 = vpop.permute.xlu0 %2737
    %2739 = vrot.lane.b32.xlu0 %v2590, 48
    %v2740 = vpop.permute.xlu0 %2739
    %2741 = vrot.lane.b32.xlu0 %v2591, 48
    %v2742 = vpop.permute.xlu0 %2741
    %2743 = vrot.lane.b32.xlu0 %v2592, 48
    %v2744 = vpop.permute.xlu0 %2743
    %2745 = vrot.lane.b32.xlu0 %v2593, 48
    %v2746 = vpop.permute.xlu0 %2745
    %2747 = vrot.lane.b32.xlu0 %v2594, 48
    %v2748 = vpop.permute.xlu0 %2747
    %2749 = vrot.lane.b32.xlu0 %v2595, 48
    %v2750 = vpop.permute.xlu0 %2749
    %2751 = vrot.lane.b32.xlu0 %v2596, 48
    %v2752 = vpop.permute.xlu0 %2751
    %2753 = vrot.lane.b32.xlu0 %v2597, 48
    %v2754 = vpop.permute.xlu0 %2753
    %2755 = vrot.lane.b32.xlu0 %v2598, 48
    %v2756 = vpop.permute.xlu0 %2755
    %2757 = vrot.lane.b32.xlu0 %v2599, 48
    %v2758 = vpop.permute.xlu0 %2757
    %2759 = vrot.lane.b32.xlu0 %v2600, 48
    %v2760 = vpop.permute.xlu0 %2759
    %2761 = vrot.lane.b32.xlu0 %v2601, 48
    %v2762 = vpop.permute.xlu0 %2761
    %2763 = vrot.lane.b32.xlu0 %v2602, 48
    %v2764 = vpop.permute.xlu0 %2763
    %2765 = vrot.lane.b32.xlu0 %v2603, 48
    %v2766 = vpop.permute.xlu0 %2765
    %2767 = vrot.lane.b32.xlu0 %v2604, 48
    %v2768 = vpop.permute.xlu0 %2767
    %2769 = vrot.lane.b32.xlu0 %v2605, 48
    %v2770 = vpop.permute.xlu0 %2769
    %2771 = vrot.lane.b32.xlu0 %v2606, 48
    %v2772 = vpop.permute.xlu0 %2771
    %2773 = vrot.lane.b32.xlu0 %v2607, 48
    %v2774 = vpop.permute.xlu0 %2773
    %2775 = vrot.lane.b32.xlu0 %v2608, 48
    %v2776 = vpop.permute.xlu0 %2775
    %2777 = vrot.lane.b32.xlu0 %v2609, 48
    %v2778 = vpop.permute.xlu0 %2777
    %2779 = vrot.lane.b32.xlu0 %v2610, 48
    %v2780 = vpop.permute.xlu0 %2779
    %2781 = vrot.lane.b32.xlu0 %v2611, 48
    %v2782 = vpop.permute.xlu0 %2781
    %2783 = vrot.lane.b32.xlu0 %v2612, 48
    %v2784 = vpop.permute.xlu0 %2783
    %2785 = vrot.lane.b32.xlu0 %v2613, 48
    %v2786 = vpop.permute.xlu0 %2785
    %2787 = vrot.lane.b32.xlu0 %v2614, 48
    %v2788 = vpop.permute.xlu0 %2787
    %2789 = vrot.lane.b32.xlu0 %v2615, 48
    %v2790 = vpop.permute.xlu0 %2789
    %2791 = vrot.lane.b32.xlu0 %v2616, 48
    %v2792 = vpop.permute.xlu0 %2791
    %2793 = vrot.lane.b32.xlu0 %v2617, 48
    %v2794 = vpop.permute.xlu0 %2793
    %2795 = vrot.lane.b32.xlu0 %v2618, 48
    %v2796 = vpop.permute.xlu0 %2795
    %2797 = vrot.lane.b32.xlu0 %v2619, 48
    %v2798 = vpop.permute.xlu0 %2797
    %2799 = vrot.lane.b32.xlu0 %v2620, 48
    %v2800 = vpop.permute.xlu0 %2799
    %2801 = vrot.lane.b32.xlu0 %v2621, 48
    %v2802 = vpop.permute.xlu0 %2801
    %2803 = vrot.lane.b32.xlu0 %v2622, 48
    %v2804 = vpop.permute.xlu0 %2803
    %2805 = vrot.lane.b32.xlu0 %v2623, 48
    %v2806 = vpop.permute.xlu0 %2805
    %2807 = vrot.lane.b32.xlu0 %v2624, 48
    %v2808 = vpop.permute.xlu0 %2807
    %2809 = vrot.lane.b32.xlu0 %v2625, 48
    %v2810 = vpop.permute.xlu0 %2809
    %2811 = vrot.lane.b32.xlu0 %v2626, 48
    %v2812 = vpop.permute.xlu0 %2811
    %2813 = vrot.lane.b32.xlu0 %v2627, 48
    %v2814 = vpop.permute.xlu0 %2813
    %2815 = vrot.lane.b32.xlu0 %v2628, 48
    %v2816 = vpop.permute.xlu0 %2815
    %2817 = vrot.lane.b32.xlu0 %v2629, 48
    %v2818 = vpop.permute.xlu0 %2817
    %2819 = vrot.lane.b32.xlu0 %v2630, 48
    %v2820 = vpop.permute.xlu0 %2819
    %2821 = vrot.lane.b32.xlu0 %v2631, 48
    %v2822 = vpop.permute.xlu0 %2821
    %2823 = vrot.lane.b32.xlu0 %v2632, 48
    %v2824 = vpop.permute.xlu0 %2823
    %v2889 = vadd.f32 %v2377, %v2698
    %v2890 = vadd.f32 %v2378, %v2700
    %v2891 = vadd.f32 %v2379, %v2702
    %v2892 = vadd.f32 %v2380, %v2704
    %v2893 = vadd.f32 %v2381, %v2706
    %v2894 = vadd.f32 %v2382, %v2708
    %v2895 = vadd.f32 %v2383, %v2710
    %v2896 = vadd.f32 %v2384, %v2712
    %v2897 = vadd.f32 %v2385, %v2714
    %v2898 = vadd.f32 %v2386, %v2716
    %v2899 = vadd.f32 %v2387, %v2718
    %v2900 = vadd.f32 %v2388, %v2720
    %v2901 = vadd.f32 %v2389, %v2722
    %v2902 = vadd.f32 %v2390, %v2724
    %v2903 = vadd.f32 %v2391, %v2726
    %v2904 = vadd.f32 %v2392, %v2728
    %v2905 = vadd.f32 %v2393, %v2730
    %v2906 = vadd.f32 %v2394, %v2732
    %v2907 = vadd.f32 %v2395, %v2734
    %v2908 = vadd.f32 %v2396, %v2736
    %v2909 = vadd.f32 %v2397, %v2738
    %v2910 = vadd.f32 %v2398, %v2740
    %v2911 = vadd.f32 %v2399, %v2742
    %v2912 = vadd.f32 %v2400, %v2744
    %v2913 = vadd.f32 %v2401, %v2746
    %v2914 = vadd.f32 %v2402, %v2748
    %v2915 = vadd.f32 %v2403, %v2750
    %v2916 = vadd.f32 %v2404, %v2752
    %v2917 = vadd.f32 %v2405, %v2754
    %v2918 = vadd.f32 %v2406, %v2756
    %v2919 = vadd.f32 %v2407, %v2758
    %v2920 = vadd.f32 %v2408, %v2760
    %v2921 = vadd.f32 %v2409, %v2762
    %v2922 = vadd.f32 %v2410, %v2764
    %v2923 = vadd.f32 %v2411, %v2766
    %v2924 = vadd.f32 %v2412, %v2768
    %v2925 = vadd.f32 %v2413, %v2770
    %v2926 = vadd.f32 %v2414, %v2772
    %v2927 = vadd.f32 %v2415, %v2774
    %v2928 = vadd.f32 %v2416, %v2776
    %v2929 = vadd.f32 %v2417, %v2778
    %v2930 = vadd.f32 %v2418, %v2780
    %v2931 = vadd.f32 %v2419, %v2782
    %v2932 = vadd.f32 %v2420, %v2784
    %v2933 = vadd.f32 %v2421, %v2786
    %v2934 = vadd.f32 %v2422, %v2788
    %v2935 = vadd.f32 %v2423, %v2790
    %v2936 = vadd.f32 %v2424, %v2792
    %v2937 = vadd.f32 %v2425, %v2794
    %v2938 = vadd.f32 %v2426, %v2796
    %v2939 = vadd.f32 %v2427, %v2798
    %v2940 = vadd.f32 %v2428, %v2800
    %v2941 = vadd.f32 %v2429, %v2802
    %v2942 = vadd.f32 %v2430, %v2804
    %v2943 = vadd.f32 %v2431, %v2806
    %v2944 = vadd.f32 %v2432, %v2808
    %v2945 = vadd.f32 %v2433, %v2810
    %v2946 = vadd.f32 %v2434, %v2812
    %v2947 = vadd.f32 %v2435, %v2814
    %v2948 = vadd.f32 %v2436, %v2816
    %v2949 = vadd.f32 %v2437, %v2818
    %v2950 = vadd.f32 %v2438, %v2820
    %v2951 = vadd.f32 %v2439, %v2822
    %v2952 = vadd.f32 %v2440, %v2824
    %vm2953 = vcmask 1046528
    %v2954 = vrot.slane %v1393, 1
    %v2955 = vrot.slane %v1396, 1
    %v2956 = vsel %vm2953, %v2954, %v2955
    %v2959 = vrot.slane %v1207, 1
    %v2960 = vrot.slane %v1210, 1
    %v2961 = vsel %vm2953, %v2959, %v2960
    %v2962 = vrot.slane %v1213, 1
    %v2963 = vsel %vm2953, %v2960, %v2962
    %v2964 = vrot.slane %v1216, 1
    %v2965 = vsel %vm2953, %v2962, %v2964
    %v2966 = vrot.slane %v1219, 1
    %v2967 = vsel %vm2953, %v2964, %v2966
    %v2968 = vrot.slane %v1222, 1
    %v2969 = vsel %vm2953, %v2966, %v2968
    %v2970 = vrot.slane %v1225, 1
    %v2971 = vsel %vm2953, %v2968, %v2970
    %v2972 = vrot.slane %v1228, 1
    %v2973 = vsel %vm2953, %v2970, %v2972
    %v2974 = vrot.slane %v1231, 1
    %v2975 = vsel %vm2953, %v2972, %v2974
    %v2976 = vrot.slane %v1234, 1
    %v2977 = vsel %vm2953, %v2974, %v2976
    %v2978 = vrot.slane %v1237, 1
    %v2979 = vsel %vm2953, %v2976, %v2978
    %v2980 = vrot.slane %v1240, 1
    %v2981 = vsel %vm2953, %v2978, %v2980
    %v2982 = vrot.slane %v1243, 1
    %v2983 = vsel %vm2953, %v2980, %v2982
    %v2984 = vrot.slane %v1246, 1
    %v2985 = vsel %vm2953, %v2982, %v2984
    %v2986 = vrot.slane %v1249, 1
    %v2987 = vsel %vm2953, %v2984, %v2986
    %v2988 = vrot.slane %v1252, 1
    %v2989 = vsel %vm2953, %v2986, %v2988
    %v2990 = vrot.slane %v1255, 1
    %v2991 = vsel %vm2953, %v2988, %v2990
    %v2992 = vrot.slane %v1258, 1
    %v2993 = vsel %vm2953, %v2990, %v2992
    %v2994 = vrot.slane %v1261, 1
    %v2995 = vsel %vm2953, %v2992, %v2994
    %v2996 = vrot.slane %v1264, 1
    %v2997 = vsel %vm2953, %v2994, %v2996
    %v2998 = vrot.slane %v1267, 1
    %v2999 = vsel %vm2953, %v2996, %v2998
    %v3000 = vrot.slane %v1270, 1
    %v3001 = vsel %vm2953, %v2998, %v3000
    %v3002 = vrot.slane %v1273, 1
    %v3003 = vsel %vm2953, %v3000, %v3002
    %v3004 = vrot.slane %v1276, 1
    %v3005 = vsel %vm2953, %v3002, %v3004
    %v3006 = vrot.slane %v1279, 1
    %v3007 = vsel %vm2953, %v3004, %v3006
    %v3008 = vrot.slane %v1282, 1
    %v3009 = vsel %vm2953, %v3006, %v3008
    %v3010 = vrot.slane %v1285, 1
    %v3011 = vsel %vm2953, %v3008, %v3010
    %v3012 = vrot.slane %v1288, 1
    %v3013 = vsel %vm2953, %v3010, %v3012
    %v3014 = vrot.slane %v1291, 1
    %v3015 = vsel %vm2953, %v3012, %v3014
    %v3016 = vrot.slane %v1294, 1
    %v3017 = vsel %vm2953, %v3014, %v3016
    %v3018 = vrot.slane %v1297, 1
    %v3019 = vsel %vm2953, %v3016, %v3018
    %v3020 = vrot.slane %v1300, 1
    %v3021 = vsel %vm2953, %v3018, %v3020
    %v3022 = vrot.slane %v1303, 1
    %v3023 = vsel %vm2953, %v3020, %v3022
    %v3024 = vrot.slane %v1306, 1
    %v3025 = vsel %vm2953, %v3022, %v3024
    %v3026 = vrot.slane %v1309, 1
    %v3027 = vsel %vm2953, %v3024, %v3026
    %v3028 = vrot.slane %v1312, 1
    %v3029 = vsel %vm2953, %v3026, %v3028
    %v3030 = vrot.slane %v1315, 1
    %v3031 = vsel %vm2953, %v3028, %v3030
    %v3032 = vrot.slane %v1318, 1
    %v3033 = vsel %vm2953, %v3030, %v3032
    %v3034 = vrot.slane %v1321, 1
    %v3035 = vsel %vm2953, %v3032, %v3034
    %v3036 = vrot.slane %v1324, 1
    %v3037 = vsel %vm2953, %v3034, %v3036
    %v3038 = vrot.slane %v1327, 1
    %v3039 = vsel %vm2953, %v3036, %v3038
    %v3040 = vrot.slane %v1330, 1
    %v3041 = vsel %vm2953, %v3038, %v3040
    %v3042 = vrot.slane %v1333, 1
    %v3043 = vsel %vm2953, %v3040, %v3042
    %v3044 = vrot.slane %v1336, 1
    %v3045 = vsel %vm2953, %v3042, %v3044
    %v3046 = vrot.slane %v1339, 1
    %v3047 = vsel %vm2953, %v3044, %v3046
    %v3048 = vrot.slane %v1342, 1
    %v3049 = vsel %vm2953, %v3046, %v3048
    %v3050 = vrot.slane %v1345, 1
    %v3051 = vsel %vm2953, %v3048, %v3050
    %v3052 = vrot.slane %v1348, 1
    %v3053 = vsel %vm2953, %v3050, %v3052
    %v3054 = vrot.slane %v1351, 1
    %v3055 = vsel %vm2953, %v3052, %v3054
    %v3056 = vrot.slane %v1354, 1
    %v3057 = vsel %vm2953, %v3054, %v3056
    %v3058 = vrot.slane %v1357, 1
    %v3059 = vsel %vm2953, %v3056, %v3058
    %v3060 = vrot.slane %v1360, 1
    %v3061 = vsel %vm2953, %v3058, %v3060
    %v3062 = vrot.slane %v1363, 1
    %v3063 = vsel %vm2953, %v3060, %v3062
    %v3064 = vrot.slane %v1366, 1
    %v3065 = vsel %vm2953, %v3062, %v3064
    %v3066 = vrot.slane %v1369, 1
    %v3067 = vsel %vm2953, %v3064, %v3066
    %v3068 = vrot.slane %v1372, 1
    %v3069 = vsel %vm2953, %v3066, %v3068
    %v3070 = vrot.slane %v1375, 1
    %v3071 = vsel %vm2953, %v3068, %v3070
    %v3072 = vrot.slane %v1378, 1
    %v3073 = vsel %vm2953, %v3070, %v3072
    %v3074 = vrot.slane %v1381, 1
    %v3075 = vsel %vm2953, %v3072, %v3074
    %v3076 = vrot.slane %v1384, 1
    %v3077 = vsel %vm2953, %v3074, %v3076
    %v3078 = vrot.slane %v1387, 1
    %v3079 = vsel %vm2953, %v3076, %v3078
    %v3080 = vrot.slane %v1390, 1
    %v3081 = vsel %vm2953, %v3078, %v3080
    %v3082 = vsel %vm2953, %v3080, %v2954
    %v3146 = vsel %vm2953, %v2955, %v2959
    %vm3147 = vmand %vm667, %vm859
    %vm3148 = vmand %vm668, %vm860
    %vm3149 = vmand %vm669, %vm861
    %vm3150 = vmand %vm670, %vm862
    %vm3151 = vmand %vm671, %vm863
    %vm3152 = vmand %vm672, %vm864
    %vm3153 = vmand %vm673, %vm865
    %vm3154 = vmand %vm674, %vm866
    %vm3155 = vmand %vm675, %vm867
    %vm3156 = vmand %vm676, %vm868
    %vm3157 = vmand %vm677, %vm869
    %vm3158 = vmand %vm678, %vm870
    %vm3159 = vmand %vm679, %vm871
    %vm3160 = vmand %vm680, %vm872
    %vm3161 = vmand %vm681, %vm873
    %vm3162 = vmand %vm682, %vm874
    %vm3163 = vmand %vm683, %vm875
    %vm3164 = vmand %vm684, %vm876
    %vm3165 = vmand %vm685, %vm877
    %vm3166 = vmand %vm686, %vm878
    %vm3167 = vmand %vm687, %vm879
    %vm3168 = vmand %vm688, %vm880
    %vm3169 = vmand %vm689, %vm881
    %vm3170 = vmand %vm690, %vm882
    %vm3171 = vmand %vm691, %vm883
    %vm3172 = vmand %vm692, %vm884
    %vm3173 = vmand %vm693, %vm885
    %vm3174 = vmand %vm694, %vm886
    %vm3175 = vmand %vm695, %vm887
    %vm3176 = vmand %vm696, %vm888
    %vm3177 = vmand %vm697, %vm889
    %vm3178 = vmand %vm698, %vm890
    %vm3179 = vmand %vm699, %vm891
    %vm3180 = vmand %vm700, %vm892
    %vm3181 = vmand %vm701, %vm893
    %vm3182 = vmand %vm702, %vm894
    %vm3183 = vmand %vm703, %vm895
    %vm3184 = vmand %vm704, %vm896
    %vm3185 = vmand %vm705, %vm897
    %vm3186 = vmand %vm706, %vm898
    %vm3187 = vmand %vm707, %vm899
    %vm3188 = vmand %vm708, %vm900
    %vm3189 = vmand %vm709, %vm901
    %vm3190 = vmand %vm710, %vm902
    %vm3191 = vmand %vm711, %vm903
    %vm3192 = vmand %vm712, %vm904
    %vm3193 = vmand %vm713, %vm905
    %vm3194 = vmand %vm714, %vm906
    %vm3195 = vmand %vm715, %vm907
    %vm3196 = vmand %vm716, %vm908
    %vm3197 = vmand %vm717, %vm909
    %vm3198 = vmand %vm718, %vm910
    %vm3199 = vmand %vm719, %vm911
    %vm3200 = vmand %vm720, %vm912
    %vm3201 = vmand %vm721, %vm913
    %vm3202 = vmand %vm722, %vm914
    %vm3203 = vmand %vm723, %vm915
    %vm3204 = vmand %vm724, %vm916
    %vm3205 = vmand %vm725, %vm917
    %vm3206 = vmand %vm726, %vm918
    %vm3207 = vmand %vm727, %vm919
    %vm3208 = vmand %vm728, %vm920
    %vm3209 = vmand %vm729, %vm921
    %vm3210 = vmand %vm730, %vm922
    %v3211 = vsel %vm3147, 1, 0
    %v3212 = vsel %vm3148, 1, 0
    %v3213 = vsel %vm3149, 1, 0
    %v3214 = vsel %vm3150, 1, 0
    %v3215 = vsel %vm3151, 1, 0
    %v3216 = vsel %vm3152, 1, 0
    %v3217 = vsel %vm3153, 1, 0
    %v3218 = vsel %vm3154, 1, 0
    %v3219 = vsel %vm3155, 1, 0
    %v3220 = vsel %vm3156, 1, 0
    %v3221 = vsel %vm3157, 1, 0
    %v3222 = vsel %vm3158, 1, 0
    %v3223 = vsel %vm3159, 1, 0
    %v3224 = vsel %vm3160, 1, 0
    %v3225 = vsel %vm3161, 1, 0
    %v3226 = vsel %vm3162, 1, 0
    %v3227 = vsel %vm3163, 1, 0
    %v3228 = vsel %vm3164, 1, 0
    %v3229 = vsel %vm3165, 1, 0
    %v3230 = vsel %vm3166, 1, 0
    %v3231 = vsel %vm3167, 1, 0
    %v3232 = vsel %vm3168, 1, 0
    %v3233 = vsel %vm3169, 1, 0
    %v3234 = vsel %vm3170, 1, 0
    %v3235 = vsel %vm3171, 1, 0
    %v3236 = vsel %vm3172, 1, 0
    %v3237 = vsel %vm3173, 1, 0
    %v3238 = vsel %vm3174, 1, 0
    %v3239 = vsel %vm3175, 1, 0
    %v3240 = vsel %vm3176, 1, 0
    %v3241 = vsel %vm3177, 1, 0
    %v3242 = vsel %vm3178, 1, 0
    %v3243 = vsel %vm3179, 1, 0
    %v3244 = vsel %vm3180, 1, 0
    %v3245 = vsel %vm3181, 1, 0
    %v3246 = vsel %vm3182, 1, 0
    %v3247 = vsel %vm3183, 1, 0
    %v3248 = vsel %vm3184, 1, 0
    %v3249 = vsel %vm3185, 1, 0
    %v3250 = vsel %vm3186, 1, 0
    %v3251 = vsel %vm3187, 1, 0
    %v3252 = vsel %vm3188, 1, 0
    %v3253 = vsel %vm3189, 1, 0
    %v3254 = vsel %vm3190, 1, 0
    %v3255 = vsel %vm3191, 1, 0
    %v3256 = vsel %vm3192, 1, 0
    %v3257 = vsel %vm3193, 1, 0
    %v3258 = vsel %vm3194, 1, 0
    %v3259 = vsel %vm3195, 1, 0
    %v3260 = vsel %vm3196, 1, 0
    %v3261 = vsel %vm3197, 1, 0
    %v3262 = vsel %vm3198, 1, 0
    %v3263 = vsel %vm3199, 1, 0
    %v3264 = vsel %vm3200, 1, 0
    %v3265 = vsel %vm3201, 1, 0
    %v3266 = vsel %vm3202, 1, 0
    %v3267 = vsel %vm3203, 1, 0
    %v3268 = vsel %vm3204, 1, 0
    %v3269 = vsel %vm3205, 1, 0
    %v3270 = vsel %vm3206, 1, 0
    %v3271 = vsel %vm3207, 1, 0
    %v3272 = vsel %vm3208, 1, 0
    %v3273 = vsel %vm3209, 1, 0
    %v3274 = vsel %vm3210, 1, 0
    %vm3275 = vcmp.eq.s32.totalorder %v3211, 1
    %vm3276 = vcmp.eq.s32.totalorder %v3212, 1
    %vm3277 = vcmp.eq.s32.totalorder %v3213, 1
    %vm3278 = vcmp.eq.s32.totalorder %v3214, 1
    %vm3279 = vcmp.eq.s32.totalorder %v3215, 1
    %vm3280 = vcmp.eq.s32.totalorder %v3216, 1
    %vm3281 = vcmp.eq.s32.totalorder %v3217, 1
    %vm3282 = vcmp.eq.s32.totalorder %v3218, 1
    %vm3283 = vcmp.eq.s32.totalorder %v3219, 1
    %vm3284 = vcmp.eq.s32.totalorder %v3220, 1
    %vm3285 = vcmp.eq.s32.totalorder %v3221, 1
    %vm3286 = vcmp.eq.s32.totalorder %v3222, 1
    %vm3287 = vcmp.eq.s32.totalorder %v3223, 1
    %vm3288 = vcmp.eq.s32.totalorder %v3224, 1
    %vm3289 = vcmp.eq.s32.totalorder %v3225, 1
    %vm3290 = vcmp.eq.s32.totalorder %v3226, 1
    %vm3291 = vcmp.eq.s32.totalorder %v3227, 1
    %vm3292 = vcmp.eq.s32.totalorder %v3228, 1
    %vm3293 = vcmp.eq.s32.totalorder %v3229, 1
    %vm3294 = vcmp.eq.s32.totalorder %v3230, 1
    %vm3295 = vcmp.eq.s32.totalorder %v3231, 1
    %vm3296 = vcmp.eq.s32.totalorder %v3232, 1
    %vm3297 = vcmp.eq.s32.totalorder %v3233, 1
    %vm3298 = vcmp.eq.s32.totalorder %v3234, 1
    %vm3299 = vcmp.eq.s32.totalorder %v3235, 1
    %vm3300 = vcmp.eq.s32.totalorder %v3236, 1
    %vm3301 = vcmp.eq.s32.totalorder %v3237, 1
    %vm3302 = vcmp.eq.s32.totalorder %v3238, 1
    %vm3303 = vcmp.eq.s32.totalorder %v3239, 1
    %vm3304 = vcmp.eq.s32.totalorder %v3240, 1
    %vm3305 = vcmp.eq.s32.totalorder %v3241, 1
    %vm3306 = vcmp.eq.s32.totalorder %v3242, 1
    %vm3307 = vcmp.eq.s32.totalorder %v3243, 1
    %vm3308 = vcmp.eq.s32.totalorder %v3244, 1
    %vm3309 = vcmp.eq.s32.totalorder %v3245, 1
    %vm3310 = vcmp.eq.s32.totalorder %v3246, 1
    %vm3311 = vcmp.eq.s32.totalorder %v3247, 1
    %vm3312 = vcmp.eq.s32.totalorder %v3248, 1
    %vm3313 = vcmp.eq.s32.totalorder %v3249, 1
    %vm3314 = vcmp.eq.s32.totalorder %v3250, 1
    %vm3315 = vcmp.eq.s32.totalorder %v3251, 1
    %vm3316 = vcmp.eq.s32.totalorder %v3252, 1
    %vm3317 = vcmp.eq.s32.totalorder %v3253, 1
    %vm3318 = vcmp.eq.s32.totalorder %v3254, 1
    %vm3319 = vcmp.eq.s32.totalorder %v3255, 1
    %vm3320 = vcmp.eq.s32.totalorder %v3256, 1
    %vm3321 = vcmp.eq.s32.totalorder %v3257, 1
    %vm3322 = vcmp.eq.s32.totalorder %v3258, 1
    %vm3323 = vcmp.eq.s32.totalorder %v3259, 1
    %vm3324 = vcmp.eq.s32.totalorder %v3260, 1
    %vm3325 = vcmp.eq.s32.totalorder %v3261, 1
    %vm3326 = vcmp.eq.s32.totalorder %v3262, 1
    %vm3327 = vcmp.eq.s32.totalorder %v3263, 1
    %vm3328 = vcmp.eq.s32.totalorder %v3264, 1
    %vm3329 = vcmp.eq.s32.totalorder %v3265, 1
    %vm3330 = vcmp.eq.s32.totalorder %v3266, 1
    %vm3331 = vcmp.eq.s32.totalorder %v3267, 1
    %vm3332 = vcmp.eq.s32.totalorder %v3268, 1
    %vm3333 = vcmp.eq.s32.totalorder %v3269, 1
    %vm3334 = vcmp.eq.s32.totalorder %v3270, 1
    %vm3335 = vcmp.eq.s32.totalorder %v3271, 1
    %vm3336 = vcmp.eq.s32.totalorder %v3272, 1
    %vm3337 = vcmp.eq.s32.totalorder %v3273, 1
    %vm3338 = vcmp.eq.s32.totalorder %v3274, 1
    %v3339 = vsel %vm3275, %v2956, 0.0
    %v3340 = vsel %vm3276, %v3146, 0.0
    %v3341 = vsel %vm3277, %v2961, 0.0
    %v3342 = vsel %vm3278, %v2963, 0.0
    %v3343 = vsel %vm3279, %v2965, 0.0
    %v3344 = vsel %vm3280, %v2967, 0.0
    %v3345 = vsel %vm3281, %v2969, 0.0
    %v3346 = vsel %vm3282, %v2971, 0.0
    %v3347 = vsel %vm3283, %v2973, 0.0
    %v3348 = vsel %vm3284, %v2975, 0.0
    %v3349 = vsel %vm3285, %v2977, 0.0
    %v3350 = vsel %vm3286, %v2979, 0.0
    %v3351 = vsel %vm3287, %v2981, 0.0
    %v3352 = vsel %vm3288, %v2983, 0.0
    %v3353 = vsel %vm3289, %v2985, 0.0
    %v3354 = vsel %vm3290, %v2987, 0.0
    %v3355 = vsel %vm3291, %v2989, 0.0
    %v3356 = vsel %vm3292, %v2991, 0.0
    %v3357 = vsel %vm3293, %v2993, 0.0
    %v3358 = vsel %vm3294, %v2995, 0.0
    %v3359 = vsel %vm3295, %v2997, 0.0
    %v3360 = vsel %vm3296, %v2999, 0.0
    %v3361 = vsel %vm3297, %v3001, 0.0
    %v3362 = vsel %vm3298, %v3003, 0.0
    %v3363 = vsel %vm3299, %v3005, 0.0
    %v3364 = vsel %vm3300, %v3007, 0.0
    %v3365 = vsel %vm3301, %v3009, 0.0
    %v3366 = vsel %vm3302, %v3011, 0.0
    %v3367 = vsel %vm3303, %v3013, 0.0
    %v3368 = vsel %vm3304, %v3015, 0.0
    %v3369 = vsel %vm3305, %v3017, 0.0
    %v3370 = vsel %vm3306, %v3019, 0.0
    %v3371 = vsel %vm3307, %v3021, 0.0
    %v3372 = vsel %vm3308, %v3023, 0.0
    %v3373 = vsel %vm3309, %v3025, 0.0
    %v3374 = vsel %vm3310, %v3027, 0.0
    %v3375 = vsel %vm3311, %v3029, 0.0
    %v3376 = vsel %vm3312, %v3031, 0.0
    %v3377 = vsel %vm3313, %v3033, 0.0
    %v3378 = vsel %vm3314, %v3035, 0.0
    %v3379 = vsel %vm3315, %v3037, 0.0
    %v3380 = vsel %vm3316, %v3039, 0.0
    %v3381 = vsel %vm3317, %v3041, 0.0
    %v3382 = vsel %vm3318, %v3043, 0.0
    %v3383 = vsel %vm3319, %v3045, 0.0
    %v3384 = vsel %vm3320, %v3047, 0.0
    %v3385 = vsel %vm3321, %v3049, 0.0
    %v3386 = vsel %vm3322, %v3051, 0.0
    %v3387 = vsel %vm3323, %v3053, 0.0
    %v3388 = vsel %vm3324, %v3055, 0.0
    %v3389 = vsel %vm3325, %v3057, 0.0
    %v3390 = vsel %vm3326, %v3059, 0.0
    %v3391 = vsel %vm3327, %v3061, 0.0
    %v3392 = vsel %vm3328, %v3063, 0.0
    %v3393 = vsel %vm3329, %v3065, 0.0
    %v3394 = vsel %vm3330, %v3067, 0.0
    %v3395 = vsel %vm3331, %v3069, 0.0
    %v3396 = vsel %vm3332, %v3071, 0.0
    %v3397 = vsel %vm3333, %v3073, 0.0
    %v3398 = vsel %vm3334, %v3075, 0.0
    %v3399 = vsel %vm3335, %v3077, 0.0
    %v3400 = vsel %vm3336, %v3079, 0.0
    %v3401 = vsel %vm3337, %v3081, 0.0
    %v3402 = vsel %vm3338, %v3082, 0.0
    %3467 = vrot.lane.b32.xlu0 %v3339, 32
    %v3468 = vpop.permute.xlu0 %3467
    %3469 = vrot.lane.b32.xlu0 %v3340, 32
    %v3470 = vpop.permute.xlu0 %3469
    %3471 = vrot.lane.b32.xlu0 %v3341, 32
    %v3472 = vpop.permute.xlu0 %3471
    %3473 = vrot.lane.b32.xlu0 %v3342, 32
    %v3474 = vpop.permute.xlu0 %3473
    %3475 = vrot.lane.b32.xlu0 %v3343, 32
    %v3476 = vpop.permute.xlu0 %3475
    %3477 = vrot.lane.b32.xlu0 %v3344, 32
    %v3478 = vpop.permute.xlu0 %3477
    %3479 = vrot.lane.b32.xlu0 %v3345, 32
    %v3480 = vpop.permute.xlu0 %3479
    %3481 = vrot.lane.b32.xlu0 %v3346, 32
    %v3482 = vpop.permute.xlu0 %3481
    %3483 = vrot.lane.b32.xlu0 %v3347, 32
    %v3484 = vpop.permute.xlu0 %3483
    %3485 = vrot.lane.b32.xlu0 %v3348, 32
    %v3486 = vpop.permute.xlu0 %3485
    %3487 = vrot.lane.b32.xlu0 %v3349, 32
    %v3488 = vpop.permute.xlu0 %3487
    %3489 = vrot.lane.b32.xlu0 %v3350, 32
    %v3490 = vpop.permute.xlu0 %3489
    %3491 = vrot.lane.b32.xlu0 %v3351, 32
    %v3492 = vpop.permute.xlu0 %3491
    %3493 = vrot.lane.b32.xlu0 %v3352, 32
    %v3494 = vpop.permute.xlu0 %3493
    %3495 = vrot.lane.b32.xlu0 %v3353, 32
    %v3496 = vpop.permute.xlu0 %3495
    %3497 = vrot.lane.b32.xlu0 %v3354, 32
    %v3498 = vpop.permute.xlu0 %3497
    %3499 = vrot.lane.b32.xlu0 %v3355, 32
    %v3500 = vpop.permute.xlu0 %3499
    %3501 = vrot.lane.b32.xlu0 %v3356, 32
    %v3502 = vpop.permute.xlu0 %3501
    %3503 = vrot.lane.b32.xlu0 %v3357, 32
    %v3504 = vpop.permute.xlu0 %3503
    %3505 = vrot.lane.b32.xlu0 %v3358, 32
    %v3506 = vpop.permute.xlu0 %3505
    %3507 = vrot.lane.b32.xlu0 %v3359, 32
    %v3508 = vpop.permute.xlu0 %3507
    %3509 = vrot.lane.b32.xlu0 %v3360, 32
    %v3510 = vpop.permute.xlu0 %3509
    %3511 = vrot.lane.b32.xlu0 %v3361, 32
    %v3512 = vpop.permute.xlu0 %3511
    %3513 = vrot.lane.b32.xlu0 %v3362, 32
    %v3514 = vpop.permute.xlu0 %3513
    %3515 = vrot.lane.b32.xlu0 %v3363, 32
    %v3516 = vpop.permute.xlu0 %3515
    %3517 = vrot.lane.b32.xlu0 %v3364, 32
    %v3518 = vpop.permute.xlu0 %3517
    %3519 = vrot.lane.b32.xlu0 %v3365, 32
    %v3520 = vpop.permute.xlu0 %3519
    %3521 = vrot.lane.b32.xlu0 %v3366, 32
    %v3522 = vpop.permute.xlu0 %3521
    %3523 = vrot.lane.b32.xlu0 %v3367, 32
    %v3524 = vpop.permute.xlu0 %3523
    %3525 = vrot.lane.b32.xlu0 %v3368, 32
    %v3526 = vpop.permute.xlu0 %3525
    %3527 = vrot.lane.b32.xlu0 %v3369, 32
    %v3528 = vpop.permute.xlu0 %3527
    %3529 = vrot.lane.b32.xlu0 %v3370, 32
    %v3530 = vpop.permute.xlu0 %3529
    %3531 = vrot.lane.b32.xlu0 %v3371, 32
    %v3532 = vpop.permute.xlu0 %3531
    %3533 = vrot.lane.b32.xlu0 %v3372, 32
    %v3534 = vpop.permute.xlu0 %3533
    %3535 = vrot.lane.b32.xlu0 %v3373, 32
    %v3536 = vpop.permute.xlu0 %3535
    %3537 = vrot.lane.b32.xlu0 %v3374, 32
    %v3538 = vpop.permute.xlu0 %3537
    %3539 = vrot.lane.b32.xlu0 %v3375, 32
    %v3540 = vpop.permute.xlu0 %3539
    %3541 = vrot.lane.b32.xlu0 %v3376, 32
    %v3542 = vpop.permute.xlu0 %3541
    %3543 = vrot.lane.b32.xlu0 %v3377, 32
    %v3544 = vpop.permute.xlu0 %3543
    %3545 = vrot.lane.b32.xlu0 %v3378, 32
    %v3546 = vpop.permute.xlu0 %3545
    %3547 = vrot.lane.b32.xlu0 %v3379, 32
    %v3548 = vpop.permute.xlu0 %3547
    %3549 = vrot.lane.b32.xlu0 %v3380, 32
    %v3550 = vpop.permute.xlu0 %3549
    %3551 = vrot.lane.b32.xlu0 %v3381, 32
    %v3552 = vpop.permute.xlu0 %3551
    %3553 = vrot.lane.b32.xlu0 %v3382, 32
    %v3554 = vpop.permute.xlu0 %3553
    %3555 = vrot.lane.b32.xlu0 %v3383, 32
    %v3556 = vpop.permute.xlu0 %3555
    %3557 = vrot.lane.b32.xlu0 %v3384, 32
    %v3558 = vpop.permute.xlu0 %3557
    %3559 = vrot.lane.b32.xlu0 %v3385, 32
    %v3560 = vpop.permute.xlu0 %3559
    %3561 = vrot.lane.b32.xlu0 %v3386, 32
    %v3562 = vpop.permute.xlu0 %3561
    %3563 = vrot.lane.b32.xlu0 %v3387, 32
    %v3564 = vpop.permute.xlu0 %3563
    %3565 = vrot.lane.b32.xlu0 %v3388, 32
    %v3566 = vpop.permute.xlu0 %3565
    %3567 = vrot.lane.b32.xlu0 %v3389, 32
    %v3568 = vpop.permute.xlu0 %3567
    %3569 = vrot.lane.b32.xlu0 %v3390, 32
    %v3570 = vpop.permute.xlu0 %3569
    %3571 = vrot.lane.b32.xlu0 %v3391, 32
    %v3572 = vpop.permute.xlu0 %3571
    %3573 = vrot.lane.b32.xlu0 %v3392, 32
    %v3574 = vpop.permute.xlu0 %3573
    %3575 = vrot.lane.b32.xlu0 %v3393, 32
    %v3576 = vpop.permute.xlu0 %3575
    %3577 = vrot.lane.b32.xlu0 %v3394, 32
    %v3578 = vpop.permute.xlu0 %3577
    %3579 = vrot.lane.b32.xlu0 %v3395, 32
    %v3580 = vpop.permute.xlu0 %3579
    %3581 = vrot.lane.b32.xlu0 %v3396, 32
    %v3582 = vpop.permute.xlu0 %3581
    %3583 = vrot.lane.b32.xlu0 %v3397, 32
    %v3584 = vpop.permute.xlu0 %3583
    %3585 = vrot.lane.b32.xlu0 %v3398, 32
    %v3586 = vpop.permute.xlu0 %3585
    %3587 = vrot.lane.b32.xlu0 %v3399, 32
    %v3588 = vpop.permute.xlu0 %3587
    %3589 = vrot.lane.b32.xlu0 %v3400, 32
    %v3590 = vpop.permute.xlu0 %3589
    %3591 = vrot.lane.b32.xlu0 %v3401, 32
    %v3592 = vpop.permute.xlu0 %3591
    %3593 = vrot.lane.b32.xlu0 %v3402, 32
    %v3594 = vpop.permute.xlu0 %3593
    %v3659 = vadd.f32 %v2889, %v3468
    %v3660 = vadd.f32 %v2890, %v3470
    %v3661 = vadd.f32 %v2891, %v3472
    %v3662 = vadd.f32 %v2892, %v3474
    %v3663 = vadd.f32 %v2893, %v3476
    %v3664 = vadd.f32 %v2894, %v3478
    %v3665 = vadd.f32 %v2895, %v3480
    %v3666 = vadd.f32 %v2896, %v3482
    %v3667 = vadd.f32 %v2897, %v3484
    %v3668 = vadd.f32 %v2898, %v3486
    %v3669 = vadd.f32 %v2899, %v3488
    %v3670 = vadd.f32 %v2900, %v3490
    %v3671 = vadd.f32 %v2901, %v3492
    %v3672 = vadd.f32 %v2902, %v3494
    %v3673 = vadd.f32 %v2903, %v3496
    %v3674 = vadd.f32 %v2904, %v3498
    %v3675 = vadd.f32 %v2905, %v3500
    %v3676 = vadd.f32 %v2906, %v3502
    %v3677 = vadd.f32 %v2907, %v3504
    %v3678 = vadd.f32 %v2908, %v3506
    %v3679 = vadd.f32 %v2909, %v3508
    %v3680 = vadd.f32 %v2910, %v3510
    %v3681 = vadd.f32 %v2911, %v3512
    %v3682 = vadd.f32 %v2912, %v3514
    %v3683 = vadd.f32 %v2913, %v3516
    %v3684 = vadd.f32 %v2914, %v3518
    %v3685 = vadd.f32 %v2915, %v3520
    %v3686 = vadd.f32 %v2916, %v3522
    %v3687 = vadd.f32 %v2917, %v3524
    %v3688 = vadd.f32 %v2918, %v3526
    %v3689 = vadd.f32 %v2919, %v3528
    %v3690 = vadd.f32 %v2920, %v3530
    %v3691 = vadd.f32 %v2921, %v3532
    %v3692 = vadd.f32 %v2922, %v3534
    %v3693 = vadd.f32 %v2923, %v3536
    %v3694 = vadd.f32 %v2924, %v3538
    %v3695 = vadd.f32 %v2925, %v3540
    %v3696 = vadd.f32 %v2926, %v3542
    %v3697 = vadd.f32 %v2927, %v3544
    %v3698 = vadd.f32 %v2928, %v3546
    %v3699 = vadd.f32 %v2929, %v3548
    %v3700 = vadd.f32 %v2930, %v3550
    %v3701 = vadd.f32 %v2931, %v3552
    %v3702 = vadd.f32 %v2932, %v3554
    %v3703 = vadd.f32 %v2933, %v3556
    %v3704 = vadd.f32 %v2934, %v3558
    %v3705 = vadd.f32 %v2935, %v3560
    %v3706 = vadd.f32 %v2936, %v3562
    %v3707 = vadd.f32 %v2937, %v3564
    %v3708 = vadd.f32 %v2938, %v3566
    %v3709 = vadd.f32 %v2939, %v3568
    %v3710 = vadd.f32 %v2940, %v3570
    %v3711 = vadd.f32 %v2941, %v3572
    %v3712 = vadd.f32 %v2942, %v3574
    %v3713 = vadd.f32 %v2943, %v3576
    %v3714 = vadd.f32 %v2944, %v3578
    %v3715 = vadd.f32 %v2945, %v3580
    %v3716 = vadd.f32 %v2946, %v3582
    %v3717 = vadd.f32 %v2947, %v3584
    %v3718 = vadd.f32 %v2948, %v3586
    %v3719 = vadd.f32 %v2949, %v3588
    %v3720 = vadd.f32 %v2950, %v3590
    %v3721 = vadd.f32 %v2951, %v3592
    %v3722 = vadd.f32 %v2952, %v3594
    %v3723 = vsel %vm795, 1, 0
    %v3724 = vsel %vm796, 1, 0
    %v3725 = vsel %vm797, 1, 0
    %v3726 = vsel %vm798, 1, 0
    %v3727 = vsel %vm799, 1, 0
    %v3728 = vsel %vm800, 1, 0
    %v3729 = vsel %vm801, 1, 0
    %v3730 = vsel %vm802, 1, 0
    %v3731 = vsel %vm803, 1, 0
    %v3732 = vsel %vm804, 1, 0
    %v3733 = vsel %vm805, 1, 0
    %v3734 = vsel %vm806, 1, 0
    %v3735 = vsel %vm807, 1, 0
    %v3736 = vsel %vm808, 1, 0
    %v3737 = vsel %vm809, 1, 0
    %v3738 = vsel %vm810, 1, 0
    %v3739 = vsel %vm811, 1, 0
    %v3740 = vsel %vm812, 1, 0
    %v3741 = vsel %vm813, 1, 0
    %v3742 = vsel %vm814, 1, 0
    %v3743 = vsel %vm815, 1, 0
    %v3744 = vsel %vm816, 1, 0
    %v3745 = vsel %vm817, 1, 0
    %v3746 = vsel %vm818, 1, 0
    %v3747 = vsel %vm819, 1, 0
    %v3748 = vsel %vm820, 1, 0
    %v3749 = vsel %vm821, 1, 0
    %v3750 = vsel %vm822, 1, 0
    %v3751 = vsel %vm823, 1, 0
    %v3752 = vsel %vm824, 1, 0
    %v3753 = vsel %vm825, 1, 0
    %v3754 = vsel %vm826, 1, 0
    %v3755 = vsel %vm827, 1, 0
    %v3756 = vsel %vm828, 1, 0
    %v3757 = vsel %vm829, 1, 0
    %v3758 = vsel %vm830, 1, 0
    %v3759 = vsel %vm831, 1, 0
    %v3760 = vsel %vm832, 1, 0
    %v3761 = vsel %vm833, 1, 0
    %v3762 = vsel %vm834, 1, 0
    %v3763 = vsel %vm835, 1, 0
    %v3764 = vsel %vm836, 1, 0
    %v3765 = vsel %vm837, 1, 0
    %v3766 = vsel %vm838, 1, 0
    %v3767 = vsel %vm839, 1, 0
    %v3768 = vsel %vm840, 1, 0
    %v3769 = vsel %vm841, 1, 0
    %v3770 = vsel %vm842, 1, 0
    %v3771 = vsel %vm843, 1, 0
    %v3772 = vsel %vm844, 1, 0
    %v3773 = vsel %vm845, 1, 0
    %v3774 = vsel %vm846, 1, 0
    %v3775 = vsel %vm847, 1, 0
    %v3776 = vsel %vm848, 1, 0
    %v3777 = vsel %vm849, 1, 0
    %v3778 = vsel %vm850, 1, 0
    %v3779 = vsel %vm851, 1, 0
    %v3780 = vsel %vm852, 1, 0
    %v3781 = vsel %vm853, 1, 0
    %v3782 = vsel %vm854, 1, 0
    %v3783 = vsel %vm855, 1, 0
    %v3784 = vsel %vm856, 1, 0
    %v3785 = vsel %vm857, 1, 0
    %v3786 = vsel %vm858, 1, 0
    %vm3787 = vcmp.eq.s32.totalorder %v3723, 1
    %vm3788 = vcmp.eq.s32.totalorder %v3724, 1
    %vm3789 = vcmp.eq.s32.totalorder %v3725, 1
    %vm3790 = vcmp.eq.s32.totalorder %v3726, 1
    %vm3791 = vcmp.eq.s32.totalorder %v3727, 1
    %vm3792 = vcmp.eq.s32.totalorder %v3728, 1
    %vm3793 = vcmp.eq.s32.totalorder %v3729, 1
    %vm3794 = vcmp.eq.s32.totalorder %v3730, 1
    %vm3795 = vcmp.eq.s32.totalorder %v3731, 1
    %vm3796 = vcmp.eq.s32.totalorder %v3732, 1
    %vm3797 = vcmp.eq.s32.totalorder %v3733, 1
    %vm3798 = vcmp.eq.s32.totalorder %v3734, 1
    %vm3799 = vcmp.eq.s32.totalorder %v3735, 1
    %vm3800 = vcmp.eq.s32.totalorder %v3736, 1
    %vm3801 = vcmp.eq.s32.totalorder %v3737, 1
    %vm3802 = vcmp.eq.s32.totalorder %v3738, 1
    %vm3803 = vcmp.eq.s32.totalorder %v3739, 1
    %vm3804 = vcmp.eq.s32.totalorder %v3740, 1
    %vm3805 = vcmp.eq.s32.totalorder %v3741, 1
    %vm3806 = vcmp.eq.s32.totalorder %v3742, 1
    %vm3807 = vcmp.eq.s32.totalorder %v3743, 1
    %vm3808 = vcmp.eq.s32.totalorder %v3744, 1
    %vm3809 = vcmp.eq.s32.totalorder %v3745, 1
    %vm3810 = vcmp.eq.s32.totalorder %v3746, 1
    %vm3811 = vcmp.eq.s32.totalorder %v3747, 1
    %vm3812 = vcmp.eq.s32.totalorder %v3748, 1
    %vm3813 = vcmp.eq.s32.totalorder %v3749, 1
    %vm3814 = vcmp.eq.s32.totalorder %v3750, 1
    %vm3815 = vcmp.eq.s32.totalorder %v3751, 1
    %vm3816 = vcmp.eq.s32.totalorder %v3752, 1
    %vm3817 = vcmp.eq.s32.totalorder %v3753, 1
    %vm3818 = vcmp.eq.s32.totalorder %v3754, 1
    %vm3819 = vcmp.eq.s32.totalorder %v3755, 1
    %vm3820 = vcmp.eq.s32.totalorder %v3756, 1
    %vm3821 = vcmp.eq.s32.totalorder %v3757, 1
    %vm3822 = vcmp.eq.s32.totalorder %v3758, 1
    %vm3823 = vcmp.eq.s32.totalorder %v3759, 1
    %vm3824 = vcmp.eq.s32.totalorder %v3760, 1
    %vm3825 = vcmp.eq.s32.totalorder %v3761, 1
    %vm3826 = vcmp.eq.s32.totalorder %v3762, 1
    %vm3827 = vcmp.eq.s32.totalorder %v3763, 1
    %vm3828 = vcmp.eq.s32.totalorder %v3764, 1
    %vm3829 = vcmp.eq.s32.totalorder %v3765, 1
    %vm3830 = vcmp.eq.s32.totalorder %v3766, 1
    %vm3831 = vcmp.eq.s32.totalorder %v3767, 1
    %vm3832 = vcmp.eq.s32.totalorder %v3768, 1
    %vm3833 = vcmp.eq.s32.totalorder %v3769, 1
    %vm3834 = vcmp.eq.s32.totalorder %v3770, 1
    %vm3835 = vcmp.eq.s32.totalorder %v3771, 1
    %vm3836 = vcmp.eq.s32.totalorder %v3772, 1
    %vm3837 = vcmp.eq.s32.totalorder %v3773, 1
    %vm3838 = vcmp.eq.s32.totalorder %v3774, 1
    %vm3839 = vcmp.eq.s32.totalorder %v3775, 1
    %vm3840 = vcmp.eq.s32.totalorder %v3776, 1
    %vm3841 = vcmp.eq.s32.totalorder %v3777, 1
    %vm3842 = vcmp.eq.s32.totalorder %v3778, 1
    %vm3843 = vcmp.eq.s32.totalorder %v3779, 1
    %vm3844 = vcmp.eq.s32.totalorder %v3780, 1
    %vm3845 = vcmp.eq.s32.totalorder %v3781, 1
    %vm3846 = vcmp.eq.s32.totalorder %v3782, 1
    %vm3847 = vcmp.eq.s32.totalorder %v3783, 1
    %vm3848 = vcmp.eq.s32.totalorder %v3784, 1
    %vm3849 = vcmp.eq.s32.totalorder %v3785, 1
    %vm3850 = vcmp.eq.s32.totalorder %v3786, 1
    %v3851 = vsel %vm3787, %v1864, 0.0
    %v3852 = vsel %vm3788, %v1682, 0.0
    %v3853 = vsel %vm3789, %v1684, 0.0
    %v3854 = vsel %vm3790, %v1686, 0.0
    %v3855 = vsel %vm3791, %v1688, 0.0
    %v3856 = vsel %vm3792, %v1690, 0.0
    %v3857 = vsel %vm3793, %v1692, 0.0
    %v3858 = vsel %vm3794, %v1694, 0.0
    %v3859 = vsel %vm3795, %v1696, 0.0
    %v3860 = vsel %vm3796, %v1698, 0.0
    %v3861 = vsel %vm3797, %v1700, 0.0
    %v3862 = vsel %vm3798, %v1702, 0.0
    %v3863 = vsel %vm3799, %v1704, 0.0
    %v3864 = vsel %vm3800, %v1706, 0.0
    %v3865 = vsel %vm3801, %v1708, 0.0
    %v3866 = vsel %vm3802, %v1710, 0.0
    %v3867 = vsel %vm3803, %v1712, 0.0
    %v3868 = vsel %vm3804, %v1714, 0.0
    %v3869 = vsel %vm3805, %v1716, 0.0
    %v3870 = vsel %vm3806, %v1718, 0.0
    %v3871 = vsel %vm3807, %v1720, 0.0
    %v3872 = vsel %vm3808, %v1722, 0.0
    %v3873 = vsel %vm3809, %v1724, 0.0
    %v3874 = vsel %vm3810, %v1726, 0.0
    %v3875 = vsel %vm3811, %v1728, 0.0
    %v3876 = vsel %vm3812, %v1730, 0.0
    %v3877 = vsel %vm3813, %v1732, 0.0
    %v3878 = vsel %vm3814, %v1734, 0.0
    %v3879 = vsel %vm3815, %v1736, 0.0
    %v3880 = vsel %vm3816, %v1738, 0.0
    %v3881 = vsel %vm3817, %v1740, 0.0
    %v3882 = vsel %vm3818, %v1742, 0.0
    %v3883 = vsel %vm3819, %v1744, 0.0
    %v3884 = vsel %vm3820, %v1746, 0.0
    %v3885 = vsel %vm3821, %v1748, 0.0
    %v3886 = vsel %vm3822, %v1750, 0.0
    %v3887 = vsel %vm3823, %v1752, 0.0
    %v3888 = vsel %vm3824, %v1754, 0.0
    %v3889 = vsel %vm3825, %v1756, 0.0
    %v3890 = vsel %vm3826, %v1758, 0.0
    %v3891 = vsel %vm3827, %v1760, 0.0
    %v3892 = vsel %vm3828, %v1762, 0.0
    %v3893 = vsel %vm3829, %v1764, 0.0
    %v3894 = vsel %vm3830, %v1766, 0.0
    %v3895 = vsel %vm3831, %v1768, 0.0
    %v3896 = vsel %vm3832, %v1770, 0.0
    %v3897 = vsel %vm3833, %v1772, 0.0
    %v3898 = vsel %vm3834, %v1774, 0.0
    %v3899 = vsel %vm3835, %v1776, 0.0
    %v3900 = vsel %vm3836, %v1778, 0.0
    %v3901 = vsel %vm3837, %v1780, 0.0
    %v3902 = vsel %vm3838, %v1782, 0.0
    %v3903 = vsel %vm3839, %v1784, 0.0
    %v3904 = vsel %vm3840, %v1786, 0.0
    %v3905 = vsel %vm3841, %v1788, 0.0
    %v3906 = vsel %vm3842, %v1790, 0.0
    %v3907 = vsel %vm3843, %v1792, 0.0
    %v3908 = vsel %vm3844, %v1794, 0.0
    %v3909 = vsel %vm3845, %v1796, 0.0
    %v3910 = vsel %vm3846, %v1798, 0.0
    %v3911 = vsel %vm3847, %v1800, 0.0
    %v3912 = vsel %vm3848, %v1801, 0.0
    %v3913 = vsel %vm3849, %v1613, 0.0
    %v3914 = vsel %vm3850, %v1615, 0.0
    %3979 = vrot.lane.b32.xlu0 %v3851, 16
    %v3980 = vpop.permute.xlu0 %3979
    %3981 = vrot.lane.b32.xlu0 %v3852, 16
    %v3982 = vpop.permute.xlu0 %3981
    %3983 = vrot.lane.b32.xlu0 %v3853, 16
    %v3984 = vpop.permute.xlu0 %3983
    %3985 = vrot.lane.b32.xlu0 %v3854, 16
    %v3986 = vpop.permute.xlu0 %3985
    %3987 = vrot.lane.b32.xlu0 %v3855, 16
    %v3988 = vpop.permute.xlu0 %3987
    %3989 = vrot.lane.b32.xlu0 %v3856, 16
    %v3990 = vpop.permute.xlu0 %3989
    %3991 = vrot.lane.b32.xlu0 %v3857, 16
    %v3992 = vpop.permute.xlu0 %3991
    %3993 = vrot.lane.b32.xlu0 %v3858, 16
    %v3994 = vpop.permute.xlu0 %3993
    %3995 = vrot.lane.b32.xlu0 %v3859, 16
    %v3996 = vpop.permute.xlu0 %3995
    %3997 = vrot.lane.b32.xlu0 %v3860, 16
    %v3998 = vpop.permute.xlu0 %3997
    %3999 = vrot.lane.b32.xlu0 %v3861, 16
    %v4000 = vpop.permute.xlu0 %3999
    %4001 = vrot.lane.b32.xlu0 %v3862, 16
    %v4002 = vpop.permute.xlu0 %4001
    %4003 = vrot.lane.b32.xlu0 %v3863, 16
    %v4004 = vpop.permute.xlu0 %4003
    %4005 = vrot.lane.b32.xlu0 %v3864, 16
    %v4006 = vpop.permute.xlu0 %4005
    %4007 = vrot.lane.b32.xlu0 %v3865, 16
    %v4008 = vpop.permute.xlu0 %4007
    %4009 = vrot.lane.b32.xlu0 %v3866, 16
    %v4010 = vpop.permute.xlu0 %4009
    %4011 = vrot.lane.b32.xlu0 %v3867, 16
    %v4012 = vpop.permute.xlu0 %4011
    %4013 = vrot.lane.b32.xlu0 %v3868, 16
    %v4014 = vpop.permute.xlu0 %4013
    %4015 = vrot.lane.b32.xlu0 %v3869, 16
    %v4016 = vpop.permute.xlu0 %4015
    %4017 = vrot.lane.b32.xlu0 %v3870, 16
    %v4018 = vpop.permute.xlu0 %4017
    %4019 = vrot.lane.b32.xlu0 %v3871, 16
    %v4020 = vpop.permute.xlu0 %4019
    %4021 = vrot.lane.b32.xlu0 %v3872, 16
    %v4022 = vpop.permute.xlu0 %4021
    %4023 = vrot.lane.b32.xlu0 %v3873, 16
    %v4024 = vpop.permute.xlu0 %4023
    %4025 = vrot.lane.b32.xlu0 %v3874, 16
    %v4026 = vpop.permute.xlu0 %4025
    %4027 = vrot.lane.b32.xlu0 %v3875, 16
    %v4028 = vpop.permute.xlu0 %4027
    %4029 = vrot.lane.b32.xlu0 %v3876, 16
    %v4030 = vpop.permute.xlu0 %4029
    %4031 = vrot.lane.b32.xlu0 %v3877, 16
    %v4032 = vpop.permute.xlu0 %4031
    %4033 = vrot.lane.b32.xlu0 %v3878, 16
    %v4034 = vpop.permute.xlu0 %4033
    %4035 = vrot.lane.b32.xlu0 %v3879, 16
    %v4036 = vpop.permute.xlu0 %4035
    %4037 = vrot.lane.b32.xlu0 %v3880, 16
    %v4038 = vpop.permute.xlu0 %4037
    %4039 = vrot.lane.b32.xlu0 %v3881, 16
    %v4040 = vpop.permute.xlu0 %4039
    %4041 = vrot.lane.b32.xlu0 %v3882, 16
    %v4042 = vpop.permute.xlu0 %4041
    %4043 = vrot.lane.b32.xlu0 %v3883, 16
    %v4044 = vpop.permute.xlu0 %4043
    %4045 = vrot.lane.b32.xlu0 %v3884, 16
    %v4046 = vpop.permute.xlu0 %4045
    %4047 = vrot.lane.b32.xlu0 %v3885, 16
    %v4048 = vpop.permute.xlu0 %4047
    %4049 = vrot.lane.b32.xlu0 %v3886, 16
    %v4050 = vpop.permute.xlu0 %4049
    %4051 = vrot.lane.b32.xlu0 %v3887, 16
    %v4052 = vpop.permute.xlu0 %4051
    %4053 = vrot.lane.b32.xlu0 %v3888, 16
    %v4054 = vpop.permute.xlu0 %4053
    %4055 = vrot.lane.b32.xlu0 %v3889, 16
    %v4056 = vpop.permute.xlu0 %4055
    %4057 = vrot.lane.b32.xlu0 %v3890, 16
    %v4058 = vpop.permute.xlu0 %4057
    %4059 = vrot.lane.b32.xlu0 %v3891, 16
    %v4060 = vpop.permute.xlu0 %4059
    %4061 = vrot.lane.b32.xlu0 %v3892, 16
    %v4062 = vpop.permute.xlu0 %4061
    %4063 = vrot.lane.b32.xlu0 %v3893, 16
    %v4064 = vpop.permute.xlu0 %4063
    %4065 = vrot.lane.b32.xlu0 %v3894, 16
    %v4066 = vpop.permute.xlu0 %4065
    %4067 = vrot.lane.b32.xlu0 %v3895, 16
    %v4068 = vpop.permute.xlu0 %4067
    %4069 = vrot.lane.b32.xlu0 %v3896, 16
    %v4070 = vpop.permute.xlu0 %4069
    %4071 = vrot.lane.b32.xlu0 %v3897, 16
    %v4072 = vpop.permute.xlu0 %4071
    %4073 = vrot.lane.b32.xlu0 %v3898, 16
    %v4074 = vpop.permute.xlu0 %4073
    %4075 = vrot.lane.b32.xlu0 %v3899, 16
    %v4076 = vpop.permute.xlu0 %4075
    %4077 = vrot.lane.b32.xlu0 %v3900, 16
    %v4078 = vpop.permute.xlu0 %4077
    %4079 = vrot.lane.b32.xlu0 %v3901, 16
    %v4080 = vpop.permute.xlu0 %4079
    %4081 = vrot.lane.b32.xlu0 %v3902, 16
    %v4082 = vpop.permute.xlu0 %4081
    %4083 = vrot.lane.b32.xlu0 %v3903, 16
    %v4084 = vpop.permute.xlu0 %4083
    %4085 = vrot.lane.b32.xlu0 %v3904, 16
    %v4086 = vpop.permute.xlu0 %4085
    %4087 = vrot.lane.b32.xlu0 %v3905, 16
    %v4088 = vpop.permute.xlu0 %4087
    %4089 = vrot.lane.b32.xlu0 %v3906, 16
    %v4090 = vpop.permute.xlu0 %4089
    %4091 = vrot.lane.b32.xlu0 %v3907, 16
    %v4092 = vpop.permute.xlu0 %4091
    %4093 = vrot.lane.b32.xlu0 %v3908, 16
    %v4094 = vpop.permute.xlu0 %4093
    %4095 = vrot.lane.b32.xlu0 %v3909, 16
    %v4096 = vpop.permute.xlu0 %4095
    %4097 = vrot.lane.b32.xlu0 %v3910, 16
    %v4098 = vpop.permute.xlu0 %4097
    %4099 = vrot.lane.b32.xlu0 %v3911, 16
    %v4100 = vpop.permute.xlu0 %4099
    %4101 = vrot.lane.b32.xlu0 %v3912, 16
    %v4102 = vpop.permute.xlu0 %4101
    %4103 = vrot.lane.b32.xlu0 %v3913, 16
    %v4104 = vpop.permute.xlu0 %4103
    %4105 = vrot.lane.b32.xlu0 %v3914, 16
    %v4106 = vpop.permute.xlu0 %4105
    %v4171 = vadd.f32 %v3659, %v3980
    %v4172 = vadd.f32 %v3660, %v3982
    %v4173 = vadd.f32 %v3661, %v3984
    %v4174 = vadd.f32 %v3662, %v3986
    %v4175 = vadd.f32 %v3663, %v3988
    %v4176 = vadd.f32 %v3664, %v3990
    %v4177 = vadd.f32 %v3665, %v3992
    %v4178 = vadd.f32 %v3666, %v3994
    %v4179 = vadd.f32 %v3667, %v3996
    %v4180 = vadd.f32 %v3668, %v3998
    %v4181 = vadd.f32 %v3669, %v4000
    %v4182 = vadd.f32 %v3670, %v4002
    %v4183 = vadd.f32 %v3671, %v4004
    %v4184 = vadd.f32 %v3672, %v4006
    %v4185 = vadd.f32 %v3673, %v4008
    %v4186 = vadd.f32 %v3674, %v4010
    %v4187 = vadd.f32 %v3675, %v4012
    %v4188 = vadd.f32 %v3676, %v4014
    %v4189 = vadd.f32 %v3677, %v4016
    %v4190 = vadd.f32 %v3678, %v4018
    %v4191 = vadd.f32 %v3679, %v4020
    %v4192 = vadd.f32 %v3680, %v4022
    %v4193 = vadd.f32 %v3681, %v4024
    %v4194 = vadd.f32 %v3682, %v4026
    %v4195 = vadd.f32 %v3683, %v4028
    %v4196 = vadd.f32 %v3684, %v4030
    %v4197 = vadd.f32 %v3685, %v4032
    %v4198 = vadd.f32 %v3686, %v4034
    %v4199 = vadd.f32 %v3687, %v4036
    %v4200 = vadd.f32 %v3688, %v4038
    %v4201 = vadd.f32 %v3689, %v4040
    %v4202 = vadd.f32 %v3690, %v4042
    %v4203 = vadd.f32 %v3691, %v4044
    %v4204 = vadd.f32 %v3692, %v4046
    %v4205 = vadd.f32 %v3693, %v4048
    %v4206 = vadd.f32 %v3694, %v4050
    %v4207 = vadd.f32 %v3695, %v4052
    %v4208 = vadd.f32 %v3696, %v4054
    %v4209 = vadd.f32 %v3697, %v4056
    %v4210 = vadd.f32 %v3698, %v4058
    %v4211 = vadd.f32 %v3699, %v4060
    %v4212 = vadd.f32 %v3700, %v4062
    %v4213 = vadd.f32 %v3701, %v4064
    %v4214 = vadd.f32 %v3702, %v4066
    %v4215 = vadd.f32 %v3703, %v4068
    %v4216 = vadd.f32 %v3704, %v4070
    %v4217 = vadd.f32 %v3705, %v4072
    %v4218 = vadd.f32 %v3706, %v4074
    %v4219 = vadd.f32 %v3707, %v4076
    %v4220 = vadd.f32 %v3708, %v4078
    %v4221 = vadd.f32 %v3709, %v4080
    %v4222 = vadd.f32 %v3710, %v4082
    %v4223 = vadd.f32 %v3711, %v4084
    %v4224 = vadd.f32 %v3712, %v4086
    %v4225 = vadd.f32 %v3713, %v4088
    %v4226 = vadd.f32 %v3714, %v4090
    %v4227 = vadd.f32 %v3715, %v4092
    %v4228 = vadd.f32 %v3716, %v4094
    %v4229 = vadd.f32 %v3717, %v4096
    %v4230 = vadd.f32 %v3718, %v4098
    %v4231 = vadd.f32 %v3719, %v4100
    %v4232 = vadd.f32 %v3720, %v4102
    %v4233 = vadd.f32 %v3721, %v4104
    %v4234 = vadd.f32 %v3722, %v4106
    %v4235 = vsel %vm859, 1, 0
    %v4236 = vsel %vm860, 1, 0
    %v4237 = vsel %vm861, 1, 0
    %v4238 = vsel %vm862, 1, 0
    %v4239 = vsel %vm863, 1, 0
    %v4240 = vsel %vm864, 1, 0
    %v4241 = vsel %vm865, 1, 0
    %v4242 = vsel %vm866, 1, 0
    %v4243 = vsel %vm867, 1, 0
    %v4244 = vsel %vm868, 1, 0
    %v4245 = vsel %vm869, 1, 0
    %v4246 = vsel %vm870, 1, 0
    %v4247 = vsel %vm871, 1, 0
    %v4248 = vsel %vm872, 1, 0
    %v4249 = vsel %vm873, 1, 0
    %v4250 = vsel %vm874, 1, 0
    %v4251 = vsel %vm875, 1, 0
    %v4252 = vsel %vm876, 1, 0
    %v4253 = vsel %vm877, 1, 0
    %v4254 = vsel %vm878, 1, 0
    %v4255 = vsel %vm879, 1, 0
    %v4256 = vsel %vm880, 1, 0
    %v4257 = vsel %vm881, 1, 0
    %v4258 = vsel %vm882, 1, 0
    %v4259 = vsel %vm883, 1, 0
    %v4260 = vsel %vm884, 1, 0
    %v4261 = vsel %vm885, 1, 0
    %v4262 = vsel %vm886, 1, 0
    %v4263 = vsel %vm887, 1, 0
    %v4264 = vsel %vm888, 1, 0
    %v4265 = vsel %vm889, 1, 0
    %v4266 = vsel %vm890, 1, 0
    %v4267 = vsel %vm891, 1, 0
    %v4268 = vsel %vm892, 1, 0
    %v4269 = vsel %vm893, 1, 0
    %v4270 = vsel %vm894, 1, 0
    %v4271 = vsel %vm895, 1, 0
    %v4272 = vsel %vm896, 1, 0
    %v4273 = vsel %vm897, 1, 0
    %v4274 = vsel %vm898, 1, 0
    %v4275 = vsel %vm899, 1, 0
    %v4276 = vsel %vm900, 1, 0
    %v4277 = vsel %vm901, 1, 0
    %v4278 = vsel %vm902, 1, 0
    %v4279 = vsel %vm903, 1, 0
    %v4280 = vsel %vm904, 1, 0
    %v4281 = vsel %vm905, 1, 0
    %v4282 = vsel %vm906, 1, 0
    %v4283 = vsel %vm907, 1, 0
    %v4284 = vsel %vm908, 1, 0
    %v4285 = vsel %vm909, 1, 0
    %v4286 = vsel %vm910, 1, 0
    %v4287 = vsel %vm911, 1, 0
    %v4288 = vsel %vm912, 1, 0
    %v4289 = vsel %vm913, 1, 0
    %v4290 = vsel %vm914, 1, 0
    %v4291 = vsel %vm915, 1, 0
    %v4292 = vsel %vm916, 1, 0
    %v4293 = vsel %vm917, 1, 0
    %v4294 = vsel %vm918, 1, 0
    %v4295 = vsel %vm919, 1, 0
    %v4296 = vsel %vm920, 1, 0
    %v4297 = vsel %vm921, 1, 0
    %v4298 = vsel %vm922, 1, 0
    %vm4299 = vcmp.eq.s32.totalorder %v4235, 1
    %vm4300 = vcmp.eq.s32.totalorder %v4236, 1
    %vm4301 = vcmp.eq.s32.totalorder %v4237, 1
    %vm4302 = vcmp.eq.s32.totalorder %v4238, 1
    %vm4303 = vcmp.eq.s32.totalorder %v4239, 1
    %vm4304 = vcmp.eq.s32.totalorder %v4240, 1
    %vm4305 = vcmp.eq.s32.totalorder %v4241, 1
    %vm4306 = vcmp.eq.s32.totalorder %v4242, 1
    %vm4307 = vcmp.eq.s32.totalorder %v4243, 1
    %vm4308 = vcmp.eq.s32.totalorder %v4244, 1
    %vm4309 = vcmp.eq.s32.totalorder %v4245, 1
    %vm4310 = vcmp.eq.s32.totalorder %v4246, 1
    %vm4311 = vcmp.eq.s32.totalorder %v4247, 1
    %vm4312 = vcmp.eq.s32.totalorder %v4248, 1
    %vm4313 = vcmp.eq.s32.totalorder %v4249, 1
    %vm4314 = vcmp.eq.s32.totalorder %v4250, 1
    %vm4315 = vcmp.eq.s32.totalorder %v4251, 1
    %vm4316 = vcmp.eq.s32.totalorder %v4252, 1
    %vm4317 = vcmp.eq.s32.totalorder %v4253, 1
    %vm4318 = vcmp.eq.s32.totalorder %v4254, 1
    %vm4319 = vcmp.eq.s32.totalorder %v4255, 1
    %vm4320 = vcmp.eq.s32.totalorder %v4256, 1
    %vm4321 = vcmp.eq.s32.totalorder %v4257, 1
    %vm4322 = vcmp.eq.s32.totalorder %v4258, 1
    %vm4323 = vcmp.eq.s32.totalorder %v4259, 1
    %vm4324 = vcmp.eq.s32.totalorder %v4260, 1
    %vm4325 = vcmp.eq.s32.totalorder %v4261, 1
    %vm4326 = vcmp.eq.s32.totalorder %v4262, 1
    %vm4327 = vcmp.eq.s32.totalorder %v4263, 1
    %vm4328 = vcmp.eq.s32.totalorder %v4264, 1
    %vm4329 = vcmp.eq.s32.totalorder %v4265, 1
    %vm4330 = vcmp.eq.s32.totalorder %v4266, 1
    %vm4331 = vcmp.eq.s32.totalorder %v4267, 1
    %vm4332 = vcmp.eq.s32.totalorder %v4268, 1
    %vm4333 = vcmp.eq.s32.totalorder %v4269, 1
    %vm4334 = vcmp.eq.s32.totalorder %v4270, 1
    %vm4335 = vcmp.eq.s32.totalorder %v4271, 1
    %vm4336 = vcmp.eq.s32.totalorder %v4272, 1
    %vm4337 = vcmp.eq.s32.totalorder %v4273, 1
    %vm4338 = vcmp.eq.s32.totalorder %v4274, 1
    %vm4339 = vcmp.eq.s32.totalorder %v4275, 1
    %vm4340 = vcmp.eq.s32.totalorder %v4276, 1
    %vm4341 = vcmp.eq.s32.totalorder %v4277, 1
    %vm4342 = vcmp.eq.s32.totalorder %v4278, 1
    %vm4343 = vcmp.eq.s32.totalorder %v4279, 1
    %vm4344 = vcmp.eq.s32.totalorder %v4280, 1
    %vm4345 = vcmp.eq.s32.totalorder %v4281, 1
    %vm4346 = vcmp.eq.s32.totalorder %v4282, 1
    %vm4347 = vcmp.eq.s32.totalorder %v4283, 1
    %vm4348 = vcmp.eq.s32.totalorder %v4284, 1
    %vm4349 = vcmp.eq.s32.totalorder %v4285, 1
    %vm4350 = vcmp.eq.s32.totalorder %v4286, 1
    %vm4351 = vcmp.eq.s32.totalorder %v4287, 1
    %vm4352 = vcmp.eq.s32.totalorder %v4288, 1
    %vm4353 = vcmp.eq.s32.totalorder %v4289, 1
    %vm4354 = vcmp.eq.s32.totalorder %v4290, 1
    %vm4355 = vcmp.eq.s32.totalorder %v4291, 1
    %vm4356 = vcmp.eq.s32.totalorder %v4292, 1
    %vm4357 = vcmp.eq.s32.totalorder %v4293, 1
    %vm4358 = vcmp.eq.s32.totalorder %v4294, 1
    %vm4359 = vcmp.eq.s32.totalorder %v4295, 1
    %vm4360 = vcmp.eq.s32.totalorder %v4296, 1
    %vm4361 = vcmp.eq.s32.totalorder %v4297, 1
    %vm4362 = vcmp.eq.s32.totalorder %v4298, 1
    %v4363 = vsel %vm4299, %v2961, 0.0
    %v4364 = vsel %vm4300, %v2963, 0.0
    %v4365 = vsel %vm4301, %v2965, 0.0
    %v4366 = vsel %vm4302, %v2967, 0.0
    %v4367 = vsel %vm4303, %v2969, 0.0
    %v4368 = vsel %vm4304, %v2971, 0.0
    %v4369 = vsel %vm4305, %v2973, 0.0
    %v4370 = vsel %vm4306, %v2975, 0.0
    %v4371 = vsel %vm4307, %v2977, 0.0
    %v4372 = vsel %vm4308, %v2979, 0.0
    %v4373 = vsel %vm4309, %v2981, 0.0
    %v4374 = vsel %vm4310, %v2983, 0.0
    %v4375 = vsel %vm4311, %v2985, 0.0
    %v4376 = vsel %vm4312, %v2987, 0.0
    %v4377 = vsel %vm4313, %v2989, 0.0
    %v4378 = vsel %vm4314, %v2991, 0.0
    %v4379 = vsel %vm4315, %v2993, 0.0
    %v4380 = vsel %vm4316, %v2995, 0.0
    %v4381 = vsel %vm4317, %v2997, 0.0
    %v4382 = vsel %vm4318, %v2999, 0.0
    %v4383 = vsel %vm4319, %v3001, 0.0
    %v4384 = vsel %vm4320, %v3003, 0.0
    %v4385 = vsel %vm4321, %v3005, 0.0
    %v4386 = vsel %vm4322, %v3007, 0.0
    %v4387 = vsel %vm4323, %v3009, 0.0
    %v4388 = vsel %vm4324, %v3011, 0.0
    %v4389 = vsel %vm4325, %v3013, 0.0
    %v4390 = vsel %vm4326, %v3015, 0.0
    %v4391 = vsel %vm4327, %v3017, 0.0
    %v4392 = vsel %vm4328, %v3019, 0.0
    %v4393 = vsel %vm4329, %v3021, 0.0
    %v4394 = vsel %vm4330, %v3023, 0.0
    %v4395 = vsel %vm4331, %v3025, 0.0
    %v4396 = vsel %vm4332, %v3027, 0.0
    %v4397 = vsel %vm4333, %v3029, 0.0
    %v4398 = vsel %vm4334, %v3031, 0.0
    %v4399 = vsel %vm4335, %v3033, 0.0
    %v4400 = vsel %vm4336, %v3035, 0.0
    %v4401 = vsel %vm4337, %v3037, 0.0
    %v4402 = vsel %vm4338, %v3039, 0.0
    %v4403 = vsel %vm4339, %v3041, 0.0
    %v4404 = vsel %vm4340, %v3043, 0.0
    %v4405 = vsel %vm4341, %v3045, 0.0
    %v4406 = vsel %vm4342, %v3047, 0.0
    %v4407 = vsel %vm4343, %v3049, 0.0
    %v4408 = vsel %vm4344, %v3051, 0.0
    %v4409 = vsel %vm4345, %v3053, 0.0
    %v4410 = vsel %vm4346, %v3055, 0.0
    %v4411 = vsel %vm4347, %v3057, 0.0
    %v4412 = vsel %vm4348, %v3059, 0.0
    %v4413 = vsel %vm4349, %v3061, 0.0
    %v4414 = vsel %vm4350, %v3063, 0.0
    %v4415 = vsel %vm4351, %v3065, 0.0
    %v4416 = vsel %vm4352, %v3067, 0.0
    %v4417 = vsel %vm4353, %v3069, 0.0
    %v4418 = vsel %vm4354, %v3071, 0.0
    %v4419 = vsel %vm4355, %v3073, 0.0
    %v4420 = vsel %vm4356, %v3075, 0.0
    %v4421 = vsel %vm4357, %v3077, 0.0
    %v4422 = vsel %vm4358, %v3079, 0.0
    %v4423 = vsel %vm4359, %v3081, 0.0
    %v4424 = vsel %vm4360, %v3082, 0.0
    %v4425 = vsel %vm4361, %v2956, 0.0
    %v4426 = vsel %vm4362, %v3146, 0.0
    %4491 = vrot.lane.b32.xlu0 %v4363, 112
    %v4492 = vpop.permute.xlu0 %4491
    %4493 = vrot.lane.b32.xlu0 %v4364, 112
    %v4494 = vpop.permute.xlu0 %4493
    %4495 = vrot.lane.b32.xlu0 %v4365, 112
    %v4496 = vpop.permute.xlu0 %4495
    %4497 = vrot.lane.b32.xlu0 %v4366, 112
    %v4498 = vpop.permute.xlu0 %4497
    %4499 = vrot.lane.b32.xlu0 %v4367, 112
    %v4500 = vpop.permute.xlu0 %4499
    %4501 = vrot.lane.b32.xlu0 %v4368, 112
    %v4502 = vpop.permute.xlu0 %4501
    %4503 = vrot.lane.b32.xlu0 %v4369, 112
    %v4504 = vpop.permute.xlu0 %4503
    %4505 = vrot.lane.b32.xlu0 %v4370, 112
    %v4506 = vpop.permute.xlu0 %4505
    %4507 = vrot.lane.b32.xlu0 %v4371, 112
    %v4508 = vpop.permute.xlu0 %4507
    %4509 = vrot.lane.b32.xlu0 %v4372, 112
    %v4510 = vpop.permute.xlu0 %4509
    %4511 = vrot.lane.b32.xlu0 %v4373, 112
    %v4512 = vpop.permute.xlu0 %4511
    %4513 = vrot.lane.b32.xlu0 %v4374, 112
    %v4514 = vpop.permute.xlu0 %4513
    %4515 = vrot.lane.b32.xlu0 %v4375, 112
    %v4516 = vpop.permute.xlu0 %4515
    %4517 = vrot.lane.b32.xlu0 %v4376, 112
    %v4518 = vpop.permute.xlu0 %4517
    %4519 = vrot.lane.b32.xlu0 %v4377, 112
    %v4520 = vpop.permute.xlu0 %4519
    %4521 = vrot.lane.b32.xlu0 %v4378, 112
    %v4522 = vpop.permute.xlu0 %4521
    %4523 = vrot.lane.b32.xlu0 %v4379, 112
    %v4524 = vpop.permute.xlu0 %4523
    %4525 = vrot.lane.b32.xlu0 %v4380, 112
    %v4526 = vpop.permute.xlu0 %4525
    %4527 = vrot.lane.b32.xlu0 %v4381, 112
    %v4528 = vpop.permute.xlu0 %4527
    %4529 = vrot.lane.b32.xlu0 %v4382, 112
    %v4530 = vpop.permute.xlu0 %4529
    %4531 = vrot.lane.b32.xlu0 %v4383, 112
    %v4532 = vpop.permute.xlu0 %4531
    %4533 = vrot.lane.b32.xlu0 %v4384, 112
    %v4534 = vpop.permute.xlu0 %4533
    %4535 = vrot.lane.b32.xlu0 %v4385, 112
    %v4536 = vpop.permute.xlu0 %4535
    %4537 = vrot.lane.b32.xlu0 %v4386, 112
    %v4538 = vpop.permute.xlu0 %4537
    %4539 = vrot.lane.b32.xlu0 %v4387, 112
    %v4540 = vpop.permute.xlu0 %4539
    %4541 = vrot.lane.b32.xlu0 %v4388, 112
    %v4542 = vpop.permute.xlu0 %4541
    %4543 = vrot.lane.b32.xlu0 %v4389, 112
    %v4544 = vpop.permute.xlu0 %4543
    %4545 = vrot.lane.b32.xlu0 %v4390, 112
    %v4546 = vpop.permute.xlu0 %4545
    %4547 = vrot.lane.b32.xlu0 %v4391, 112
    %v4548 = vpop.permute.xlu0 %4547
    %4549 = vrot.lane.b32.xlu0 %v4392, 112
    %v4550 = vpop.permute.xlu0 %4549
    %4551 = vrot.lane.b32.xlu0 %v4393, 112
    %v4552 = vpop.permute.xlu0 %4551
    %4553 = vrot.lane.b32.xlu0 %v4394, 112
    %v4554 = vpop.permute.xlu0 %4553
    %4555 = vrot.lane.b32.xlu0 %v4395, 112
    %v4556 = vpop.permute.xlu0 %4555
    %4557 = vrot.lane.b32.xlu0 %v4396, 112
    %v4558 = vpop.permute.xlu0 %4557
    %4559 = vrot.lane.b32.xlu0 %v4397, 112
    %v4560 = vpop.permute.xlu0 %4559
    %4561 = vrot.lane.b32.xlu0 %v4398, 112
    %v4562 = vpop.permute.xlu0 %4561
    %4563 = vrot.lane.b32.xlu0 %v4399, 112
    %v4564 = vpop.permute.xlu0 %4563
    %4565 = vrot.lane.b32.xlu0 %v4400, 112
    %v4566 = vpop.permute.xlu0 %4565
    %4567 = vrot.lane.b32.xlu0 %v4401, 112
    %v4568 = vpop.permute.xlu0 %4567
    %4569 = vrot.lane.b32.xlu0 %v4402, 112
    %v4570 = vpop.permute.xlu0 %4569
    %4571 = vrot.lane.b32.xlu0 %v4403, 112
    %v4572 = vpop.permute.xlu0 %4571
    %4573 = vrot.lane.b32.xlu0 %v4404, 112
    %v4574 = vpop.permute.xlu0 %4573
    %4575 = vrot.lane.b32.xlu0 %v4405, 112
    %v4576 = vpop.permute.xlu0 %4575
    %4577 = vrot.lane.b32.xlu0 %v4406, 112
    %v4578 = vpop.permute.xlu0 %4577
    %4579 = vrot.lane.b32.xlu0 %v4407, 112
    %v4580 = vpop.permute.xlu0 %4579
    %4581 = vrot.lane.b32.xlu0 %v4408, 112
    %v4582 = vpop.permute.xlu0 %4581
    %4583 = vrot.lane.b32.xlu0 %v4409, 112
    %v4584 = vpop.permute.xlu0 %4583
    %4585 = vrot.lane.b32.xlu0 %v4410, 112
    %v4586 = vpop.permute.xlu0 %4585
    %4587 = vrot.lane.b32.xlu0 %v4411, 112
    %v4588 = vpop.permute.xlu0 %4587
    %4589 = vrot.lane.b32.xlu0 %v4412, 112
    %v4590 = vpop.permute.xlu0 %4589
    %4591 = vrot.lane.b32.xlu0 %v4413, 112
    %v4592 = vpop.permute.xlu0 %4591
    %4593 = vrot.lane.b32.xlu0 %v4414, 112
    %v4594 = vpop.permute.xlu0 %4593
    %4595 = vrot.lane.b32.xlu0 %v4415, 112
    %v4596 = vpop.permute.xlu0 %4595
    %4597 = vrot.lane.b32.xlu0 %v4416, 112
    %v4598 = vpop.permute.xlu0 %4597
    %4599 = vrot.lane.b32.xlu0 %v4417, 112
    %v4600 = vpop.permute.xlu0 %4599
    %4601 = vrot.lane.b32.xlu0 %v4418, 112
    %v4602 = vpop.permute.xlu0 %4601
    %4603 = vrot.lane.b32.xlu0 %v4419, 112
    %v4604 = vpop.permute.xlu0 %4603
    %4605 = vrot.lane.b32.xlu0 %v4420, 112
    %v4606 = vpop.permute.xlu0 %4605
    %4607 = vrot.lane.b32.xlu0 %v4421, 112
    %v4608 = vpop.permute.xlu0 %4607
    %4609 = vrot.lane.b32.xlu0 %v4422, 112
    %v4610 = vpop.permute.xlu0 %4609
    %4611 = vrot.lane.b32.xlu0 %v4423, 112
    %v4612 = vpop.permute.xlu0 %4611
    %4613 = vrot.lane.b32.xlu0 %v4424, 112
    %v4614 = vpop.permute.xlu0 %4613
    %4615 = vrot.lane.b32.xlu0 %v4425, 112
    %v4616 = vpop.permute.xlu0 %4615
    %4617 = vrot.lane.b32.xlu0 %v4426, 112
    %v4618 = vpop.permute.xlu0 %4617
    %v4683 = vadd.f32 %v4171, %v4492
    %v4684 = vadd.f32 %v4172, %v4494
    %v4685 = vadd.f32 %v4173, %v4496
    %v4686 = vadd.f32 %v4174, %v4498
    %v4687 = vadd.f32 %v4175, %v4500
    %v4688 = vadd.f32 %v4176, %v4502
    %v4689 = vadd.f32 %v4177, %v4504
    %v4690 = vadd.f32 %v4178, %v4506
    %v4691 = vadd.f32 %v4179, %v4508
    %v4692 = vadd.f32 %v4180, %v4510
    %v4693 = vadd.f32 %v4181, %v4512
    %v4694 = vadd.f32 %v4182, %v4514
    %v4695 = vadd.f32 %v4183, %v4516
    %v4696 = vadd.f32 %v4184, %v4518
    %v4697 = vadd.f32 %v4185, %v4520
    %v4698 = vadd.f32 %v4186, %v4522
    %v4699 = vadd.f32 %v4187, %v4524
    %v4700 = vadd.f32 %v4188, %v4526
    %v4701 = vadd.f32 %v4189, %v4528
    %v4702 = vadd.f32 %v4190, %v4530
    %v4703 = vadd.f32 %v4191, %v4532
    %v4704 = vadd.f32 %v4192, %v4534
    %v4705 = vadd.f32 %v4193, %v4536
    %v4706 = vadd.f32 %v4194, %v4538
    %v4707 = vadd.f32 %v4195, %v4540
    %v4708 = vadd.f32 %v4196, %v4542
    %v4709 = vadd.f32 %v4197, %v4544
    %v4710 = vadd.f32 %v4198, %v4546
    %v4711 = vadd.f32 %v4199, %v4548
    %v4712 = vadd.f32 %v4200, %v4550
    %v4713 = vadd.f32 %v4201, %v4552
    %v4714 = vadd.f32 %v4202, %v4554
    %v4715 = vadd.f32 %v4203, %v4556
    %v4716 = vadd.f32 %v4204, %v4558
    %v4717 = vadd.f32 %v4205, %v4560
    %v4718 = vadd.f32 %v4206, %v4562
    %v4719 = vadd.f32 %v4207, %v4564
    %v4720 = vadd.f32 %v4208, %v4566
    %v4721 = vadd.f32 %v4209, %v4568
    %v4722 = vadd.f32 %v4210, %v4570
    %v4723 = vadd.f32 %v4211, %v4572
    %v4724 = vadd.f32 %v4212, %v4574
    %v4725 = vadd.f32 %v4213, %v4576
    %v4726 = vadd.f32 %v4214, %v4578
    %v4727 = vadd.f32 %v4215, %v4580
    %v4728 = vadd.f32 %v4216, %v4582
    %v4729 = vadd.f32 %v4217, %v4584
    %v4730 = vadd.f32 %v4218, %v4586
    %v4731 = vadd.f32 %v4219, %v4588
    %v4732 = vadd.f32 %v4220, %v4590
    %v4733 = vadd.f32 %v4221, %v4592
    %v4734 = vadd.f32 %v4222, %v4594
    %v4735 = vadd.f32 %v4223, %v4596
    %v4736 = vadd.f32 %v4224, %v4598
    %v4737 = vadd.f32 %v4225, %v4600
    %v4738 = vadd.f32 %v4226, %v4602
    %v4739 = vadd.f32 %v4227, %v4604
    %v4740 = vadd.f32 %v4228, %v4606
    %v4741 = vadd.f32 %v4229, %v4608
    %v4742 = vadd.f32 %v4230, %v4610
    %v4743 = vadd.f32 %v4231, %v4612
    %v4744 = vadd.f32 %v4232, %v4614
    %v4745 = vadd.f32 %v4233, %v4616
    %v4746 = vadd.f32 %v4234, %v4618
    %vm4747 = vmand %vm731, %vm795
    %vm4748 = vmand %vm732, %vm796
    %vm4749 = vmand %vm733, %vm797
    %vm4750 = vmand %vm734, %vm798
    %vm4751 = vmand %vm735, %vm799
    %vm4752 = vmand %vm736, %vm800
    %vm4753 = vmand %vm737, %vm801
    %vm4754 = vmand %vm738, %vm802
    %vm4755 = vmand %vm739, %vm803
    %vm4756 = vmand %vm740, %vm804
    %vm4757 = vmand %vm741, %vm805
    %vm4758 = vmand %vm742, %vm806
    %vm4759 = vmand %vm743, %vm807
    %vm4760 = vmand %vm744, %vm808
    %vm4761 = vmand %vm745, %vm809
    %vm4762 = vmand %vm746, %vm810
    %vm4763 = vmand %vm747, %vm811
    %vm4764 = vmand %vm748, %vm812
    %vm4765 = vmand %vm749, %vm813
    %vm4766 = vmand %vm750, %vm814
    %vm4767 = vmand %vm751, %vm815
    %vm4768 = vmand %vm752, %vm816
    %vm4769 = vmand %vm753, %vm817
    %vm4770 = vmand %vm754, %vm818
    %vm4771 = vmand %vm755, %vm819
    %vm4772 = vmand %vm756, %vm820
    %vm4773 = vmand %vm757, %vm821
    %vm4774 = vmand %vm758, %vm822
    %vm4775 = vmand %vm759, %vm823
    %vm4776 = vmand %vm760, %vm824
    %vm4777 = vmand %vm761, %vm825
    %vm4778 = vmand %vm762, %vm826
    %vm4779 = vmand %vm763, %vm827
    %vm4780 = vmand %vm764, %vm828
    %vm4781 = vmand %vm765, %vm829
    %vm4782 = vmand %vm766, %vm830
    %vm4783 = vmand %vm767, %vm831
    %vm4784 = vmand %vm768, %vm832
    %vm4785 = vmand %vm769, %vm833
    %vm4786 = vmand %vm770, %vm834
    %vm4787 = vmand %vm771, %vm835
    %vm4788 = vmand %vm772, %vm836
    %vm4789 = vmand %vm773, %vm837
    %vm4790 = vmand %vm774, %vm838
    %vm4791 = vmand %vm775, %vm839
    %vm4792 = vmand %vm776, %vm840
    %vm4793 = vmand %vm777, %vm841
    %vm4794 = vmand %vm778, %vm842
    %vm4795 = vmand %vm779, %vm843
    %vm4796 = vmand %vm780, %vm844
    %vm4797 = vmand %vm781, %vm845
    %vm4798 = vmand %vm782, %vm846
    %vm4799 = vmand %vm783, %vm847
    %vm4800 = vmand %vm784, %vm848
    %vm4801 = vmand %vm785, %vm849
    %vm4802 = vmand %vm786, %vm850
    %vm4803 = vmand %vm787, %vm851
    %vm4804 = vmand %vm788, %vm852
    %vm4805 = vmand %vm789, %vm853
    %vm4806 = vmand %vm790, %vm854
    %vm4807 = vmand %vm791, %vm855
    %vm4808 = vmand %vm792, %vm856
    %vm4809 = vmand %vm793, %vm857
    %vm4810 = vmand %vm794, %vm858
    %v4811 = vsel %vm4747, 1, 0
    %v4812 = vsel %vm4748, 1, 0
    %v4813 = vsel %vm4749, 1, 0
    %v4814 = vsel %vm4750, 1, 0
    %v4815 = vsel %vm4751, 1, 0
    %v4816 = vsel %vm4752, 1, 0
    %v4817 = vsel %vm4753, 1, 0
    %v4818 = vsel %vm4754, 1, 0
    %v4819 = vsel %vm4755, 1, 0
    %v4820 = vsel %vm4756, 1, 0
    %v4821 = vsel %vm4757, 1, 0
    %v4822 = vsel %vm4758, 1, 0
    %v4823 = vsel %vm4759, 1, 0
    %v4824 = vsel %vm4760, 1, 0
    %v4825 = vsel %vm4761, 1, 0
    %v4826 = vsel %vm4762, 1, 0
    %v4827 = vsel %vm4763, 1, 0
    %v4828 = vsel %vm4764, 1, 0
    %v4829 = vsel %vm4765, 1, 0
    %v4830 = vsel %vm4766, 1, 0
    %v4831 = vsel %vm4767, 1, 0
    %v4832 = vsel %vm4768, 1, 0
    %v4833 = vsel %vm4769, 1, 0
    %v4834 = vsel %vm4770, 1, 0
    %v4835 = vsel %vm4771, 1, 0
    %v4836 = vsel %vm4772, 1, 0
    %v4837 = vsel %vm4773, 1, 0
    %v4838 = vsel %vm4774, 1, 0
    %v4839 = vsel %vm4775, 1, 0
    %v4840 = vsel %vm4776, 1, 0
    %v4841 = vsel %vm4777, 1, 0
    %v4842 = vsel %vm4778, 1, 0
    %v4843 = vsel %vm4779, 1, 0
    %v4844 = vsel %vm4780, 1, 0
    %v4845 = vsel %vm4781, 1, 0
    %v4846 = vsel %vm4782, 1, 0
    %v4847 = vsel %vm4783, 1, 0
    %v4848 = vsel %vm4784, 1, 0
    %v4849 = vsel %vm4785, 1, 0
    %v4850 = vsel %vm4786, 1, 0
    %v4851 = vsel %vm4787, 1, 0
    %v4852 = vsel %vm4788, 1, 0
    %v4853 = vsel %vm4789, 1, 0
    %v4854 = vsel %vm4790, 1, 0
    %v4855 = vsel %vm4791, 1, 0
    %v4856 = vsel %vm4792, 1, 0
    %v4857 = vsel %vm4793, 1, 0
    %v4858 = vsel %vm4794, 1, 0
    %v4859 = vsel %vm4795, 1, 0
    %v4860 = vsel %vm4796, 1, 0
    %v4861 = vsel %vm4797, 1, 0
    %v4862 = vsel %vm4798, 1, 0
    %v4863 = vsel %vm4799, 1, 0
    %v4864 = vsel %vm4800, 1, 0
    %v4865 = vsel %vm4801, 1, 0
    %v4866 = vsel %vm4802, 1, 0
    %v4867 = vsel %vm4803, 1, 0
    %v4868 = vsel %vm4804, 1, 0
    %v4869 = vsel %vm4805, 1, 0
    %v4870 = vsel %vm4806, 1, 0
    %v4871 = vsel %vm4807, 1, 0
    %v4872 = vsel %vm4808, 1, 0
    %v4873 = vsel %vm4809, 1, 0
    %v4874 = vsel %vm4810, 1, 0
    %vm4875 = vcmp.eq.s32.totalorder %v4811, 1
    %vm4876 = vcmp.eq.s32.totalorder %v4812, 1
    %vm4877 = vcmp.eq.s32.totalorder %v4813, 1
    %vm4878 = vcmp.eq.s32.totalorder %v4814, 1
    %vm4879 = vcmp.eq.s32.totalorder %v4815, 1
    %vm4880 = vcmp.eq.s32.totalorder %v4816, 1
    %vm4881 = vcmp.eq.s32.totalorder %v4817, 1
    %vm4882 = vcmp.eq.s32.totalorder %v4818, 1
    %vm4883 = vcmp.eq.s32.totalorder %v4819, 1
    %vm4884 = vcmp.eq.s32.totalorder %v4820, 1
    %vm4885 = vcmp.eq.s32.totalorder %v4821, 1
    %vm4886 = vcmp.eq.s32.totalorder %v4822, 1
    %vm4887 = vcmp.eq.s32.totalorder %v4823, 1
    %vm4888 = vcmp.eq.s32.totalorder %v4824, 1
    %vm4889 = vcmp.eq.s32.totalorder %v4825, 1
    %vm4890 = vcmp.eq.s32.totalorder %v4826, 1
    %vm4891 = vcmp.eq.s32.totalorder %v4827, 1
    %vm4892 = vcmp.eq.s32.totalorder %v4828, 1
    %vm4893 = vcmp.eq.s32.totalorder %v4829, 1
    %vm4894 = vcmp.eq.s32.totalorder %v4830, 1
    %vm4895 = vcmp.eq.s32.totalorder %v4831, 1
    %vm4896 = vcmp.eq.s32.totalorder %v4832, 1
    %vm4897 = vcmp.eq.s32.totalorder %v4833, 1
    %vm4898 = vcmp.eq.s32.totalorder %v4834, 1
    %vm4899 = vcmp.eq.s32.totalorder %v4835, 1
    %vm4900 = vcmp.eq.s32.totalorder %v4836, 1
    %vm4901 = vcmp.eq.s32.totalorder %v4837, 1
    %vm4902 = vcmp.eq.s32.totalorder %v4838, 1
    %vm4903 = vcmp.eq.s32.totalorder %v4839, 1
    %vm4904 = vcmp.eq.s32.totalorder %v4840, 1
    %vm4905 = vcmp.eq.s32.totalorder %v4841, 1
    %vm4906 = vcmp.eq.s32.totalorder %v4842, 1
    %vm4907 = vcmp.eq.s32.totalorder %v4843, 1
    %vm4908 = vcmp.eq.s32.totalorder %v4844, 1
    %vm4909 = vcmp.eq.s32.totalorder %v4845, 1
    %vm4910 = vcmp.eq.s32.totalorder %v4846, 1
    %vm4911 = vcmp.eq.s32.totalorder %v4847, 1
    %vm4912 = vcmp.eq.s32.totalorder %v4848, 1
    %vm4913 = vcmp.eq.s32.totalorder %v4849, 1
    %vm4914 = vcmp.eq.s32.totalorder %v4850, 1
    %vm4915 = vcmp.eq.s32.totalorder %v4851, 1
    %vm4916 = vcmp.eq.s32.totalorder %v4852, 1
    %vm4917 = vcmp.eq.s32.totalorder %v4853, 1
    %vm4918 = vcmp.eq.s32.totalorder %v4854, 1
    %vm4919 = vcmp.eq.s32.totalorder %v4855, 1
    %vm4920 = vcmp.eq.s32.totalorder %v4856, 1
    %vm4921 = vcmp.eq.s32.totalorder %v4857, 1
    %vm4922 = vcmp.eq.s32.totalorder %v4858, 1
    %vm4923 = vcmp.eq.s32.totalorder %v4859, 1
    %vm4924 = vcmp.eq.s32.totalorder %v4860, 1
    %vm4925 = vcmp.eq.s32.totalorder %v4861, 1
    %vm4926 = vcmp.eq.s32.totalorder %v4862, 1
    %vm4927 = vcmp.eq.s32.totalorder %v4863, 1
    %vm4928 = vcmp.eq.s32.totalorder %v4864, 1
    %vm4929 = vcmp.eq.s32.totalorder %v4865, 1
    %vm4930 = vcmp.eq.s32.totalorder %v4866, 1
    %vm4931 = vcmp.eq.s32.totalorder %v4867, 1
    %vm4932 = vcmp.eq.s32.totalorder %v4868, 1
    %vm4933 = vcmp.eq.s32.totalorder %v4869, 1
    %vm4934 = vcmp.eq.s32.totalorder %v4870, 1
    %vm4935 = vcmp.eq.s32.totalorder %v4871, 1
    %vm4936 = vcmp.eq.s32.totalorder %v4872, 1
    %vm4937 = vcmp.eq.s32.totalorder %v4873, 1
    %vm4938 = vcmp.eq.s32.totalorder %v4874, 1
    %v4939 = vsel %vm4875, %v1684, 0.0
    %v4940 = vsel %vm4876, %v1686, 0.0
    %v4941 = vsel %vm4877, %v1688, 0.0
    %v4942 = vsel %vm4878, %v1690, 0.0
    %v4943 = vsel %vm4879, %v1692, 0.0
    %v4944 = vsel %vm4880, %v1694, 0.0
    %v4945 = vsel %vm4881, %v1696, 0.0
    %v4946 = vsel %vm4882, %v1698, 0.0
    %v4947 = vsel %vm4883, %v1700, 0.0
    %v4948 = vsel %vm4884, %v1702, 0.0
    %v4949 = vsel %vm4885, %v1704, 0.0
    %v4950 = vsel %vm4886, %v1706, 0.0
    %v4951 = vsel %vm4887, %v1708, 0.0
    %v4952 = vsel %vm4888, %v1710, 0.0
    %v4953 = vsel %vm4889, %v1712, 0.0
    %v4954 = vsel %vm4890, %v1714, 0.0
    %v4955 = vsel %vm4891, %v1716, 0.0
    %v4956 = vsel %vm4892, %v1718, 0.0
    %v4957 = vsel %vm4893, %v1720, 0.0
    %v4958 = vsel %vm4894, %v1722, 0.0
    %v4959 = vsel %vm4895, %v1724, 0.0
    %v4960 = vsel %vm4896, %v1726, 0.0
    %v4961 = vsel %vm4897, %v1728, 0.0
    %v4962 = vsel %vm4898, %v1730, 0.0
    %v4963 = vsel %vm4899, %v1732, 0.0
    %v4964 = vsel %vm4900, %v1734, 0.0
    %v4965 = vsel %vm4901, %v1736, 0.0
    %v4966 = vsel %vm4902, %v1738, 0.0
    %v4967 = vsel %vm4903, %v1740, 0.0
    %v4968 = vsel %vm4904, %v1742, 0.0
    %v4969 = vsel %vm4905, %v1744, 0.0
    %v4970 = vsel %vm4906, %v1746, 0.0
    %v4971 = vsel %vm4907, %v1748, 0.0
    %v4972 = vsel %vm4908, %v1750, 0.0
    %v4973 = vsel %vm4909, %v1752, 0.0
    %v4974 = vsel %vm4910, %v1754, 0.0
    %v4975 = vsel %vm4911, %v1756, 0.0
    %v4976 = vsel %vm4912, %v1758, 0.0
    %v4977 = vsel %vm4913, %v1760, 0.0
    %v4978 = vsel %vm4914, %v1762, 0.0
    %v4979 = vsel %vm4915, %v1764, 0.0
    %v4980 = vsel %vm4916, %v1766, 0.0
    %v4981 = vsel %vm4917, %v1768, 0.0
    %v4982 = vsel %vm4918, %v1770, 0.0
    %v4983 = vsel %vm4919, %v1772, 0.0
    %v4984 = vsel %vm4920, %v1774, 0.0
    %v4985 = vsel %vm4921, %v1776, 0.0
    %v4986 = vsel %vm4922, %v1778, 0.0
    %v4987 = vsel %vm4923, %v1780, 0.0
    %v4988 = vsel %vm4924, %v1782, 0.0
    %v4989 = vsel %vm4925, %v1784, 0.0
    %v4990 = vsel %vm4926, %v1786, 0.0
    %v4991 = vsel %vm4927, %v1788, 0.0
    %v4992 = vsel %vm4928, %v1790, 0.0
    %v4993 = vsel %vm4929, %v1792, 0.0
    %v4994 = vsel %vm4930, %v1794, 0.0
    %v4995 = vsel %vm4931, %v1796, 0.0
    %v4996 = vsel %vm4932, %v1798, 0.0
    %v4997 = vsel %vm4933, %v1800, 0.0
    %v4998 = vsel %vm4934, %v1801, 0.0
    %v4999 = vsel %vm4935, %v1613, 0.0
    %v5000 = vsel %vm4936, %v1615, 0.0
    %v5001 = vsel %vm4937, %v1864, 0.0
    %v5002 = vsel %vm4938, %v1682, 0.0
    %5067 = vrot.lane.b32.xlu0 %v4939, 96
    %v5068 = vpop.permute.xlu0 %5067
    %5069 = vrot.lane.b32.xlu0 %v4940, 96
    %v5070 = vpop.permute.xlu0 %5069
    %5071 = vrot.lane.b32.xlu0 %v4941, 96
    %v5072 = vpop.permute.xlu0 %5071
    %5073 = vrot.lane.b32.xlu0 %v4942, 96
    %v5074 = vpop.permute.xlu0 %5073
    %5075 = vrot.lane.b32.xlu0 %v4943, 96
    %v5076 = vpop.permute.xlu0 %5075
    %5077 = vrot.lane.b32.xlu0 %v4944, 96
    %v5078 = vpop.permute.xlu0 %5077
    %5079 = vrot.lane.b32.xlu0 %v4945, 96
    %v5080 = vpop.permute.xlu0 %5079
    %5081 = vrot.lane.b32.xlu0 %v4946, 96
    %v5082 = vpop.permute.xlu0 %5081
    %5083 = vrot.lane.b32.xlu0 %v4947, 96
    %v5084 = vpop.permute.xlu0 %5083
    %5085 = vrot.lane.b32.xlu0 %v4948, 96
    %v5086 = vpop.permute.xlu0 %5085
    %5087 = vrot.lane.b32.xlu0 %v4949, 96
    %v5088 = vpop.permute.xlu0 %5087
    %5089 = vrot.lane.b32.xlu0 %v4950, 96
    %v5090 = vpop.permute.xlu0 %5089
    %5091 = vrot.lane.b32.xlu0 %v4951, 96
    %v5092 = vpop.permute.xlu0 %5091
    %5093 = vrot.lane.b32.xlu0 %v4952, 96
    %v5094 = vpop.permute.xlu0 %5093
    %5095 = vrot.lane.b32.xlu0 %v4953, 96
    %v5096 = vpop.permute.xlu0 %5095
    %5097 = vrot.lane.b32.xlu0 %v4954, 96
    %v5098 = vpop.permute.xlu0 %5097
    %5099 = vrot.lane.b32.xlu0 %v4955, 96
    %v5100 = vpop.permute.xlu0 %5099
    %5101 = vrot.lane.b32.xlu0 %v4956, 96
    %v5102 = vpop.permute.xlu0 %5101
    %5103 = vrot.lane.b32.xlu0 %v4957, 96
    %v5104 = vpop.permute.xlu0 %5103
    %5105 = vrot.lane.b32.xlu0 %v4958, 96
    %v5106 = vpop.permute.xlu0 %5105
    %5107 = vrot.lane.b32.xlu0 %v4959, 96
    %v5108 = vpop.permute.xlu0 %5107
    %5109 = vrot.lane.b32.xlu0 %v4960, 96
    %v5110 = vpop.permute.xlu0 %5109
    %5111 = vrot.lane.b32.xlu0 %v4961, 96
    %v5112 = vpop.permute.xlu0 %5111
    %5113 = vrot.lane.b32.xlu0 %v4962, 96
    %v5114 = vpop.permute.xlu0 %5113
    %5115 = vrot.lane.b32.xlu0 %v4963, 96
    %v5116 = vpop.permute.xlu0 %5115
    %5117 = vrot.lane.b32.xlu0 %v4964, 96
    %v5118 = vpop.permute.xlu0 %5117
    %5119 = vrot.lane.b32.xlu0 %v4965, 96
    %v5120 = vpop.permute.xlu0 %5119
    %5121 = vrot.lane.b32.xlu0 %v4966, 96
    %v5122 = vpop.permute.xlu0 %5121
    %5123 = vrot.lane.b32.xlu0 %v4967, 96
    %v5124 = vpop.permute.xlu0 %5123
    %5125 = vrot.lane.b32.xlu0 %v4968, 96
    %v5126 = vpop.permute.xlu0 %5125
    %5127 = vrot.lane.b32.xlu0 %v4969, 96
    %v5128 = vpop.permute.xlu0 %5127
    %5129 = vrot.lane.b32.xlu0 %v4970, 96
    %v5130 = vpop.permute.xlu0 %5129
    %5131 = vrot.lane.b32.xlu0 %v4971, 96
    %v5132 = vpop.permute.xlu0 %5131
    %5133 = vrot.lane.b32.xlu0 %v4972, 96
    %v5134 = vpop.permute.xlu0 %5133
    %5135 = vrot.lane.b32.xlu0 %v4973, 96
    %v5136 = vpop.permute.xlu0 %5135
    %5137 = vrot.lane.b32.xlu0 %v4974, 96
    %v5138 = vpop.permute.xlu0 %5137
    %5139 = vrot.lane.b32.xlu0 %v4975, 96
    %v5140 = vpop.permute.xlu0 %5139
    %5141 = vrot.lane.b32.xlu0 %v4976, 96
    %v5142 = vpop.permute.xlu0 %5141
    %5143 = vrot.lane.b32.xlu0 %v4977, 96
    %v5144 = vpop.permute.xlu0 %5143
    %5145 = vrot.lane.b32.xlu0 %v4978, 96
    %v5146 = vpop.permute.xlu0 %5145
    %5147 = vrot.lane.b32.xlu0 %v4979, 96
    %v5148 = vpop.permute.xlu0 %5147
    %5149 = vrot.lane.b32.xlu0 %v4980, 96
    %v5150 = vpop.permute.xlu0 %5149
    %5151 = vrot.lane.b32.xlu0 %v4981, 96
    %v5152 = vpop.permute.xlu0 %5151
    %5153 = vrot.lane.b32.xlu0 %v4982, 96
    %v5154 = vpop.permute.xlu0 %5153
    %5155 = vrot.lane.b32.xlu0 %v4983, 96
    %v5156 = vpop.permute.xlu0 %5155
    %5157 = vrot.lane.b32.xlu0 %v4984, 96
    %v5158 = vpop.permute.xlu0 %5157
    %5159 = vrot.lane.b32.xlu0 %v4985, 96
    %v5160 = vpop.permute.xlu0 %5159
    %5161 = vrot.lane.b32.xlu0 %v4986, 96
    %v5162 = vpop.permute.xlu0 %5161
    %5163 = vrot.lane.b32.xlu0 %v4987, 96
    %v5164 = vpop.permute.xlu0 %5163
    %5165 = vrot.lane.b32.xlu0 %v4988, 96
    %v5166 = vpop.permute.xlu0 %5165
    %5167 = vrot.lane.b32.xlu0 %v4989, 96
    %v5168 = vpop.permute.xlu0 %5167
    %5169 = vrot.lane.b32.xlu0 %v4990, 96
    %v5170 = vpop.permute.xlu0 %5169
    %5171 = vrot.lane.b32.xlu0 %v4991, 96
    %v5172 = vpop.permute.xlu0 %5171
    %5173 = vrot.lane.b32.xlu0 %v4992, 96
    %v5174 = vpop.permute.xlu0 %5173
    %5175 = vrot.lane.b32.xlu0 %v4993, 96
    %v5176 = vpop.permute.xlu0 %5175
    %5177 = vrot.lane.b32.xlu0 %v4994, 96
    %v5178 = vpop.permute.xlu0 %5177
    %5179 = vrot.lane.b32.xlu0 %v4995, 96
    %v5180 = vpop.permute.xlu0 %5179
    %5181 = vrot.lane.b32.xlu0 %v4996, 96
    %v5182 = vpop.permute.xlu0 %5181
    %5183 = vrot.lane.b32.xlu0 %v4997, 96
    %v5184 = vpop.permute.xlu0 %5183
    %5185 = vrot.lane.b32.xlu0 %v4998, 96
    %v5186 = vpop.permute.xlu0 %5185
    %5187 = vrot.lane.b32.xlu0 %v4999, 96
    %v5188 = vpop.permute.xlu0 %5187
    %5189 = vrot.lane.b32.xlu0 %v5000, 96
    %v5190 = vpop.permute.xlu0 %5189
    %5191 = vrot.lane.b32.xlu0 %v5001, 96
    %v5192 = vpop.permute.xlu0 %5191
    %5193 = vrot.lane.b32.xlu0 %v5002, 96
    %v5194 = vpop.permute.xlu0 %5193
    %v5259 = vadd.f32 %v4683, %v5068
    %v5260 = vadd.f32 %v4684, %v5070
    %v5261 = vadd.f32 %v4685, %v5072
    %v5262 = vadd.f32 %v4686, %v5074
    %v5263 = vadd.f32 %v4687, %v5076
    %v5264 = vadd.f32 %v4688, %v5078
    %v5265 = vadd.f32 %v4689, %v5080
    %v5266 = vadd.f32 %v4690, %v5082
    %v5267 = vadd.f32 %v4691, %v5084
    %v5268 = vadd.f32 %v4692, %v5086
    %v5269 = vadd.f32 %v4693, %v5088
    %v5270 = vadd.f32 %v4694, %v5090
    %v5271 = vadd.f32 %v4695, %v5092
    %v5272 = vadd.f32 %v4696, %v5094
    %v5273 = vadd.f32 %v4697, %v5096
    %v5274 = vadd.f32 %v4698, %v5098
    %v5275 = vadd.f32 %v4699, %v5100
    %v5276 = vadd.f32 %v4700, %v5102
    %v5277 = vadd.f32 %v4701, %v5104
    %v5278 = vadd.f32 %v4702, %v5106
    %v5279 = vadd.f32 %v4703, %v5108
    %v5280 = vadd.f32 %v4704, %v5110
    %v5281 = vadd.f32 %v4705, %v5112
    %v5282 = vadd.f32 %v4706, %v5114
    %v5283 = vadd.f32 %v4707, %v5116
    %v5284 = vadd.f32 %v4708, %v5118
    %v5285 = vadd.f32 %v4709, %v5120
    %v5286 = vadd.f32 %v4710, %v5122
    %v5287 = vadd.f32 %v4711, %v5124
    %v5288 = vadd.f32 %v4712, %v5126
    %v5289 = vadd.f32 %v4713, %v5128
    %v5290 = vadd.f32 %v4714, %v5130
    %v5291 = vadd.f32 %v4715, %v5132
    %v5292 = vadd.f32 %v4716, %v5134
    %v5293 = vadd.f32 %v4717, %v5136
    %v5294 = vadd.f32 %v4718, %v5138
    %v5295 = vadd.f32 %v4719, %v5140
    %v5296 = vadd.f32 %v4720, %v5142
    %v5297 = vadd.f32 %v4721, %v5144
    %v5298 = vadd.f32 %v4722, %v5146
    %v5299 = vadd.f32 %v4723, %v5148
    %v5300 = vadd.f32 %v4724, %v5150
    %v5301 = vadd.f32 %v4725, %v5152
    %v5302 = vadd.f32 %v4726, %v5154
    %v5303 = vadd.f32 %v4727, %v5156
    %v5304 = vadd.f32 %v4728, %v5158
    %v5305 = vadd.f32 %v4729, %v5160
    %v5306 = vadd.f32 %v4730, %v5162
    %v5307 = vadd.f32 %v4731, %v5164
    %v5308 = vadd.f32 %v4732, %v5166
    %v5309 = vadd.f32 %v4733, %v5168
    %v5310 = vadd.f32 %v4734, %v5170
    %v5311 = vadd.f32 %v4735, %v5172
    %v5312 = vadd.f32 %v4736, %v5174
    %v5313 = vadd.f32 %v4737, %v5176
    %v5314 = vadd.f32 %v4738, %v5178
    %v5315 = vadd.f32 %v4739, %v5180
    %v5316 = vadd.f32 %v4740, %v5182
    %v5317 = vadd.f32 %v4741, %v5184
    %v5318 = vadd.f32 %v4742, %v5186
    %v5319 = vadd.f32 %v4743, %v5188
    %v5320 = vadd.f32 %v4744, %v5190
    %v5321 = vadd.f32 %v4745, %v5192
    %v5322 = vadd.f32 %v4746, %v5194
    %v5323 = vsel %vm731, 1, 0
    %v5324 = vsel %vm732, 1, 0
    %v5325 = vsel %vm733, 1, 0
    %v5326 = vsel %vm734, 1, 0
    %v5327 = vsel %vm735, 1, 0
    %v5328 = vsel %vm736, 1, 0
    %v5329 = vsel %vm737, 1, 0
    %v5330 = vsel %vm738, 1, 0
    %v5331 = vsel %vm739, 1, 0
    %v5332 = vsel %vm740, 1, 0
    %v5333 = vsel %vm741, 1, 0
    %v5334 = vsel %vm742, 1, 0
    %v5335 = vsel %vm743, 1, 0
    %v5336 = vsel %vm744, 1, 0
    %v5337 = vsel %vm745, 1, 0
    %v5338 = vsel %vm746, 1, 0
    %v5339 = vsel %vm747, 1, 0
    %v5340 = vsel %vm748, 1, 0
    %v5341 = vsel %vm749, 1, 0
    %v5342 = vsel %vm750, 1, 0
    %v5343 = vsel %vm751, 1, 0
    %v5344 = vsel %vm752, 1, 0
    %v5345 = vsel %vm753, 1, 0
    %v5346 = vsel %vm754, 1, 0
    %v5347 = vsel %vm755, 1, 0
    %v5348 = vsel %vm756, 1, 0
    %v5349 = vsel %vm757, 1, 0
    %v5350 = vsel %vm758, 1, 0
    %v5351 = vsel %vm759, 1, 0
    %v5352 = vsel %vm760, 1, 0
    %v5353 = vsel %vm761, 1, 0
    %v5354 = vsel %vm762, 1, 0
    %v5355 = vsel %vm763, 1, 0
    %v5356 = vsel %vm764, 1, 0
    %v5357 = vsel %vm765, 1, 0
    %v5358 = vsel %vm766, 1, 0
    %v5359 = vsel %vm767, 1, 0
    %v5360 = vsel %vm768, 1, 0
    %v5361 = vsel %vm769, 1, 0
    %v5362 = vsel %vm770, 1, 0
    %v5363 = vsel %vm771, 1, 0
    %v5364 = vsel %vm772, 1, 0
    %v5365 = vsel %vm773, 1, 0
    %v5366 = vsel %vm774, 1, 0
    %v5367 = vsel %vm775, 1, 0
    %v5368 = vsel %vm776, 1, 0
    %v5369 = vsel %vm777, 1, 0
    %v5370 = vsel %vm778, 1, 0
    %v5371 = vsel %vm779, 1, 0
    %v5372 = vsel %vm780, 1, 0
    %v5373 = vsel %vm781, 1, 0
    %v5374 = vsel %vm782, 1, 0
    %v5375 = vsel %vm783, 1, 0
    %v5376 = vsel %vm784, 1, 0
    %v5377 = vsel %vm785, 1, 0
    %v5378 = vsel %vm786, 1, 0
    %v5379 = vsel %vm787, 1, 0
    %v5380 = vsel %vm788, 1, 0
    %v5381 = vsel %vm789, 1, 0
    %v5382 = vsel %vm790, 1, 0
    %v5383 = vsel %vm791, 1, 0
    %v5384 = vsel %vm792, 1, 0
    %v5385 = vsel %vm793, 1, 0
    %v5386 = vsel %vm794, 1, 0
    %vm5387 = vcmp.eq.s32.totalorder %v5323, 1
    %vm5388 = vcmp.eq.s32.totalorder %v5324, 1
    %vm5389 = vcmp.eq.s32.totalorder %v5325, 1
    %vm5390 = vcmp.eq.s32.totalorder %v5326, 1
    %vm5391 = vcmp.eq.s32.totalorder %v5327, 1
    %vm5392 = vcmp.eq.s32.totalorder %v5328, 1
    %vm5393 = vcmp.eq.s32.totalorder %v5329, 1
    %vm5394 = vcmp.eq.s32.totalorder %v5330, 1
    %vm5395 = vcmp.eq.s32.totalorder %v5331, 1
    %vm5396 = vcmp.eq.s32.totalorder %v5332, 1
    %vm5397 = vcmp.eq.s32.totalorder %v5333, 1
    %vm5398 = vcmp.eq.s32.totalorder %v5334, 1
    %vm5399 = vcmp.eq.s32.totalorder %v5335, 1
    %vm5400 = vcmp.eq.s32.totalorder %v5336, 1
    %vm5401 = vcmp.eq.s32.totalorder %v5337, 1
    %vm5402 = vcmp.eq.s32.totalorder %v5338, 1
    %vm5403 = vcmp.eq.s32.totalorder %v5339, 1
    %vm5404 = vcmp.eq.s32.totalorder %v5340, 1
    %vm5405 = vcmp.eq.s32.totalorder %v5341, 1
    %vm5406 = vcmp.eq.s32.totalorder %v5342, 1
    %vm5407 = vcmp.eq.s32.totalorder %v5343, 1
    %vm5408 = vcmp.eq.s32.totalorder %v5344, 1
    %vm5409 = vcmp.eq.s32.totalorder %v5345, 1
    %vm5410 = vcmp.eq.s32.totalorder %v5346, 1
    %vm5411 = vcmp.eq.s32.totalorder %v5347, 1
    %vm5412 = vcmp.eq.s32.totalorder %v5348, 1
    %vm5413 = vcmp.eq.s32.totalorder %v5349, 1
    %vm5414 = vcmp.eq.s32.totalorder %v5350, 1
    %vm5415 = vcmp.eq.s32.totalorder %v5351, 1
    %vm5416 = vcmp.eq.s32.totalorder %v5352, 1
    %vm5417 = vcmp.eq.s32.totalorder %v5353, 1
    %vm5418 = vcmp.eq.s32.totalorder %v5354, 1
    %vm5419 = vcmp.eq.s32.totalorder %v5355, 1
    %vm5420 = vcmp.eq.s32.totalorder %v5356, 1
    %vm5421 = vcmp.eq.s32.totalorder %v5357, 1
    %vm5422 = vcmp.eq.s32.totalorder %v5358, 1
    %vm5423 = vcmp.eq.s32.totalorder %v5359, 1
    %vm5424 = vcmp.eq.s32.totalorder %v5360, 1
    %vm5425 = vcmp.eq.s32.totalorder %v5361, 1
    %vm5426 = vcmp.eq.s32.totalorder %v5362, 1
    %vm5427 = vcmp.eq.s32.totalorder %v5363, 1
    %vm5428 = vcmp.eq.s32.totalorder %v5364, 1
    %vm5429 = vcmp.eq.s32.totalorder %v5365, 1
    %vm5430 = vcmp.eq.s32.totalorder %v5366, 1
    %vm5431 = vcmp.eq.s32.totalorder %v5367, 1
    %vm5432 = vcmp.eq.s32.totalorder %v5368, 1
    %vm5433 = vcmp.eq.s32.totalorder %v5369, 1
    %vm5434 = vcmp.eq.s32.totalorder %v5370, 1
    %vm5435 = vcmp.eq.s32.totalorder %v5371, 1
    %vm5436 = vcmp.eq.s32.totalorder %v5372, 1
    %vm5437 = vcmp.eq.s32.totalorder %v5373, 1
    %vm5438 = vcmp.eq.s32.totalorder %v5374, 1
    %vm5439 = vcmp.eq.s32.totalorder %v5375, 1
    %vm5440 = vcmp.eq.s32.totalorder %v5376, 1
    %vm5441 = vcmp.eq.s32.totalorder %v5377, 1
    %vm5442 = vcmp.eq.s32.totalorder %v5378, 1
    %vm5443 = vcmp.eq.s32.totalorder %v5379, 1
    %vm5444 = vcmp.eq.s32.totalorder %v5380, 1
    %vm5445 = vcmp.eq.s32.totalorder %v5381, 1
    %vm5446 = vcmp.eq.s32.totalorder %v5382, 1
    %vm5447 = vcmp.eq.s32.totalorder %v5383, 1
    %vm5448 = vcmp.eq.s32.totalorder %v5384, 1
    %vm5449 = vcmp.eq.s32.totalorder %v5385, 1
    %vm5450 = vcmp.eq.s32.totalorder %v5386, 1
    %v5451 = vsel %vm5387, %v1213, 0.0
    %v5452 = vsel %vm5388, %v1216, 0.0
    %v5453 = vsel %vm5389, %v1219, 0.0
    %v5454 = vsel %vm5390, %v1222, 0.0
    %v5455 = vsel %vm5391, %v1225, 0.0
    %v5456 = vsel %vm5392, %v1228, 0.0
    %v5457 = vsel %vm5393, %v1231, 0.0
    %v5458 = vsel %vm5394, %v1234, 0.0
    %v5459 = vsel %vm5395, %v1237, 0.0
    %v5460 = vsel %vm5396, %v1240, 0.0
    %v5461 = vsel %vm5397, %v1243, 0.0
    %v5462 = vsel %vm5398, %v1246, 0.0
    %v5463 = vsel %vm5399, %v1249, 0.0
    %v5464 = vsel %vm5400, %v1252, 0.0
    %v5465 = vsel %vm5401, %v1255, 0.0
    %v5466 = vsel %vm5402, %v1258, 0.0
    %v5467 = vsel %vm5403, %v1261, 0.0
    %v5468 = vsel %vm5404, %v1264, 0.0
    %v5469 = vsel %vm5405, %v1267, 0.0
    %v5470 = vsel %vm5406, %v1270, 0.0
    %v5471 = vsel %vm5407, %v1273, 0.0
    %v5472 = vsel %vm5408, %v1276, 0.0
    %v5473 = vsel %vm5409, %v1279, 0.0
    %v5474 = vsel %vm5410, %v1282, 0.0
    %v5475 = vsel %vm5411, %v1285, 0.0
    %v5476 = vsel %vm5412, %v1288, 0.0
    %v5477 = vsel %vm5413, %v1291, 0.0
    %v5478 = vsel %vm5414, %v1294, 0.0
    %v5479 = vsel %vm5415, %v1297, 0.0
    %v5480 = vsel %vm5416, %v1300, 0.0
    %v5481 = vsel %vm5417, %v1303, 0.0
    %v5482 = vsel %vm5418, %v1306, 0.0
    %v5483 = vsel %vm5419, %v1309, 0.0
    %v5484 = vsel %vm5420, %v1312, 0.0
    %v5485 = vsel %vm5421, %v1315, 0.0
    %v5486 = vsel %vm5422, %v1318, 0.0
    %v5487 = vsel %vm5423, %v1321, 0.0
    %v5488 = vsel %vm5424, %v1324, 0.0
    %v5489 = vsel %vm5425, %v1327, 0.0
    %v5490 = vsel %vm5426, %v1330, 0.0
    %v5491 = vsel %vm5427, %v1333, 0.0
    %v5492 = vsel %vm5428, %v1336, 0.0
    %v5493 = vsel %vm5429, %v1339, 0.0
    %v5494 = vsel %vm5430, %v1342, 0.0
    %v5495 = vsel %vm5431, %v1345, 0.0
    %v5496 = vsel %vm5432, %v1348, 0.0
    %v5497 = vsel %vm5433, %v1351, 0.0
    %v5498 = vsel %vm5434, %v1354, 0.0
    %v5499 = vsel %vm5435, %v1357, 0.0
    %v5500 = vsel %vm5436, %v1360, 0.0
    %v5501 = vsel %vm5437, %v1363, 0.0
    %v5502 = vsel %vm5438, %v1366, 0.0
    %v5503 = vsel %vm5439, %v1369, 0.0
    %v5504 = vsel %vm5440, %v1372, 0.0
    %v5505 = vsel %vm5441, %v1375, 0.0
    %v5506 = vsel %vm5442, %v1378, 0.0
    %v5507 = vsel %vm5443, %v1381, 0.0
    %v5508 = vsel %vm5444, %v1384, 0.0
    %v5509 = vsel %vm5445, %v1387, 0.0
    %v5510 = vsel %vm5446, %v1390, 0.0
    %v5511 = vsel %vm5447, %v1393, 0.0
    %v5512 = vsel %vm5448, %v1396, 0.0
    %v5513 = vsel %vm5449, %v1207, 0.0
    %v5514 = vsel %vm5450, %v1210, 0.0
    %5579 = vrot.lane.b32.xlu0 %v5451, 80
    %v5580 = vpop.permute.xlu0 %5579
    %5581 = vrot.lane.b32.xlu0 %v5452, 80
    %v5582 = vpop.permute.xlu0 %5581
    %5583 = vrot.lane.b32.xlu0 %v5453, 80
    %v5584 = vpop.permute.xlu0 %5583
    %5585 = vrot.lane.b32.xlu0 %v5454, 80
    %v5586 = vpop.permute.xlu0 %5585
    %5587 = vrot.lane.b32.xlu0 %v5455, 80
    %v5588 = vpop.permute.xlu0 %5587
    %5589 = vrot.lane.b32.xlu0 %v5456, 80
    %v5590 = vpop.permute.xlu0 %5589
    %5591 = vrot.lane.b32.xlu0 %v5457, 80
    %v5592 = vpop.permute.xlu0 %5591
    %5593 = vrot.lane.b32.xlu0 %v5458, 80
    %v5594 = vpop.permute.xlu0 %5593
    %5595 = vrot.lane.b32.xlu0 %v5459, 80
    %v5596 = vpop.permute.xlu0 %5595
    %5597 = vrot.lane.b32.xlu0 %v5460, 80
    %v5598 = vpop.permute.xlu0 %5597
    %5599 = vrot.lane.b32.xlu0 %v5461, 80
    %v5600 = vpop.permute.xlu0 %5599
    %5601 = vrot.lane.b32.xlu0 %v5462, 80
    %v5602 = vpop.permute.xlu0 %5601
    %5603 = vrot.lane.b32.xlu0 %v5463, 80
    %v5604 = vpop.permute.xlu0 %5603
    %5605 = vrot.lane.b32.xlu0 %v5464, 80
    %v5606 = vpop.permute.xlu0 %5605
    %5607 = vrot.lane.b32.xlu0 %v5465, 80
    %v5608 = vpop.permute.xlu0 %5607
    %5609 = vrot.lane.b32.xlu0 %v5466, 80
    %v5610 = vpop.permute.xlu0 %5609
    %5611 = vrot.lane.b32.xlu0 %v5467, 80
    %v5612 = vpop.permute.xlu0 %5611
    %5613 = vrot.lane.b32.xlu0 %v5468, 80
    %v5614 = vpop.permute.xlu0 %5613
    %5615 = vrot.lane.b32.xlu0 %v5469, 80
    %v5616 = vpop.permute.xlu0 %5615
    %5617 = vrot.lane.b32.xlu0 %v5470, 80
    %v5618 = vpop.permute.xlu0 %5617
    %5619 = vrot.lane.b32.xlu0 %v5471, 80
    %v5620 = vpop.permute.xlu0 %5619
    %5621 = vrot.lane.b32.xlu0 %v5472, 80
    %v5622 = vpop.permute.xlu0 %5621
    %5623 = vrot.lane.b32.xlu0 %v5473, 80
    %v5624 = vpop.permute.xlu0 %5623
    %5625 = vrot.lane.b32.xlu0 %v5474, 80
    %v5626 = vpop.permute.xlu0 %5625
    %5627 = vrot.lane.b32.xlu0 %v5475, 80
    %v5628 = vpop.permute.xlu0 %5627
    %5629 = vrot.lane.b32.xlu0 %v5476, 80
    %v5630 = vpop.permute.xlu0 %5629
    %5631 = vrot.lane.b32.xlu0 %v5477, 80
    %v5632 = vpop.permute.xlu0 %5631
    %5633 = vrot.lane.b32.xlu0 %v5478, 80
    %v5634 = vpop.permute.xlu0 %5633
    %5635 = vrot.lane.b32.xlu0 %v5479, 80
    %v5636 = vpop.permute.xlu0 %5635
    %5637 = vrot.lane.b32.xlu0 %v5480, 80
    %v5638 = vpop.permute.xlu0 %5637
    %5639 = vrot.lane.b32.xlu0 %v5481, 80
    %v5640 = vpop.permute.xlu0 %5639
    %5641 = vrot.lane.b32.xlu0 %v5482, 80
    %v5642 = vpop.permute.xlu0 %5641
    %5643 = vrot.lane.b32.xlu0 %v5483, 80
    %v5644 = vpop.permute.xlu0 %5643
    %5645 = vrot.lane.b32.xlu0 %v5484, 80
    %v5646 = vpop.permute.xlu0 %5645
    %5647 = vrot.lane.b32.xlu0 %v5485, 80
    %v5648 = vpop.permute.xlu0 %5647
    %5649 = vrot.lane.b32.xlu0 %v5486, 80
    %v5650 = vpop.permute.xlu0 %5649
    %5651 = vrot.lane.b32.xlu0 %v5487, 80
    %v5652 = vpop.permute.xlu0 %5651
    %5653 = vrot.lane.b32.xlu0 %v5488, 80
    %v5654 = vpop.permute.xlu0 %5653
    %5655 = vrot.lane.b32.xlu0 %v5489, 80
    %v5656 = vpop.permute.xlu0 %5655
    %5657 = vrot.lane.b32.xlu0 %v5490, 80
    %v5658 = vpop.permute.xlu0 %5657
    %5659 = vrot.lane.b32.xlu0 %v5491, 80
    %v5660 = vpop.permute.xlu0 %5659
    %5661 = vrot.lane.b32.xlu0 %v5492, 80
    %v5662 = vpop.permute.xlu0 %5661
    %5663 = vrot.lane.b32.xlu0 %v5493, 80
    %v5664 = vpop.permute.xlu0 %5663
    %5665 = vrot.lane.b32.xlu0 %v5494, 80
    %v5666 = vpop.permute.xlu0 %5665
    %5667 = vrot.lane.b32.xlu0 %v5495, 80
    %v5668 = vpop.permute.xlu0 %5667
    %5669 = vrot.lane.b32.xlu0 %v5496, 80
    %v5670 = vpop.permute.xlu0 %5669
    %5671 = vrot.lane.b32.xlu0 %v5497, 80
    %v5672 = vpop.permute.xlu0 %5671
    %5673 = vrot.lane.b32.xlu0 %v5498, 80
    %v5674 = vpop.permute.xlu0 %5673
    %5675 = vrot.lane.b32.xlu0 %v5499, 80
    %v5676 = vpop.permute.xlu0 %5675
    %5677 = vrot.lane.b32.xlu0 %v5500, 80
    %v5678 = vpop.permute.xlu0 %5677
    %5679 = vrot.lane.b32.xlu0 %v5501, 80
    %v5680 = vpop.permute.xlu0 %5679
    %5681 = vrot.lane.b32.xlu0 %v5502, 80
    %v5682 = vpop.permute.xlu0 %5681
    %5683 = vrot.lane.b32.xlu0 %v5503, 80
    %v5684 = vpop.permute.xlu0 %5683
    %5685 = vrot.lane.b32.xlu0 %v5504, 80
    %v5686 = vpop.permute.xlu0 %5685
    %5687 = vrot.lane.b32.xlu0 %v5505, 80
    %v5688 = vpop.permute.xlu0 %5687
    %5689 = vrot.lane.b32.xlu0 %v5506, 80
    %v5690 = vpop.permute.xlu0 %5689
    %5691 = vrot.lane.b32.xlu0 %v5507, 80
    %v5692 = vpop.permute.xlu0 %5691
    %5693 = vrot.lane.b32.xlu0 %v5508, 80
    %v5694 = vpop.permute.xlu0 %5693
    %5695 = vrot.lane.b32.xlu0 %v5509, 80
    %v5696 = vpop.permute.xlu0 %5695
    %5697 = vrot.lane.b32.xlu0 %v5510, 80
    %v5698 = vpop.permute.xlu0 %5697
    %5699 = vrot.lane.b32.xlu0 %v5511, 80
    %v5700 = vpop.permute.xlu0 %5699
    %5701 = vrot.lane.b32.xlu0 %v5512, 80
    %v5702 = vpop.permute.xlu0 %5701
    %5703 = vrot.lane.b32.xlu0 %v5513, 80
    %v5704 = vpop.permute.xlu0 %5703
    %5705 = vrot.lane.b32.xlu0 %v5514, 80
    %v5706 = vpop.permute.xlu0 %5705
    %v5771 = vadd.f32 %v5259, %v5580
    %v5772 = vadd.f32 %v5260, %v5582
    %v5773 = vadd.f32 %v5261, %v5584
    %v5774 = vadd.f32 %v5262, %v5586
    %v5775 = vadd.f32 %v5263, %v5588
    %v5776 = vadd.f32 %v5264, %v5590
    %v5777 = vadd.f32 %v5265, %v5592
    %v5778 = vadd.f32 %v5266, %v5594
    %v5779 = vadd.f32 %v5267, %v5596
    %v5780 = vadd.f32 %v5268, %v5598
    %v5781 = vadd.f32 %v5269, %v5600
    %v5782 = vadd.f32 %v5270, %v5602
    %v5783 = vadd.f32 %v5271, %v5604
    %v5784 = vadd.f32 %v5272, %v5606
    %v5785 = vadd.f32 %v5273, %v5608
    %v5786 = vadd.f32 %v5274, %v5610
    %v5787 = vadd.f32 %v5275, %v5612
    %v5788 = vadd.f32 %v5276, %v5614
    %v5789 = vadd.f32 %v5277, %v5616
    %v5790 = vadd.f32 %v5278, %v5618
    %v5791 = vadd.f32 %v5279, %v5620
    %v5792 = vadd.f32 %v5280, %v5622
    %v5793 = vadd.f32 %v5281, %v5624
    %v5794 = vadd.f32 %v5282, %v5626
    %v5795 = vadd.f32 %v5283, %v5628
    %v5796 = vadd.f32 %v5284, %v5630
    %v5797 = vadd.f32 %v5285, %v5632
    %v5798 = vadd.f32 %v5286, %v5634
    %v5799 = vadd.f32 %v5287, %v5636
    %v5800 = vadd.f32 %v5288, %v5638
    %v5801 = vadd.f32 %v5289, %v5640
    %v5802 = vadd.f32 %v5290, %v5642
    %v5803 = vadd.f32 %v5291, %v5644
    %v5804 = vadd.f32 %v5292, %v5646
    %v5805 = vadd.f32 %v5293, %v5648
    %v5806 = vadd.f32 %v5294, %v5650
    %v5807 = vadd.f32 %v5295, %v5652
    %v5808 = vadd.f32 %v5296, %v5654
    %v5809 = vadd.f32 %v5297, %v5656
    %v5810 = vadd.f32 %v5298, %v5658
    %v5811 = vadd.f32 %v5299, %v5660
    %v5812 = vadd.f32 %v5300, %v5662
    %v5813 = vadd.f32 %v5301, %v5664
    %v5814 = vadd.f32 %v5302, %v5666
    %v5815 = vadd.f32 %v5303, %v5668
    %v5816 = vadd.f32 %v5304, %v5670
    %v5817 = vadd.f32 %v5305, %v5672
    %v5818 = vadd.f32 %v5306, %v5674
    %v5819 = vadd.f32 %v5307, %v5676
    %v5820 = vadd.f32 %v5308, %v5678
    %v5821 = vadd.f32 %v5309, %v5680
    %v5822 = vadd.f32 %v5310, %v5682
    %v5823 = vadd.f32 %v5311, %v5684
    %v5824 = vadd.f32 %v5312, %v5686
    %v5825 = vadd.f32 %v5313, %v5688
    %v5826 = vadd.f32 %v5314, %v5690
    %v5827 = vadd.f32 %v5315, %v5692
    %v5828 = vadd.f32 %v5316, %v5694
    %v5829 = vadd.f32 %v5317, %v5696
    %v5830 = vadd.f32 %v5318, %v5698
    %v5831 = vadd.f32 %v5319, %v5700
    %v5832 = vadd.f32 %v5320, %v5702
    %v5833 = vadd.f32 %v5321, %v5704
    %v5834 = vadd.f32 %v5322, %v5706
    %v5897 = vrot.slane %v1422, 1
    %v5898 = vrot.slane %v1425, 1
    %v5899 = vsel %vm2953, %v5897, %v5898
    %v5900 = vrot.slane %v1428, 1
    %v5901 = vsel %vm2953, %v5898, %v5900
    %v5902 = vrot.slane %v1431, 1
    %v5903 = vsel %vm2953, %v5900, %v5902
    %v5904 = vrot.slane %v1434, 1
    %v5905 = vsel %vm2953, %v5902, %v5904
    %v5906 = vrot.slane %v1437, 1
    %v5907 = vsel %vm2953, %v5904, %v5906
    %v5908 = vrot.slane %v1440, 1
    %v5909 = vsel %vm2953, %v5906, %v5908
    %v5910 = vrot.slane %v1443, 1
    %v5911 = vsel %vm2953, %v5908, %v5910
    %v5912 = vrot.slane %v1446, 1
    %v5913 = vsel %vm2953, %v5910, %v5912
    %v5914 = vrot.slane %v1449, 1
    %v5915 = vsel %vm2953, %v5912, %v5914
    %v5916 = vrot.slane %v1452, 1
    %v5917 = vsel %vm2953, %v5914, %v5916
    %v5918 = vrot.slane %v1455, 1
    %v5919 = vsel %vm2953, %v5916, %v5918
    %v5920 = vrot.slane %v1458, 1
    %v5921 = vsel %vm2953, %v5918, %v5920
    %v5922 = vrot.slane %v1461, 1
    %v5923 = vsel %vm2953, %v5920, %v5922
    %v5924 = vrot.slane %v1464, 1
    %v5925 = vsel %vm2953, %v5922, %v5924
    %v5926 = vrot.slane %v1467, 1
    %v5927 = vsel %vm2953, %v5924, %v5926
    %v5928 = vrot.slane %v1470, 1
    %v5929 = vsel %vm2953, %v5926, %v5928
    %v5930 = vrot.slane %v1473, 1
    %v5931 = vsel %vm2953, %v5928, %v5930
    %v5932 = vrot.slane %v1476, 1
    %v5933 = vsel %vm2953, %v5930, %v5932
    %v5934 = vrot.slane %v1479, 1
    %v5935 = vsel %vm2953, %v5932, %v5934
    %v5936 = vrot.slane %v1482, 1
    %v5937 = vsel %vm2953, %v5934, %v5936
    %v5938 = vrot.slane %v1485, 1
    %v5939 = vsel %vm2953, %v5936, %v5938
    %v5940 = vrot.slane %v1488, 1
    %v5941 = vsel %vm2953, %v5938, %v5940
    %v5942 = vrot.slane %v1491, 1
    %v5943 = vsel %vm2953, %v5940, %v5942
    %v5944 = vrot.slane %v1494, 1
    %v5945 = vsel %vm2953, %v5942, %v5944
    %v5946 = vrot.slane %v1497, 1
    %v5947 = vsel %vm2953, %v5944, %v5946
    %v5948 = vrot.slane %v1500, 1
    %v5949 = vsel %vm2953, %v5946, %v5948
    %v5950 = vrot.slane %v1503, 1
    %v5951 = vsel %vm2953, %v5948, %v5950
    %v5952 = vrot.slane %v1506, 1
    %v5953 = vsel %vm2953, %v5950, %v5952
    %v5954 = vrot.slane %v1509, 1
    %v5955 = vsel %vm2953, %v5952, %v5954
    %v5956 = vrot.slane %v1512, 1
    %v5957 = vsel %vm2953, %v5954, %v5956
    %v5958 = vrot.slane %v1515, 1
    %v5959 = vsel %vm2953, %v5956, %v5958
    %v5960 = vrot.slane %v1518, 1
    %v5961 = vsel %vm2953, %v5958, %v5960
    %v5962 = vrot.slane %v1521, 1
    %v5963 = vsel %vm2953, %v5960, %v5962
    %v5964 = vrot.slane %v1524, 1
    %v5965 = vsel %vm2953, %v5962, %v5964
    %v5966 = vrot.slane %v1527, 1
    %v5967 = vsel %vm2953, %v5964, %v5966
    %v5968 = vrot.slane %v1530, 1
    %v5969 = vsel %vm2953, %v5966, %v5968
    %v5970 = vrot.slane %v1533, 1
    %v5971 = vsel %vm2953, %v5968, %v5970
    %v5972 = vrot.slane %v1536, 1
    %v5973 = vsel %vm2953, %v5970, %v5972
    %v5974 = vrot.slane %v1539, 1
    %v5975 = vsel %vm2953, %v5972, %v5974
    %v5976 = vrot.slane %v1542, 1
    %v5977 = vsel %vm2953, %v5974, %v5976
    %v5978 = vrot.slane %v1545, 1
    %v5979 = vsel %vm2953, %v5976, %v5978
    %v5980 = vrot.slane %v1548, 1
    %v5981 = vsel %vm2953, %v5978, %v5980
    %v5982 = vrot.slane %v1551, 1
    %v5983 = vsel %vm2953, %v5980, %v5982
    %v5984 = vrot.slane %v1554, 1
    %v5985 = vsel %vm2953, %v5982, %v5984
    %v5986 = vrot.slane %v1557, 1
    %v5987 = vsel %vm2953, %v5984, %v5986
    %v5988 = vrot.slane %v1560, 1
    %v5989 = vsel %vm2953, %v5986, %v5988
    %v5990 = vrot.slane %v1563, 1
    %v5991 = vsel %vm2953, %v5988, %v5990
    %v5992 = vrot.slane %v1566, 1
    %v5993 = vsel %vm2953, %v5990, %v5992
    %v5994 = vrot.slane %v1569, 1
    %v5995 = vsel %vm2953, %v5992, %v5994
    %v5996 = vrot.slane %v1572, 1
    %v5997 = vsel %vm2953, %v5994, %v5996
    %v5998 = vrot.slane %v1575, 1
    %v5999 = vsel %vm2953, %v5996, %v5998
    %v6000 = vrot.slane %v1578, 1
    %v6001 = vsel %vm2953, %v5998, %v6000
    %v6002 = vrot.slane %v1581, 1
    %v6003 = vsel %vm2953, %v6000, %v6002
    %v6004 = vrot.slane %v1584, 1
    %v6005 = vsel %vm2953, %v6002, %v6004
    %v6006 = vrot.slane %v1587, 1
    %v6007 = vsel %vm2953, %v6004, %v6006
    %v6008 = vrot.slane %v1590, 1
    %v6009 = vsel %vm2953, %v6006, %v6008
    %v6010 = vrot.slane %v1593, 1
    %v6011 = vsel %vm2953, %v6008, %v6010
    %v6012 = vrot.slane %v1596, 1
    %v6013 = vsel %vm2953, %v6010, %v6012
    %v6014 = vrot.slane %v1599, 1
    %v6015 = vsel %vm2953, %v6012, %v6014
    %v6016 = vrot.slane %v1602, 1
    %v6017 = vsel %vm2953, %v6014, %v6016
    %v6018 = vrot.slane %v1605, 1
    %v6019 = vsel %vm2953, %v6016, %v6018
    %v6084 = vrot.slane %v1416, 1
    %v6085 = vrot.slane %v1419, 1
    %v6086 = vsel %vm2953, %v6084, %v6085
    %v6087 = vsel %vm2953, %v6085, %v5897
    %v6091 = vsel %vm2953, %v6018, %v6084
    %vm6092 = vmand %vm731, %vm859
    %vm6093 = vmand %vm732, %vm860
    %vm6094 = vmand %vm733, %vm861
    %vm6095 = vmand %vm734, %vm862
    %vm6096 = vmand %vm735, %vm863
    %vm6097 = vmand %vm736, %vm864
    %vm6098 = vmand %vm737, %vm865
    %vm6099 = vmand %vm738, %vm866
    %vm6100 = vmand %vm739, %vm867
    %vm6101 = vmand %vm740, %vm868
    %vm6102 = vmand %vm741, %vm869
    %vm6103 = vmand %vm742, %vm870
    %vm6104 = vmand %vm743, %vm871
    %vm6105 = vmand %vm744, %vm872
    %vm6106 = vmand %vm745, %vm873
    %vm6107 = vmand %vm746, %vm874
    %vm6108 = vmand %vm747, %vm875
    %vm6109 = vmand %vm748, %vm876
    %vm6110 = vmand %vm749, %vm877
    %vm6111 = vmand %vm750, %vm878
    %vm6112 = vmand %vm751, %vm879
    %vm6113 = vmand %vm752, %vm880
    %vm6114 = vmand %vm753, %vm881
    %vm6115 = vmand %vm754, %vm882
    %vm6116 = vmand %vm755, %vm883
    %vm6117 = vmand %vm756, %vm884
    %vm6118 = vmand %vm757, %vm885
    %vm6119 = vmand %vm758, %vm886
    %vm6120 = vmand %vm759, %vm887
    %vm6121 = vmand %vm760, %vm888
    %vm6122 = vmand %vm761, %vm889
    %vm6123 = vmand %vm762, %vm890
    %vm6124 = vmand %vm763, %vm891
    %vm6125 = vmand %vm764, %vm892
    %vm6126 = vmand %vm765, %vm893
    %vm6127 = vmand %vm766, %vm894
    %vm6128 = vmand %vm767, %vm895
    %vm6129 = vmand %vm768, %vm896
    %vm6130 = vmand %vm769, %vm897
    %vm6131 = vmand %vm770, %vm898
    %vm6132 = vmand %vm771, %vm899
    %vm6133 = vmand %vm772, %vm900
    %vm6134 = vmand %vm773, %vm901
    %vm6135 = vmand %vm774, %vm902
    %vm6136 = vmand %vm775, %vm903
    %vm6137 = vmand %vm776, %vm904
    %vm6138 = vmand %vm777, %vm905
    %vm6139 = vmand %vm778, %vm906
    %vm6140 = vmand %vm779, %vm907
    %vm6141 = vmand %vm780, %vm908
    %vm6142 = vmand %vm781, %vm909
    %vm6143 = vmand %vm782, %vm910
    %vm6144 = vmand %vm783, %vm911
    %vm6145 = vmand %vm784, %vm912
    %vm6146 = vmand %vm785, %vm913
    %vm6147 = vmand %vm786, %vm914
    %vm6148 = vmand %vm787, %vm915
    %vm6149 = vmand %vm788, %vm916
    %vm6150 = vmand %vm789, %vm917
    %vm6151 = vmand %vm790, %vm918
    %vm6152 = vmand %vm791, %vm919
    %vm6153 = vmand %vm792, %vm920
    %vm6154 = vmand %vm793, %vm921
    %vm6155 = vmand %vm794, %vm922
    %v6156 = vsel %vm6092, 1, 0
    %v6157 = vsel %vm6093, 1, 0
    %v6158 = vsel %vm6094, 1, 0
    %v6159 = vsel %vm6095, 1, 0
    %v6160 = vsel %vm6096, 1, 0
    %v6161 = vsel %vm6097, 1, 0
    %v6162 = vsel %vm6098, 1, 0
    %v6163 = vsel %vm6099, 1, 0
    %v6164 = vsel %vm6100, 1, 0
    %v6165 = vsel %vm6101, 1, 0
    %v6166 = vsel %vm6102, 1, 0
    %v6167 = vsel %vm6103, 1, 0
    %v6168 = vsel %vm6104, 1, 0
    %v6169 = vsel %vm6105, 1, 0
    %v6170 = vsel %vm6106, 1, 0
    %v6171 = vsel %vm6107, 1, 0
    %v6172 = vsel %vm6108, 1, 0
    %v6173 = vsel %vm6109, 1, 0
    %v6174 = vsel %vm6110, 1, 0
    %v6175 = vsel %vm6111, 1, 0
    %v6176 = vsel %vm6112, 1, 0
    %v6177 = vsel %vm6113, 1, 0
    %v6178 = vsel %vm6114, 1, 0
    %v6179 = vsel %vm6115, 1, 0
    %v6180 = vsel %vm6116, 1, 0
    %v6181 = vsel %vm6117, 1, 0
    %v6182 = vsel %vm6118, 1, 0
    %v6183 = vsel %vm6119, 1, 0
    %v6184 = vsel %vm6120, 1, 0
    %v6185 = vsel %vm6121, 1, 0
    %v6186 = vsel %vm6122, 1, 0
    %v6187 = vsel %vm6123, 1, 0
    %v6188 = vsel %vm6124, 1, 0
    %v6189 = vsel %vm6125, 1, 0
    %v6190 = vsel %vm6126, 1, 0
    %v6191 = vsel %vm6127, 1, 0
    %v6192 = vsel %vm6128, 1, 0
    %v6193 = vsel %vm6129, 1, 0
    %v6194 = vsel %vm6130, 1, 0
    %v6195 = vsel %vm6131, 1, 0
    %v6196 = vsel %vm6132, 1, 0
    %v6197 = vsel %vm6133, 1, 0
    %v6198 = vsel %vm6134, 1, 0
    %v6199 = vsel %vm6135, 1, 0
    %v6200 = vsel %vm6136, 1, 0
    %v6201 = vsel %vm6137, 1, 0
    %v6202 = vsel %vm6138, 1, 0
    %v6203 = vsel %vm6139, 1, 0
    %v6204 = vsel %vm6140, 1, 0
    %v6205 = vsel %vm6141, 1, 0
    %v6206 = vsel %vm6142, 1, 0
    %v6207 = vsel %vm6143, 1, 0
    %v6208 = vsel %vm6144, 1, 0
    %v6209 = vsel %vm6145, 1, 0
    %v6210 = vsel %vm6146, 1, 0
    %v6211 = vsel %vm6147, 1, 0
    %v6212 = vsel %vm6148, 1, 0
    %v6213 = vsel %vm6149, 1, 0
    %v6214 = vsel %vm6150, 1, 0
    %v6215 = vsel %vm6151, 1, 0
    %v6216 = vsel %vm6152, 1, 0
    %v6217 = vsel %vm6153, 1, 0
    %v6218 = vsel %vm6154, 1, 0
    %v6219 = vsel %vm6155, 1, 0
    %vm6220 = vcmp.eq.s32.totalorder %v6156, 1
    %vm6221 = vcmp.eq.s32.totalorder %v6157, 1
    %vm6222 = vcmp.eq.s32.totalorder %v6158, 1
    %vm6223 = vcmp.eq.s32.totalorder %v6159, 1
    %vm6224 = vcmp.eq.s32.totalorder %v6160, 1
    %vm6225 = vcmp.eq.s32.totalorder %v6161, 1
    %vm6226 = vcmp.eq.s32.totalorder %v6162, 1
    %vm6227 = vcmp.eq.s32.totalorder %v6163, 1
    %vm6228 = vcmp.eq.s32.totalorder %v6164, 1
    %vm6229 = vcmp.eq.s32.totalorder %v6165, 1
    %vm6230 = vcmp.eq.s32.totalorder %v6166, 1
    %vm6231 = vcmp.eq.s32.totalorder %v6167, 1
    %vm6232 = vcmp.eq.s32.totalorder %v6168, 1
    %vm6233 = vcmp.eq.s32.totalorder %v6169, 1
    %vm6234 = vcmp.eq.s32.totalorder %v6170, 1
    %vm6235 = vcmp.eq.s32.totalorder %v6171, 1
    %vm6236 = vcmp.eq.s32.totalorder %v6172, 1
    %vm6237 = vcmp.eq.s32.totalorder %v6173, 1
    %vm6238 = vcmp.eq.s32.totalorder %v6174, 1
    %vm6239 = vcmp.eq.s32.totalorder %v6175, 1
    %vm6240 = vcmp.eq.s32.totalorder %v6176, 1
    %vm6241 = vcmp.eq.s32.totalorder %v6177, 1
    %vm6242 = vcmp.eq.s32.totalorder %v6178, 1
    %vm6243 = vcmp.eq.s32.totalorder %v6179, 1
    %vm6244 = vcmp.eq.s32.totalorder %v6180, 1
    %vm6245 = vcmp.eq.s32.totalorder %v6181, 1
    %vm6246 = vcmp.eq.s32.totalorder %v6182, 1
    %vm6247 = vcmp.eq.s32.totalorder %v6183, 1
    %vm6248 = vcmp.eq.s32.totalorder %v6184, 1
    %vm6249 = vcmp.eq.s32.totalorder %v6185, 1
    %vm6250 = vcmp.eq.s32.totalorder %v6186, 1
    %vm6251 = vcmp.eq.s32.totalorder %v6187, 1
    %vm6252 = vcmp.eq.s32.totalorder %v6188, 1
    %vm6253 = vcmp.eq.s32.totalorder %v6189, 1
    %vm6254 = vcmp.eq.s32.totalorder %v6190, 1
    %vm6255 = vcmp.eq.s32.totalorder %v6191, 1
    %vm6256 = vcmp.eq.s32.totalorder %v6192, 1
    %vm6257 = vcmp.eq.s32.totalorder %v6193, 1
    %vm6258 = vcmp.eq.s32.totalorder %v6194, 1
    %vm6259 = vcmp.eq.s32.totalorder %v6195, 1
    %vm6260 = vcmp.eq.s32.totalorder %v6196, 1
    %vm6261 = vcmp.eq.s32.totalorder %v6197, 1
    %vm6262 = vcmp.eq.s32.totalorder %v6198, 1
    %vm6263 = vcmp.eq.s32.totalorder %v6199, 1
    %vm6264 = vcmp.eq.s32.totalorder %v6200, 1
    %vm6265 = vcmp.eq.s32.totalorder %v6201, 1
    %vm6266 = vcmp.eq.s32.totalorder %v6202, 1
    %vm6267 = vcmp.eq.s32.totalorder %v6203, 1
    %vm6268 = vcmp.eq.s32.totalorder %v6204, 1
    %vm6269 = vcmp.eq.s32.totalorder %v6205, 1
    %vm6270 = vcmp.eq.s32.totalorder %v6206, 1
    %vm6271 = vcmp.eq.s32.totalorder %v6207, 1
    %vm6272 = vcmp.eq.s32.totalorder %v6208, 1
    %vm6273 = vcmp.eq.s32.totalorder %v6209, 1
    %vm6274 = vcmp.eq.s32.totalorder %v6210, 1
    %vm6275 = vcmp.eq.s32.totalorder %v6211, 1
    %vm6276 = vcmp.eq.s32.totalorder %v6212, 1
    %vm6277 = vcmp.eq.s32.totalorder %v6213, 1
    %vm6278 = vcmp.eq.s32.totalorder %v6214, 1
    %vm6279 = vcmp.eq.s32.totalorder %v6215, 1
    %vm6280 = vcmp.eq.s32.totalorder %v6216, 1
    %vm6281 = vcmp.eq.s32.totalorder %v6217, 1
    %vm6282 = vcmp.eq.s32.totalorder %v6218, 1
    %vm6283 = vcmp.eq.s32.totalorder %v6219, 1
    %v6284 = vsel %vm6220, %v5899, 0.0
    %v6285 = vsel %vm6221, %v5901, 0.0
    %v6286 = vsel %vm6222, %v5903, 0.0
    %v6287 = vsel %vm6223, %v5905, 0.0
    %v6288 = vsel %vm6224, %v5907, 0.0
    %v6289 = vsel %vm6225, %v5909, 0.0
    %v6290 = vsel %vm6226, %v5911, 0.0
    %v6291 = vsel %vm6227, %v5913, 0.0
    %v6292 = vsel %vm6228, %v5915, 0.0
    %v6293 = vsel %vm6229, %v5917, 0.0
    %v6294 = vsel %vm6230, %v5919, 0.0
    %v6295 = vsel %vm6231, %v5921, 0.0
    %v6296 = vsel %vm6232, %v5923, 0.0
    %v6297 = vsel %vm6233, %v5925, 0.0
    %v6298 = vsel %vm6234, %v5927, 0.0
    %v6299 = vsel %vm6235, %v5929, 0.0
    %v6300 = vsel %vm6236, %v5931, 0.0
    %v6301 = vsel %vm6237, %v5933, 0.0
    %v6302 = vsel %vm6238, %v5935, 0.0
    %v6303 = vsel %vm6239, %v5937, 0.0
    %v6304 = vsel %vm6240, %v5939, 0.0
    %v6305 = vsel %vm6241, %v5941, 0.0
    %v6306 = vsel %vm6242, %v5943, 0.0
    %v6307 = vsel %vm6243, %v5945, 0.0
    %v6308 = vsel %vm6244, %v5947, 0.0
    %v6309 = vsel %vm6245, %v5949, 0.0
    %v6310 = vsel %vm6246, %v5951, 0.0
    %v6311 = vsel %vm6247, %v5953, 0.0
    %v6312 = vsel %vm6248, %v5955, 0.0
    %v6313 = vsel %vm6249, %v5957, 0.0
    %v6314 = vsel %vm6250, %v5959, 0.0
    %v6315 = vsel %vm6251, %v5961, 0.0
    %v6316 = vsel %vm6252, %v5963, 0.0
    %v6317 = vsel %vm6253, %v5965, 0.0
    %v6318 = vsel %vm6254, %v5967, 0.0
    %v6319 = vsel %vm6255, %v5969, 0.0
    %v6320 = vsel %vm6256, %v5971, 0.0
    %v6321 = vsel %vm6257, %v5973, 0.0
    %v6322 = vsel %vm6258, %v5975, 0.0
    %v6323 = vsel %vm6259, %v5977, 0.0
    %v6324 = vsel %vm6260, %v5979, 0.0
    %v6325 = vsel %vm6261, %v5981, 0.0
    %v6326 = vsel %vm6262, %v5983, 0.0
    %v6327 = vsel %vm6263, %v5985, 0.0
    %v6328 = vsel %vm6264, %v5987, 0.0
    %v6329 = vsel %vm6265, %v5989, 0.0
    %v6330 = vsel %vm6266, %v5991, 0.0
    %v6331 = vsel %vm6267, %v5993, 0.0
    %v6332 = vsel %vm6268, %v5995, 0.0
    %v6333 = vsel %vm6269, %v5997, 0.0
    %v6334 = vsel %vm6270, %v5999, 0.0
    %v6335 = vsel %vm6271, %v6001, 0.0
    %v6336 = vsel %vm6272, %v6003, 0.0
    %v6337 = vsel %vm6273, %v6005, 0.0
    %v6338 = vsel %vm6274, %v6007, 0.0
    %v6339 = vsel %vm6275, %v6009, 0.0
    %v6340 = vsel %vm6276, %v6011, 0.0
    %v6341 = vsel %vm6277, %v6013, 0.0
    %v6342 = vsel %vm6278, %v6015, 0.0
    %v6343 = vsel %vm6279, %v6017, 0.0
    %v6344 = vsel %vm6280, %v6019, 0.0
    %v6345 = vsel %vm6281, %v6091, 0.0
    %v6346 = vsel %vm6282, %v6086, 0.0
    %v6347 = vsel %vm6283, %v6087, 0.0
    %6412 = vrot.lane.b32.xlu0 %v6284, 64
    %v6413 = vpop.permute.xlu0 %6412
    %6414 = vrot.lane.b32.xlu0 %v6285, 64
    %v6415 = vpop.permute.xlu0 %6414
    %6416 = vrot.lane.b32.xlu0 %v6286, 64
    %v6417 = vpop.permute.xlu0 %6416
    %6418 = vrot.lane.b32.xlu0 %v6287, 64
    %v6419 = vpop.permute.xlu0 %6418
    %6420 = vrot.lane.b32.xlu0 %v6288, 64
    %v6421 = vpop.permute.xlu0 %6420
    %6422 = vrot.lane.b32.xlu0 %v6289, 64
    %v6423 = vpop.permute.xlu0 %6422
    %6424 = vrot.lane.b32.xlu0 %v6290, 64
    %v6425 = vpop.permute.xlu0 %6424
    %6426 = vrot.lane.b32.xlu0 %v6291, 64
    %v6427 = vpop.permute.xlu0 %6426
    %6428 = vrot.lane.b32.xlu0 %v6292, 64
    %v6429 = vpop.permute.xlu0 %6428
    %6430 = vrot.lane.b32.xlu0 %v6293, 64
    %v6431 = vpop.permute.xlu0 %6430
    %6432 = vrot.lane.b32.xlu0 %v6294, 64
    %v6433 = vpop.permute.xlu0 %6432
    %6434 = vrot.lane.b32.xlu0 %v6295, 64
    %v6435 = vpop.permute.xlu0 %6434
    %6436 = vrot.lane.b32.xlu0 %v6296, 64
    %v6437 = vpop.permute.xlu0 %6436
    %6438 = vrot.lane.b32.xlu0 %v6297, 64
    %v6439 = vpop.permute.xlu0 %6438
    %6440 = vrot.lane.b32.xlu0 %v6298, 64
    %v6441 = vpop.permute.xlu0 %6440
    %6442 = vrot.lane.b32.xlu0 %v6299, 64
    %v6443 = vpop.permute.xlu0 %6442
    %6444 = vrot.lane.b32.xlu0 %v6300, 64
    %v6445 = vpop.permute.xlu0 %6444
    %6446 = vrot.lane.b32.xlu0 %v6301, 64
    %v6447 = vpop.permute.xlu0 %6446
    %6448 = vrot.lane.b32.xlu0 %v6302, 64
    %v6449 = vpop.permute.xlu0 %6448
    %6450 = vrot.lane.b32.xlu0 %v6303, 64
    %v6451 = vpop.permute.xlu0 %6450
    %6452 = vrot.lane.b32.xlu0 %v6304, 64
    %v6453 = vpop.permute.xlu0 %6452
    %6454 = vrot.lane.b32.xlu0 %v6305, 64
    %v6455 = vpop.permute.xlu0 %6454
    %6456 = vrot.lane.b32.xlu0 %v6306, 64
    %v6457 = vpop.permute.xlu0 %6456
    %6458 = vrot.lane.b32.xlu0 %v6307, 64
    %v6459 = vpop.permute.xlu0 %6458
    %6460 = vrot.lane.b32.xlu0 %v6308, 64
    %v6461 = vpop.permute.xlu0 %6460
    %6462 = vrot.lane.b32.xlu0 %v6309, 64
    %v6463 = vpop.permute.xlu0 %6462
    %6464 = vrot.lane.b32.xlu0 %v6310, 64
    %v6465 = vpop.permute.xlu0 %6464
    %6466 = vrot.lane.b32.xlu0 %v6311, 64
    %v6467 = vpop.permute.xlu0 %6466
    %6468 = vrot.lane.b32.xlu0 %v6312, 64
    %v6469 = vpop.permute.xlu0 %6468
    %6470 = vrot.lane.b32.xlu0 %v6313, 64
    %v6471 = vpop.permute.xlu0 %6470
    %6472 = vrot.lane.b32.xlu0 %v6314, 64
    %v6473 = vpop.permute.xlu0 %6472
    %6474 = vrot.lane.b32.xlu0 %v6315, 64
    %v6475 = vpop.permute.xlu0 %6474
    %6476 = vrot.lane.b32.xlu0 %v6316, 64
    %v6477 = vpop.permute.xlu0 %6476
    %6478 = vrot.lane.b32.xlu0 %v6317, 64
    %v6479 = vpop.permute.xlu0 %6478
    %6480 = vrot.lane.b32.xlu0 %v6318, 64
    %v6481 = vpop.permute.xlu0 %6480
    %6482 = vrot.lane.b32.xlu0 %v6319, 64
    %v6483 = vpop.permute.xlu0 %6482
    %6484 = vrot.lane.b32.xlu0 %v6320, 64
    %v6485 = vpop.permute.xlu0 %6484
    %6486 = vrot.lane.b32.xlu0 %v6321, 64
    %v6487 = vpop.permute.xlu0 %6486
    %6488 = vrot.lane.b32.xlu0 %v6322, 64
    %v6489 = vpop.permute.xlu0 %6488
    %6490 = vrot.lane.b32.xlu0 %v6323, 64
    %v6491 = vpop.permute.xlu0 %6490
    %6492 = vrot.lane.b32.xlu0 %v6324, 64
    %v6493 = vpop.permute.xlu0 %6492
    %6494 = vrot.lane.b32.xlu0 %v6325, 64
    %v6495 = vpop.permute.xlu0 %6494
    %6496 = vrot.lane.b32.xlu0 %v6326, 64
    %v6497 = vpop.permute.xlu0 %6496
    %6498 = vrot.lane.b32.xlu0 %v6327, 64
    %v6499 = vpop.permute.xlu0 %6498
    %6500 = vrot.lane.b32.xlu0 %v6328, 64
    %v6501 = vpop.permute.xlu0 %6500
    %6502 = vrot.lane.b32.xlu0 %v6329, 64
    %v6503 = vpop.permute.xlu0 %6502
    %6504 = vrot.lane.b32.xlu0 %v6330, 64
    %v6505 = vpop.permute.xlu0 %6504
    %6506 = vrot.lane.b32.xlu0 %v6331, 64
    %v6507 = vpop.permute.xlu0 %6506
    %6508 = vrot.lane.b32.xlu0 %v6332, 64
    %v6509 = vpop.permute.xlu0 %6508
    %6510 = vrot.lane.b32.xlu0 %v6333, 64
    %v6511 = vpop.permute.xlu0 %6510
    %6512 = vrot.lane.b32.xlu0 %v6334, 64
    %v6513 = vpop.permute.xlu0 %6512
    %6514 = vrot.lane.b32.xlu0 %v6335, 64
    %v6515 = vpop.permute.xlu0 %6514
    %6516 = vrot.lane.b32.xlu0 %v6336, 64
    %v6517 = vpop.permute.xlu0 %6516
    %6518 = vrot.lane.b32.xlu0 %v6337, 64
    %v6519 = vpop.permute.xlu0 %6518
    %6520 = vrot.lane.b32.xlu0 %v6338, 64
    %v6521 = vpop.permute.xlu0 %6520
    %6522 = vrot.lane.b32.xlu0 %v6339, 64
    %v6523 = vpop.permute.xlu0 %6522
    %6524 = vrot.lane.b32.xlu0 %v6340, 64
    %v6525 = vpop.permute.xlu0 %6524
    %6526 = vrot.lane.b32.xlu0 %v6341, 64
    %v6527 = vpop.permute.xlu0 %6526
    %6528 = vrot.lane.b32.xlu0 %v6342, 64
    %v6529 = vpop.permute.xlu0 %6528
    %6530 = vrot.lane.b32.xlu0 %v6343, 64
    %v6531 = vpop.permute.xlu0 %6530
    %6532 = vrot.lane.b32.xlu0 %v6344, 64
    %v6533 = vpop.permute.xlu0 %6532
    %6534 = vrot.lane.b32.xlu0 %v6345, 64
    %v6535 = vpop.permute.xlu0 %6534
    %6536 = vrot.lane.b32.xlu0 %v6346, 64
    %v6537 = vpop.permute.xlu0 %6536
    %6538 = vrot.lane.b32.xlu0 %v6347, 64
    %v6539 = vpop.permute.xlu0 %6538
    %v6604 = vadd.f32 %v5771, %v6413
    %v6605 = vadd.f32 %v5772, %v6415
    %v6606 = vadd.f32 %v5773, %v6417
    %v6607 = vadd.f32 %v5774, %v6419
    %v6608 = vadd.f32 %v5775, %v6421
    %v6609 = vadd.f32 %v5776, %v6423
    %v6610 = vadd.f32 %v5777, %v6425
    %v6611 = vadd.f32 %v5778, %v6427
    %v6612 = vadd.f32 %v5779, %v6429
    %v6613 = vadd.f32 %v5780, %v6431
    %v6614 = vadd.f32 %v5781, %v6433
    %v6615 = vadd.f32 %v5782, %v6435
    %v6616 = vadd.f32 %v5783, %v6437
    %v6617 = vadd.f32 %v5784, %v6439
    %v6618 = vadd.f32 %v5785, %v6441
    %v6619 = vadd.f32 %v5786, %v6443
    %v6620 = vadd.f32 %v5787, %v6445
    %v6621 = vadd.f32 %v5788, %v6447
    %v6622 = vadd.f32 %v5789, %v6449
    %v6623 = vadd.f32 %v5790, %v6451
    %v6624 = vadd.f32 %v5791, %v6453
    %v6625 = vadd.f32 %v5792, %v6455
    %v6626 = vadd.f32 %v5793, %v6457
    %v6627 = vadd.f32 %v5794, %v6459
    %v6628 = vadd.f32 %v5795, %v6461
    %v6629 = vadd.f32 %v5796, %v6463
    %v6630 = vadd.f32 %v5797, %v6465
    %v6631 = vadd.f32 %v5798, %v6467
    %v6632 = vadd.f32 %v5799, %v6469
    %v6633 = vadd.f32 %v5800, %v6471
    %v6634 = vadd.f32 %v5801, %v6473
    %v6635 = vadd.f32 %v5802, %v6475
    %v6636 = vadd.f32 %v5803, %v6477
    %v6637 = vadd.f32 %v5804, %v6479
    %v6638 = vadd.f32 %v5805, %v6481
    %v6639 = vadd.f32 %v5806, %v6483
    %v6640 = vadd.f32 %v5807, %v6485
    %v6641 = vadd.f32 %v5808, %v6487
    %v6642 = vadd.f32 %v5809, %v6489
    %v6643 = vadd.f32 %v5810, %v6491
    %v6644 = vadd.f32 %v5811, %v6493
    %v6645 = vadd.f32 %v5812, %v6495
    %v6646 = vadd.f32 %v5813, %v6497
    %v6647 = vadd.f32 %v5814, %v6499
    %v6648 = vadd.f32 %v5815, %v6501
    %v6649 = vadd.f32 %v5816, %v6503
    %v6650 = vadd.f32 %v5817, %v6505
    %v6651 = vadd.f32 %v5818, %v6507
    %v6652 = vadd.f32 %v5819, %v6509
    %v6653 = vadd.f32 %v5820, %v6511
    %v6654 = vadd.f32 %v5821, %v6513
    %v6655 = vadd.f32 %v5822, %v6515
    %v6656 = vadd.f32 %v5823, %v6517
    %v6657 = vadd.f32 %v5824, %v6519
    %v6658 = vadd.f32 %v5825, %v6521
    %v6659 = vadd.f32 %v5826, %v6523
    %v6660 = vadd.f32 %v5827, %v6525
    %v6661 = vadd.f32 %v5828, %v6527
    %v6662 = vadd.f32 %v5829, %v6529
    %v6663 = vadd.f32 %v5830, %v6531
    %v6664 = vadd.f32 %v5831, %v6533
    %v6665 = vadd.f32 %v5832, %v6535
    %v6666 = vadd.f32 %v5833, %v6537
    %v6667 = vadd.f32 %v5834, %v6539
    %v6668 = vld [vmem:[%s1 + $0xa8] ss:$0 sm:$0xff]
    %6670 = vrot.lane.b32.xlu0 %v6668, 64
    %v6671 = vpop.permute.xlu0 %6670
    %v6673 = vadd.f32 %v6604, %v6671
    %v6674 = vadd.f32 %v6605, %v6671
    %v6675 = vadd.f32 %v6606, %v6671
    %v6676 = vadd.f32 %v6607, %v6671
    %v6677 = vadd.f32 %v6608, %v6671
    %v6678 = vadd.f32 %v6609, %v6671
    %v6679 = vadd.f32 %v6610, %v6671
    %v6680 = vadd.f32 %v6611, %v6671
    %v6681 = vadd.f32 %v6612, %v6671
    %v6682 = vadd.f32 %v6613, %v6671
    %v6683 = vadd.f32 %v6614, %v6671
    %v6684 = vadd.f32 %v6615, %v6671
    %v6685 = vadd.f32 %v6616, %v6671
    %v6686 = vadd.f32 %v6617, %v6671
    %v6687 = vadd.f32 %v6618, %v6671
    %v6688 = vadd.f32 %v6619, %v6671
    %v6689 = vadd.f32 %v6620, %v6671
    %v6690 = vadd.f32 %v6621, %v6671
    %v6691 = vadd.f32 %v6622, %v6671
    %v6692 = vadd.f32 %v6623, %v6671
    %v6693 = vadd.f32 %v6624, %v6671
    %v6694 = vadd.f32 %v6625, %v6671
    %v6695 = vadd.f32 %v6626, %v6671
    %v6696 = vadd.f32 %v6627, %v6671
    %v6697 = vadd.f32 %v6628, %v6671
    %v6698 = vadd.f32 %v6629, %v6671
    %v6699 = vadd.f32 %v6630, %v6671
    %v6700 = vadd.f32 %v6631, %v6671
    %v6701 = vadd.f32 %v6632, %v6671
    %v6702 = vadd.f32 %v6633, %v6671
    %v6703 = vadd.f32 %v6634, %v6671
    %v6704 = vadd.f32 %v6635, %v6671
    %v6705 = vadd.f32 %v6636, %v6671
    %v6706 = vadd.f32 %v6637, %v6671
    %v6707 = vadd.f32 %v6638, %v6671
    %v6708 = vadd.f32 %v6639, %v6671
    %v6709 = vadd.f32 %v6640, %v6671
    %v6710 = vadd.f32 %v6641, %v6671
    %v6711 = vadd.f32 %v6642, %v6671
    %v6712 = vadd.f32 %v6643, %v6671
    %v6713 = vadd.f32 %v6644, %v6671
    %v6714 = vadd.f32 %v6645, %v6671
    %v6715 = vadd.f32 %v6646, %v6671
    %v6716 = vadd.f32 %v6647, %v6671
    %v6717 = vadd.f32 %v6648, %v6671
    %v6718 = vadd.f32 %v6649, %v6671
    %v6719 = vadd.f32 %v6650, %v6671
    %v6720 = vadd.f32 %v6651, %v6671
    %v6721 = vadd.f32 %v6652, %v6671
    %v6722 = vadd.f32 %v6653, %v6671
    %v6723 = vadd.f32 %v6654, %v6671
    %v6724 = vadd.f32 %v6655, %v6671
    %v6725 = vadd.f32 %v6656, %v6671
    %v6726 = vadd.f32 %v6657, %v6671
    %v6727 = vadd.f32 %v6658, %v6671
    %v6728 = vadd.f32 %v6659, %v6671
    %v6729 = vadd.f32 %v6660, %v6671
    %v6730 = vadd.f32 %v6661, %v6671
    %v6731 = vadd.f32 %v6662, %v6671
    %v6732 = vadd.f32 %v6663, %v6671
    %v6733 = vadd.f32 %v6664, %v6671
    %v6734 = vadd.f32 %v6665, %v6671
    %v6735 = vadd.f32 %v6666, %v6671
    %v6736 = vadd.f32 %v6667, %v6671
    %v6737 = vmax.f32 %v6673, 0.0
    %v6738 = vmax.f32 %v6674, 0.0
    %v6739 = vmax.f32 %v6675, 0.0
    %v6740 = vmax.f32 %v6676, 0.0
    %v6741 = vmax.f32 %v6677, 0.0
    %v6742 = vmax.f32 %v6678, 0.0
    %v6743 = vmax.f32 %v6679, 0.0
    %v6744 = vmax.f32 %v6680, 0.0
    %v6745 = vmax.f32 %v6681, 0.0
    %v6746 = vmax.f32 %v6682, 0.0
    %v6747 = vmax.f32 %v6683, 0.0
    %v6748 = vmax.f32 %v6684, 0.0
    %v6749 = vmax.f32 %v6685, 0.0
    %v6750 = vmax.f32 %v6686, 0.0
    %v6751 = vmax.f32 %v6687, 0.0
    %v6752 = vmax.f32 %v6688, 0.0
    %v6753 = vmax.f32 %v6689, 0.0
    %v6754 = vmax.f32 %v6690, 0.0
    %v6755 = vmax.f32 %v6691, 0.0
    %v6756 = vmax.f32 %v6692, 0.0
    %v6757 = vmax.f32 %v6693, 0.0
    %v6758 = vmax.f32 %v6694, 0.0
    %v6759 = vmax.f32 %v6695, 0.0
    %v6760 = vmax.f32 %v6696, 0.0
    %v6761 = vmax.f32 %v6697, 0.0
    %v6762 = vmax.f32 %v6698, 0.0
    %v6763 = vmax.f32 %v6699, 0.0
    %v6764 = vmax.f32 %v6700, 0.0
    %v6765 = vmax.f32 %v6701, 0.0
    %v6766 = vmax.f32 %v6702, 0.0
    %v6767 = vmax.f32 %v6703, 0.0
    %v6768 = vmax.f32 %v6704, 0.0
    %v6769 = vmax.f32 %v6705, 0.0
    %v6770 = vmax.f32 %v6706, 0.0
    %v6771 = vmax.f32 %v6707, 0.0
    %v6772 = vmax.f32 %v6708, 0.0
    %v6773 = vmax.f32 %v6709, 0.0
    %v6774 = vmax.f32 %v6710, 0.0
    %v6775 = vmax.f32 %v6711, 0.0
    %v6776 = vmax.f32 %v6712, 0.0
    %v6777 = vmax.f32 %v6713, 0.0
    %v6778 = vmax.f32 %v6714, 0.0
    %v6779 = vmax.f32 %v6715, 0.0
    %v6780 = vmax.f32 %v6716, 0.0
    %v6781 = vmax.f32 %v6717, 0.0
    %v6782 = vmax.f32 %v6718, 0.0
    %v6783 = vmax.f32 %v6719, 0.0
    %v6784 = vmax.f32 %v6720, 0.0
    %v6785 = vmax.f32 %v6721, 0.0
    %v6786 = vmax.f32 %v6722, 0.0
    %v6787 = vmax.f32 %v6723, 0.0
    %v6788 = vmax.f32 %v6724, 0.0
    %v6789 = vmax.f32 %v6725, 0.0
    %v6790 = vmax.f32 %v6726, 0.0
    %v6791 = vmax.f32 %v6727, 0.0
    %v6792 = vmax.f32 %v6728, 0.0
    %v6793 = vmax.f32 %v6729, 0.0
    %v6794 = vmax.f32 %v6730, 0.0
    %v6795 = vmax.f32 %v6731, 0.0
    %v6796 = vmax.f32 %v6732, 0.0
    %v6797 = vmax.f32 %v6733, 0.0
    %v6798 = vmax.f32 %v6734, 0.0
    %v6799 = vmax.f32 %v6735, 0.0
    %v6800 = vmax.f32 %v6736, 0.0
    %v6801 = vld [vmem:[%s1 + $0x18] sm:$0xff]
    %v6802 = vld [vmem:[%s1 + $0x20] sm:$0xff]
    %v6803 = vld [vmem:[%s1 + $0x28] sm:$0xff]
    %v6804 = vld [vmem:[%s1 + $0x30] sm:$0xff]
    %v6805 = vld [vmem:[%s1 + $0x38] sm:$0xff]
    %v6806 = vld [vmem:[%s1 + $0x40] sm:$0xff]
    %6871 = vrot.lane.b32.xlu0 %v6737, 64
    %v6872 = vpop.permute.xlu0 %6871
    %6873 = vrot.lane.b32.xlu0 %v6738, 64
    %v6874 = vpop.permute.xlu0 %6873
    %6875 = vrot.lane.b32.xlu0 %v6739, 64
    %v6876 = vpop.permute.xlu0 %6875
    %6877 = vrot.lane.b32.xlu0 %v6740, 64
    %v6878 = vpop.permute.xlu0 %6877
    %6879 = vrot.lane.b32.xlu0 %v6741, 64
    %v6880 = vpop.permute.xlu0 %6879
    %6881 = vrot.lane.b32.xlu0 %v6742, 64
    %v6882 = vpop.permute.xlu0 %6881
    %6883 = vrot.lane.b32.xlu0 %v6743, 64
    %v6884 = vpop.permute.xlu0 %6883
    %6885 = vrot.lane.b32.xlu0 %v6744, 64
    %v6886 = vpop.permute.xlu0 %6885
    %6887 = vrot.lane.b32.xlu0 %v6745, 64
    %v6888 = vpop.permute.xlu0 %6887
    %6889 = vrot.lane.b32.xlu0 %v6746, 64
    %v6890 = vpop.permute.xlu0 %6889
    %6891 = vrot.lane.b32.xlu0 %v6747, 64
    %v6892 = vpop.permute.xlu0 %6891
    %6893 = vrot.lane.b32.xlu0 %v6748, 64
    %v6894 = vpop.permute.xlu0 %6893
    %6895 = vrot.lane.b32.xlu0 %v6749, 64
    %v6896 = vpop.permute.xlu0 %6895
    %6897 = vrot.lane.b32.xlu0 %v6750, 64
    %v6898 = vpop.permute.xlu0 %6897
    %6899 = vrot.lane.b32.xlu0 %v6751, 64
    %v6900 = vpop.permute.xlu0 %6899
    %6901 = vrot.lane.b32.xlu0 %v6752, 64
    %v6902 = vpop.permute.xlu0 %6901
    %6903 = vrot.lane.b32.xlu0 %v6753, 64
    %v6904 = vpop.permute.xlu0 %6903
    %6905 = vrot.lane.b32.xlu0 %v6754, 64
    %v6906 = vpop.permute.xlu0 %6905
    %6907 = vrot.lane.b32.xlu0 %v6755, 64
    %v6908 = vpop.permute.xlu0 %6907
    %6909 = vrot.lane.b32.xlu0 %v6756, 64
    %v6910 = vpop.permute.xlu0 %6909
    %6911 = vrot.lane.b32.xlu0 %v6757, 64
    %v6912 = vpop.permute.xlu0 %6911
    %6913 = vrot.lane.b32.xlu0 %v6758, 64
    %v6914 = vpop.permute.xlu0 %6913
    %6915 = vrot.lane.b32.xlu0 %v6759, 64
    %v6916 = vpop.permute.xlu0 %6915
    %6917 = vrot.lane.b32.xlu0 %v6760, 64
    %v6918 = vpop.permute.xlu0 %6917
    %6919 = vrot.lane.b32.xlu0 %v6761, 64
    %v6920 = vpop.permute.xlu0 %6919
    %6921 = vrot.lane.b32.xlu0 %v6762, 64
    %v6922 = vpop.permute.xlu0 %6921
    %6923 = vrot.lane.b32.xlu0 %v6763, 64
    %v6924 = vpop.permute.xlu0 %6923
    %6925 = vrot.lane.b32.xlu0 %v6764, 64
    %v6926 = vpop.permute.xlu0 %6925
    %6927 = vrot.lane.b32.xlu0 %v6765, 64
    %v6928 = vpop.permute.xlu0 %6927
    %6929 = vrot.lane.b32.xlu0 %v6766, 64
    %v6930 = vpop.permute.xlu0 %6929
    %6931 = vrot.lane.b32.xlu0 %v6767, 64
    %v6932 = vpop.permute.xlu0 %6931
    %6933 = vrot.lane.b32.xlu0 %v6768, 64
    %v6934 = vpop.permute.xlu0 %6933
    %6935 = vrot.lane.b32.xlu0 %v6769, 64
    %v6936 = vpop.permute.xlu0 %6935
    %6937 = vrot.lane.b32.xlu0 %v6770, 64
    %v6938 = vpop.permute.xlu0 %6937
    %6939 = vrot.lane.b32.xlu0 %v6771, 64
    %v6940 = vpop.permute.xlu0 %6939
    %6941 = vrot.lane.b32.xlu0 %v6772, 64
    %v6942 = vpop.permute.xlu0 %6941
    %6943 = vrot.lane.b32.xlu0 %v6773, 64
    %v6944 = vpop.permute.xlu0 %6943
    %6945 = vrot.lane.b32.xlu0 %v6774, 64
    %v6946 = vpop.permute.xlu0 %6945
    %6947 = vrot.lane.b32.xlu0 %v6775, 64
    %v6948 = vpop.permute.xlu0 %6947
    %6949 = vrot.lane.b32.xlu0 %v6776, 64
    %v6950 = vpop.permute.xlu0 %6949
    %6951 = vrot.lane.b32.xlu0 %v6777, 64
    %v6952 = vpop.permute.xlu0 %6951
    %6953 = vrot.lane.b32.xlu0 %v6778, 64
    %v6954 = vpop.permute.xlu0 %6953
    %6955 = vrot.lane.b32.xlu0 %v6779, 64
    %v6956 = vpop.permute.xlu0 %6955
    %6957 = vrot.lane.b32.xlu0 %v6780, 64
    %v6958 = vpop.permute.xlu0 %6957
    %6959 = vrot.lane.b32.xlu0 %v6781, 64
    %v6960 = vpop.permute.xlu0 %6959
    %6961 = vrot.lane.b32.xlu0 %v6782, 64
    %v6962 = vpop.permute.xlu0 %6961
    %6963 = vrot.lane.b32.xlu0 %v6783, 64
    %v6964 = vpop.permute.xlu0 %6963
    %6965 = vrot.lane.b32.xlu0 %v6784, 64
    %v6966 = vpop.permute.xlu0 %6965
    %6967 = vrot.lane.b32.xlu0 %v6785, 64
    %v6968 = vpop.permute.xlu0 %6967
    %6969 = vrot.lane.b32.xlu0 %v6786, 64
    %v6970 = vpop.permute.xlu0 %6969
    %6971 = vrot.lane.b32.xlu0 %v6787, 64
    %v6972 = vpop.permute.xlu0 %6971
    %6973 = vrot.lane.b32.xlu0 %v6788, 64
    %v6974 = vpop.permute.xlu0 %6973
    %6975 = vrot.lane.b32.xlu0 %v6789, 64
    %v6976 = vpop.permute.xlu0 %6975
    %6977 = vrot.lane.b32.xlu0 %v6790, 64
    %v6978 = vpop.permute.xlu0 %6977
    %6979 = vrot.lane.b32.xlu0 %v6791, 64
    %v6980 = vpop.permute.xlu0 %6979
    %6981 = vrot.lane.b32.xlu0 %v6792, 64
    %v6982 = vpop.permute.xlu0 %6981
    %6983 = vrot.lane.b32.xlu0 %v6793, 64
    %v6984 = vpop.permute.xlu0 %6983
    %6985 = vrot.lane.b32.xlu0 %v6794, 64
    %v6986 = vpop.permute.xlu0 %6985
    %6987 = vrot.lane.b32.xlu0 %v6795, 64
    %v6988 = vpop.permute.xlu0 %6987
    %6989 = vrot.lane.b32.xlu0 %v6796, 64
    %v6990 = vpop.permute.xlu0 %6989
    %6991 = vrot.lane.b32.xlu0 %v6797, 64
    %v6992 = vpop.permute.xlu0 %6991
    %6993 = vrot.lane.b32.xlu0 %v6798, 64
    %v6994 = vpop.permute.xlu0 %6993
    %6995 = vrot.lane.b32.xlu0 %v6799, 64
    %v6996 = vpop.permute.xlu0 %6995
    %6997 = vrot.lane.b32.xlu0 %v6800, 64
    %v6998 = vpop.permute.xlu0 %6997
    %vm6999 = vcmask 130048
    %v7000 = vsel %vm6999, %v6872, 0
    %v7002 = vsel %vm6999, %v6874, 0
    %v7004 = vsel %vm6999, %v6876, 0
    %v7006 = vsel %vm6999, %v6878, 0
    %v7008 = vsel %vm6999, %v6880, 0
    %v7010 = vsel %vm6999, %v6882, 0
    %v7012 = vsel %vm6999, %v6884, 0
    %v7014 = vsel %vm6999, %v6886, 0
    %v7016 = vsel %vm6999, %v6888, 0
    %v7018 = vsel %vm6999, %v6890, 0
    %v7020 = vsel %vm6999, %v6892, 0
    %v7022 = vsel %vm6999, %v6894, 0
    %v7024 = vsel %vm6999, %v6896, 0
    %v7026 = vsel %vm6999, %v6898, 0
    %v7028 = vsel %vm6999, %v6900, 0
    %v7030 = vsel %vm6999, %v6902, 0
    %v7032 = vsel %vm6999, %v6904, 0
    %v7034 = vsel %vm6999, %v6906, 0
    %v7036 = vsel %vm6999, %v6908, 0
    %v7038 = vsel %vm6999, %v6910, 0
    %v7040 = vsel %vm6999, %v6912, 0
    %v7042 = vsel %vm6999, %v6914, 0
    %v7044 = vsel %vm6999, %v6916, 0
    %v7046 = vsel %vm6999, %v6918, 0
    %v7048 = vsel %vm6999, %v6920, 0
    %v7050 = vsel %vm6999, %v6922, 0
    %v7052 = vsel %vm6999, %v6924, 0
    %v7054 = vsel %vm6999, %v6926, 0
    %v7056 = vsel %vm6999, %v6928, 0
    %v7058 = vsel %vm6999, %v6930, 0
    %v7060 = vsel %vm6999, %v6932, 0
    %v7062 = vsel %vm6999, %v6934, 0
    %v7064 = vsel %vm6999, %v6936, 0
    %v7066 = vsel %vm6999, %v6938, 0
    %v7068 = vsel %vm6999, %v6940, 0
    %v7070 = vsel %vm6999, %v6942, 0
    %v7072 = vsel %vm6999, %v6944, 0
    %v7074 = vsel %vm6999, %v6946, 0
    %v7076 = vsel %vm6999, %v6948, 0
    %v7078 = vsel %vm6999, %v6950, 0
    %v7080 = vsel %vm6999, %v6952, 0
    %v7082 = vsel %vm6999, %v6954, 0
    %v7084 = vsel %vm6999, %v6956, 0
    %v7086 = vsel %vm6999, %v6958, 0
    %v7088 = vsel %vm6999, %v6960, 0
    %v7090 = vsel %vm6999, %v6962, 0
    %v7092 = vsel %vm6999, %v6964, 0
    %v7094 = vsel %vm6999, %v6966, 0
    %v7096 = vsel %vm6999, %v6968, 0
    %v7098 = vsel %vm6999, %v6970, 0
    %v7100 = vsel %vm6999, %v6972, 0
    %v7102 = vsel %vm6999, %v6974, 0
    %v7104 = vsel %vm6999, %v6976, 0
    %v7106 = vsel %vm6999, %v6978, 0
    %v7108 = vsel %vm6999, %v6980, 0
    %v7110 = vsel %vm6999, %v6982, 0
    %v7112 = vsel %vm6999, %v6984, 0
    %v7114 = vsel %vm6999, %v6986, 0
    %v7116 = vsel %vm6999, %v6988, 0
    %v7118 = vsel %vm6999, %v6990, 0
    %v7120 = vsel %vm6999, %v6992, 0
    %v7122 = vsel %vm6999, %v6994, 0
    %v7124 = vsel %vm6999, %v6996, 0
    %v7126 = vsel %vm6999, %v6998, 0
    %7128 = vmatpush.msra.mxu0 0.0
    %7129 = vmatpush.msra.mxu0 0.0
    %7130 = vmatpush.msra.mxu0 0.0
    %7131 = vmatpush.msra.mxu0 0.0
    %7132 = vmatpush.msra.mxu0 0.0
    %7133 = vmatpush.msra.mxu0 0.0
    %7134 = vmatpush.msra.mxu0 0.0
    %7135 = vmatpush.msra.mxu0 0.0
    %7136 = vmatpush.msra.mxu0 0.0
    %7137 = vmatpush.msra.mxu0 0.0
    %7138 = vmatpush.msra.mxu0 0.0
    %7139 = vmatpush.msra.mxu0 0.0
    %7140 = vmatpush.msra.mxu0 0.0
    %7141 = vmatpush.msra.mxu0 0.0
    %7142 = vmatpush.msra.mxu0 %v6804
    %7143 = vmatpush.msra.mxu0 %v6801
    %7144 = vmatmul.f32.gmra.mxu0 %v7000
    %v7145 = vpop.f32.mrf.mxu0
    %v7146 = vadd.f32 0.0, %v7145
    %7147 = vmatmul.f32.gmra.mxu0 %v7002
    %v7148 = vpop.f32.mrf.mxu0
    %v7149 = vadd.f32 0.0, %v7148
    %7150 = vmatmul.f32.gmra.mxu0 %v7004
    %v7151 = vpop.f32.mrf.mxu0
    %v7152 = vadd.f32 0.0, %v7151
    %7153 = vmatmul.f32.gmra.mxu0 %v7006
    %v7154 = vpop.f32.mrf.mxu0
    %v7155 = vadd.f32 0.0, %v7154
    %7156 = vmatmul.f32.gmra.mxu0 %v7008
    %v7157 = vpop.f32.mrf.mxu0
    %v7158 = vadd.f32 0.0, %v7157
    %7159 = vmatmul.f32.gmra.mxu0 %v7010
    %v7160 = vpop.f32.mrf.mxu0
    %v7161 = vadd.f32 0.0, %v7160
    %7162 = vmatmul.f32.gmra.mxu0 %v7012
    %v7163 = vpop.f32.mrf.mxu0
    %v7164 = vadd.f32 0.0, %v7163
    %7165 = vmatmul.f32.gmra.mxu0 %v7014
    %v7166 = vpop.f32.mrf.mxu0
    %v7167 = vadd.f32 0.0, %v7166
    %7168 = vmatmul.f32.gmra.mxu0 %v7016
    %v7169 = vpop.f32.mrf.mxu0
    %v7170 = vadd.f32 0.0, %v7169
    %7171 = vmatmul.f32.gmra.mxu0 %v7018
    %v7172 = vpop.f32.mrf.mxu0
    %v7173 = vadd.f32 0.0, %v7172
    %7174 = vmatmul.f32.gmra.mxu0 %v7020
    %v7175 = vpop.f32.mrf.mxu0
    %v7176 = vadd.f32 0.0, %v7175
    %7177 = vmatmul.f32.gmra.mxu0 %v7022
    %v7178 = vpop.f32.mrf.mxu0
    %v7179 = vadd.f32 0.0, %v7178
    %7180 = vmatmul.f32.gmra.mxu0 %v7024
    %v7181 = vpop.f32.mrf.mxu0
    %v7182 = vadd.f32 0.0, %v7181
    %7183 = vmatmul.f32.gmra.mxu0 %v7026
    %v7184 = vpop.f32.mrf.mxu0
    %v7185 = vadd.f32 0.0, %v7184
    %7186 = vmatmul.f32.gmra.mxu0 %v7028
    %v7187 = vpop.f32.mrf.mxu0
    %v7188 = vadd.f32 0.0, %v7187
    %7189 = vmatmul.f32.gmra.mxu0 %v7030
    %v7190 = vpop.f32.mrf.mxu0
    %v7191 = vadd.f32 0.0, %v7190
    %7192 = vmatmul.f32.gmra.mxu0 %v7032
    %v7193 = vpop.f32.mrf.mxu0
    %v7194 = vadd.f32 0.0, %v7193
    %7195 = vmatmul.f32.gmra.mxu0 %v7034
    %v7196 = vpop.f32.mrf.mxu0
    %v7197 = vadd.f32 0.0, %v7196
    %7198 = vmatmul.f32.gmra.mxu0 %v7036
    %v7199 = vpop.f32.mrf.mxu0
    %v7200 = vadd.f32 0.0, %v7199
    %7201 = vmatmul.f32.gmra.mxu0 %v7038
    %v7202 = vpop.f32.mrf.mxu0
    %v7203 = vadd.f32 0.0, %v7202
    %7204 = vmatmul.f32.gmra.mxu0 %v7040
    %v7205 = vpop.f32.mrf.mxu0
    %v7206 = vadd.f32 0.0, %v7205
    %7207 = vmatmul.f32.gmra.mxu0 %v7042
    %v7208 = vpop.f32.mrf.mxu0
    %v7209 = vadd.f32 0.0, %v7208
    %7210 = vmatmul.f32.gmra.mxu0 %v7044
    %v7211 = vpop.f32.mrf.mxu0
    %v7212 = vadd.f32 0.0, %v7211
    %7213 = vmatmul.f32.gmra.mxu0 %v7046
    %v7214 = vpop.f32.mrf.mxu0
    %v7215 = vadd.f32 0.0, %v7214
    %7216 = vmatmul.f32.gmra.mxu0 %v7048
    %v7217 = vpop.f32.mrf.mxu0
    %v7218 = vadd.f32 0.0, %v7217
    %7219 = vmatmul.f32.gmra.mxu0 %v7050
    %v7220 = vpop.f32.mrf.mxu0
    %v7221 = vadd.f32 0.0, %v7220
    %7222 = vmatmul.f32.gmra.mxu0 %v7052
    %v7223 = vpop.f32.mrf.mxu0
    %v7224 = vadd.f32 0.0, %v7223
    %7225 = vmatmul.f32.gmra.mxu0 %v7054
    %v7226 = vpop.f32.mrf.mxu0
    %v7227 = vadd.f32 0.0, %v7226
    %7228 = vmatmul.f32.gmra.mxu0 %v7056
    %v7229 = vpop.f32.mrf.mxu0
    %v7230 = vadd.f32 0.0, %v7229
    %7231 = vmatmul.f32.gmra.mxu0 %v7058
    %v7232 = vpop.f32.mrf.mxu0
    %v7233 = vadd.f32 0.0, %v7232
    %7234 = vmatmul.f32.gmra.mxu0 %v7060
    %v7235 = vpop.f32.mrf.mxu0
    %v7236 = vadd.f32 0.0, %v7235
    %7237 = vmatmul.f32.gmra.mxu0 %v7062
    %v7238 = vpop.f32.mrf.mxu0
    %v7239 = vadd.f32 0.0, %v7238
    %7240 = vmatmul.f32.gmra.mxu0 %v7064
    %v7241 = vpop.f32.mrf.mxu0
    %v7242 = vadd.f32 0.0, %v7241
    %7243 = vmatmul.f32.gmra.mxu0 %v7066
    %v7244 = vpop.f32.mrf.mxu0
    %v7245 = vadd.f32 0.0, %v7244
    %7246 = vmatmul.f32.gmra.mxu0 %v7068
    %v7247 = vpop.f32.mrf.mxu0
    %v7248 = vadd.f32 0.0, %v7247
    %7249 = vmatmul.f32.gmra.mxu0 %v7070
    %v7250 = vpop.f32.mrf.mxu0
    %v7251 = vadd.f32 0.0, %v7250
    %7252 = vmatmul.f32.gmra.mxu0 %v7072
    %v7253 = vpop.f32.mrf.mxu0
    %v7254 = vadd.f32 0.0, %v7253
    %7255 = vmatmul.f32.gmra.mxu0 %v7074
    %v7256 = vpop.f32.mrf.mxu0
    %v7257 = vadd.f32 0.0, %v7256
    %7258 = vmatmul.f32.gmra.mxu0 %v7076
    %v7259 = vpop.f32.mrf.mxu0
    %v7260 = vadd.f32 0.0, %v7259
    %7261 = vmatmul.f32.gmra.mxu0 %v7078
    %v7262 = vpop.f32.mrf.mxu0
    %v7263 = vadd.f32 0.0, %v7262
    %7264 = vmatmul.f32.gmra.mxu0 %v7080
    %v7265 = vpop.f32.mrf.mxu0
    %v7266 = vadd.f32 0.0, %v7265
    %7267 = vmatmul.f32.gmra.mxu0 %v7082
    %v7268 = vpop.f32.mrf.mxu0
    %v7269 = vadd.f32 0.0, %v7268
    %7270 = vmatmul.f32.gmra.mxu0 %v7084
    %v7271 = vpop.f32.mrf.mxu0
    %v7272 = vadd.f32 0.0, %v7271
    %7273 = vmatmul.f32.gmra.mxu0 %v7086
    %v7274 = vpop.f32.mrf.mxu0
    %v7275 = vadd.f32 0.0, %v7274
    %7276 = vmatmul.f32.gmra.mxu0 %v7088
    %v7277 = vpop.f32.mrf.mxu0
    %v7278 = vadd.f32 0.0, %v7277
    %7279 = vmatmul.f32.gmra.mxu0 %v7090
    %v7280 = vpop.f32.mrf.mxu0
    %v7281 = vadd.f32 0.0, %v7280
    %7282 = vmatmul.f32.gmra.mxu0 %v7092
    %v7283 = vpop.f32.mrf.mxu0
    %v7284 = vadd.f32 0.0, %v7283
    %7285 = vmatmul.f32.gmra.mxu0 %v7094
    %v7286 = vpop.f32.mrf.mxu0
    %v7287 = vadd.f32 0.0, %v7286
    %7288 = vmatmul.f32.gmra.mxu0 %v7096
    %v7289 = vpop.f32.mrf.mxu0
    %v7290 = vadd.f32 0.0, %v7289
    %7291 = vmatmul.f32.gmra.mxu0 %v7098
    %v7292 = vpop.f32.mrf.mxu0
    %v7293 = vadd.f32 0.0, %v7292
    %7294 = vmatmul.f32.gmra.mxu0 %v7100
    %v7295 = vpop.f32.mrf.mxu0
    %v7296 = vadd.f32 0.0, %v7295
    %7297 = vmatmul.f32.gmra.mxu0 %v7102
    %v7298 = vpop.f32.mrf.mxu0
    %v7299 = vadd.f32 0.0, %v7298
    %7300 = vmatmul.f32.gmra.mxu0 %v7104
    %v7301 = vpop.f32.mrf.mxu0
    %v7302 = vadd.f32 0.0, %v7301
    %7303 = vmatmul.f32.gmra.mxu0 %v7106
    %v7304 = vpop.f32.mrf.mxu0
    %v7305 = vadd.f32 0.0, %v7304
    %7306 = vmatmul.f32.gmra.mxu0 %v7108
    %v7307 = vpop.f32.mrf.mxu0
    %v7308 = vadd.f32 0.0, %v7307
    %7309 = vmatmul.f32.gmra.mxu0 %v7110
    %v7310 = vpop.f32.mrf.mxu0
    %v7311 = vadd.f32 0.0, %v7310
    %7312 = vmatmul.f32.gmra.mxu0 %v7112
    %v7313 = vpop.f32.mrf.mxu0
    %v7314 = vadd.f32 0.0, %v7313
    %7315 = vmatmul.f32.gmra.mxu0 %v7114
    %v7316 = vpop.f32.mrf.mxu0
    %v7317 = vadd.f32 0.0, %v7316
    %7318 = vmatmul.f32.gmra.mxu0 %v7116
    %v7319 = vpop.f32.mrf.mxu0
    %v7320 = vadd.f32 0.0, %v7319
    %7321 = vmatmul.f32.gmra.mxu0 %v7118
    %v7322 = vpop.f32.mrf.mxu0
    %v7323 = vadd.f32 0.0, %v7322
    %7324 = vmatmul.f32.gmra.mxu0 %v7120
    %v7325 = vpop.f32.mrf.mxu0
    %v7326 = vadd.f32 0.0, %v7325
    %7327 = vmatmul.f32.gmra.mxu0 %v7122
    %v7328 = vpop.f32.mrf.mxu0
    %v7329 = vadd.f32 0.0, %v7328
    %7330 = vmatmul.f32.gmra.mxu0 %v7124
    %v7331 = vpop.f32.mrf.mxu0
    %v7332 = vadd.f32 0.0, %v7331
    %7333 = vmatmul.f32.gmra.mxu0 %v7126
    %v7334 = vpop.f32.mrf.mxu0
    %v7335 = vadd.f32 0.0, %v7334
    %7336 = vdwg.mxu0
    %7337 = vmatpush.msra.mxu0 0.0
    %7338 = vmatpush.msra.mxu0 0.0
    %7339 = vmatpush.msra.mxu0 0.0
    %7340 = vmatpush.msra.mxu0 0.0
    %7341 = vmatpush.msra.mxu0 0.0
    %7342 = vmatpush.msra.mxu0 0.0
    %7343 = vmatpush.msra.mxu0 0.0
    %7344 = vmatpush.msra.mxu0 0.0
    %7345 = vmatpush.msra.mxu0 0.0
    %7346 = vmatpush.msra.mxu0 0.0
    %7347 = vmatpush.msra.mxu0 0.0
    %7348 = vmatpush.msra.mxu0 0.0
    %7349 = vmatpush.msra.mxu0 0.0
    %7350 = vmatpush.msra.mxu0 0.0
    %7351 = vmatpush.msra.mxu0 %v6805
    %7352 = vmatpush.msra.mxu0 %v6802
    %7353 = vmatmul.f32.gmra.mxu0 %v7000
    %v7354 = vpop.f32.mrf.mxu0
    %v7355 = vadd.f32 0.0, %v7354
    %7356 = vmatmul.f32.gmra.mxu0 %v7002
    %v7357 = vpop.f32.mrf.mxu0
    %v7358 = vadd.f32 0.0, %v7357
    %7359 = vmatmul.f32.gmra.mxu0 %v7004
    %v7360 = vpop.f32.mrf.mxu0
    %v7361 = vadd.f32 0.0, %v7360
    %7362 = vmatmul.f32.gmra.mxu0 %v7006
    %v7363 = vpop.f32.mrf.mxu0
    %v7364 = vadd.f32 0.0, %v7363
    %7365 = vmatmul.f32.gmra.mxu0 %v7008
    %v7366 = vpop.f32.mrf.mxu0
    %v7367 = vadd.f32 0.0, %v7366
    %7368 = vmatmul.f32.gmra.mxu0 %v7010
    %v7369 = vpop.f32.mrf.mxu0
    %v7370 = vadd.f32 0.0, %v7369
    %7371 = vmatmul.f32.gmra.mxu0 %v7012
    %v7372 = vpop.f32.mrf.mxu0
    %v7373 = vadd.f32 0.0, %v7372
    %7374 = vmatmul.f32.gmra.mxu0 %v7014
    %v7375 = vpop.f32.mrf.mxu0
    %v7376 = vadd.f32 0.0, %v7375
    %7377 = vmatmul.f32.gmra.mxu0 %v7016
    %v7378 = vpop.f32.mrf.mxu0
    %v7379 = vadd.f32 0.0, %v7378
    %7380 = vmatmul.f32.gmra.mxu0 %v7018
    %v7381 = vpop.f32.mrf.mxu0
    %v7382 = vadd.f32 0.0, %v7381
    %7383 = vmatmul.f32.gmra.mxu0 %v7020
    %v7384 = vpop.f32.mrf.mxu0
    %v7385 = vadd.f32 0.0, %v7384
    %7386 = vmatmul.f32.gmra.mxu0 %v7022
    %v7387 = vpop.f32.mrf.mxu0
    %v7388 = vadd.f32 0.0, %v7387
    %7389 = vmatmul.f32.gmra.mxu0 %v7024
    %v7390 = vpop.f32.mrf.mxu0
    %v7391 = vadd.f32 0.0, %v7390
    %7392 = vmatmul.f32.gmra.mxu0 %v7026
    %v7393 = vpop.f32.mrf.mxu0
    %v7394 = vadd.f32 0.0, %v7393
    %7395 = vmatmul.f32.gmra.mxu0 %v7028
    %v7396 = vpop.f32.mrf.mxu0
    %v7397 = vadd.f32 0.0, %v7396
    %7398 = vmatmul.f32.gmra.mxu0 %v7030
    %v7399 = vpop.f32.mrf.mxu0
    %v7400 = vadd.f32 0.0, %v7399
    %7401 = vmatmul.f32.gmra.mxu0 %v7032
    %v7402 = vpop.f32.mrf.mxu0
    %v7403 = vadd.f32 0.0, %v7402
    %7404 = vmatmul.f32.gmra.mxu0 %v7034
    %v7405 = vpop.f32.mrf.mxu0
    %v7406 = vadd.f32 0.0, %v7405
    %7407 = vmatmul.f32.gmra.mxu0 %v7036
    %v7408 = vpop.f32.mrf.mxu0
    %v7409 = vadd.f32 0.0, %v7408
    %7410 = vmatmul.f32.gmra.mxu0 %v7038
    %v7411 = vpop.f32.mrf.mxu0
    %v7412 = vadd.f32 0.0, %v7411
    %7413 = vmatmul.f32.gmra.mxu0 %v7040
    %v7414 = vpop.f32.mrf.mxu0
    %v7415 = vadd.f32 0.0, %v7414
    %7416 = vmatmul.f32.gmra.mxu0 %v7042
    %v7417 = vpop.f32.mrf.mxu0
    %v7418 = vadd.f32 0.0, %v7417
    %7419 = vmatmul.f32.gmra.mxu0 %v7044
    %v7420 = vpop.f32.mrf.mxu0
    %v7421 = vadd.f32 0.0, %v7420
    %7422 = vmatmul.f32.gmra.mxu0 %v7046
    %v7423 = vpop.f32.mrf.mxu0
    %v7424 = vadd.f32 0.0, %v7423
    %7425 = vmatmul.f32.gmra.mxu0 %v7048
    %v7426 = vpop.f32.mrf.mxu0
    %v7427 = vadd.f32 0.0, %v7426
    %7428 = vmatmul.f32.gmra.mxu0 %v7050
    %v7429 = vpop.f32.mrf.mxu0
    %v7430 = vadd.f32 0.0, %v7429
    %7431 = vmatmul.f32.gmra.mxu0 %v7052
    %v7432 = vpop.f32.mrf.mxu0
    %v7433 = vadd.f32 0.0, %v7432
    %7434 = vmatmul.f32.gmra.mxu0 %v7054
    %v7435 = vpop.f32.mrf.mxu0
    %v7436 = vadd.f32 0.0, %v7435
    %7437 = vmatmul.f32.gmra.mxu0 %v7056
    %v7438 = vpop.f32.mrf.mxu0
    %v7439 = vadd.f32 0.0, %v7438
    %7440 = vmatmul.f32.gmra.mxu0 %v7058
    %v7441 = vpop.f32.mrf.mxu0
    %v7442 = vadd.f32 0.0, %v7441
    %7443 = vmatmul.f32.gmra.mxu0 %v7060
    %v7444 = vpop.f32.mrf.mxu0
    %v7445 = vadd.f32 0.0, %v7444
    %7446 = vmatmul.f32.gmra.mxu0 %v7062
    %v7447 = vpop.f32.mrf.mxu0
    %v7448 = vadd.f32 0.0, %v7447
    %7449 = vmatmul.f32.gmra.mxu0 %v7064
    %v7450 = vpop.f32.mrf.mxu0
    %v7451 = vadd.f32 0.0, %v7450
    %7452 = vmatmul.f32.gmra.mxu0 %v7066
    %v7453 = vpop.f32.mrf.mxu0
    %v7454 = vadd.f32 0.0, %v7453
    %7455 = vmatmul.f32.gmra.mxu0 %v7068
    %v7456 = vpop.f32.mrf.mxu0
    %v7457 = vadd.f32 0.0, %v7456
    %7458 = vmatmul.f32.gmra.mxu0 %v7070
    %v7459 = vpop.f32.mrf.mxu0
    %v7460 = vadd.f32 0.0, %v7459
    %7461 = vmatmul.f32.gmra.mxu0 %v7072
    %v7462 = vpop.f32.mrf.mxu0
    %v7463 = vadd.f32 0.0, %v7462
    %7464 = vmatmul.f32.gmra.mxu0 %v7074
    %v7465 = vpop.f32.mrf.mxu0
    %v7466 = vadd.f32 0.0, %v7465
    %7467 = vmatmul.f32.gmra.mxu0 %v7076
    %v7468 = vpop.f32.mrf.mxu0
    %v7469 = vadd.f32 0.0, %v7468
    %7470 = vmatmul.f32.gmra.mxu0 %v7078
    %v7471 = vpop.f32.mrf.mxu0
    %v7472 = vadd.f32 0.0, %v7471
    %7473 = vmatmul.f32.gmra.mxu0 %v7080
    %v7474 = vpop.f32.mrf.mxu0
    %v7475 = vadd.f32 0.0, %v7474
    %7476 = vmatmul.f32.gmra.mxu0 %v7082
    %v7477 = vpop.f32.mrf.mxu0
    %v7478 = vadd.f32 0.0, %v7477
    %7479 = vmatmul.f32.gmra.mxu0 %v7084
    %v7480 = vpop.f32.mrf.mxu0
    %v7481 = vadd.f32 0.0, %v7480
    %7482 = vmatmul.f32.gmra.mxu0 %v7086
    %v7483 = vpop.f32.mrf.mxu0
    %v7484 = vadd.f32 0.0, %v7483
    %7485 = vmatmul.f32.gmra.mxu0 %v7088
    %v7486 = vpop.f32.mrf.mxu0
    %v7487 = vadd.f32 0.0, %v7486
    %7488 = vmatmul.f32.gmra.mxu0 %v7090
    %v7489 = vpop.f32.mrf.mxu0
    %v7490 = vadd.f32 0.0, %v7489
    %7491 = vmatmul.f32.gmra.mxu0 %v7092
    %v7492 = vpop.f32.mrf.mxu0
    %v7493 = vadd.f32 0.0, %v7492
    %7494 = vmatmul.f32.gmra.mxu0 %v7094
    %v7495 = vpop.f32.mrf.mxu0
    %v7496 = vadd.f32 0.0, %v7495
    %7497 = vmatmul.f32.gmra.mxu0 %v7096
    %v7498 = vpop.f32.mrf.mxu0
    %v7499 = vadd.f32 0.0, %v7498
    %7500 = vmatmul.f32.gmra.mxu0 %v7098
    %v7501 = vpop.f32.mrf.mxu0
    %v7502 = vadd.f32 0.0, %v7501
    %7503 = vmatmul.f32.gmra.mxu0 %v7100
    %v7504 = vpop.f32.mrf.mxu0
    %v7505 = vadd.f32 0.0, %v7504
    %7506 = vmatmul.f32.gmra.mxu0 %v7102
    %v7507 = vpop.f32.mrf.mxu0
    %v7508 = vadd.f32 0.0, %v7507
    %7509 = vmatmul.f32.gmra.mxu0 %v7104
    %v7510 = vpop.f32.mrf.mxu0
    %v7511 = vadd.f32 0.0, %v7510
    %7512 = vmatmul.f32.gmra.mxu0 %v7106
    %v7513 = vpop.f32.mrf.mxu0
    %v7514 = vadd.f32 0.0, %v7513
    %7515 = vmatmul.f32.gmra.mxu0 %v7108
    %v7516 = vpop.f32.mrf.mxu0
    %v7517 = vadd.f32 0.0, %v7516
    %7518 = vmatmul.f32.gmra.mxu0 %v7110
    %v7519 = vpop.f32.mrf.mxu0
    %v7520 = vadd.f32 0.0, %v7519
    %7521 = vmatmul.f32.gmra.mxu0 %v7112
    %v7522 = vpop.f32.mrf.mxu0
    %v7523 = vadd.f32 0.0, %v7522
    %7524 = vmatmul.f32.gmra.mxu0 %v7114
    %v7525 = vpop.f32.mrf.mxu0
    %v7526 = vadd.f32 0.0, %v7525
    %7527 = vmatmul.f32.gmra.mxu0 %v7116
    %v7528 = vpop.f32.mrf.mxu0
    %v7529 = vadd.f32 0.0, %v7528
    %7530 = vmatmul.f32.gmra.mxu0 %v7118
    %v7531 = vpop.f32.mrf.mxu0
    %v7532 = vadd.f32 0.0, %v7531
    %7533 = vmatmul.f32.gmra.mxu0 %v7120
    %v7534 = vpop.f32.mrf.mxu0
    %v7535 = vadd.f32 0.0, %v7534
    %7536 = vmatmul.f32.gmra.mxu0 %v7122
    %v7537 = vpop.f32.mrf.mxu0
    %v7538 = vadd.f32 0.0, %v7537
    %7539 = vmatmul.f32.gmra.mxu0 %v7124
    %v7540 = vpop.f32.mrf.mxu0
    %v7541 = vadd.f32 0.0, %v7540
    %7542 = vmatmul.f32.gmra.mxu0 %v7126
    %v7543 = vpop.f32.mrf.mxu0
    %v7544 = vadd.f32 0.0, %v7543
    %7545 = vdwg.mxu0
    %7546 = vmatpush.msra.mxu0 0.0
    %7547 = vmatpush.msra.mxu0 0.0
    %7548 = vmatpush.msra.mxu0 0.0
    %7549 = vmatpush.msra.mxu0 0.0
    %7550 = vmatpush.msra.mxu0 0.0
    %7551 = vmatpush.msra.mxu0 0.0
    %7552 = vmatpush.msra.mxu0 0.0
    %7553 = vmatpush.msra.mxu0 0.0
    %7554 = vmatpush.msra.mxu0 0.0
    %7555 = vmatpush.msra.mxu0 0.0
    %7556 = vmatpush.msra.mxu0 0.0
    %7557 = vmatpush.msra.mxu0 0.0
    %7558 = vmatpush.msra.mxu0 0.0
    %7559 = vmatpush.msra.mxu0 0.0
    %7560 = vmatpush.msra.mxu0 %v6806
    %7561 = vmatpush.msra.mxu0 %v6803
    %7562 = vmatmul.f32.gmra.mxu0 %v7000
    %v7563 = vpop.f32.mrf.mxu0
    %v7564 = vadd.f32 0.0, %v7563
    %7565 = vmatmul.f32.gmra.mxu0 %v7002
    %v7566 = vpop.f32.mrf.mxu0
    %v7567 = vadd.f32 0.0, %v7566
    %7568 = vmatmul.f32.gmra.mxu0 %v7004
    %v7569 = vpop.f32.mrf.mxu0
    %v7570 = vadd.f32 0.0, %v7569
    %7571 = vmatmul.f32.gmra.mxu0 %v7006
    %v7572 = vpop.f32.mrf.mxu0
    %v7573 = vadd.f32 0.0, %v7572
    %7574 = vmatmul.f32.gmra.mxu0 %v7008
    %v7575 = vpop.f32.mrf.mxu0
    %v7576 = vadd.f32 0.0, %v7575
    %7577 = vmatmul.f32.gmra.mxu0 %v7010
    %v7578 = vpop.f32.mrf.mxu0
    %v7579 = vadd.f32 0.0, %v7578
    %7580 = vmatmul.f32.gmra.mxu0 %v7012
    %v7581 = vpop.f32.mrf.mxu0
    %v7582 = vadd.f32 0.0, %v7581
    %7583 = vmatmul.f32.gmra.mxu0 %v7014
    %v7584 = vpop.f32.mrf.mxu0
    %v7585 = vadd.f32 0.0, %v7584
    %7586 = vmatmul.f32.gmra.mxu0 %v7016
    %v7587 = vpop.f32.mrf.mxu0
    %v7588 = vadd.f32 0.0, %v7587
    %7589 = vmatmul.f32.gmra.mxu0 %v7018
    %v7590 = vpop.f32.mrf.mxu0
    %v7591 = vadd.f32 0.0, %v7590
    %7592 = vmatmul.f32.gmra.mxu0 %v7020
    %v7593 = vpop.f32.mrf.mxu0
    %v7594 = vadd.f32 0.0, %v7593
    %7595 = vmatmul.f32.gmra.mxu0 %v7022
    %v7596 = vpop.f32.mrf.mxu0
    %v7597 = vadd.f32 0.0, %v7596
    %7598 = vmatmul.f32.gmra.mxu0 %v7024
    %v7599 = vpop.f32.mrf.mxu0
    %v7600 = vadd.f32 0.0, %v7599
    %7601 = vmatmul.f32.gmra.mxu0 %v7026
    %v7602 = vpop.f32.mrf.mxu0
    %v7603 = vadd.f32 0.0, %v7602
    %7604 = vmatmul.f32.gmra.mxu0 %v7028
    %v7605 = vpop.f32.mrf.mxu0
    %v7606 = vadd.f32 0.0, %v7605
    %7607 = vmatmul.f32.gmra.mxu0 %v7030
    %v7608 = vpop.f32.mrf.mxu0
    %v7609 = vadd.f32 0.0, %v7608
    %7610 = vmatmul.f32.gmra.mxu0 %v7032
    %v7611 = vpop.f32.mrf.mxu0
    %v7612 = vadd.f32 0.0, %v7611
    %7613 = vmatmul.f32.gmra.mxu0 %v7034
    %v7614 = vpop.f32.mrf.mxu0
    %v7615 = vadd.f32 0.0, %v7614
    %7616 = vmatmul.f32.gmra.mxu0 %v7036
    %v7617 = vpop.f32.mrf.mxu0
    %v7618 = vadd.f32 0.0, %v7617
    %7619 = vmatmul.f32.gmra.mxu0 %v7038
    %v7620 = vpop.f32.mrf.mxu0
    %v7621 = vadd.f32 0.0, %v7620
    %7622 = vmatmul.f32.gmra.mxu0 %v7040
    %v7623 = vpop.f32.mrf.mxu0
    %v7624 = vadd.f32 0.0, %v7623
    %7625 = vmatmul.f32.gmra.mxu0 %v7042
    %v7626 = vpop.f32.mrf.mxu0
    %v7627 = vadd.f32 0.0, %v7626
    %7628 = vmatmul.f32.gmra.mxu0 %v7044
    %v7629 = vpop.f32.mrf.mxu0
    %v7630 = vadd.f32 0.0, %v7629
    %7631 = vmatmul.f32.gmra.mxu0 %v7046
    %v7632 = vpop.f32.mrf.mxu0
    %v7633 = vadd.f32 0.0, %v7632
    %7634 = vmatmul.f32.gmra.mxu0 %v7048
    %v7635 = vpop.f32.mrf.mxu0
    %v7636 = vadd.f32 0.0, %v7635
    %7637 = vmatmul.f32.gmra.mxu0 %v7050
    %v7638 = vpop.f32.mrf.mxu0
    %v7639 = vadd.f32 0.0, %v7638
    %7640 = vmatmul.f32.gmra.mxu0 %v7052
    %v7641 = vpop.f32.mrf.mxu0
    %v7642 = vadd.f32 0.0, %v7641
    %7643 = vmatmul.f32.gmra.mxu0 %v7054
    %v7644 = vpop.f32.mrf.mxu0
    %v7645 = vadd.f32 0.0, %v7644
    %7646 = vmatmul.f32.gmra.mxu0 %v7056
    %v7647 = vpop.f32.mrf.mxu0
    %v7648 = vadd.f32 0.0, %v7647
    %7649 = vmatmul.f32.gmra.mxu0 %v7058
    %v7650 = vpop.f32.mrf.mxu0
    %v7651 = vadd.f32 0.0, %v7650
    %7652 = vmatmul.f32.gmra.mxu0 %v7060
    %v7653 = vpop.f32.mrf.mxu0
    %v7654 = vadd.f32 0.0, %v7653
    %7655 = vmatmul.f32.gmra.mxu0 %v7062
    %v7656 = vpop.f32.mrf.mxu0
    %v7657 = vadd.f32 0.0, %v7656
    %7658 = vmatmul.f32.gmra.mxu0 %v7064
    %v7659 = vpop.f32.mrf.mxu0
    %v7660 = vadd.f32 0.0, %v7659
    %7661 = vmatmul.f32.gmra.mxu0 %v7066
    %v7662 = vpop.f32.mrf.mxu0
    %v7663 = vadd.f32 0.0, %v7662
    %7664 = vmatmul.f32.gmra.mxu0 %v7068
    %v7665 = vpop.f32.mrf.mxu0
    %v7666 = vadd.f32 0.0, %v7665
    %7667 = vmatmul.f32.gmra.mxu0 %v7070
    %v7668 = vpop.f32.mrf.mxu0
    %v7669 = vadd.f32 0.0, %v7668
    %7670 = vmatmul.f32.gmra.mxu0 %v7072
    %v7671 = vpop.f32.mrf.mxu0
    %v7672 = vadd.f32 0.0, %v7671
    %7673 = vmatmul.f32.gmra.mxu0 %v7074
    %v7674 = vpop.f32.mrf.mxu0
    %v7675 = vadd.f32 0.0, %v7674
    %7676 = vmatmul.f32.gmra.mxu0 %v7076
    %v7677 = vpop.f32.mrf.mxu0
    %v7678 = vadd.f32 0.0, %v7677
    %7679 = vmatmul.f32.gmra.mxu0 %v7078
    %v7680 = vpop.f32.mrf.mxu0
    %v7681 = vadd.f32 0.0, %v7680
    %7682 = vmatmul.f32.gmra.mxu0 %v7080
    %v7683 = vpop.f32.mrf.mxu0
    %v7684 = vadd.f32 0.0, %v7683
    %7685 = vmatmul.f32.gmra.mxu0 %v7082
    %v7686 = vpop.f32.mrf.mxu0
    %v7687 = vadd.f32 0.0, %v7686
    %7688 = vmatmul.f32.gmra.mxu0 %v7084
    %v7689 = vpop.f32.mrf.mxu0
    %v7690 = vadd.f32 0.0, %v7689
    %7691 = vmatmul.f32.gmra.mxu0 %v7086
    %v7692 = vpop.f32.mrf.mxu0
    %v7693 = vadd.f32 0.0, %v7692
    %7694 = vmatmul.f32.gmra.mxu0 %v7088
    %v7695 = vpop.f32.mrf.mxu0
    %v7696 = vadd.f32 0.0, %v7695
    %7697 = vmatmul.f32.gmra.mxu0 %v7090
    %v7698 = vpop.f32.mrf.mxu0
    %v7699 = vadd.f32 0.0, %v7698
    %7700 = vmatmul.f32.gmra.mxu0 %v7092
    %v7701 = vpop.f32.mrf.mxu0
    %v7702 = vadd.f32 0.0, %v7701
    %7703 = vmatmul.f32.gmra.mxu0 %v7094
    %v7704 = vpop.f32.mrf.mxu0
    %v7705 = vadd.f32 0.0, %v7704
    %7706 = vmatmul.f32.gmra.mxu0 %v7096
    %v7707 = vpop.f32.mrf.mxu0
    %v7708 = vadd.f32 0.0, %v7707
    %7709 = vmatmul.f32.gmra.mxu0 %v7098
    %v7710 = vpop.f32.mrf.mxu0
    %v7711 = vadd.f32 0.0, %v7710
    %7712 = vmatmul.f32.gmra.mxu0 %v7100
    %v7713 = vpop.f32.mrf.mxu0
    %v7714 = vadd.f32 0.0, %v7713
    %7715 = vmatmul.f32.gmra.mxu0 %v7102
    %v7716 = vpop.f32.mrf.mxu0
    %v7717 = vadd.f32 0.0, %v7716
    %7718 = vmatmul.f32.gmra.mxu0 %v7104
    %v7719 = vpop.f32.mrf.mxu0
    %v7720 = vadd.f32 0.0, %v7719
    %7721 = vmatmul.f32.gmra.mxu0 %v7106
    %v7722 = vpop.f32.mrf.mxu0
    %v7723 = vadd.f32 0.0, %v7722
    %7724 = vmatmul.f32.gmra.mxu0 %v7108
    %v7725 = vpop.f32.mrf.mxu0
    %v7726 = vadd.f32 0.0, %v7725
    %7727 = vmatmul.f32.gmra.mxu0 %v7110
    %v7728 = vpop.f32.mrf.mxu0
    %v7729 = vadd.f32 0.0, %v7728
    %7730 = vmatmul.f32.gmra.mxu0 %v7112
    %v7731 = vpop.f32.mrf.mxu0
    %v7732 = vadd.f32 0.0, %v7731
    %7733 = vmatmul.f32.gmra.mxu0 %v7114
    %v7734 = vpop.f32.mrf.mxu0
    %v7735 = vadd.f32 0.0, %v7734
    %7736 = vmatmul.f32.gmra.mxu0 %v7116
    %v7737 = vpop.f32.mrf.mxu0
    %v7738 = vadd.f32 0.0, %v7737
    %7739 = vmatmul.f32.gmra.mxu0 %v7118
    %v7740 = vpop.f32.mrf.mxu0
    %v7741 = vadd.f32 0.0, %v7740
    %7742 = vmatmul.f32.gmra.mxu0 %v7120
    %v7743 = vpop.f32.mrf.mxu0
    %v7744 = vadd.f32 0.0, %v7743
    %7745 = vmatmul.f32.gmra.mxu0 %v7122
    %v7746 = vpop.f32.mrf.mxu0
    %v7747 = vadd.f32 0.0, %v7746
    %7748 = vmatmul.f32.gmra.mxu0 %v7124
    %v7749 = vpop.f32.mrf.mxu0
    %v7750 = vadd.f32 0.0, %v7749
    %7751 = vmatmul.f32.gmra.mxu0 %v7126
    %v7752 = vpop.f32.mrf.mxu0
    %v7753 = vadd.f32 0.0, %v7752
    %7754 = vdwg.mxu0
    %v7758 = vrot.slane %v7329, 7
    %v7759 = vrot.slane %v7332, 7
    %v7760 = vsel %vm1610, %v7758, %v7759
    %v7761 = vrot.slane %v7335, 7
    %v7762 = vsel %vm1610, %v7759, %v7761
    %v7827 = vrot.slane %v7146, 7
    %v7828 = vrot.slane %v7149, 7
    %v7829 = vsel %vm1610, %v7827, %v7828
    %v7830 = vrot.slane %v7152, 7
    %v7831 = vsel %vm1610, %v7828, %v7830
    %v7832 = vrot.slane %v7155, 7
    %v7833 = vsel %vm1610, %v7830, %v7832
    %v7834 = vrot.slane %v7158, 7
    %v7835 = vsel %vm1610, %v7832, %v7834
    %v7836 = vrot.slane %v7161, 7
    %v7837 = vsel %vm1610, %v7834, %v7836
    %v7838 = vrot.slane %v7164, 7
    %v7839 = vsel %vm1610, %v7836, %v7838
    %v7840 = vrot.slane %v7167, 7
    %v7841 = vsel %vm1610, %v7838, %v7840
    %v7842 = vrot.slane %v7170, 7
    %v7843 = vsel %vm1610, %v7840, %v7842
    %v7844 = vrot.slane %v7173, 7
    %v7845 = vsel %vm1610, %v7842, %v7844
    %v7846 = vrot.slane %v7176, 7
    %v7847 = vsel %vm1610, %v7844, %v7846
    %v7848 = vrot.slane %v7179, 7
    %v7849 = vsel %vm1610, %v7846, %v7848
    %v7850 = vrot.slane %v7182, 7
    %v7851 = vsel %vm1610, %v7848, %v7850
    %v7852 = vrot.slane %v7185, 7
    %v7853 = vsel %vm1610, %v7850, %v7852
    %v7854 = vrot.slane %v7188, 7
    %v7855 = vsel %vm1610, %v7852, %v7854
    %v7856 = vrot.slane %v7191, 7
    %v7857 = vsel %vm1610, %v7854, %v7856
    %v7858 = vrot.slane %v7194, 7
    %v7859 = vsel %vm1610, %v7856, %v7858
    %v7860 = vrot.slane %v7197, 7
    %v7861 = vsel %vm1610, %v7858, %v7860
    %v7862 = vrot.slane %v7200, 7
    %v7863 = vsel %vm1610, %v7860, %v7862
    %v7864 = vrot.slane %v7203, 7
    %v7865 = vsel %vm1610, %v7862, %v7864
    %v7866 = vrot.slane %v7206, 7
    %v7867 = vsel %vm1610, %v7864, %v7866
    %v7868 = vrot.slane %v7209, 7
    %v7869 = vsel %vm1610, %v7866, %v7868
    %v7870 = vrot.slane %v7212, 7
    %v7871 = vsel %vm1610, %v7868, %v7870
    %v7872 = vrot.slane %v7215, 7
    %v7873 = vsel %vm1610, %v7870, %v7872
    %v7874 = vrot.slane %v7218, 7
    %v7875 = vsel %vm1610, %v7872, %v7874
    %v7876 = vrot.slane %v7221, 7
    %v7877 = vsel %vm1610, %v7874, %v7876
    %v7878 = vrot.slane %v7224, 7
    %v7879 = vsel %vm1610, %v7876, %v7878
    %v7880 = vrot.slane %v7227, 7
    %v7881 = vsel %vm1610, %v7878, %v7880
    %v7882 = vrot.slane %v7230, 7
    %v7883 = vsel %vm1610, %v7880, %v7882
    %v7884 = vrot.slane %v7233, 7
    %v7885 = vsel %vm1610, %v7882, %v7884
    %v7886 = vrot.slane %v7236, 7
    %v7887 = vsel %vm1610, %v7884, %v7886
    %v7888 = vrot.slane %v7239, 7
    %v7889 = vsel %vm1610, %v7886, %v7888
    %v7890 = vrot.slane %v7242, 7
    %v7891 = vsel %vm1610, %v7888, %v7890
    %v7892 = vrot.slane %v7245, 7
    %v7893 = vsel %vm1610, %v7890, %v7892
    %v7894 = vrot.slane %v7248, 7
    %v7895 = vsel %vm1610, %v7892, %v7894
    %v7896 = vrot.slane %v7251, 7
    %v7897 = vsel %vm1610, %v7894, %v7896
    %v7898 = vrot.slane %v7254, 7
    %v7899 = vsel %vm1610, %v7896, %v7898
    %v7900 = vrot.slane %v7257, 7
    %v7901 = vsel %vm1610, %v7898, %v7900
    %v7902 = vrot.slane %v7260, 7
    %v7903 = vsel %vm1610, %v7900, %v7902
    %v7904 = vrot.slane %v7263, 7
    %v7905 = vsel %vm1610, %v7902, %v7904
    %v7906 = vrot.slane %v7266, 7
    %v7907 = vsel %vm1610, %v7904, %v7906
    %v7908 = vrot.slane %v7269, 7
    %v7909 = vsel %vm1610, %v7906, %v7908
    %v7910 = vrot.slane %v7272, 7
    %v7911 = vsel %vm1610, %v7908, %v7910
    %v7912 = vrot.slane %v7275, 7
    %v7913 = vsel %vm1610, %v7910, %v7912
    %v7914 = vrot.slane %v7278, 7
    %v7915 = vsel %vm1610, %v7912, %v7914
    %v7916 = vrot.slane %v7281, 7
    %v7917 = vsel %vm1610, %v7914, %v7916
    %v7918 = vrot.slane %v7284, 7
    %v7919 = vsel %vm1610, %v7916, %v7918
    %v7920 = vrot.slane %v7287, 7
    %v7921 = vsel %vm1610, %v7918, %v7920
    %v7922 = vrot.slane %v7290, 7
    %v7923 = vsel %vm1610, %v7920, %v7922
    %v7924 = vrot.slane %v7293, 7
    %v7925 = vsel %vm1610, %v7922, %v7924
    %v7926 = vrot.slane %v7296, 7
    %v7927 = vsel %vm1610, %v7924, %v7926
    %v7928 = vrot.slane %v7299, 7
    %v7929 = vsel %vm1610, %v7926, %v7928
    %v7930 = vrot.slane %v7302, 7
    %v7931 = vsel %vm1610, %v7928, %v7930
    %v7932 = vrot.slane %v7305, 7
    %v7933 = vsel %vm1610, %v7930, %v7932
    %v7934 = vrot.slane %v7308, 7
    %v7935 = vsel %vm1610, %v7932, %v7934
    %v7936 = vrot.slane %v7311, 7
    %v7937 = vsel %vm1610, %v7934, %v7936
    %v7938 = vrot.slane %v7314, 7
    %v7939 = vsel %vm1610, %v7936, %v7938
    %v7940 = vrot.slane %v7317, 7
    %v7941 = vsel %vm1610, %v7938, %v7940
    %v7942 = vrot.slane %v7320, 7
    %v7943 = vsel %vm1610, %v7940, %v7942
    %v7944 = vrot.slane %v7323, 7
    %v7945 = vsel %vm1610, %v7942, %v7944
    %v7946 = vrot.slane %v7326, 7
    %v7947 = vsel %vm1610, %v7944, %v7946
    %v7948 = vsel %vm1610, %v7946, %v7758
    %v8011 = vsel %vm1610, %v7761, %v7827
    %v8012 = vsel %vm1993, %v7760, 0.0
    %v8013 = vsel %vm1994, %v7762, 0.0
    %v8014 = vsel %vm1995, %v8011, 0.0
    %v8015 = vsel %vm1996, %v7829, 0.0
    %v8016 = vsel %vm1997, %v7831, 0.0
    %v8017 = vsel %vm1998, %v7833, 0.0
    %v8018 = vsel %vm1999, %v7835, 0.0
    %v8019 = vsel %vm2000, %v7837, 0.0
    %v8020 = vsel %vm2001, %v7839, 0.0
    %v8021 = vsel %vm2002, %v7841, 0.0
    %v8022 = vsel %vm2003, %v7843, 0.0
    %v8023 = vsel %vm2004, %v7845, 0.0
    %v8024 = vsel %vm2005, %v7847, 0.0
    %v8025 = vsel %vm2006, %v7849, 0.0
    %v8026 = vsel %vm2007, %v7851, 0.0
    %v8027 = vsel %vm2008, %v7853, 0.0
    %v8028 = vsel %vm2009, %v7855, 0.0
    %v8029 = vsel %vm2010, %v7857, 0.0
    %v8030 = vsel %vm2011, %v7859, 0.0
    %v8031 = vsel %vm2012, %v7861, 0.0
    %v8032 = vsel %vm2013, %v7863, 0.0
    %v8033 = vsel %vm2014, %v7865, 0.0
    %v8034 = vsel %vm2015, %v7867, 0.0
    %v8035 = vsel %vm2016, %v7869, 0.0
    %v8036 = vsel %vm2017, %v7871, 0.0
    %v8037 = vsel %vm2018, %v7873, 0.0
    %v8038 = vsel %vm2019, %v7875, 0.0
    %v8039 = vsel %vm2020, %v7877, 0.0
    %v8040 = vsel %vm2021, %v7879, 0.0
    %v8041 = vsel %vm2022, %v7881, 0.0
    %v8042 = vsel %vm2023, %v7883, 0.0
    %v8043 = vsel %vm2024, %v7885, 0.0
    %v8044 = vsel %vm2025, %v7887, 0.0
    %v8045 = vsel %vm2026, %v7889, 0.0
    %v8046 = vsel %vm2027, %v7891, 0.0
    %v8047 = vsel %vm2028, %v7893, 0.0
    %v8048 = vsel %vm2029, %v7895, 0.0
    %v8049 = vsel %vm2030, %v7897, 0.0
    %v8050 = vsel %vm2031, %v7899, 0.0
    %v8051 = vsel %vm2032, %v7901, 0.0
    %v8052 = vsel %vm2033, %v7903, 0.0
    %v8053 = vsel %vm2034, %v7905, 0.0
    %v8054 = vsel %vm2035, %v7907, 0.0
    %v8055 = vsel %vm2036, %v7909, 0.0
    %v8056 = vsel %vm2037, %v7911, 0.0
    %v8057 = vsel %vm2038, %v7913, 0.0
    %v8058 = vsel %vm2039, %v7915, 0.0
    %v8059 = vsel %vm2040, %v7917, 0.0
    %v8060 = vsel %vm2041, %v7919, 0.0
    %v8061 = vsel %vm2042, %v7921, 0.0
    %v8062 = vsel %vm2043, %v7923, 0.0
    %v8063 = vsel %vm2044, %v7925, 0.0
    %v8064 = vsel %vm2045, %v7927, 0.0
    %v8065 = vsel %vm2046, %v7929, 0.0
    %v8066 = vsel %vm2047, %v7931, 0.0
    %v8067 = vsel %vm2048, %v7933, 0.0
    %v8068 = vsel %vm2049, %v7935, 0.0
    %v8069 = vsel %vm2050, %v7937, 0.0
    %v8070 = vsel %vm2051, %v7939, 0.0
    %v8071 = vsel %vm2052, %v7941, 0.0
    %v8072 = vsel %vm2053, %v7943, 0.0
    %v8073 = vsel %vm2054, %v7945, 0.0
    %v8074 = vsel %vm2055, %v7947, 0.0
    %v8075 = vsel %vm2056, %v7948, 0.0
    %v8076 = vadd.f32 %v7355, %v8012
    %v8077 = vadd.f32 %v7358, %v8013
    %v8078 = vadd.f32 %v7361, %v8014
    %v8079 = vadd.f32 %v7364, %v8015
    %v8080 = vadd.f32 %v7367, %v8016
    %v8081 = vadd.f32 %v7370, %v8017
    %v8082 = vadd.f32 %v7373, %v8018
    %v8083 = vadd.f32 %v7376, %v8019
    %v8084 = vadd.f32 %v7379, %v8020
    %v8085 = vadd.f32 %v7382, %v8021
    %v8086 = vadd.f32 %v7385, %v8022
    %v8087 = vadd.f32 %v7388, %v8023
    %v8088 = vadd.f32 %v7391, %v8024
    %v8089 = vadd.f32 %v7394, %v8025
    %v8090 = vadd.f32 %v7397, %v8026
    %v8091 = vadd.f32 %v7400, %v8027
    %v8092 = vadd.f32 %v7403, %v8028
    %v8093 = vadd.f32 %v7406, %v8029
    %v8094 = vadd.f32 %v7409, %v8030
    %v8095 = vadd.f32 %v7412, %v8031
    %v8096 = vadd.f32 %v7415, %v8032
    %v8097 = vadd.f32 %v7418, %v8033
    %v8098 = vadd.f32 %v7421, %v8034
    %v8099 = vadd.f32 %v7424, %v8035
    %v8100 = vadd.f32 %v7427, %v8036
    %v8101 = vadd.f32 %v7430, %v8037
    %v8102 = vadd.f32 %v7433, %v8038
    %v8103 = vadd.f32 %v7436, %v8039
    %v8104 = vadd.f32 %v7439, %v8040
    %v8105 = vadd.f32 %v7442, %v8041
    %v8106 = vadd.f32 %v7445, %v8042
    %v8107 = vadd.f32 %v7448, %v8043
    %v8108 = vadd.f32 %v7451, %v8044
    %v8109 = vadd.f32 %v7454, %v8045
    %v8110 = vadd.f32 %v7457, %v8046
    %v8111 = vadd.f32 %v7460, %v8047
    %v8112 = vadd.f32 %v7463, %v8048
    %v8113 = vadd.f32 %v7466, %v8049
    %v8114 = vadd.f32 %v7469, %v8050
    %v8115 = vadd.f32 %v7472, %v8051
    %v8116 = vadd.f32 %v7475, %v8052
    %v8117 = vadd.f32 %v7478, %v8053
    %v8118 = vadd.f32 %v7481, %v8054
    %v8119 = vadd.f32 %v7484, %v8055
    %v8120 = vadd.f32 %v7487, %v8056
    %v8121 = vadd.f32 %v7490, %v8057
    %v8122 = vadd.f32 %v7493, %v8058
    %v8123 = vadd.f32 %v7496, %v8059
    %v8124 = vadd.f32 %v7499, %v8060
    %v8125 = vadd.f32 %v7502, %v8061
    %v8126 = vadd.f32 %v7505, %v8062
    %v8127 = vadd.f32 %v7508, %v8063
    %v8128 = vadd.f32 %v7511, %v8064
    %v8129 = vadd.f32 %v7514, %v8065
    %v8130 = vadd.f32 %v7517, %v8066
    %v8131 = vadd.f32 %v7520, %v8067
    %v8132 = vadd.f32 %v7523, %v8068
    %v8133 = vadd.f32 %v7526, %v8069
    %v8134 = vadd.f32 %v7529, %v8070
    %v8135 = vadd.f32 %v7532, %v8071
    %v8136 = vadd.f32 %v7535, %v8072
    %v8137 = vadd.f32 %v7538, %v8073
    %v8138 = vadd.f32 %v7541, %v8074
    %v8139 = vadd.f32 %v7544, %v8075
    %v8140 = vsel %vm2505, %v7332, 0.0
    %v8141 = vsel %vm2506, %v7335, 0.0
    %v8142 = vsel %vm2507, %v7146, 0.0
    %v8143 = vsel %vm2508, %v7149, 0.0
    %v8144 = vsel %vm2509, %v7152, 0.0
    %v8145 = vsel %vm2510, %v7155, 0.0
    %v8146 = vsel %vm2511, %v7158, 0.0
    %v8147 = vsel %vm2512, %v7161, 0.0
    %v8148 = vsel %vm2513, %v7164, 0.0
    %v8149 = vsel %vm2514, %v7167, 0.0
    %v8150 = vsel %vm2515, %v7170, 0.0
    %v8151 = vsel %vm2516, %v7173, 0.0
    %v8152 = vsel %vm2517, %v7176, 0.0
    %v8153 = vsel %vm2518, %v7179, 0.0
    %v8154 = vsel %vm2519, %v7182, 0.0
    %v8155 = vsel %vm2520, %v7185, 0.0
    %v8156 = vsel %vm2521, %v7188, 0.0
    %v8157 = vsel %vm2522, %v7191, 0.0
    %v8158 = vsel %vm2523, %v7194, 0.0
    %v8159 = vsel %vm2524, %v7197, 0.0
    %v8160 = vsel %vm2525, %v7200, 0.0
    %v8161 = vsel %vm2526, %v7203, 0.0
    %v8162 = vsel %vm2527, %v7206, 0.0
    %v8163 = vsel %vm2528, %v7209, 0.0
    %v8164 = vsel %vm2529, %v7212, 0.0
    %v8165 = vsel %vm2530, %v7215, 0.0
    %v8166 = vsel %vm2531, %v7218, 0.0
    %v8167 = vsel %vm2532, %v7221, 0.0
    %v8168 = vsel %vm2533, %v7224, 0.0
    %v8169 = vsel %vm2534, %v7227, 0.0
    %v8170 = vsel %vm2535, %v7230, 0.0
    %v8171 = vsel %vm2536, %v7233, 0.0
    %v8172 = vsel %vm2537, %v7236, 0.0
    %v8173 = vsel %vm2538, %v7239, 0.0
    %v8174 = vsel %vm2539, %v7242, 0.0
    %v8175 = vsel %vm2540, %v7245, 0.0
    %v8176 = vsel %vm2541, %v7248, 0.0
    %v8177 = vsel %vm2542, %v7251, 0.0
    %v8178 = vsel %vm2543, %v7254, 0.0
    %v8179 = vsel %vm2544, %v7257, 0.0
    %v8180 = vsel %vm2545, %v7260, 0.0
    %v8181 = vsel %vm2546, %v7263, 0.0
    %v8182 = vsel %vm2547, %v7266, 0.0
    %v8183 = vsel %vm2548, %v7269, 0.0
    %v8184 = vsel %vm2549, %v7272, 0.0
    %v8185 = vsel %vm2550, %v7275, 0.0
    %v8186 = vsel %vm2551, %v7278, 0.0
    %v8187 = vsel %vm2552, %v7281, 0.0
    %v8188 = vsel %vm2553, %v7284, 0.0
    %v8189 = vsel %vm2554, %v7287, 0.0
    %v8190 = vsel %vm2555, %v7290, 0.0
    %v8191 = vsel %vm2556, %v7293, 0.0
    %v8192 = vsel %vm2557, %v7296, 0.0
    %v8193 = vsel %vm2558, %v7299, 0.0
    %v8194 = vsel %vm2559, %v7302, 0.0
    %v8195 = vsel %vm2560, %v7305, 0.0
    %v8196 = vsel %vm2561, %v7308, 0.0
    %v8197 = vsel %vm2562, %v7311, 0.0
    %v8198 = vsel %vm2563, %v7314, 0.0
    %v8199 = vsel %vm2564, %v7317, 0.0
    %v8200 = vsel %vm2565, %v7320, 0.0
    %v8201 = vsel %vm2566, %v7323, 0.0
    %v8202 = vsel %vm2567, %v7326, 0.0
    %v8203 = vsel %vm2568, %v7329, 0.0
    %8268 = vrot.lane.b32.xlu0 %v8140, 96
    %v8269 = vpop.permute.xlu0 %8268
    %8270 = vrot.lane.b32.xlu0 %v8141, 96
    %v8271 = vpop.permute.xlu0 %8270
    %8272 = vrot.lane.b32.xlu0 %v8142, 96
    %v8273 = vpop.permute.xlu0 %8272
    %8274 = vrot.lane.b32.xlu0 %v8143, 96
    %v8275 = vpop.permute.xlu0 %8274
    %8276 = vrot.lane.b32.xlu0 %v8144, 96
    %v8277 = vpop.permute.xlu0 %8276
    %8278 = vrot.lane.b32.xlu0 %v8145, 96
    %v8279 = vpop.permute.xlu0 %8278
    %8280 = vrot.lane.b32.xlu0 %v8146, 96
    %v8281 = vpop.permute.xlu0 %8280
    %8282 = vrot.lane.b32.xlu0 %v8147, 96
    %v8283 = vpop.permute.xlu0 %8282
    %8284 = vrot.lane.b32.xlu0 %v8148, 96
    %v8285 = vpop.permute.xlu0 %8284
    %8286 = vrot.lane.b32.xlu0 %v8149, 96
    %v8287 = vpop.permute.xlu0 %8286
    %8288 = vrot.lane.b32.xlu0 %v8150, 96
    %v8289 = vpop.permute.xlu0 %8288
    %8290 = vrot.lane.b32.xlu0 %v8151, 96
    %v8291 = vpop.permute.xlu0 %8290
    %8292 = vrot.lane.b32.xlu0 %v8152, 96
    %v8293 = vpop.permute.xlu0 %8292
    %8294 = vrot.lane.b32.xlu0 %v8153, 96
    %v8295 = vpop.permute.xlu0 %8294
    %8296 = vrot.lane.b32.xlu0 %v8154, 96
    %v8297 = vpop.permute.xlu0 %8296
    %8298 = vrot.lane.b32.xlu0 %v8155, 96
    %v8299 = vpop.permute.xlu0 %8298
    %8300 = vrot.lane.b32.xlu0 %v8156, 96
    %v8301 = vpop.permute.xlu0 %8300
    %8302 = vrot.lane.b32.xlu0 %v8157, 96
    %v8303 = vpop.permute.xlu0 %8302
    %8304 = vrot.lane.b32.xlu0 %v8158, 96
    %v8305 = vpop.permute.xlu0 %8304
    %8306 = vrot.lane.b32.xlu0 %v8159, 96
    %v8307 = vpop.permute.xlu0 %8306
    %8308 = vrot.lane.b32.xlu0 %v8160, 96
    %v8309 = vpop.permute.xlu0 %8308
    %8310 = vrot.lane.b32.xlu0 %v8161, 96
    %v8311 = vpop.permute.xlu0 %8310
    %8312 = vrot.lane.b32.xlu0 %v8162, 96
    %v8313 = vpop.permute.xlu0 %8312
    %8314 = vrot.lane.b32.xlu0 %v8163, 96
    %v8315 = vpop.permute.xlu0 %8314
    %8316 = vrot.lane.b32.xlu0 %v8164, 96
    %v8317 = vpop.permute.xlu0 %8316
    %8318 = vrot.lane.b32.xlu0 %v8165, 96
    %v8319 = vpop.permute.xlu0 %8318
    %8320 = vrot.lane.b32.xlu0 %v8166, 96
    %v8321 = vpop.permute.xlu0 %8320
    %8322 = vrot.lane.b32.xlu0 %v8167, 96
    %v8323 = vpop.permute.xlu0 %8322
    %8324 = vrot.lane.b32.xlu0 %v8168, 96
    %v8325 = vpop.permute.xlu0 %8324
    %8326 = vrot.lane.b32.xlu0 %v8169, 96
    %v8327 = vpop.permute.xlu0 %8326
    %8328 = vrot.lane.b32.xlu0 %v8170, 96
    %v8329 = vpop.permute.xlu0 %8328
    %8330 = vrot.lane.b32.xlu0 %v8171, 96
    %v8331 = vpop.permute.xlu0 %8330
    %8332 = vrot.lane.b32.xlu0 %v8172, 96
    %v8333 = vpop.permute.xlu0 %8332
    %8334 = vrot.lane.b32.xlu0 %v8173, 96
    %v8335 = vpop.permute.xlu0 %8334
    %8336 = vrot.lane.b32.xlu0 %v8174, 96
    %v8337 = vpop.permute.xlu0 %8336
    %8338 = vrot.lane.b32.xlu0 %v8175, 96
    %v8339 = vpop.permute.xlu0 %8338
    %8340 = vrot.lane.b32.xlu0 %v8176, 96
    %v8341 = vpop.permute.xlu0 %8340
    %8342 = vrot.lane.b32.xlu0 %v8177, 96
    %v8343 = vpop.permute.xlu0 %8342
    %8344 = vrot.lane.b32.xlu0 %v8178, 96
    %v8345 = vpop.permute.xlu0 %8344
    %8346 = vrot.lane.b32.xlu0 %v8179, 96
    %v8347 = vpop.permute.xlu0 %8346
    %8348 = vrot.lane.b32.xlu0 %v8180, 96
    %v8349 = vpop.permute.xlu0 %8348
    %8350 = vrot.lane.b32.xlu0 %v8181, 96
    %v8351 = vpop.permute.xlu0 %8350
    %8352 = vrot.lane.b32.xlu0 %v8182, 96
    %v8353 = vpop.permute.xlu0 %8352
    %8354 = vrot.lane.b32.xlu0 %v8183, 96
    %v8355 = vpop.permute.xlu0 %8354
    %8356 = vrot.lane.b32.xlu0 %v8184, 96
    %v8357 = vpop.permute.xlu0 %8356
    %8358 = vrot.lane.b32.xlu0 %v8185, 96
    %v8359 = vpop.permute.xlu0 %8358
    %8360 = vrot.lane.b32.xlu0 %v8186, 96
    %v8361 = vpop.permute.xlu0 %8360
    %8362 = vrot.lane.b32.xlu0 %v8187, 96
    %v8363 = vpop.permute.xlu0 %8362
    %8364 = vrot.lane.b32.xlu0 %v8188, 96
    %v8365 = vpop.permute.xlu0 %8364
    %8366 = vrot.lane.b32.xlu0 %v8189, 96
    %v8367 = vpop.permute.xlu0 %8366
    %8368 = vrot.lane.b32.xlu0 %v8190, 96
    %v8369 = vpop.permute.xlu0 %8368
    %8370 = vrot.lane.b32.xlu0 %v8191, 96
    %v8371 = vpop.permute.xlu0 %8370
    %8372 = vrot.lane.b32.xlu0 %v8192, 96
    %v8373 = vpop.permute.xlu0 %8372
    %8374 = vrot.lane.b32.xlu0 %v8193, 96
    %v8375 = vpop.permute.xlu0 %8374
    %8376 = vrot.lane.b32.xlu0 %v8194, 96
    %v8377 = vpop.permute.xlu0 %8376
    %8378 = vrot.lane.b32.xlu0 %v8195, 96
    %v8379 = vpop.permute.xlu0 %8378
    %8380 = vrot.lane.b32.xlu0 %v8196, 96
    %v8381 = vpop.permute.xlu0 %8380
    %8382 = vrot.lane.b32.xlu0 %v8197, 96
    %v8383 = vpop.permute.xlu0 %8382
    %8384 = vrot.lane.b32.xlu0 %v8198, 96
    %v8385 = vpop.permute.xlu0 %8384
    %8386 = vrot.lane.b32.xlu0 %v8199, 96
    %v8387 = vpop.permute.xlu0 %8386
    %8388 = vrot.lane.b32.xlu0 %v8200, 96
    %v8389 = vpop.permute.xlu0 %8388
    %8390 = vrot.lane.b32.xlu0 %v8201, 96
    %v8391 = vpop.permute.xlu0 %8390
    %8392 = vrot.lane.b32.xlu0 %v8202, 96
    %v8393 = vpop.permute.xlu0 %8392
    %8394 = vrot.lane.b32.xlu0 %v8203, 96
    %v8395 = vpop.permute.xlu0 %8394
    %v8460 = vadd.f32 %v8076, %v8269
    %v8461 = vadd.f32 %v8077, %v8271
    %v8462 = vadd.f32 %v8078, %v8273
    %v8463 = vadd.f32 %v8079, %v8275
    %v8464 = vadd.f32 %v8080, %v8277
    %v8465 = vadd.f32 %v8081, %v8279
    %v8466 = vadd.f32 %v8082, %v8281
    %v8467 = vadd.f32 %v8083, %v8283
    %v8468 = vadd.f32 %v8084, %v8285
    %v8469 = vadd.f32 %v8085, %v8287
    %v8470 = vadd.f32 %v8086, %v8289
    %v8471 = vadd.f32 %v8087, %v8291
    %v8472 = vadd.f32 %v8088, %v8293
    %v8473 = vadd.f32 %v8089, %v8295
    %v8474 = vadd.f32 %v8090, %v8297
    %v8475 = vadd.f32 %v8091, %v8299
    %v8476 = vadd.f32 %v8092, %v8301
    %v8477 = vadd.f32 %v8093, %v8303
    %v8478 = vadd.f32 %v8094, %v8305
    %v8479 = vadd.f32 %v8095, %v8307
    %v8480 = vadd.f32 %v8096, %v8309
    %v8481 = vadd.f32 %v8097, %v8311
    %v8482 = vadd.f32 %v8098, %v8313
    %v8483 = vadd.f32 %v8099, %v8315
    %v8484 = vadd.f32 %v8100, %v8317
    %v8485 = vadd.f32 %v8101, %v8319
    %v8486 = vadd.f32 %v8102, %v8321
    %v8487 = vadd.f32 %v8103, %v8323
    %v8488 = vadd.f32 %v8104, %v8325
    %v8489 = vadd.f32 %v8105, %v8327
    %v8490 = vadd.f32 %v8106, %v8329
    %v8491 = vadd.f32 %v8107, %v8331
    %v8492 = vadd.f32 %v8108, %v8333
    %v8493 = vadd.f32 %v8109, %v8335
    %v8494 = vadd.f32 %v8110, %v8337
    %v8495 = vadd.f32 %v8111, %v8339
    %v8496 = vadd.f32 %v8112, %v8341
    %v8497 = vadd.f32 %v8113, %v8343
    %v8498 = vadd.f32 %v8114, %v8345
    %v8499 = vadd.f32 %v8115, %v8347
    %v8500 = vadd.f32 %v8116, %v8349
    %v8501 = vadd.f32 %v8117, %v8351
    %v8502 = vadd.f32 %v8118, %v8353
    %v8503 = vadd.f32 %v8119, %v8355
    %v8504 = vadd.f32 %v8120, %v8357
    %v8505 = vadd.f32 %v8121, %v8359
    %v8506 = vadd.f32 %v8122, %v8361
    %v8507 = vadd.f32 %v8123, %v8363
    %v8508 = vadd.f32 %v8124, %v8365
    %v8509 = vadd.f32 %v8125, %v8367
    %v8510 = vadd.f32 %v8126, %v8369
    %v8511 = vadd.f32 %v8127, %v8371
    %v8512 = vadd.f32 %v8128, %v8373
    %v8513 = vadd.f32 %v8129, %v8375
    %v8514 = vadd.f32 %v8130, %v8377
    %v8515 = vadd.f32 %v8131, %v8379
    %v8516 = vadd.f32 %v8132, %v8381
    %v8517 = vadd.f32 %v8133, %v8383
    %v8518 = vadd.f32 %v8134, %v8385
    %v8519 = vadd.f32 %v8135, %v8387
    %v8520 = vadd.f32 %v8136, %v8389
    %v8521 = vadd.f32 %v8137, %v8391
    %v8522 = vadd.f32 %v8138, %v8393
    %v8523 = vadd.f32 %v8139, %v8395
    %v8524 = vrot.slane %v7332, 1
    %v8525 = vrot.slane %v7335, 1
    %v8526 = vsel %vm2953, %v8524, %v8525
    %v8529 = vrot.slane %v7146, 1
    %v8530 = vrot.slane %v7149, 1
    %v8531 = vsel %vm2953, %v8529, %v8530
    %v8532 = vrot.slane %v7152, 1
    %v8533 = vsel %vm2953, %v8530, %v8532
    %v8534 = vrot.slane %v7155, 1
    %v8535 = vsel %vm2953, %v8532, %v8534
    %v8536 = vrot.slane %v7158, 1
    %v8537 = vsel %vm2953, %v8534, %v8536
    %v8538 = vrot.slane %v7161, 1
    %v8539 = vsel %vm2953, %v8536, %v8538
    %v8540 = vrot.slane %v7164, 1
    %v8541 = vsel %vm2953, %v8538, %v8540
    %v8542 = vrot.slane %v7167, 1
    %v8543 = vsel %vm2953, %v8540, %v8542
    %v8544 = vrot.slane %v7170, 1
    %v8545 = vsel %vm2953, %v8542, %v8544
    %v8546 = vrot.slane %v7173, 1
    %v8547 = vsel %vm2953, %v8544, %v8546
    %v8548 = vrot.slane %v7176, 1
    %v8549 = vsel %vm2953, %v8546, %v8548
    %v8550 = vrot.slane %v7179, 1
    %v8551 = vsel %vm2953, %v8548, %v8550
    %v8552 = vrot.slane %v7182, 1
    %v8553 = vsel %vm2953, %v8550, %v8552
    %v8554 = vrot.slane %v7185, 1
    %v8555 = vsel %vm2953, %v8552, %v8554
    %v8556 = vrot.slane %v7188, 1
    %v8557 = vsel %vm2953, %v8554, %v8556
    %v8558 = vrot.slane %v7191, 1
    %v8559 = vsel %vm2953, %v8556, %v8558
    %v8560 = vrot.slane %v7194, 1
    %v8561 = vsel %vm2953, %v8558, %v8560
    %v8562 = vrot.slane %v7197, 1
    %v8563 = vsel %vm2953, %v8560, %v8562
    %v8564 = vrot.slane %v7200, 1
    %v8565 = vsel %vm2953, %v8562, %v8564
    %v8566 = vrot.slane %v7203, 1
    %v8567 = vsel %vm2953, %v8564, %v8566
    %v8568 = vrot.slane %v7206, 1
    %v8569 = vsel %vm2953, %v8566, %v8568
    %v8570 = vrot.slane %v7209, 1
    %v8571 = vsel %vm2953, %v8568, %v8570
    %v8572 = vrot.slane %v7212, 1
    %v8573 = vsel %vm2953, %v8570, %v8572
    %v8574 = vrot.slane %v7215, 1
    %v8575 = vsel %vm2953, %v8572, %v8574
    %v8576 = vrot.slane %v7218, 1
    %v8577 = vsel %vm2953, %v8574, %v8576
    %v8578 = vrot.slane %v7221, 1
    %v8579 = vsel %vm2953, %v8576, %v8578
    %v8580 = vrot.slane %v7224, 1
    %v8581 = vsel %vm2953, %v8578, %v8580
    %v8582 = vrot.slane %v7227, 1
    %v8583 = vsel %vm2953, %v8580, %v8582
    %v8584 = vrot.slane %v7230, 1
    %v8585 = vsel %vm2953, %v8582, %v8584
    %v8586 = vrot.slane %v7233, 1
    %v8587 = vsel %vm2953, %v8584, %v8586
    %v8588 = vrot.slane %v7236, 1
    %v8589 = vsel %vm2953, %v8586, %v8588
    %v8590 = vrot.slane %v7239, 1
    %v8591 = vsel %vm2953, %v8588, %v8590
    %v8592 = vrot.slane %v7242, 1
    %v8593 = vsel %vm2953, %v8590, %v8592
    %v8594 = vrot.slane %v7245, 1
    %v8595 = vsel %vm2953, %v8592, %v8594
    %v8596 = vrot.slane %v7248, 1
    %v8597 = vsel %vm2953, %v8594, %v8596
    %v8598 = vrot.slane %v7251, 1
    %v8599 = vsel %vm2953, %v8596, %v8598
    %v8600 = vrot.slane %v7254, 1
    %v8601 = vsel %vm2953, %v8598, %v8600
    %v8602 = vrot.slane %v7257, 1
    %v8603 = vsel %vm2953, %v8600, %v8602
    %v8604 = vrot.slane %v7260, 1
    %v8605 = vsel %vm2953, %v8602, %v8604
    %v8606 = vrot.slane %v7263, 1
    %v8607 = vsel %vm2953, %v8604, %v8606
    %v8608 = vrot.slane %v7266, 1
    %v8609 = vsel %vm2953, %v8606, %v8608
    %v8610 = vrot.slane %v7269, 1
    %v8611 = vsel %vm2953, %v8608, %v8610
    %v8612 = vrot.slane %v7272, 1
    %v8613 = vsel %vm2953, %v8610, %v8612
    %v8614 = vrot.slane %v7275, 1
    %v8615 = vsel %vm2953, %v8612, %v8614
    %v8616 = vrot.slane %v7278, 1
    %v8617 = vsel %vm2953, %v8614, %v8616
    %v8618 = vrot.slane %v7281, 1
    %v8619 = vsel %vm2953, %v8616, %v8618
    %v8620 = vrot.slane %v7284, 1
    %v8621 = vsel %vm2953, %v8618, %v8620
    %v8622 = vrot.slane %v7287, 1
    %v8623 = vsel %vm2953, %v8620, %v8622
    %v8624 = vrot.slane %v7290, 1
    %v8625 = vsel %vm2953, %v8622, %v8624
    %v8626 = vrot.slane %v7293, 1
    %v8627 = vsel %vm2953, %v8624, %v8626
    %v8628 = vrot.slane %v7296, 1
    %v8629 = vsel %vm2953, %v8626, %v8628
    %v8630 = vrot.slane %v7299, 1
    %v8631 = vsel %vm2953, %v8628, %v8630
    %v8632 = vrot.slane %v7302, 1
    %v8633 = vsel %vm2953, %v8630, %v8632
    %v8634 = vrot.slane %v7305, 1
    %v8635 = vsel %vm2953, %v8632, %v8634
    %v8636 = vrot.slane %v7308, 1
    %v8637 = vsel %vm2953, %v8634, %v8636
    %v8638 = vrot.slane %v7311, 1
    %v8639 = vsel %vm2953, %v8636, %v8638
    %v8640 = vrot.slane %v7314, 1
    %v8641 = vsel %vm2953, %v8638, %v8640
    %v8642 = vrot.slane %v7317, 1
    %v8643 = vsel %vm2953, %v8640, %v8642
    %v8644 = vrot.slane %v7320, 1
    %v8645 = vsel %vm2953, %v8642, %v8644
    %v8646 = vrot.slane %v7323, 1
    %v8647 = vsel %vm2953, %v8644, %v8646
    %v8648 = vrot.slane %v7326, 1
    %v8649 = vsel %vm2953, %v8646, %v8648
    %v8650 = vrot.slane %v7329, 1
    %v8651 = vsel %vm2953, %v8648, %v8650
    %v8652 = vsel %vm2953, %v8650, %v8524
    %v8716 = vsel %vm2953, %v8525, %v8529
    %v8717 = vsel %vm3275, %v8526, 0.0
    %v8718 = vsel %vm3276, %v8716, 0.0
    %v8719 = vsel %vm3277, %v8531, 0.0
    %v8720 = vsel %vm3278, %v8533, 0.0
    %v8721 = vsel %vm3279, %v8535, 0.0
    %v8722 = vsel %vm3280, %v8537, 0.0
    %v8723 = vsel %vm3281, %v8539, 0.0
    %v8724 = vsel %vm3282, %v8541, 0.0
    %v8725 = vsel %vm3283, %v8543, 0.0
    %v8726 = vsel %vm3284, %v8545, 0.0
    %v8727 = vsel %vm3285, %v8547, 0.0
    %v8728 = vsel %vm3286, %v8549, 0.0
    %v8729 = vsel %vm3287, %v8551, 0.0
    %v8730 = vsel %vm3288, %v8553, 0.0
    %v8731 = vsel %vm3289, %v8555, 0.0
    %v8732 = vsel %vm3290, %v8557, 0.0
    %v8733 = vsel %vm3291, %v8559, 0.0
    %v8734 = vsel %vm3292, %v8561, 0.0
    %v8735 = vsel %vm3293, %v8563, 0.0
    %v8736 = vsel %vm3294, %v8565, 0.0
    %v8737 = vsel %vm3295, %v8567, 0.0
    %v8738 = vsel %vm3296, %v8569, 0.0
    %v8739 = vsel %vm3297, %v8571, 0.0
    %v8740 = vsel %vm3298, %v8573, 0.0
    %v8741 = vsel %vm3299, %v8575, 0.0
    %v8742 = vsel %vm3300, %v8577, 0.0
    %v8743 = vsel %vm3301, %v8579, 0.0
    %v8744 = vsel %vm3302, %v8581, 0.0
    %v8745 = vsel %vm3303, %v8583, 0.0
    %v8746 = vsel %vm3304, %v8585, 0.0
    %v8747 = vsel %vm3305, %v8587, 0.0
    %v8748 = vsel %vm3306, %v8589, 0.0
    %v8749 = vsel %vm3307, %v8591, 0.0
    %v8750 = vsel %vm3308, %v8593, 0.0
    %v8751 = vsel %vm3309, %v8595, 0.0
    %v8752 = vsel %vm3310, %v8597, 0.0
    %v8753 = vsel %vm3311, %v8599, 0.0
    %v8754 = vsel %vm3312, %v8601, 0.0
    %v8755 = vsel %vm3313, %v8603, 0.0
    %v8756 = vsel %vm3314, %v8605, 0.0
    %v8757 = vsel %vm3315, %v8607, 0.0
    %v8758 = vsel %vm3316, %v8609, 0.0
    %v8759 = vsel %vm3317, %v8611, 0.0
    %v8760 = vsel %vm3318, %v8613, 0.0
    %v8761 = vsel %vm3319, %v8615, 0.0
    %v8762 = vsel %vm3320, %v8617, 0.0
    %v8763 = vsel %vm3321, %v8619, 0.0
    %v8764 = vsel %vm3322, %v8621, 0.0
    %v8765 = vsel %vm3323, %v8623, 0.0
    %v8766 = vsel %vm3324, %v8625, 0.0
    %v8767 = vsel %vm3325, %v8627, 0.0
    %v8768 = vsel %vm3326, %v8629, 0.0
    %v8769 = vsel %vm3327, %v8631, 0.0
    %v8770 = vsel %vm3328, %v8633, 0.0
    %v8771 = vsel %vm3329, %v8635, 0.0
    %v8772 = vsel %vm3330, %v8637, 0.0
    %v8773 = vsel %vm3331, %v8639, 0.0
    %v8774 = vsel %vm3332, %v8641, 0.0
    %v8775 = vsel %vm3333, %v8643, 0.0
    %v8776 = vsel %vm3334, %v8645, 0.0
    %v8777 = vsel %vm3335, %v8647, 0.0
    %v8778 = vsel %vm3336, %v8649, 0.0
    %v8779 = vsel %vm3337, %v8651, 0.0
    %v8780 = vsel %vm3338, %v8652, 0.0
    %8845 = vrot.lane.b32.xlu0 %v8717, 64
    %v8846 = vpop.permute.xlu0 %8845
    %8847 = vrot.lane.b32.xlu0 %v8718, 64
    %v8848 = vpop.permute.xlu0 %8847
    %8849 = vrot.lane.b32.xlu0 %v8719, 64
    %v8850 = vpop.permute.xlu0 %8849
    %8851 = vrot.lane.b32.xlu0 %v8720, 64
    %v8852 = vpop.permute.xlu0 %8851
    %8853 = vrot.lane.b32.xlu0 %v8721, 64
    %v8854 = vpop.permute.xlu0 %8853
    %8855 = vrot.lane.b32.xlu0 %v8722, 64
    %v8856 = vpop.permute.xlu0 %8855
    %8857 = vrot.lane.b32.xlu0 %v8723, 64
    %v8858 = vpop.permute.xlu0 %8857
    %8859 = vrot.lane.b32.xlu0 %v8724, 64
    %v8860 = vpop.permute.xlu0 %8859
    %8861 = vrot.lane.b32.xlu0 %v8725, 64
    %v8862 = vpop.permute.xlu0 %8861
    %8863 = vrot.lane.b32.xlu0 %v8726, 64
    %v8864 = vpop.permute.xlu0 %8863
    %8865 = vrot.lane.b32.xlu0 %v8727, 64
    %v8866 = vpop.permute.xlu0 %8865
    %8867 = vrot.lane.b32.xlu0 %v8728, 64
    %v8868 = vpop.permute.xlu0 %8867
    %8869 = vrot.lane.b32.xlu0 %v8729, 64
    %v8870 = vpop.permute.xlu0 %8869
    %8871 = vrot.lane.b32.xlu0 %v8730, 64
    %v8872 = vpop.permute.xlu0 %8871
    %8873 = vrot.lane.b32.xlu0 %v8731, 64
    %v8874 = vpop.permute.xlu0 %8873
    %8875 = vrot.lane.b32.xlu0 %v8732, 64
    %v8876 = vpop.permute.xlu0 %8875
    %8877 = vrot.lane.b32.xlu0 %v8733, 64
    %v8878 = vpop.permute.xlu0 %8877
    %8879 = vrot.lane.b32.xlu0 %v8734, 64
    %v8880 = vpop.permute.xlu0 %8879
    %8881 = vrot.lane.b32.xlu0 %v8735, 64
    %v8882 = vpop.permute.xlu0 %8881
    %8883 = vrot.lane.b32.xlu0 %v8736, 64
    %v8884 = vpop.permute.xlu0 %8883
    %8885 = vrot.lane.b32.xlu0 %v8737, 64
    %v8886 = vpop.permute.xlu0 %8885
    %8887 = vrot.lane.b32.xlu0 %v8738, 64
    %v8888 = vpop.permute.xlu0 %8887
    %8889 = vrot.lane.b32.xlu0 %v8739, 64
    %v8890 = vpop.permute.xlu0 %8889
    %8891 = vrot.lane.b32.xlu0 %v8740, 64
    %v8892 = vpop.permute.xlu0 %8891
    %8893 = vrot.lane.b32.xlu0 %v8741, 64
    %v8894 = vpop.permute.xlu0 %8893
    %8895 = vrot.lane.b32.xlu0 %v8742, 64
    %v8896 = vpop.permute.xlu0 %8895
    %8897 = vrot.lane.b32.xlu0 %v8743, 64
    %v8898 = vpop.permute.xlu0 %8897
    %8899 = vrot.lane.b32.xlu0 %v8744, 64
    %v8900 = vpop.permute.xlu0 %8899
    %8901 = vrot.lane.b32.xlu0 %v8745, 64
    %v8902 = vpop.permute.xlu0 %8901
    %8903 = vrot.lane.b32.xlu0 %v8746, 64
    %v8904 = vpop.permute.xlu0 %8903
    %8905 = vrot.lane.b32.xlu0 %v8747, 64
    %v8906 = vpop.permute.xlu0 %8905
    %8907 = vrot.lane.b32.xlu0 %v8748, 64
    %v8908 = vpop.permute.xlu0 %8907
    %8909 = vrot.lane.b32.xlu0 %v8749, 64
    %v8910 = vpop.permute.xlu0 %8909
    %8911 = vrot.lane.b32.xlu0 %v8750, 64
    %v8912 = vpop.permute.xlu0 %8911
    %8913 = vrot.lane.b32.xlu0 %v8751, 64
    %v8914 = vpop.permute.xlu0 %8913
    %8915 = vrot.lane.b32.xlu0 %v8752, 64
    %v8916 = vpop.permute.xlu0 %8915
    %8917 = vrot.lane.b32.xlu0 %v8753, 64
    %v8918 = vpop.permute.xlu0 %8917
    %8919 = vrot.lane.b32.xlu0 %v8754, 64
    %v8920 = vpop.permute.xlu0 %8919
    %8921 = vrot.lane.b32.xlu0 %v8755, 64
    %v8922 = vpop.permute.xlu0 %8921
    %8923 = vrot.lane.b32.xlu0 %v8756, 64
    %v8924 = vpop.permute.xlu0 %8923
    %8925 = vrot.lane.b32.xlu0 %v8757, 64
    %v8926 = vpop.permute.xlu0 %8925
    %8927 = vrot.lane.b32.xlu0 %v8758, 64
    %v8928 = vpop.permute.xlu0 %8927
    %8929 = vrot.lane.b32.xlu0 %v8759, 64
    %v8930 = vpop.permute.xlu0 %8929
    %8931 = vrot.lane.b32.xlu0 %v8760, 64
    %v8932 = vpop.permute.xlu0 %8931
    %8933 = vrot.lane.b32.xlu0 %v8761, 64
    %v8934 = vpop.permute.xlu0 %8933
    %8935 = vrot.lane.b32.xlu0 %v8762, 64
    %v8936 = vpop.permute.xlu0 %8935
    %8937 = vrot.lane.b32.xlu0 %v8763, 64
    %v8938 = vpop.permute.xlu0 %8937
    %8939 = vrot.lane.b32.xlu0 %v8764, 64
    %v8940 = vpop.permute.xlu0 %8939
    %8941 = vrot.lane.b32.xlu0 %v8765, 64
    %v8942 = vpop.permute.xlu0 %8941
    %8943 = vrot.lane.b32.xlu0 %v8766, 64
    %v8944 = vpop.permute.xlu0 %8943
    %8945 = vrot.lane.b32.xlu0 %v8767, 64
    %v8946 = vpop.permute.xlu0 %8945
    %8947 = vrot.lane.b32.xlu0 %v8768, 64
    %v8948 = vpop.permute.xlu0 %8947
    %8949 = vrot.lane.b32.xlu0 %v8769, 64
    %v8950 = vpop.permute.xlu0 %8949
    %8951 = vrot.lane.b32.xlu0 %v8770, 64
    %v8952 = vpop.permute.xlu0 %8951
    %8953 = vrot.lane.b32.xlu0 %v8771, 64
    %v8954 = vpop.permute.xlu0 %8953
    %8955 = vrot.lane.b32.xlu0 %v8772, 64
    %v8956 = vpop.permute.xlu0 %8955
    %8957 = vrot.lane.b32.xlu0 %v8773, 64
    %v8958 = vpop.permute.xlu0 %8957
    %8959 = vrot.lane.b32.xlu0 %v8774, 64
    %v8960 = vpop.permute.xlu0 %8959
    %8961 = vrot.lane.b32.xlu0 %v8775, 64
    %v8962 = vpop.permute.xlu0 %8961
    %8963 = vrot.lane.b32.xlu0 %v8776, 64
    %v8964 = vpop.permute.xlu0 %8963
    %8965 = vrot.lane.b32.xlu0 %v8777, 64
    %v8966 = vpop.permute.xlu0 %8965
    %8967 = vrot.lane.b32.xlu0 %v8778, 64
    %v8968 = vpop.permute.xlu0 %8967
    %8969 = vrot.lane.b32.xlu0 %v8779, 64
    %v8970 = vpop.permute.xlu0 %8969
    %8971 = vrot.lane.b32.xlu0 %v8780, 64
    %v8972 = vpop.permute.xlu0 %8971
    %v9037 = vadd.f32 %v8460, %v8846
    %v9038 = vadd.f32 %v8461, %v8848
    %v9039 = vadd.f32 %v8462, %v8850
    %v9040 = vadd.f32 %v8463, %v8852
    %v9041 = vadd.f32 %v8464, %v8854
    %v9042 = vadd.f32 %v8465, %v8856
    %v9043 = vadd.f32 %v8466, %v8858
    %v9044 = vadd.f32 %v8467, %v8860
    %v9045 = vadd.f32 %v8468, %v8862
    %v9046 = vadd.f32 %v8469, %v8864
    %v9047 = vadd.f32 %v8470, %v8866
    %v9048 = vadd.f32 %v8471, %v8868
    %v9049 = vadd.f32 %v8472, %v8870
    %v9050 = vadd.f32 %v8473, %v8872
    %v9051 = vadd.f32 %v8474, %v8874
    %v9052 = vadd.f32 %v8475, %v8876
    %v9053 = vadd.f32 %v8476, %v8878
    %v9054 = vadd.f32 %v8477, %v8880
    %v9055 = vadd.f32 %v8478, %v8882
    %v9056 = vadd.f32 %v8479, %v8884
    %v9057 = vadd.f32 %v8480, %v8886
    %v9058 = vadd.f32 %v8481, %v8888
    %v9059 = vadd.f32 %v8482, %v8890
    %v9060 = vadd.f32 %v8483, %v8892
    %v9061 = vadd.f32 %v8484, %v8894
    %v9062 = vadd.f32 %v8485, %v8896
    %v9063 = vadd.f32 %v8486, %v8898
    %v9064 = vadd.f32 %v8487, %v8900
    %v9065 = vadd.f32 %v8488, %v8902
    %v9066 = vadd.f32 %v8489, %v8904
    %v9067 = vadd.f32 %v8490, %v8906
    %v9068 = vadd.f32 %v8491, %v8908
    %v9069 = vadd.f32 %v8492, %v8910
    %v9070 = vadd.f32 %v8493, %v8912
    %v9071 = vadd.f32 %v8494, %v8914
    %v9072 = vadd.f32 %v8495, %v8916
    %v9073 = vadd.f32 %v8496, %v8918
    %v9074 = vadd.f32 %v8497, %v8920
    %v9075 = vadd.f32 %v8498, %v8922
    %v9076 = vadd.f32 %v8499, %v8924
    %v9077 = vadd.f32 %v8500, %v8926
    %v9078 = vadd.f32 %v8501, %v8928
    %v9079 = vadd.f32 %v8502, %v8930
    %v9080 = vadd.f32 %v8503, %v8932
    %v9081 = vadd.f32 %v8504, %v8934
    %v9082 = vadd.f32 %v8505, %v8936
    %v9083 = vadd.f32 %v8506, %v8938
    %v9084 = vadd.f32 %v8507, %v8940
    %v9085 = vadd.f32 %v8508, %v8942
    %v9086 = vadd.f32 %v8509, %v8944
    %v9087 = vadd.f32 %v8510, %v8946
    %v9088 = vadd.f32 %v8511, %v8948
    %v9089 = vadd.f32 %v8512, %v8950
    %v9090 = vadd.f32 %v8513, %v8952
    %v9091 = vadd.f32 %v8514, %v8954
    %v9092 = vadd.f32 %v8515, %v8956
    %v9093 = vadd.f32 %v8516, %v8958
    %v9094 = vadd.f32 %v8517, %v8960
    %v9095 = vadd.f32 %v8518, %v8962
    %v9096 = vadd.f32 %v8519, %v8964
    %v9097 = vadd.f32 %v8520, %v8966
    %v9098 = vadd.f32 %v8521, %v8968
    %v9099 = vadd.f32 %v8522, %v8970
    %v9100 = vadd.f32 %v8523, %v8972
    %v9101 = vsel %vm3787, %v8011, 0.0
    %v9102 = vsel %vm3788, %v7829, 0.0
    %v9103 = vsel %vm3789, %v7831, 0.0
    %v9104 = vsel %vm3790, %v7833, 0.0
    %v9105 = vsel %vm3791, %v7835, 0.0
    %v9106 = vsel %vm3792, %v7837, 0.0
    %v9107 = vsel %vm3793, %v7839, 0.0
    %v9108 = vsel %vm3794, %v7841, 0.0
    %v9109 = vsel %vm3795, %v7843, 0.0
    %v9110 = vsel %vm3796, %v7845, 0.0
    %v9111 = vsel %vm3797, %v7847, 0.0
    %v9112 = vsel %vm3798, %v7849, 0.0
    %v9113 = vsel %vm3799, %v7851, 0.0
    %v9114 = vsel %vm3800, %v7853, 0.0
    %v9115 = vsel %vm3801, %v7855, 0.0
    %v9116 = vsel %vm3802, %v7857, 0.0
    %v9117 = vsel %vm3803, %v7859, 0.0
    %v9118 = vsel %vm3804, %v7861, 0.0
    %v9119 = vsel %vm3805, %v7863, 0.0
    %v9120 = vsel %vm3806, %v7865, 0.0
    %v9121 = vsel %vm3807, %v7867, 0.0
    %v9122 = vsel %vm3808, %v7869, 0.0
    %v9123 = vsel %vm3809, %v7871, 0.0
    %v9124 = vsel %vm3810, %v7873, 0.0
    %v9125 = vsel %vm3811, %v7875, 0.0
    %v9126 = vsel %vm3812, %v7877, 0.0
    %v9127 = vsel %vm3813, %v7879, 0.0
    %v9128 = vsel %vm3814, %v7881, 0.0
    %v9129 = vsel %vm3815, %v7883, 0.0
    %v9130 = vsel %vm3816, %v7885, 0.0
    %v9131 = vsel %vm3817, %v7887, 0.0
    %v9132 = vsel %vm3818, %v7889, 0.0
    %v9133 = vsel %vm3819, %v7891, 0.0
    %v9134 = vsel %vm3820, %v7893, 0.0
    %v9135 = vsel %vm3821, %v7895, 0.0
    %v9136 = vsel %vm3822, %v7897, 0.0
    %v9137 = vsel %vm3823, %v7899, 0.0
    %v9138 = vsel %vm3824, %v7901, 0.0
    %v9139 = vsel %vm3825, %v7903, 0.0
    %v9140 = vsel %vm3826, %v7905, 0.0
    %v9141 = vsel %vm3827, %v7907, 0.0
    %v9142 = vsel %vm3828, %v7909, 0.0
    %v9143 = vsel %vm3829, %v7911, 0.0
    %v9144 = vsel %vm3830, %v7913, 0.0
    %v9145 = vsel %vm3831, %v7915, 0.0
    %v9146 = vsel %vm3832, %v7917, 0.0
    %v9147 = vsel %vm3833, %v7919, 0.0
    %v9148 = vsel %vm3834, %v7921, 0.0
    %v9149 = vsel %vm3835, %v7923, 0.0
    %v9150 = vsel %vm3836, %v7925, 0.0
    %v9151 = vsel %vm3837, %v7927, 0.0
    %v9152 = vsel %vm3838, %v7929, 0.0
    %v9153 = vsel %vm3839, %v7931, 0.0
    %v9154 = vsel %vm3840, %v7933, 0.0
    %v9155 = vsel %vm3841, %v7935, 0.0
    %v9156 = vsel %vm3842, %v7937, 0.0
    %v9157 = vsel %vm3843, %v7939, 0.0
    %v9158 = vsel %vm3844, %v7941, 0.0
    %v9159 = vsel %vm3845, %v7943, 0.0
    %v9160 = vsel %vm3846, %v7945, 0.0
    %v9161 = vsel %vm3847, %v7947, 0.0
    %v9162 = vsel %vm3848, %v7948, 0.0
    %v9163 = vsel %vm3849, %v7760, 0.0
    %v9164 = vsel %vm3850, %v7762, 0.0
    %9229 = vrot.lane.b32.xlu0 %v9101, 32
    %v9230 = vpop.permute.xlu0 %9229
    %9231 = vrot.lane.b32.xlu0 %v9102, 32
    %v9232 = vpop.permute.xlu0 %9231
    %9233 = vrot.lane.b32.xlu0 %v9103, 32
    %v9234 = vpop.permute.xlu0 %9233
    %9235 = vrot.lane.b32.xlu0 %v9104, 32
    %v9236 = vpop.permute.xlu0 %9235
    %9237 = vrot.lane.b32.xlu0 %v9105, 32
    %v9238 = vpop.permute.xlu0 %9237
    %9239 = vrot.lane.b32.xlu0 %v9106, 32
    %v9240 = vpop.permute.xlu0 %9239
    %9241 = vrot.lane.b32.xlu0 %v9107, 32
    %v9242 = vpop.permute.xlu0 %9241
    %9243 = vrot.lane.b32.xlu0 %v9108, 32
    %v9244 = vpop.permute.xlu0 %9243
    %9245 = vrot.lane.b32.xlu0 %v9109, 32
    %v9246 = vpop.permute.xlu0 %9245
    %9247 = vrot.lane.b32.xlu0 %v9110, 32
    %v9248 = vpop.permute.xlu0 %9247
    %9249 = vrot.lane.b32.xlu0 %v9111, 32
    %v9250 = vpop.permute.xlu0 %9249
    %9251 = vrot.lane.b32.xlu0 %v9112, 32
    %v9252 = vpop.permute.xlu0 %9251
    %9253 = vrot.lane.b32.xlu0 %v9113, 32
    %v9254 = vpop.permute.xlu0 %9253
    %9255 = vrot.lane.b32.xlu0 %v9114, 32
    %v9256 = vpop.permute.xlu0 %9255
    %9257 = vrot.lane.b32.xlu0 %v9115, 32
    %v9258 = vpop.permute.xlu0 %9257
    %9259 = vrot.lane.b32.xlu0 %v9116, 32
    %v9260 = vpop.permute.xlu0 %9259
    %9261 = vrot.lane.b32.xlu0 %v9117, 32
    %v9262 = vpop.permute.xlu0 %9261
    %9263 = vrot.lane.b32.xlu0 %v9118, 32
    %v9264 = vpop.permute.xlu0 %9263
    %9265 = vrot.lane.b32.xlu0 %v9119, 32
    %v9266 = vpop.permute.xlu0 %9265
    %9267 = vrot.lane.b32.xlu0 %v9120, 32
    %v9268 = vpop.permute.xlu0 %9267
    %9269 = vrot.lane.b32.xlu0 %v9121, 32
    %v9270 = vpop.permute.xlu0 %9269
    %9271 = vrot.lane.b32.xlu0 %v9122, 32
    %v9272 = vpop.permute.xlu0 %9271
    %9273 = vrot.lane.b32.xlu0 %v9123, 32
    %v9274 = vpop.permute.xlu0 %9273
    %9275 = vrot.lane.b32.xlu0 %v9124, 32
    %v9276 = vpop.permute.xlu0 %9275
    %9277 = vrot.lane.b32.xlu0 %v9125, 32
    %v9278 = vpop.permute.xlu0 %9277
    %9279 = vrot.lane.b32.xlu0 %v9126, 32
    %v9280 = vpop.permute.xlu0 %9279
    %9281 = vrot.lane.b32.xlu0 %v9127, 32
    %v9282 = vpop.permute.xlu0 %9281
    %9283 = vrot.lane.b32.xlu0 %v9128, 32
    %v9284 = vpop.permute.xlu0 %9283
    %9285 = vrot.lane.b32.xlu0 %v9129, 32
    %v9286 = vpop.permute.xlu0 %9285
    %9287 = vrot.lane.b32.xlu0 %v9130, 32
    %v9288 = vpop.permute.xlu0 %9287
    %9289 = vrot.lane.b32.xlu0 %v9131, 32
    %v9290 = vpop.permute.xlu0 %9289
    %9291 = vrot.lane.b32.xlu0 %v9132, 32
    %v9292 = vpop.permute.xlu0 %9291
    %9293 = vrot.lane.b32.xlu0 %v9133, 32
    %v9294 = vpop.permute.xlu0 %9293
    %9295 = vrot.lane.b32.xlu0 %v9134, 32
    %v9296 = vpop.permute.xlu0 %9295
    %9297 = vrot.lane.b32.xlu0 %v9135, 32
    %v9298 = vpop.permute.xlu0 %9297
    %9299 = vrot.lane.b32.xlu0 %v9136, 32
    %v9300 = vpop.permute.xlu0 %9299
    %9301 = vrot.lane.b32.xlu0 %v9137, 32
    %v9302 = vpop.permute.xlu0 %9301
    %9303 = vrot.lane.b32.xlu0 %v9138, 32
    %v9304 = vpop.permute.xlu0 %9303
    %9305 = vrot.lane.b32.xlu0 %v9139, 32
    %v9306 = vpop.permute.xlu0 %9305
    %9307 = vrot.lane.b32.xlu0 %v9140, 32
    %v9308 = vpop.permute.xlu0 %9307
    %9309 = vrot.lane.b32.xlu0 %v9141, 32
    %v9310 = vpop.permute.xlu0 %9309
    %9311 = vrot.lane.b32.xlu0 %v9142, 32
    %v9312 = vpop.permute.xlu0 %9311
    %9313 = vrot.lane.b32.xlu0 %v9143, 32
    %v9314 = vpop.permute.xlu0 %9313
    %9315 = vrot.lane.b32.xlu0 %v9144, 32
    %v9316 = vpop.permute.xlu0 %9315
    %9317 = vrot.lane.b32.xlu0 %v9145, 32
    %v9318 = vpop.permute.xlu0 %9317
    %9319 = vrot.lane.b32.xlu0 %v9146, 32
    %v9320 = vpop.permute.xlu0 %9319
    %9321 = vrot.lane.b32.xlu0 %v9147, 32
    %v9322 = vpop.permute.xlu0 %9321
    %9323 = vrot.lane.b32.xlu0 %v9148, 32
    %v9324 = vpop.permute.xlu0 %9323
    %9325 = vrot.lane.b32.xlu0 %v9149, 32
    %v9326 = vpop.permute.xlu0 %9325
    %9327 = vrot.lane.b32.xlu0 %v9150, 32
    %v9328 = vpop.permute.xlu0 %9327
    %9329 = vrot.lane.b32.xlu0 %v9151, 32
    %v9330 = vpop.permute.xlu0 %9329
    %9331 = vrot.lane.b32.xlu0 %v9152, 32
    %v9332 = vpop.permute.xlu0 %9331
    %9333 = vrot.lane.b32.xlu0 %v9153, 32
    %v9334 = vpop.permute.xlu0 %9333
    %9335 = vrot.lane.b32.xlu0 %v9154, 32
    %v9336 = vpop.permute.xlu0 %9335
    %9337 = vrot.lane.b32.xlu0 %v9155, 32
    %v9338 = vpop.permute.xlu0 %9337
    %9339 = vrot.lane.b32.xlu0 %v9156, 32
    %v9340 = vpop.permute.xlu0 %9339
    %9341 = vrot.lane.b32.xlu0 %v9157, 32
    %v9342 = vpop.permute.xlu0 %9341
    %9343 = vrot.lane.b32.xlu0 %v9158, 32
    %v9344 = vpop.permute.xlu0 %9343
    %9345 = vrot.lane.b32.xlu0 %v9159, 32
    %v9346 = vpop.permute.xlu0 %9345
    %9347 = vrot.lane.b32.xlu0 %v9160, 32
    %v9348 = vpop.permute.xlu0 %9347
    %9349 = vrot.lane.b32.xlu0 %v9161, 32
    %v9350 = vpop.permute.xlu0 %9349
    %9351 = vrot.lane.b32.xlu0 %v9162, 32
    %v9352 = vpop.permute.xlu0 %9351
    %9353 = vrot.lane.b32.xlu0 %v9163, 32
    %v9354 = vpop.permute.xlu0 %9353
    %9355 = vrot.lane.b32.xlu0 %v9164, 32
    %v9356 = vpop.permute.xlu0 %9355
    %v9421 = vadd.f32 %v9037, %v9230
    %v9422 = vadd.f32 %v9038, %v9232
    %v9423 = vadd.f32 %v9039, %v9234
    %v9424 = vadd.f32 %v9040, %v9236
    %v9425 = vadd.f32 %v9041, %v9238
    %v9426 = vadd.f32 %v9042, %v9240
    %v9427 = vadd.f32 %v9043, %v9242
    %v9428 = vadd.f32 %v9044, %v9244
    %v9429 = vadd.f32 %v9045, %v9246
    %v9430 = vadd.f32 %v9046, %v9248
    %v9431 = vadd.f32 %v9047, %v9250
    %v9432 = vadd.f32 %v9048, %v9252
    %v9433 = vadd.f32 %v9049, %v9254
    %v9434 = vadd.f32 %v9050, %v9256
    %v9435 = vadd.f32 %v9051, %v9258
    %v9436 = vadd.f32 %v9052, %v9260
    %v9437 = vadd.f32 %v9053, %v9262
    %v9438 = vadd.f32 %v9054, %v9264
    %v9439 = vadd.f32 %v9055, %v9266
    %v9440 = vadd.f32 %v9056, %v9268
    %v9441 = vadd.f32 %v9057, %v9270
    %v9442 = vadd.f32 %v9058, %v9272
    %v9443 = vadd.f32 %v9059, %v9274
    %v9444 = vadd.f32 %v9060, %v9276
    %v9445 = vadd.f32 %v9061, %v9278
    %v9446 = vadd.f32 %v9062, %v9280
    %v9447 = vadd.f32 %v9063, %v9282
    %v9448 = vadd.f32 %v9064, %v9284
    %v9449 = vadd.f32 %v9065, %v9286
    %v9450 = vadd.f32 %v9066, %v9288
    %v9451 = vadd.f32 %v9067, %v9290
    %v9452 = vadd.f32 %v9068, %v9292
    %v9453 = vadd.f32 %v9069, %v9294
    %v9454 = vadd.f32 %v9070, %v9296
    %v9455 = vadd.f32 %v9071, %v9298
    %v9456 = vadd.f32 %v9072, %v9300
    %v9457 = vadd.f32 %v9073, %v9302
    %v9458 = vadd.f32 %v9074, %v9304
    %v9459 = vadd.f32 %v9075, %v9306
    %v9460 = vadd.f32 %v9076, %v9308
    %v9461 = vadd.f32 %v9077, %v9310
    %v9462 = vadd.f32 %v9078, %v9312
    %v9463 = vadd.f32 %v9079, %v9314
    %v9464 = vadd.f32 %v9080, %v9316
    %v9465 = vadd.f32 %v9081, %v9318
    %v9466 = vadd.f32 %v9082, %v9320
    %v9467 = vadd.f32 %v9083, %v9322
    %v9468 = vadd.f32 %v9084, %v9324
    %v9469 = vadd.f32 %v9085, %v9326
    %v9470 = vadd.f32 %v9086, %v9328
    %v9471 = vadd.f32 %v9087, %v9330
    %v9472 = vadd.f32 %v9088, %v9332
    %v9473 = vadd.f32 %v9089, %v9334
    %v9474 = vadd.f32 %v9090, %v9336
    %v9475 = vadd.f32 %v9091, %v9338
    %v9476 = vadd.f32 %v9092, %v9340
    %v9477 = vadd.f32 %v9093, %v9342
    %v9478 = vadd.f32 %v9094, %v9344
    %v9479 = vadd.f32 %v9095, %v9346
    %v9480 = vadd.f32 %v9096, %v9348
    %v9481 = vadd.f32 %v9097, %v9350
    %v9482 = vadd.f32 %v9098, %v9352
    %v9483 = vadd.f32 %v9099, %v9354
    %v9484 = vadd.f32 %v9100, %v9356
    %v9549 = vrot.slane %v7355, 1
    %v9550 = vrot.slane %v7358, 1
    %v9551 = vsel %vm2953, %v9549, %v9550
    %v9552 = vrot.slane %v7361, 1
    %v9553 = vsel %vm2953, %v9550, %v9552
    %v9554 = vrot.slane %v7364, 1
    %v9555 = vsel %vm2953, %v9552, %v9554
    %v9556 = vrot.slane %v7367, 1
    %v9557 = vsel %vm2953, %v9554, %v9556
    %v9558 = vrot.slane %v7370, 1
    %v9559 = vsel %vm2953, %v9556, %v9558
    %v9560 = vrot.slane %v7373, 1
    %v9561 = vsel %vm2953, %v9558, %v9560
    %v9562 = vrot.slane %v7376, 1
    %v9563 = vsel %vm2953, %v9560, %v9562
    %v9564 = vrot.slane %v7379, 1
    %v9565 = vsel %vm2953, %v9562, %v9564
    %v9566 = vrot.slane %v7382, 1
    %v9567 = vsel %vm2953, %v9564, %v9566
    %v9568 = vrot.slane %v7385, 1
    %v9569 = vsel %vm2953, %v9566, %v9568
    %v9570 = vrot.slane %v7388, 1
    %v9571 = vsel %vm2953, %v9568, %v9570
    %v9572 = vrot.slane %v7391, 1
    %v9573 = vsel %vm2953, %v9570, %v9572
    %v9574 = vrot.slane %v7394, 1
    %v9575 = vsel %vm2953, %v9572, %v9574
    %v9576 = vrot.slane %v7397, 1
    %v9577 = vsel %vm2953, %v9574, %v9576
    %v9578 = vrot.slane %v7400, 1
    %v9579 = vsel %vm2953, %v9576, %v9578
    %v9580 = vrot.slane %v7403, 1
    %v9581 = vsel %vm2953, %v9578, %v9580
    %v9582 = vrot.slane %v7406, 1
    %v9583 = vsel %vm2953, %v9580, %v9582
    %v9584 = vrot.slane %v7409, 1
    %v9585 = vsel %vm2953, %v9582, %v9584
    %v9586 = vrot.slane %v7412, 1
    %v9587 = vsel %vm2953, %v9584, %v9586
    %v9588 = vrot.slane %v7415, 1
    %v9589 = vsel %vm2953, %v9586, %v9588
    %v9590 = vrot.slane %v7418, 1
    %v9591 = vsel %vm2953, %v9588, %v9590
    %v9592 = vrot.slane %v7421, 1
    %v9593 = vsel %vm2953, %v9590, %v9592
    %v9594 = vrot.slane %v7424, 1
    %v9595 = vsel %vm2953, %v9592, %v9594
    %v9596 = vrot.slane %v7427, 1
    %v9597 = vsel %vm2953, %v9594, %v9596
    %v9598 = vrot.slane %v7430, 1
    %v9599 = vsel %vm2953, %v9596, %v9598
    %v9600 = vrot.slane %v7433, 1
    %v9601 = vsel %vm2953, %v9598, %v9600
    %v9602 = vrot.slane %v7436, 1
    %v9603 = vsel %vm2953, %v9600, %v9602
    %v9604 = vrot.slane %v7439, 1
    %v9605 = vsel %vm2953, %v9602, %v9604
    %v9606 = vrot.slane %v7442, 1
    %v9607 = vsel %vm2953, %v9604, %v9606
    %v9608 = vrot.slane %v7445, 1
    %v9609 = vsel %vm2953, %v9606, %v9608
    %v9610 = vrot.slane %v7448, 1
    %v9611 = vsel %vm2953, %v9608, %v9610
    %v9612 = vrot.slane %v7451, 1
    %v9613 = vsel %vm2953, %v9610, %v9612
    %v9614 = vrot.slane %v7454, 1
    %v9615 = vsel %vm2953, %v9612, %v9614
    %v9616 = vrot.slane %v7457, 1
    %v9617 = vsel %vm2953, %v9614, %v9616
    %v9618 = vrot.slane %v7460, 1
    %v9619 = vsel %vm2953, %v9616, %v9618
    %v9620 = vrot.slane %v7463, 1
    %v9621 = vsel %vm2953, %v9618, %v9620
    %v9622 = vrot.slane %v7466, 1
    %v9623 = vsel %vm2953, %v9620, %v9622
    %v9624 = vrot.slane %v7469, 1
    %v9625 = vsel %vm2953, %v9622, %v9624
    %v9626 = vrot.slane %v7472, 1
    %v9627 = vsel %vm2953, %v9624, %v9626
    %v9628 = vrot.slane %v7475, 1
    %v9629 = vsel %vm2953, %v9626, %v9628
    %v9630 = vrot.slane %v7478, 1
    %v9631 = vsel %vm2953, %v9628, %v9630
    %v9632 = vrot.slane %v7481, 1
    %v9633 = vsel %vm2953, %v9630, %v9632
    %v9634 = vrot.slane %v7484, 1
    %v9635 = vsel %vm2953, %v9632, %v9634
    %v9636 = vrot.slane %v7487, 1
    %v9637 = vsel %vm2953, %v9634, %v9636
    %v9638 = vrot.slane %v7490, 1
    %v9639 = vsel %vm2953, %v9636, %v9638
    %v9640 = vrot.slane %v7493, 1
    %v9641 = vsel %vm2953, %v9638, %v9640
    %v9642 = vrot.slane %v7496, 1
    %v9643 = vsel %vm2953, %v9640, %v9642
    %v9644 = vrot.slane %v7499, 1
    %v9645 = vsel %vm2953, %v9642, %v9644
    %v9646 = vrot.slane %v7502, 1
    %v9647 = vsel %vm2953, %v9644, %v9646
    %v9648 = vrot.slane %v7505, 1
    %v9649 = vsel %vm2953, %v9646, %v9648
    %v9650 = vrot.slane %v7508, 1
    %v9651 = vsel %vm2953, %v9648, %v9650
    %v9652 = vrot.slane %v7511, 1
    %v9653 = vsel %vm2953, %v9650, %v9652
    %v9654 = vrot.slane %v7514, 1
    %v9655 = vsel %vm2953, %v9652, %v9654
    %v9656 = vrot.slane %v7517, 1
    %v9657 = vsel %vm2953, %v9654, %v9656
    %v9658 = vrot.slane %v7520, 1
    %v9659 = vsel %vm2953, %v9656, %v9658
    %v9660 = vrot.slane %v7523, 1
    %v9661 = vsel %vm2953, %v9658, %v9660
    %v9662 = vrot.slane %v7526, 1
    %v9663 = vsel %vm2953, %v9660, %v9662
    %v9664 = vrot.slane %v7529, 1
    %v9665 = vsel %vm2953, %v9662, %v9664
    %v9666 = vrot.slane %v7532, 1
    %v9667 = vsel %vm2953, %v9664, %v9666
    %v9668 = vrot.slane %v7535, 1
    %v9669 = vsel %vm2953, %v9666, %v9668
    %v9670 = vrot.slane %v7538, 1
    %v9671 = vsel %vm2953, %v9668, %v9670
    %v9672 = vrot.slane %v7541, 1
    %v9673 = vsel %vm2953, %v9670, %v9672
    %v9674 = vrot.slane %v7544, 1
    %v9675 = vsel %vm2953, %v9672, %v9674
    %v9741 = vsel %vm2953, %v9674, %v9549
    %v9742 = vsel %vm4299, %v9551, 0.0
    %v9743 = vsel %vm4300, %v9553, 0.0
    %v9744 = vsel %vm4301, %v9555, 0.0
    %v9745 = vsel %vm4302, %v9557, 0.0
    %v9746 = vsel %vm4303, %v9559, 0.0
    %v9747 = vsel %vm4304, %v9561, 0.0
    %v9748 = vsel %vm4305, %v9563, 0.0
    %v9749 = vsel %vm4306, %v9565, 0.0
    %v9750 = vsel %vm4307, %v9567, 0.0
    %v9751 = vsel %vm4308, %v9569, 0.0
    %v9752 = vsel %vm4309, %v9571, 0.0
    %v9753 = vsel %vm4310, %v9573, 0.0
    %v9754 = vsel %vm4311, %v9575, 0.0
    %v9755 = vsel %vm4312, %v9577, 0.0
    %v9756 = vsel %vm4313, %v9579, 0.0
    %v9757 = vsel %vm4314, %v9581, 0.0
    %v9758 = vsel %vm4315, %v9583, 0.0
    %v9759 = vsel %vm4316, %v9585, 0.0
    %v9760 = vsel %vm4317, %v9587, 0.0
    %v9761 = vsel %vm4318, %v9589, 0.0
    %v9762 = vsel %vm4319, %v9591, 0.0
    %v9763 = vsel %vm4320, %v9593, 0.0
    %v9764 = vsel %vm4321, %v9595, 0.0
    %v9765 = vsel %vm4322, %v9597, 0.0
    %v9766 = vsel %vm4323, %v9599, 0.0
    %v9767 = vsel %vm4324, %v9601, 0.0
    %v9768 = vsel %vm4325, %v9603, 0.0
    %v9769 = vsel %vm4326, %v9605, 0.0
    %v9770 = vsel %vm4327, %v9607, 0.0
    %v9771 = vsel %vm4328, %v9609, 0.0
    %v9772 = vsel %vm4329, %v9611, 0.0
    %v9773 = vsel %vm4330, %v9613, 0.0
    %v9774 = vsel %vm4331, %v9615, 0.0
    %v9775 = vsel %vm4332, %v9617, 0.0
    %v9776 = vsel %vm4333, %v9619, 0.0
    %v9777 = vsel %vm4334, %v9621, 0.0
    %v9778 = vsel %vm4335, %v9623, 0.0
    %v9779 = vsel %vm4336, %v9625, 0.0
    %v9780 = vsel %vm4337, %v9627, 0.0
    %v9781 = vsel %vm4338, %v9629, 0.0
    %v9782 = vsel %vm4339, %v9631, 0.0
    %v9783 = vsel %vm4340, %v9633, 0.0
    %v9784 = vsel %vm4341, %v9635, 0.0
    %v9785 = vsel %vm4342, %v9637, 0.0
    %v9786 = vsel %vm4343, %v9639, 0.0
    %v9787 = vsel %vm4344, %v9641, 0.0
    %v9788 = vsel %vm4345, %v9643, 0.0
    %v9789 = vsel %vm4346, %v9645, 0.0
    %v9790 = vsel %vm4347, %v9647, 0.0
    %v9791 = vsel %vm4348, %v9649, 0.0
    %v9792 = vsel %vm4349, %v9651, 0.0
    %v9793 = vsel %vm4350, %v9653, 0.0
    %v9794 = vsel %vm4351, %v9655, 0.0
    %v9795 = vsel %vm4352, %v9657, 0.0
    %v9796 = vsel %vm4353, %v9659, 0.0
    %v9797 = vsel %vm4354, %v9661, 0.0
    %v9798 = vsel %vm4355, %v9663, 0.0
    %v9799 = vsel %vm4356, %v9665, 0.0
    %v9800 = vsel %vm4357, %v9667, 0.0
    %v9801 = vsel %vm4358, %v9669, 0.0
    %v9802 = vsel %vm4359, %v9671, 0.0
    %v9803 = vsel %vm4360, %v9673, 0.0
    %v9804 = vsel %vm4361, %v9675, 0.0
    %v9805 = vsel %vm4362, %v9741, 0.0
    %9870 = vrot.lane.b32.xlu0 %v9742, 96
    %v9871 = vpop.permute.xlu0 %9870
    %9872 = vrot.lane.b32.xlu0 %v9743, 96
    %v9873 = vpop.permute.xlu0 %9872
    %9874 = vrot.lane.b32.xlu0 %v9744, 96
    %v9875 = vpop.permute.xlu0 %9874
    %9876 = vrot.lane.b32.xlu0 %v9745, 96
    %v9877 = vpop.permute.xlu0 %9876
    %9878 = vrot.lane.b32.xlu0 %v9746, 96
    %v9879 = vpop.permute.xlu0 %9878
    %9880 = vrot.lane.b32.xlu0 %v9747, 96
    %v9881 = vpop.permute.xlu0 %9880
    %9882 = vrot.lane.b32.xlu0 %v9748, 96
    %v9883 = vpop.permute.xlu0 %9882
    %9884 = vrot.lane.b32.xlu0 %v9749, 96
    %v9885 = vpop.permute.xlu0 %9884
    %9886 = vrot.lane.b32.xlu0 %v9750, 96
    %v9887 = vpop.permute.xlu0 %9886
    %9888 = vrot.lane.b32.xlu0 %v9751, 96
    %v9889 = vpop.permute.xlu0 %9888
    %9890 = vrot.lane.b32.xlu0 %v9752, 96
    %v9891 = vpop.permute.xlu0 %9890
    %9892 = vrot.lane.b32.xlu0 %v9753, 96
    %v9893 = vpop.permute.xlu0 %9892
    %9894 = vrot.lane.b32.xlu0 %v9754, 96
    %v9895 = vpop.permute.xlu0 %9894
    %9896 = vrot.lane.b32.xlu0 %v9755, 96
    %v9897 = vpop.permute.xlu0 %9896
    %9898 = vrot.lane.b32.xlu0 %v9756, 96
    %v9899 = vpop.permute.xlu0 %9898
    %9900 = vrot.lane.b32.xlu0 %v9757, 96
    %v9901 = vpop.permute.xlu0 %9900
    %9902 = vrot.lane.b32.xlu0 %v9758, 96
    %v9903 = vpop.permute.xlu0 %9902
    %9904 = vrot.lane.b32.xlu0 %v9759, 96
    %v9905 = vpop.permute.xlu0 %9904
    %9906 = vrot.lane.b32.xlu0 %v9760, 96
    %v9907 = vpop.permute.xlu0 %9906
    %9908 = vrot.lane.b32.xlu0 %v9761, 96
    %v9909 = vpop.permute.xlu0 %9908
    %9910 = vrot.lane.b32.xlu0 %v9762, 96
    %v9911 = vpop.permute.xlu0 %9910
    %9912 = vrot.lane.b32.xlu0 %v9763, 96
    %v9913 = vpop.permute.xlu0 %9912
    %9914 = vrot.lane.b32.xlu0 %v9764, 96
    %v9915 = vpop.permute.xlu0 %9914
    %9916 = vrot.lane.b32.xlu0 %v9765, 96
    %v9917 = vpop.permute.xlu0 %9916
    %9918 = vrot.lane.b32.xlu0 %v9766, 96
    %v9919 = vpop.permute.xlu0 %9918
    %9920 = vrot.lane.b32.xlu0 %v9767, 96
    %v9921 = vpop.permute.xlu0 %9920
    %9922 = vrot.lane.b32.xlu0 %v9768, 96
    %v9923 = vpop.permute.xlu0 %9922
    %9924 = vrot.lane.b32.xlu0 %v9769, 96
    %v9925 = vpop.permute.xlu0 %9924
    %9926 = vrot.lane.b32.xlu0 %v9770, 96
    %v9927 = vpop.permute.xlu0 %9926
    %9928 = vrot.lane.b32.xlu0 %v9771, 96
    %v9929 = vpop.permute.xlu0 %9928
    %9930 = vrot.lane.b32.xlu0 %v9772, 96
    %v9931 = vpop.permute.xlu0 %9930
    %9932 = vrot.lane.b32.xlu0 %v9773, 96
    %v9933 = vpop.permute.xlu0 %9932
    %9934 = vrot.lane.b32.xlu0 %v9774, 96
    %v9935 = vpop.permute.xlu0 %9934
    %9936 = vrot.lane.b32.xlu0 %v9775, 96
    %v9937 = vpop.permute.xlu0 %9936
    %9938 = vrot.lane.b32.xlu0 %v9776, 96
    %v9939 = vpop.permute.xlu0 %9938
    %9940 = vrot.lane.b32.xlu0 %v9777, 96
    %v9941 = vpop.permute.xlu0 %9940
    %9942 = vrot.lane.b32.xlu0 %v9778, 96
    %v9943 = vpop.permute.xlu0 %9942
    %9944 = vrot.lane.b32.xlu0 %v9779, 96
    %v9945 = vpop.permute.xlu0 %9944
    %9946 = vrot.lane.b32.xlu0 %v9780, 96
    %v9947 = vpop.permute.xlu0 %9946
    %9948 = vrot.lane.b32.xlu0 %v9781, 96
    %v9949 = vpop.permute.xlu0 %9948
    %9950 = vrot.lane.b32.xlu0 %v9782, 96
    %v9951 = vpop.permute.xlu0 %9950
    %9952 = vrot.lane.b32.xlu0 %v9783, 96
    %v9953 = vpop.permute.xlu0 %9952
    %9954 = vrot.lane.b32.xlu0 %v9784, 96
    %v9955 = vpop.permute.xlu0 %9954
    %9956 = vrot.lane.b32.xlu0 %v9785, 96
    %v9957 = vpop.permute.xlu0 %9956
    %9958 = vrot.lane.b32.xlu0 %v9786, 96
    %v9959 = vpop.permute.xlu0 %9958
    %9960 = vrot.lane.b32.xlu0 %v9787, 96
    %v9961 = vpop.permute.xlu0 %9960
    %9962 = vrot.lane.b32.xlu0 %v9788, 96
    %v9963 = vpop.permute.xlu0 %9962
    %9964 = vrot.lane.b32.xlu0 %v9789, 96
    %v9965 = vpop.permute.xlu0 %9964
    %9966 = vrot.lane.b32.xlu0 %v9790, 96
    %v9967 = vpop.permute.xlu0 %9966
    %9968 = vrot.lane.b32.xlu0 %v9791, 96
    %v9969 = vpop.permute.xlu0 %9968
    %9970 = vrot.lane.b32.xlu0 %v9792, 96
    %v9971 = vpop.permute.xlu0 %9970
    %9972 = vrot.lane.b32.xlu0 %v9793, 96
    %v9973 = vpop.permute.xlu0 %9972
    %9974 = vrot.lane.b32.xlu0 %v9794, 96
    %v9975 = vpop.permute.xlu0 %9974
    %9976 = vrot.lane.b32.xlu0 %v9795, 96
    %v9977 = vpop.permute.xlu0 %9976
    %9978 = vrot.lane.b32.xlu0 %v9796, 96
    %v9979 = vpop.permute.xlu0 %9978
    %9980 = vrot.lane.b32.xlu0 %v9797, 96
    %v9981 = vpop.permute.xlu0 %9980
    %9982 = vrot.lane.b32.xlu0 %v9798, 96
    %v9983 = vpop.permute.xlu0 %9982
    %9984 = vrot.lane.b32.xlu0 %v9799, 96
    %v9985 = vpop.permute.xlu0 %9984
    %9986 = vrot.lane.b32.xlu0 %v9800, 96
    %v9987 = vpop.permute.xlu0 %9986
    %9988 = vrot.lane.b32.xlu0 %v9801, 96
    %v9989 = vpop.permute.xlu0 %9988
    %9990 = vrot.lane.b32.xlu0 %v9802, 96
    %v9991 = vpop.permute.xlu0 %9990
    %9992 = vrot.lane.b32.xlu0 %v9803, 96
    %v9993 = vpop.permute.xlu0 %9992
    %9994 = vrot.lane.b32.xlu0 %v9804, 96
    %v9995 = vpop.permute.xlu0 %9994
    %9996 = vrot.lane.b32.xlu0 %v9805, 96
    %v9997 = vpop.permute.xlu0 %9996
    %v10062 = vadd.f32 %v9421, %v9871
    %v10063 = vadd.f32 %v9422, %v9873
    %v10064 = vadd.f32 %v9423, %v9875
    %v10065 = vadd.f32 %v9424, %v9877
    %v10066 = vadd.f32 %v9425, %v9879
    %v10067 = vadd.f32 %v9426, %v9881
    %v10068 = vadd.f32 %v9427, %v9883
    %v10069 = vadd.f32 %v9428, %v9885
    %v10070 = vadd.f32 %v9429, %v9887
    %v10071 = vadd.f32 %v9430, %v9889
    %v10072 = vadd.f32 %v9431, %v9891
    %v10073 = vadd.f32 %v9432, %v9893
    %v10074 = vadd.f32 %v9433, %v9895
    %v10075 = vadd.f32 %v9434, %v9897
    %v10076 = vadd.f32 %v9435, %v9899
    %v10077 = vadd.f32 %v9436, %v9901
    %v10078 = vadd.f32 %v9437, %v9903
    %v10079 = vadd.f32 %v9438, %v9905
    %v10080 = vadd.f32 %v9439, %v9907
    %v10081 = vadd.f32 %v9440, %v9909
    %v10082 = vadd.f32 %v9441, %v9911
    %v10083 = vadd.f32 %v9442, %v9913
    %v10084 = vadd.f32 %v9443, %v9915
    %v10085 = vadd.f32 %v9444, %v9917
    %v10086 = vadd.f32 %v9445, %v9919
    %v10087 = vadd.f32 %v9446, %v9921
    %v10088 = vadd.f32 %v9447, %v9923
    %v10089 = vadd.f32 %v9448, %v9925
    %v10090 = vadd.f32 %v9449, %v9927
    %v10091 = vadd.f32 %v9450, %v9929
    %v10092 = vadd.f32 %v9451, %v9931
    %v10093 = vadd.f32 %v9452, %v9933
    %v10094 = vadd.f32 %v9453, %v9935
    %v10095 = vadd.f32 %v9454, %v9937
    %v10096 = vadd.f32 %v9455, %v9939
    %v10097 = vadd.f32 %v9456, %v9941
    %v10098 = vadd.f32 %v9457, %v9943
    %v10099 = vadd.f32 %v9458, %v9945
    %v10100 = vadd.f32 %v9459, %v9947
    %v10101 = vadd.f32 %v9460, %v9949
    %v10102 = vadd.f32 %v9461, %v9951
    %v10103 = vadd.f32 %v9462, %v9953
    %v10104 = vadd.f32 %v9463, %v9955
    %v10105 = vadd.f32 %v9464, %v9957
    %v10106 = vadd.f32 %v9465, %v9959
    %v10107 = vadd.f32 %v9466, %v9961
    %v10108 = vadd.f32 %v9467, %v9963
    %v10109 = vadd.f32 %v9468, %v9965
    %v10110 = vadd.f32 %v9469, %v9967
    %v10111 = vadd.f32 %v9470, %v9969
    %v10112 = vadd.f32 %v9471, %v9971
    %v10113 = vadd.f32 %v9472, %v9973
    %v10114 = vadd.f32 %v9473, %v9975
    %v10115 = vadd.f32 %v9474, %v9977
    %v10116 = vadd.f32 %v9475, %v9979
    %v10117 = vadd.f32 %v9476, %v9981
    %v10118 = vadd.f32 %v9477, %v9983
    %v10119 = vadd.f32 %v9478, %v9985
    %v10120 = vadd.f32 %v9479, %v9987
    %v10121 = vadd.f32 %v9480, %v9989
    %v10122 = vadd.f32 %v9481, %v9991
    %v10123 = vadd.f32 %v9482, %v9993
    %v10124 = vadd.f32 %v9483, %v9995
    %v10125 = vadd.f32 %v9484, %v9997
    %v10126 = vrot.slane %v7358, 7
    %v10127 = vrot.slane %v7361, 7
    %v10128 = vsel %vm1610, %v10126, %v10127
    %v10129 = vrot.slane %v7364, 7
    %v10130 = vsel %vm1610, %v10127, %v10129
    %v10131 = vrot.slane %v7367, 7
    %v10132 = vsel %vm1610, %v10129, %v10131
    %v10133 = vrot.slane %v7370, 7
    %v10134 = vsel %vm1610, %v10131, %v10133
    %v10135 = vrot.slane %v7373, 7
    %v10136 = vsel %vm1610, %v10133, %v10135
    %v10137 = vrot.slane %v7376, 7
    %v10138 = vsel %vm1610, %v10135, %v10137
    %v10139 = vrot.slane %v7379, 7
    %v10140 = vsel %vm1610, %v10137, %v10139
    %v10141 = vrot.slane %v7382, 7
    %v10142 = vsel %vm1610, %v10139, %v10141
    %v10143 = vrot.slane %v7385, 7
    %v10144 = vsel %vm1610, %v10141, %v10143
    %v10145 = vrot.slane %v7388, 7
    %v10146 = vsel %vm1610, %v10143, %v10145
    %v10147 = vrot.slane %v7391, 7
    %v10148 = vsel %vm1610, %v10145, %v10147
    %v10149 = vrot.slane %v7394, 7
    %v10150 = vsel %vm1610, %v10147, %v10149
    %v10151 = vrot.slane %v7397, 7
    %v10152 = vsel %vm1610, %v10149, %v10151
    %v10153 = vrot.slane %v7400, 7
    %v10154 = vsel %vm1610, %v10151, %v10153
    %v10155 = vrot.slane %v7403, 7
    %v10156 = vsel %vm1610, %v10153, %v10155
    %v10157 = vrot.slane %v7406, 7
    %v10158 = vsel %vm1610, %v10155, %v10157
    %v10159 = vrot.slane %v7409, 7
    %v10160 = vsel %vm1610, %v10157, %v10159
    %v10161 = vrot.slane %v7412, 7
    %v10162 = vsel %vm1610, %v10159, %v10161
    %v10163 = vrot.slane %v7415, 7
    %v10164 = vsel %vm1610, %v10161, %v10163
    %v10165 = vrot.slane %v7418, 7
    %v10166 = vsel %vm1610, %v10163, %v10165
    %v10167 = vrot.slane %v7421, 7
    %v10168 = vsel %vm1610, %v10165, %v10167
    %v10169 = vrot.slane %v7424, 7
    %v10170 = vsel %vm1610, %v10167, %v10169
    %v10171 = vrot.slane %v7427, 7
    %v10172 = vsel %vm1610, %v10169, %v10171
    %v10173 = vrot.slane %v7430, 7
    %v10174 = vsel %vm1610, %v10171, %v10173
    %v10175 = vrot.slane %v7433, 7
    %v10176 = vsel %vm1610, %v10173, %v10175
    %v10177 = vrot.slane %v7436, 7
    %v10178 = vsel %vm1610, %v10175, %v10177
    %v10179 = vrot.slane %v7439, 7
    %v10180 = vsel %vm1610, %v10177, %v10179
    %v10181 = vrot.slane %v7442, 7
    %v10182 = vsel %vm1610, %v10179, %v10181
    %v10183 = vrot.slane %v7445, 7
    %v10184 = vsel %vm1610, %v10181, %v10183
    %v10185 = vrot.slane %v7448, 7
    %v10186 = vsel %vm1610, %v10183, %v10185
    %v10187 = vrot.slane %v7451, 7
    %v10188 = vsel %vm1610, %v10185, %v10187
    %v10189 = vrot.slane %v7454, 7
    %v10190 = vsel %vm1610, %v10187, %v10189
    %v10191 = vrot.slane %v7457, 7
    %v10192 = vsel %vm1610, %v10189, %v10191
    %v10193 = vrot.slane %v7460, 7
    %v10194 = vsel %vm1610, %v10191, %v10193
    %v10195 = vrot.slane %v7463, 7
    %v10196 = vsel %vm1610, %v10193, %v10195
    %v10197 = vrot.slane %v7466, 7
    %v10198 = vsel %vm1610, %v10195, %v10197
    %v10199 = vrot.slane %v7469, 7
    %v10200 = vsel %vm1610, %v10197, %v10199
    %v10201 = vrot.slane %v7472, 7
    %v10202 = vsel %vm1610, %v10199, %v10201
    %v10203 = vrot.slane %v7475, 7
    %v10204 = vsel %vm1610, %v10201, %v10203
    %v10205 = vrot.slane %v7478, 7
    %v10206 = vsel %vm1610, %v10203, %v10205
    %v10207 = vrot.slane %v7481, 7
    %v10208 = vsel %vm1610, %v10205, %v10207
    %v10209 = vrot.slane %v7484, 7
    %v10210 = vsel %vm1610, %v10207, %v10209
    %v10211 = vrot.slane %v7487, 7
    %v10212 = vsel %vm1610, %v10209, %v10211
    %v10213 = vrot.slane %v7490, 7
    %v10214 = vsel %vm1610, %v10211, %v10213
    %v10215 = vrot.slane %v7493, 7
    %v10216 = vsel %vm1610, %v10213, %v10215
    %v10217 = vrot.slane %v7496, 7
    %v10218 = vsel %vm1610, %v10215, %v10217
    %v10219 = vrot.slane %v7499, 7
    %v10220 = vsel %vm1610, %v10217, %v10219
    %v10221 = vrot.slane %v7502, 7
    %v10222 = vsel %vm1610, %v10219, %v10221
    %v10223 = vrot.slane %v7505, 7
    %v10224 = vsel %vm1610, %v10221, %v10223
    %v10225 = vrot.slane %v7508, 7
    %v10226 = vsel %vm1610, %v10223, %v10225
    %v10227 = vrot.slane %v7511, 7
    %v10228 = vsel %vm1610, %v10225, %v10227
    %v10229 = vrot.slane %v7514, 7
    %v10230 = vsel %vm1610, %v10227, %v10229
    %v10231 = vrot.slane %v7517, 7
    %v10232 = vsel %vm1610, %v10229, %v10231
    %v10233 = vrot.slane %v7520, 7
    %v10234 = vsel %vm1610, %v10231, %v10233
    %v10235 = vrot.slane %v7523, 7
    %v10236 = vsel %vm1610, %v10233, %v10235
    %v10237 = vrot.slane %v7526, 7
    %v10238 = vsel %vm1610, %v10235, %v10237
    %v10239 = vrot.slane %v7529, 7
    %v10240 = vsel %vm1610, %v10237, %v10239
    %v10241 = vrot.slane %v7532, 7
    %v10242 = vsel %vm1610, %v10239, %v10241
    %v10243 = vrot.slane %v7535, 7
    %v10244 = vsel %vm1610, %v10241, %v10243
    %v10245 = vrot.slane %v7538, 7
    %v10246 = vsel %vm1610, %v10243, %v10245
    %v10247 = vrot.slane %v7541, 7
    %v10248 = vsel %vm1610, %v10245, %v10247
    %v10249 = vrot.slane %v7544, 7
    %v10250 = vsel %vm1610, %v10247, %v10249
    %v10314 = vrot.slane %v7355, 7
    %v10315 = vsel %vm1610, %v10314, %v10126
    %v10318 = vsel %vm1610, %v10249, %v10314
    %v10319 = vsel %vm4875, %v10128, 0.0
    %v10320 = vsel %vm4876, %v10130, 0.0
    %v10321 = vsel %vm4877, %v10132, 0.0
    %v10322 = vsel %vm4878, %v10134, 0.0
    %v10323 = vsel %vm4879, %v10136, 0.0
    %v10324 = vsel %vm4880, %v10138, 0.0
    %v10325 = vsel %vm4881, %v10140, 0.0
    %v10326 = vsel %vm4882, %v10142, 0.0
    %v10327 = vsel %vm4883, %v10144, 0.0
    %v10328 = vsel %vm4884, %v10146, 0.0
    %v10329 = vsel %vm4885, %v10148, 0.0
    %v10330 = vsel %vm4886, %v10150, 0.0
    %v10331 = vsel %vm4887, %v10152, 0.0
    %v10332 = vsel %vm4888, %v10154, 0.0
    %v10333 = vsel %vm4889, %v10156, 0.0
    %v10334 = vsel %vm4890, %v10158, 0.0
    %v10335 = vsel %vm4891, %v10160, 0.0
    %v10336 = vsel %vm4892, %v10162, 0.0
    %v10337 = vsel %vm4893, %v10164, 0.0
    %v10338 = vsel %vm4894, %v10166, 0.0
    %v10339 = vsel %vm4895, %v10168, 0.0
    %v10340 = vsel %vm4896, %v10170, 0.0
    %v10341 = vsel %vm4897, %v10172, 0.0
    %v10342 = vsel %vm4898, %v10174, 0.0
    %v10343 = vsel %vm4899, %v10176, 0.0
    %v10344 = vsel %vm4900, %v10178, 0.0
    %v10345 = vsel %vm4901, %v10180, 0.0
    %v10346 = vsel %vm4902, %v10182, 0.0
    %v10347 = vsel %vm4903, %v10184, 0.0
    %v10348 = vsel %vm4904, %v10186, 0.0
    %v10349 = vsel %vm4905, %v10188, 0.0
    %v10350 = vsel %vm4906, %v10190, 0.0
    %v10351 = vsel %vm4907, %v10192, 0.0
    %v10352 = vsel %vm4908, %v10194, 0.0
    %v10353 = vsel %vm4909, %v10196, 0.0
    %v10354 = vsel %vm4910, %v10198, 0.0
    %v10355 = vsel %vm4911, %v10200, 0.0
    %v10356 = vsel %vm4912, %v10202, 0.0
    %v10357 = vsel %vm4913, %v10204, 0.0
    %v10358 = vsel %vm4914, %v10206, 0.0
    %v10359 = vsel %vm4915, %v10208, 0.0
    %v10360 = vsel %vm4916, %v10210, 0.0
    %v10361 = vsel %vm4917, %v10212, 0.0
    %v10362 = vsel %vm4918, %v10214, 0.0
    %v10363 = vsel %vm4919, %v10216, 0.0
    %v10364 = vsel %vm4920, %v10218, 0.0
    %v10365 = vsel %vm4921, %v10220, 0.0
    %v10366 = vsel %vm4922, %v10222, 0.0
    %v10367 = vsel %vm4923, %v10224, 0.0
    %v10368 = vsel %vm4924, %v10226, 0.0
    %v10369 = vsel %vm4925, %v10228, 0.0
    %v10370 = vsel %vm4926, %v10230, 0.0
    %v10371 = vsel %vm4927, %v10232, 0.0
    %v10372 = vsel %vm4928, %v10234, 0.0
    %v10373 = vsel %vm4929, %v10236, 0.0
    %v10374 = vsel %vm4930, %v10238, 0.0
    %v10375 = vsel %vm4931, %v10240, 0.0
    %v10376 = vsel %vm4932, %v10242, 0.0
    %v10377 = vsel %vm4933, %v10244, 0.0
    %v10378 = vsel %vm4934, %v10246, 0.0
    %v10379 = vsel %vm4935, %v10248, 0.0
    %v10380 = vsel %vm4936, %v10250, 0.0
    %v10381 = vsel %vm4937, %v10318, 0.0
    %v10382 = vsel %vm4938, %v10315, 0.0
    %10447 = vrot.lane.b32.xlu0 %v10319, 64
    %v10448 = vpop.permute.xlu0 %10447
    %10449 = vrot.lane.b32.xlu0 %v10320, 64
    %v10450 = vpop.permute.xlu0 %10449
    %10451 = vrot.lane.b32.xlu0 %v10321, 64
    %v10452 = vpop.permute.xlu0 %10451
    %10453 = vrot.lane.b32.xlu0 %v10322, 64
    %v10454 = vpop.permute.xlu0 %10453
    %10455 = vrot.lane.b32.xlu0 %v10323, 64
    %v10456 = vpop.permute.xlu0 %10455
    %10457 = vrot.lane.b32.xlu0 %v10324, 64
    %v10458 = vpop.permute.xlu0 %10457
    %10459 = vrot.lane.b32.xlu0 %v10325, 64
    %v10460 = vpop.permute.xlu0 %10459
    %10461 = vrot.lane.b32.xlu0 %v10326, 64
    %v10462 = vpop.permute.xlu0 %10461
    %10463 = vrot.lane.b32.xlu0 %v10327, 64
    %v10464 = vpop.permute.xlu0 %10463
    %10465 = vrot.lane.b32.xlu0 %v10328, 64
    %v10466 = vpop.permute.xlu0 %10465
    %10467 = vrot.lane.b32.xlu0 %v10329, 64
    %v10468 = vpop.permute.xlu0 %10467
    %10469 = vrot.lane.b32.xlu0 %v10330, 64
    %v10470 = vpop.permute.xlu0 %10469
    %10471 = vrot.lane.b32.xlu0 %v10331, 64
    %v10472 = vpop.permute.xlu0 %10471
    %10473 = vrot.lane.b32.xlu0 %v10332, 64
    %v10474 = vpop.permute.xlu0 %10473
    %10475 = vrot.lane.b32.xlu0 %v10333, 64
    %v10476 = vpop.permute.xlu0 %10475
    %10477 = vrot.lane.b32.xlu0 %v10334, 64
    %v10478 = vpop.permute.xlu0 %10477
    %10479 = vrot.lane.b32.xlu0 %v10335, 64
    %v10480 = vpop.permute.xlu0 %10479
    %10481 = vrot.lane.b32.xlu0 %v10336, 64
    %v10482 = vpop.permute.xlu0 %10481
    %10483 = vrot.lane.b32.xlu0 %v10337, 64
    %v10484 = vpop.permute.xlu0 %10483
    %10485 = vrot.lane.b32.xlu0 %v10338, 64
    %v10486 = vpop.permute.xlu0 %10485
    %10487 = vrot.lane.b32.xlu0 %v10339, 64
    %v10488 = vpop.permute.xlu0 %10487
    %10489 = vrot.lane.b32.xlu0 %v10340, 64
    %v10490 = vpop.permute.xlu0 %10489
    %10491 = vrot.lane.b32.xlu0 %v10341, 64
    %v10492 = vpop.permute.xlu0 %10491
    %10493 = vrot.lane.b32.xlu0 %v10342, 64
    %v10494 = vpop.permute.xlu0 %10493
    %10495 = vrot.lane.b32.xlu0 %v10343, 64
    %v10496 = vpop.permute.xlu0 %10495
    %10497 = vrot.lane.b32.xlu0 %v10344, 64
    %v10498 = vpop.permute.xlu0 %10497
    %10499 = vrot.lane.b32.xlu0 %v10345, 64
    %v10500 = vpop.permute.xlu0 %10499
    %10501 = vrot.lane.b32.xlu0 %v10346, 64
    %v10502 = vpop.permute.xlu0 %10501
    %10503 = vrot.lane.b32.xlu0 %v10347, 64
    %v10504 = vpop.permute.xlu0 %10503
    %10505 = vrot.lane.b32.xlu0 %v10348, 64
    %v10506 = vpop.permute.xlu0 %10505
    %10507 = vrot.lane.b32.xlu0 %v10349, 64
    %v10508 = vpop.permute.xlu0 %10507
    %10509 = vrot.lane.b32.xlu0 %v10350, 64
    %v10510 = vpop.permute.xlu0 %10509
    %10511 = vrot.lane.b32.xlu0 %v10351, 64
    %v10512 = vpop.permute.xlu0 %10511
    %10513 = vrot.lane.b32.xlu0 %v10352, 64
    %v10514 = vpop.permute.xlu0 %10513
    %10515 = vrot.lane.b32.xlu0 %v10353, 64
    %v10516 = vpop.permute.xlu0 %10515
    %10517 = vrot.lane.b32.xlu0 %v10354, 64
    %v10518 = vpop.permute.xlu0 %10517
    %10519 = vrot.lane.b32.xlu0 %v10355, 64
    %v10520 = vpop.permute.xlu0 %10519
    %10521 = vrot.lane.b32.xlu0 %v10356, 64
    %v10522 = vpop.permute.xlu0 %10521
    %10523 = vrot.lane.b32.xlu0 %v10357, 64
    %v10524 = vpop.permute.xlu0 %10523
    %10525 = vrot.lane.b32.xlu0 %v10358, 64
    %v10526 = vpop.permute.xlu0 %10525
    %10527 = vrot.lane.b32.xlu0 %v10359, 64
    %v10528 = vpop.permute.xlu0 %10527
    %10529 = vrot.lane.b32.xlu0 %v10360, 64
    %v10530 = vpop.permute.xlu0 %10529
    %10531 = vrot.lane.b32.xlu0 %v10361, 64
    %v10532 = vpop.permute.xlu0 %10531
    %10533 = vrot.lane.b32.xlu0 %v10362, 64
    %v10534 = vpop.permute.xlu0 %10533
    %10535 = vrot.lane.b32.xlu0 %v10363, 64
    %v10536 = vpop.permute.xlu0 %10535
    %10537 = vrot.lane.b32.xlu0 %v10364, 64
    %v10538 = vpop.permute.xlu0 %10537
    %10539 = vrot.lane.b32.xlu0 %v10365, 64
    %v10540 = vpop.permute.xlu0 %10539
    %10541 = vrot.lane.b32.xlu0 %v10366, 64
    %v10542 = vpop.permute.xlu0 %10541
    %10543 = vrot.lane.b32.xlu0 %v10367, 64
    %v10544 = vpop.permute.xlu0 %10543
    %10545 = vrot.lane.b32.xlu0 %v10368, 64
    %v10546 = vpop.permute.xlu0 %10545
    %10547 = vrot.lane.b32.xlu0 %v10369, 64
    %v10548 = vpop.permute.xlu0 %10547
    %10549 = vrot.lane.b32.xlu0 %v10370, 64
    %v10550 = vpop.permute.xlu0 %10549
    %10551 = vrot.lane.b32.xlu0 %v10371, 64
    %v10552 = vpop.permute.xlu0 %10551
    %10553 = vrot.lane.b32.xlu0 %v10372, 64
    %v10554 = vpop.permute.xlu0 %10553
    %10555 = vrot.lane.b32.xlu0 %v10373, 64
    %v10556 = vpop.permute.xlu0 %10555
    %10557 = vrot.lane.b32.xlu0 %v10374, 64
    %v10558 = vpop.permute.xlu0 %10557
    %10559 = vrot.lane.b32.xlu0 %v10375, 64
    %v10560 = vpop.permute.xlu0 %10559
    %10561 = vrot.lane.b32.xlu0 %v10376, 64
    %v10562 = vpop.permute.xlu0 %10561
    %10563 = vrot.lane.b32.xlu0 %v10377, 64
    %v10564 = vpop.permute.xlu0 %10563
    %10565 = vrot.lane.b32.xlu0 %v10378, 64
    %v10566 = vpop.permute.xlu0 %10565
    %10567 = vrot.lane.b32.xlu0 %v10379, 64
    %v10568 = vpop.permute.xlu0 %10567
    %10569 = vrot.lane.b32.xlu0 %v10380, 64
    %v10570 = vpop.permute.xlu0 %10569
    %10571 = vrot.lane.b32.xlu0 %v10381, 64
    %v10572 = vpop.permute.xlu0 %10571
    %10573 = vrot.lane.b32.xlu0 %v10382, 64
    %v10574 = vpop.permute.xlu0 %10573
    %v10639 = vadd.f32 %v10062, %v10448
    %v10640 = vadd.f32 %v10063, %v10450
    %v10641 = vadd.f32 %v10064, %v10452
    %v10642 = vadd.f32 %v10065, %v10454
    %v10643 = vadd.f32 %v10066, %v10456
    %v10644 = vadd.f32 %v10067, %v10458
    %v10645 = vadd.f32 %v10068, %v10460
    %v10646 = vadd.f32 %v10069, %v10462
    %v10647 = vadd.f32 %v10070, %v10464
    %v10648 = vadd.f32 %v10071, %v10466
    %v10649 = vadd.f32 %v10072, %v10468
    %v10650 = vadd.f32 %v10073, %v10470
    %v10651 = vadd.f32 %v10074, %v10472
    %v10652 = vadd.f32 %v10075, %v10474
    %v10653 = vadd.f32 %v10076, %v10476
    %v10654 = vadd.f32 %v10077, %v10478
    %v10655 = vadd.f32 %v10078, %v10480
    %v10656 = vadd.f32 %v10079, %v10482
    %v10657 = vadd.f32 %v10080, %v10484
    %v10658 = vadd.f32 %v10081, %v10486
    %v10659 = vadd.f32 %v10082, %v10488
    %v10660 = vadd.f32 %v10083, %v10490
    %v10661 = vadd.f32 %v10084, %v10492
    %v10662 = vadd.f32 %v10085, %v10494
    %v10663 = vadd.f32 %v10086, %v10496
    %v10664 = vadd.f32 %v10087, %v10498
    %v10665 = vadd.f32 %v10088, %v10500
    %v10666 = vadd.f32 %v10089, %v10502
    %v10667 = vadd.f32 %v10090, %v10504
    %v10668 = vadd.f32 %v10091, %v10506
    %v10669 = vadd.f32 %v10092, %v10508
    %v10670 = vadd.f32 %v10093, %v10510
    %v10671 = vadd.f32 %v10094, %v10512
    %v10672 = vadd.f32 %v10095, %v10514
    %v10673 = vadd.f32 %v10096, %v10516
    %v10674 = vadd.f32 %v10097, %v10518
    %v10675 = vadd.f32 %v10098, %v10520
    %v10676 = vadd.f32 %v10099, %v10522
    %v10677 = vadd.f32 %v10100, %v10524
    %v10678 = vadd.f32 %v10101, %v10526
    %v10679 = vadd.f32 %v10102, %v10528
    %v10680 = vadd.f32 %v10103, %v10530
    %v10681 = vadd.f32 %v10104, %v10532
    %v10682 = vadd.f32 %v10105, %v10534
    %v10683 = vadd.f32 %v10106, %v10536
    %v10684 = vadd.f32 %v10107, %v10538
    %v10685 = vadd.f32 %v10108, %v10540
    %v10686 = vadd.f32 %v10109, %v10542
    %v10687 = vadd.f32 %v10110, %v10544
    %v10688 = vadd.f32 %v10111, %v10546
    %v10689 = vadd.f32 %v10112, %v10548
    %v10690 = vadd.f32 %v10113, %v10550
    %v10691 = vadd.f32 %v10114, %v10552
    %v10692 = vadd.f32 %v10115, %v10554
    %v10693 = vadd.f32 %v10116, %v10556
    %v10694 = vadd.f32 %v10117, %v10558
    %v10695 = vadd.f32 %v10118, %v10560
    %v10696 = vadd.f32 %v10119, %v10562
    %v10697 = vadd.f32 %v10120, %v10564
    %v10698 = vadd.f32 %v10121, %v10566
    %v10699 = vadd.f32 %v10122, %v10568
    %v10700 = vadd.f32 %v10123, %v10570
    %v10701 = vadd.f32 %v10124, %v10572
    %v10702 = vadd.f32 %v10125, %v10574
    %v10703 = vsel %vm5387, %v7361, 0.0
    %v10704 = vsel %vm5388, %v7364, 0.0
    %v10705 = vsel %vm5389, %v7367, 0.0
    %v10706 = vsel %vm5390, %v7370, 0.0
    %v10707 = vsel %vm5391, %v7373, 0.0
    %v10708 = vsel %vm5392, %v7376, 0.0
    %v10709 = vsel %vm5393, %v7379, 0.0
    %v10710 = vsel %vm5394, %v7382, 0.0
    %v10711 = vsel %vm5395, %v7385, 0.0
    %v10712 = vsel %vm5396, %v7388, 0.0
    %v10713 = vsel %vm5397, %v7391, 0.0
    %v10714 = vsel %vm5398, %v7394, 0.0
    %v10715 = vsel %vm5399, %v7397, 0.0
    %v10716 = vsel %vm5400, %v7400, 0.0
    %v10717 = vsel %vm5401, %v7403, 0.0
    %v10718 = vsel %vm5402, %v7406, 0.0
    %v10719 = vsel %vm5403, %v7409, 0.0
    %v10720 = vsel %vm5404, %v7412, 0.0
    %v10721 = vsel %vm5405, %v7415, 0.0
    %v10722 = vsel %vm5406, %v7418, 0.0
    %v10723 = vsel %vm5407, %v7421, 0.0
    %v10724 = vsel %vm5408, %v7424, 0.0
    %v10725 = vsel %vm5409, %v7427, 0.0
    %v10726 = vsel %vm5410, %v7430, 0.0
    %v10727 = vsel %vm5411, %v7433, 0.0
    %v10728 = vsel %vm5412, %v7436, 0.0
    %v10729 = vsel %vm5413, %v7439, 0.0
    %v10730 = vsel %vm5414, %v7442, 0.0
    %v10731 = vsel %vm5415, %v7445, 0.0
    %v10732 = vsel %vm5416, %v7448, 0.0
    %v10733 = vsel %vm5417, %v7451, 0.0
    %v10734 = vsel %vm5418, %v7454, 0.0
    %v10735 = vsel %vm5419, %v7457, 0.0
    %v10736 = vsel %vm5420, %v7460, 0.0
    %v10737 = vsel %vm5421, %v7463, 0.0
    %v10738 = vsel %vm5422, %v7466, 0.0
    %v10739 = vsel %vm5423, %v7469, 0.0
    %v10740 = vsel %vm5424, %v7472, 0.0
    %v10741 = vsel %vm5425, %v7475, 0.0
    %v10742 = vsel %vm5426, %v7478, 0.0
    %v10743 = vsel %vm5427, %v7481, 0.0
    %v10744 = vsel %vm5428, %v7484, 0.0
    %v10745 = vsel %vm5429, %v7487, 0.0
    %v10746 = vsel %vm5430, %v7490, 0.0
    %v10747 = vsel %vm5431, %v7493, 0.0
    %v10748 = vsel %vm5432, %v7496, 0.0
    %v10749 = vsel %vm5433, %v7499, 0.0
    %v10750 = vsel %vm5434, %v7502, 0.0
    %v10751 = vsel %vm5435, %v7505, 0.0
    %v10752 = vsel %vm5436, %v7508, 0.0
    %v10753 = vsel %vm5437, %v7511, 0.0
    %v10754 = vsel %vm5438, %v7514, 0.0
    %v10755 = vsel %vm5439, %v7517, 0.0
    %v10756 = vsel %vm5440, %v7520, 0.0
    %v10757 = vsel %vm5441, %v7523, 0.0
    %v10758 = vsel %vm5442, %v7526, 0.0
    %v10759 = vsel %vm5443, %v7529, 0.0
    %v10760 = vsel %vm5444, %v7532, 0.0
    %v10761 = vsel %vm5445, %v7535, 0.0
    %v10762 = vsel %vm5446, %v7538, 0.0
    %v10763 = vsel %vm5447, %v7541, 0.0
    %v10764 = vsel %vm5448, %v7544, 0.0
    %v10765 = vsel %vm5449, %v7355, 0.0
    %v10766 = vsel %vm5450, %v7358, 0.0
    %10831 = vrot.lane.b32.xlu0 %v10703, 32
    %v10832 = vpop.permute.xlu0 %10831
    %10833 = vrot.lane.b32.xlu0 %v10704, 32
    %v10834 = vpop.permute.xlu0 %10833
    %10835 = vrot.lane.b32.xlu0 %v10705, 32
    %v10836 = vpop.permute.xlu0 %10835
    %10837 = vrot.lane.b32.xlu0 %v10706, 32
    %v10838 = vpop.permute.xlu0 %10837
    %10839 = vrot.lane.b32.xlu0 %v10707, 32
    %v10840 = vpop.permute.xlu0 %10839
    %10841 = vrot.lane.b32.xlu0 %v10708, 32
    %v10842 = vpop.permute.xlu0 %10841
    %10843 = vrot.lane.b32.xlu0 %v10709, 32
    %v10844 = vpop.permute.xlu0 %10843
    %10845 = vrot.lane.b32.xlu0 %v10710, 32
    %v10846 = vpop.permute.xlu0 %10845
    %10847 = vrot.lane.b32.xlu0 %v10711, 32
    %v10848 = vpop.permute.xlu0 %10847
    %10849 = vrot.lane.b32.xlu0 %v10712, 32
    %v10850 = vpop.permute.xlu0 %10849
    %10851 = vrot.lane.b32.xlu0 %v10713, 32
    %v10852 = vpop.permute.xlu0 %10851
    %10853 = vrot.lane.b32.xlu0 %v10714, 32
    %v10854 = vpop.permute.xlu0 %10853
    %10855 = vrot.lane.b32.xlu0 %v10715, 32
    %v10856 = vpop.permute.xlu0 %10855
    %10857 = vrot.lane.b32.xlu0 %v10716, 32
    %v10858 = vpop.permute.xlu0 %10857
    %10859 = vrot.lane.b32.xlu0 %v10717, 32
    %v10860 = vpop.permute.xlu0 %10859
    %10861 = vrot.lane.b32.xlu0 %v10718, 32
    %v10862 = vpop.permute.xlu0 %10861
    %10863 = vrot.lane.b32.xlu0 %v10719, 32
    %v10864 = vpop.permute.xlu0 %10863
    %10865 = vrot.lane.b32.xlu0 %v10720, 32
    %v10866 = vpop.permute.xlu0 %10865
    %10867 = vrot.lane.b32.xlu0 %v10721, 32
    %v10868 = vpop.permute.xlu0 %10867
    %10869 = vrot.lane.b32.xlu0 %v10722, 32
    %v10870 = vpop.permute.xlu0 %10869
    %10871 = vrot.lane.b32.xlu0 %v10723, 32
    %v10872 = vpop.permute.xlu0 %10871
    %10873 = vrot.lane.b32.xlu0 %v10724, 32
    %v10874 = vpop.permute.xlu0 %10873
    %10875 = vrot.lane.b32.xlu0 %v10725, 32
    %v10876 = vpop.permute.xlu0 %10875
    %10877 = vrot.lane.b32.xlu0 %v10726, 32
    %v10878 = vpop.permute.xlu0 %10877
    %10879 = vrot.lane.b32.xlu0 %v10727, 32
    %v10880 = vpop.permute.xlu0 %10879
    %10881 = vrot.lane.b32.xlu0 %v10728, 32
    %v10882 = vpop.permute.xlu0 %10881
    %10883 = vrot.lane.b32.xlu0 %v10729, 32
    %v10884 = vpop.permute.xlu0 %10883
    %10885 = vrot.lane.b32.xlu0 %v10730, 32
    %v10886 = vpop.permute.xlu0 %10885
    %10887 = vrot.lane.b32.xlu0 %v10731, 32
    %v10888 = vpop.permute.xlu0 %10887
    %10889 = vrot.lane.b32.xlu0 %v10732, 32
    %v10890 = vpop.permute.xlu0 %10889
    %10891 = vrot.lane.b32.xlu0 %v10733, 32
    %v10892 = vpop.permute.xlu0 %10891
    %10893 = vrot.lane.b32.xlu0 %v10734, 32
    %v10894 = vpop.permute.xlu0 %10893
    %10895 = vrot.lane.b32.xlu0 %v10735, 32
    %v10896 = vpop.permute.xlu0 %10895
    %10897 = vrot.lane.b32.xlu0 %v10736, 32
    %v10898 = vpop.permute.xlu0 %10897
    %10899 = vrot.lane.b32.xlu0 %v10737, 32
    %v10900 = vpop.permute.xlu0 %10899
    %10901 = vrot.lane.b32.xlu0 %v10738, 32
    %v10902 = vpop.permute.xlu0 %10901
    %10903 = vrot.lane.b32.xlu0 %v10739, 32
    %v10904 = vpop.permute.xlu0 %10903
    %10905 = vrot.lane.b32.xlu0 %v10740, 32
    %v10906 = vpop.permute.xlu0 %10905
    %10907 = vrot.lane.b32.xlu0 %v10741, 32
    %v10908 = vpop.permute.xlu0 %10907
    %10909 = vrot.lane.b32.xlu0 %v10742, 32
    %v10910 = vpop.permute.xlu0 %10909
    %10911 = vrot.lane.b32.xlu0 %v10743, 32
    %v10912 = vpop.permute.xlu0 %10911
    %10913 = vrot.lane.b32.xlu0 %v10744, 32
    %v10914 = vpop.permute.xlu0 %10913
    %10915 = vrot.lane.b32.xlu0 %v10745, 32
    %v10916 = vpop.permute.xlu0 %10915
    %10917 = vrot.lane.b32.xlu0 %v10746, 32
    %v10918 = vpop.permute.xlu0 %10917
    %10919 = vrot.lane.b32.xlu0 %v10747, 32
    %v10920 = vpop.permute.xlu0 %10919
    %10921 = vrot.lane.b32.xlu0 %v10748, 32
    %v10922 = vpop.permute.xlu0 %10921
    %10923 = vrot.lane.b32.xlu0 %v10749, 32
    %v10924 = vpop.permute.xlu0 %10923
    %10925 = vrot.lane.b32.xlu0 %v10750, 32
    %v10926 = vpop.permute.xlu0 %10925
    %10927 = vrot.lane.b32.xlu0 %v10751, 32
    %v10928 = vpop.permute.xlu0 %10927
    %10929 = vrot.lane.b32.xlu0 %v10752, 32
    %v10930 = vpop.permute.xlu0 %10929
    %10931 = vrot.lane.b32.xlu0 %v10753, 32
    %v10932 = vpop.permute.xlu0 %10931
    %10933 = vrot.lane.b32.xlu0 %v10754, 32
    %v10934 = vpop.permute.xlu0 %10933
    %10935 = vrot.lane.b32.xlu0 %v10755, 32
    %v10936 = vpop.permute.xlu0 %10935
    %10937 = vrot.lane.b32.xlu0 %v10756, 32
    %v10938 = vpop.permute.xlu0 %10937
    %10939 = vrot.lane.b32.xlu0 %v10757, 32
    %v10940 = vpop.permute.xlu0 %10939
    %10941 = vrot.lane.b32.xlu0 %v10758, 32
    %v10942 = vpop.permute.xlu0 %10941
    %10943 = vrot.lane.b32.xlu0 %v10759, 32
    %v10944 = vpop.permute.xlu0 %10943
    %10945 = vrot.lane.b32.xlu0 %v10760, 32
    %v10946 = vpop.permute.xlu0 %10945
    %10947 = vrot.lane.b32.xlu0 %v10761, 32
    %v10948 = vpop.permute.xlu0 %10947
    %10949 = vrot.lane.b32.xlu0 %v10762, 32
    %v10950 = vpop.permute.xlu0 %10949
    %10951 = vrot.lane.b32.xlu0 %v10763, 32
    %v10952 = vpop.permute.xlu0 %10951
    %10953 = vrot.lane.b32.xlu0 %v10764, 32
    %v10954 = vpop.permute.xlu0 %10953
    %10955 = vrot.lane.b32.xlu0 %v10765, 32
    %v10956 = vpop.permute.xlu0 %10955
    %10957 = vrot.lane.b32.xlu0 %v10766, 32
    %v10958 = vpop.permute.xlu0 %10957
    %v11023 = vadd.f32 %v10639, %v10832
    %v11024 = vadd.f32 %v10640, %v10834
    %v11025 = vadd.f32 %v10641, %v10836
    %v11026 = vadd.f32 %v10642, %v10838
    %v11027 = vadd.f32 %v10643, %v10840
    %v11028 = vadd.f32 %v10644, %v10842
    %v11029 = vadd.f32 %v10645, %v10844
    %v11030 = vadd.f32 %v10646, %v10846
    %v11031 = vadd.f32 %v10647, %v10848
    %v11032 = vadd.f32 %v10648, %v10850
    %v11033 = vadd.f32 %v10649, %v10852
    %v11034 = vadd.f32 %v10650, %v10854
    %v11035 = vadd.f32 %v10651, %v10856
    %v11036 = vadd.f32 %v10652, %v10858
    %v11037 = vadd.f32 %v10653, %v10860
    %v11038 = vadd.f32 %v10654, %v10862
    %v11039 = vadd.f32 %v10655, %v10864
    %v11040 = vadd.f32 %v10656, %v10866
    %v11041 = vadd.f32 %v10657, %v10868
    %v11042 = vadd.f32 %v10658, %v10870
    %v11043 = vadd.f32 %v10659, %v10872
    %v11044 = vadd.f32 %v10660, %v10874
    %v11045 = vadd.f32 %v10661, %v10876
    %v11046 = vadd.f32 %v10662, %v10878
    %v11047 = vadd.f32 %v10663, %v10880
    %v11048 = vadd.f32 %v10664, %v10882
    %v11049 = vadd.f32 %v10665, %v10884
    %v11050 = vadd.f32 %v10666, %v10886
    %v11051 = vadd.f32 %v10667, %v10888
    %v11052 = vadd.f32 %v10668, %v10890
    %v11053 = vadd.f32 %v10669, %v10892
    %v11054 = vadd.f32 %v10670, %v10894
    %v11055 = vadd.f32 %v10671, %v10896
    %v11056 = vadd.f32 %v10672, %v10898
    %v11057 = vadd.f32 %v10673, %v10900
    %v11058 = vadd.f32 %v10674, %v10902
    %v11059 = vadd.f32 %v10675, %v10904
    %v11060 = vadd.f32 %v10676, %v10906
    %v11061 = vadd.f32 %v10677, %v10908
    %v11062 = vadd.f32 %v10678, %v10910
    %v11063 = vadd.f32 %v10679, %v10912
    %v11064 = vadd.f32 %v10680, %v10914
    %v11065 = vadd.f32 %v10681, %v10916
    %v11066 = vadd.f32 %v10682, %v10918
    %v11067 = vadd.f32 %v10683, %v10920
    %v11068 = vadd.f32 %v10684, %v10922
    %v11069 = vadd.f32 %v10685, %v10924
    %v11070 = vadd.f32 %v10686, %v10926
    %v11071 = vadd.f32 %v10687, %v10928
    %v11072 = vadd.f32 %v10688, %v10930
    %v11073 = vadd.f32 %v10689, %v10932
    %v11074 = vadd.f32 %v10690, %v10934
    %v11075 = vadd.f32 %v10691, %v10936
    %v11076 = vadd.f32 %v10692, %v10938
    %v11077 = vadd.f32 %v10693, %v10940
    %v11078 = vadd.f32 %v10694, %v10942
    %v11079 = vadd.f32 %v10695, %v10944
    %v11080 = vadd.f32 %v10696, %v10946
    %v11081 = vadd.f32 %v10697, %v10948
    %v11082 = vadd.f32 %v10698, %v10950
    %v11083 = vadd.f32 %v10699, %v10952
    %v11084 = vadd.f32 %v10700, %v10954
    %v11085 = vadd.f32 %v10701, %v10956
    %v11086 = vadd.f32 %v10702, %v10958
    %v11149 = vrot.slane %v7570, 1
    %v11150 = vrot.slane %v7573, 1
    %v11151 = vsel %vm2953, %v11149, %v11150
    %v11152 = vrot.slane %v7576, 1
    %v11153 = vsel %vm2953, %v11150, %v11152
    %v11154 = vrot.slane %v7579, 1
    %v11155 = vsel %vm2953, %v11152, %v11154
    %v11156 = vrot.slane %v7582, 1
    %v11157 = vsel %vm2953, %v11154, %v11156
    %v11158 = vrot.slane %v7585, 1
    %v11159 = vsel %vm2953, %v11156, %v11158
    %v11160 = vrot.slane %v7588, 1
    %v11161 = vsel %vm2953, %v11158, %v11160
    %v11162 = vrot.slane %v7591, 1
    %v11163 = vsel %vm2953, %v11160, %v11162
    %v11164 = vrot.slane %v7594, 1
    %v11165 = vsel %vm2953, %v11162, %v11164
    %v11166 = vrot.slane %v7597, 1
    %v11167 = vsel %vm2953, %v11164, %v11166
    %v11168 = vrot.slane %v7600, 1
    %v11169 = vsel %vm2953, %v11166, %v11168
    %v11170 = vrot.slane %v7603, 1
    %v11171 = vsel %vm2953, %v11168, %v11170
    %v11172 = vrot.slane %v7606, 1
    %v11173 = vsel %vm2953, %v11170, %v11172
    %v11174 = vrot.slane %v7609, 1
    %v11175 = vsel %vm2953, %v11172, %v11174
    %v11176 = vrot.slane %v7612, 1
    %v11177 = vsel %vm2953, %v11174, %v11176
    %v11178 = vrot.slane %v7615, 1
    %v11179 = vsel %vm2953, %v11176, %v11178
    %v11180 = vrot.slane %v7618, 1
    %v11181 = vsel %vm2953, %v11178, %v11180
    %v11182 = vrot.slane %v7621, 1
    %v11183 = vsel %vm2953, %v11180, %v11182
    %v11184 = vrot.slane %v7624, 1
    %v11185 = vsel %vm2953, %v11182, %v11184
    %v11186 = vrot.slane %v7627, 1
    %v11187 = vsel %vm2953, %v11184, %v11186
    %v11188 = vrot.slane %v7630, 1
    %v11189 = vsel %vm2953, %v11186, %v11188
    %v11190 = vrot.slane %v7633, 1
    %v11191 = vsel %vm2953, %v11188, %v11190
    %v11192 = vrot.slane %v7636, 1
    %v11193 = vsel %vm2953, %v11190, %v11192
    %v11194 = vrot.slane %v7639, 1
    %v11195 = vsel %vm2953, %v11192, %v11194
    %v11196 = vrot.slane %v7642, 1
    %v11197 = vsel %vm2953, %v11194, %v11196
    %v11198 = vrot.slane %v7645, 1
    %v11199 = vsel %vm2953, %v11196, %v11198
    %v11200 = vrot.slane %v7648, 1
    %v11201 = vsel %vm2953, %v11198, %v11200
    %v11202 = vrot.slane %v7651, 1
    %v11203 = vsel %vm2953, %v11200, %v11202
    %v11204 = vrot.slane %v7654, 1
    %v11205 = vsel %vm2953, %v11202, %v11204
    %v11206 = vrot.slane %v7657, 1
    %v11207 = vsel %vm2953, %v11204, %v11206
    %v11208 = vrot.slane %v7660, 1
    %v11209 = vsel %vm2953, %v11206, %v11208
    %v11210 = vrot.slane %v7663, 1
    %v11211 = vsel %vm2953, %v11208, %v11210
    %v11212 = vrot.slane %v7666, 1
    %v11213 = vsel %vm2953, %v11210, %v11212
    %v11214 = vrot.slane %v7669, 1
    %v11215 = vsel %vm2953, %v11212, %v11214
    %v11216 = vrot.slane %v7672, 1
    %v11217 = vsel %vm2953, %v11214, %v11216
    %v11218 = vrot.slane %v7675, 1
    %v11219 = vsel %vm2953, %v11216, %v11218
    %v11220 = vrot.slane %v7678, 1
    %v11221 = vsel %vm2953, %v11218, %v11220
    %v11222 = vrot.slane %v7681, 1
    %v11223 = vsel %vm2953, %v11220, %v11222
    %v11224 = vrot.slane %v7684, 1
    %v11225 = vsel %vm2953, %v11222, %v11224
    %v11226 = vrot.slane %v7687, 1
    %v11227 = vsel %vm2953, %v11224, %v11226
    %v11228 = vrot.slane %v7690, 1
    %v11229 = vsel %vm2953, %v11226, %v11228
    %v11230 = vrot.slane %v7693, 1
    %v11231 = vsel %vm2953, %v11228, %v11230
    %v11232 = vrot.slane %v7696, 1
    %v11233 = vsel %vm2953, %v11230, %v11232
    %v11234 = vrot.slane %v7699, 1
    %v11235 = vsel %vm2953, %v11232, %v11234
    %v11236 = vrot.slane %v7702, 1
    %v11237 = vsel %vm2953, %v11234, %v11236
    %v11238 = vrot.slane %v7705, 1
    %v11239 = vsel %vm2953, %v11236, %v11238
    %v11240 = vrot.slane %v7708, 1
    %v11241 = vsel %vm2953, %v11238, %v11240
    %v11242 = vrot.slane %v7711, 1
    %v11243 = vsel %vm2953, %v11240, %v11242
    %v11244 = vrot.slane %v7714, 1
    %v11245 = vsel %vm2953, %v11242, %v11244
    %v11246 = vrot.slane %v7717, 1
    %v11247 = vsel %vm2953, %v11244, %v11246
    %v11248 = vrot.slane %v7720, 1
    %v11249 = vsel %vm2953, %v11246, %v11248
    %v11250 = vrot.slane %v7723, 1
    %v11251 = vsel %vm2953, %v11248, %v11250
    %v11252 = vrot.slane %v7726, 1
    %v11253 = vsel %vm2953, %v11250, %v11252
    %v11254 = vrot.slane %v7729, 1
    %v11255 = vsel %vm2953, %v11252, %v11254
    %v11256 = vrot.slane %v7732, 1
    %v11257 = vsel %vm2953, %v11254, %v11256
    %v11258 = vrot.slane %v7735, 1
    %v11259 = vsel %vm2953, %v11256, %v11258
    %v11260 = vrot.slane %v7738, 1
    %v11261 = vsel %vm2953, %v11258, %v11260
    %v11262 = vrot.slane %v7741, 1
    %v11263 = vsel %vm2953, %v11260, %v11262
    %v11264 = vrot.slane %v7744, 1
    %v11265 = vsel %vm2953, %v11262, %v11264
    %v11266 = vrot.slane %v7747, 1
    %v11267 = vsel %vm2953, %v11264, %v11266
    %v11268 = vrot.slane %v7750, 1
    %v11269 = vsel %vm2953, %v11266, %v11268
    %v11270 = vrot.slane %v7753, 1
    %v11271 = vsel %vm2953, %v11268, %v11270
    %v11336 = vrot.slane %v7564, 1
    %v11337 = vrot.slane %v7567, 1
    %v11338 = vsel %vm2953, %v11336, %v11337
    %v11339 = vsel %vm2953, %v11337, %v11149
    %v11343 = vsel %vm2953, %v11270, %v11336
    %v11344 = vsel %vm6220, %v11151, 0.0
    %v11345 = vsel %vm6221, %v11153, 0.0
    %v11346 = vsel %vm6222, %v11155, 0.0
    %v11347 = vsel %vm6223, %v11157, 0.0
    %v11348 = vsel %vm6224, %v11159, 0.0
    %v11349 = vsel %vm6225, %v11161, 0.0
    %v11350 = vsel %vm6226, %v11163, 0.0
    %v11351 = vsel %vm6227, %v11165, 0.0
    %v11352 = vsel %vm6228, %v11167, 0.0
    %v11353 = vsel %vm6229, %v11169, 0.0
    %v11354 = vsel %vm6230, %v11171, 0.0
    %v11355 = vsel %vm6231, %v11173, 0.0
    %v11356 = vsel %vm6232, %v11175, 0.0
    %v11357 = vsel %vm6233, %v11177, 0.0
    %v11358 = vsel %vm6234, %v11179, 0.0
    %v11359 = vsel %vm6235, %v11181, 0.0
    %v11360 = vsel %vm6236, %v11183, 0.0
    %v11361 = vsel %vm6237, %v11185, 0.0
    %v11362 = vsel %vm6238, %v11187, 0.0
    %v11363 = vsel %vm6239, %v11189, 0.0
    %v11364 = vsel %vm6240, %v11191, 0.0
    %v11365 = vsel %vm6241, %v11193, 0.0
    %v11366 = vsel %vm6242, %v11195, 0.0
    %v11367 = vsel %vm6243, %v11197, 0.0
    %v11368 = vsel %vm6244, %v11199, 0.0
    %v11369 = vsel %vm6245, %v11201, 0.0
    %v11370 = vsel %vm6246, %v11203, 0.0
    %v11371 = vsel %vm6247, %v11205, 0.0
    %v11372 = vsel %vm6248, %v11207, 0.0
    %v11373 = vsel %vm6249, %v11209, 0.0
    %v11374 = vsel %vm6250, %v11211, 0.0
    %v11375 = vsel %vm6251, %v11213, 0.0
    %v11376 = vsel %vm6252, %v11215, 0.0
    %v11377 = vsel %vm6253, %v11217, 0.0
    %v11378 = vsel %vm6254, %v11219, 0.0
    %v11379 = vsel %vm6255, %v11221, 0.0
    %v11380 = vsel %vm6256, %v11223, 0.0
    %v11381 = vsel %vm6257, %v11225, 0.0
    %v11382 = vsel %vm6258, %v11227, 0.0
    %v11383 = vsel %vm6259, %v11229, 0.0
    %v11384 = vsel %vm6260, %v11231, 0.0
    %v11385 = vsel %vm6261, %v11233, 0.0
    %v11386 = vsel %vm6262, %v11235, 0.0
    %v11387 = vsel %vm6263, %v11237, 0.0
    %v11388 = vsel %vm6264, %v11239, 0.0
    %v11389 = vsel %vm6265, %v11241, 0.0
    %v11390 = vsel %vm6266, %v11243, 0.0
    %v11391 = vsel %vm6267, %v11245, 0.0
    %v11392 = vsel %vm6268, %v11247, 0.0
    %v11393 = vsel %vm6269, %v11249, 0.0
    %v11394 = vsel %vm6270, %v11251, 0.0
    %v11395 = vsel %vm6271, %v11253, 0.0
    %v11396 = vsel %vm6272, %v11255, 0.0
    %v11397 = vsel %vm6273, %v11257, 0.0
    %v11398 = vsel %vm6274, %v11259, 0.0
    %v11399 = vsel %vm6275, %v11261, 0.0
    %v11400 = vsel %vm6276, %v11263, 0.0
    %v11401 = vsel %vm6277, %v11265, 0.0
    %v11402 = vsel %vm6278, %v11267, 0.0
    %v11403 = vsel %vm6279, %v11269, 0.0
    %v11404 = vsel %vm6280, %v11271, 0.0
    %v11405 = vsel %vm6281, %v11343, 0.0
    %v11406 = vsel %vm6282, %v11338, 0.0
    %v11407 = vsel %vm6283, %v11339, 0.0
    %v11408 = vadd.f32 %v11023, %v11344
    %v11409 = vadd.f32 %v11024, %v11345
    %v11410 = vadd.f32 %v11025, %v11346
    %v11411 = vadd.f32 %v11026, %v11347
    %v11412 = vadd.f32 %v11027, %v11348
    %v11413 = vadd.f32 %v11028, %v11349
    %v11414 = vadd.f32 %v11029, %v11350
    %v11415 = vadd.f32 %v11030, %v11351
    %v11416 = vadd.f32 %v11031, %v11352
    %v11417 = vadd.f32 %v11032, %v11353
    %v11418 = vadd.f32 %v11033, %v11354
    %v11419 = vadd.f32 %v11034, %v11355
    %v11420 = vadd.f32 %v11035, %v11356
    %v11421 = vadd.f32 %v11036, %v11357
    %v11422 = vadd.f32 %v11037, %v11358
    %v11423 = vadd.f32 %v11038, %v11359
    %v11424 = vadd.f32 %v11039, %v11360
    %v11425 = vadd.f32 %v11040, %v11361
    %v11426 = vadd.f32 %v11041, %v11362
    %v11427 = vadd.f32 %v11042, %v11363
    %v11428 = vadd.f32 %v11043, %v11364
    %v11429 = vadd.f32 %v11044, %v11365
    %v11430 = vadd.f32 %v11045, %v11366
    %v11431 = vadd.f32 %v11046, %v11367
    %v11432 = vadd.f32 %v11047, %v11368
    %v11433 = vadd.f32 %v11048, %v11369
    %v11434 = vadd.f32 %v11049, %v11370
    %v11435 = vadd.f32 %v11050, %v11371
    %v11436 = vadd.f32 %v11051, %v11372
    %v11437 = vadd.f32 %v11052, %v11373
    %v11438 = vadd.f32 %v11053, %v11374
    %v11439 = vadd.f32 %v11054, %v11375
    %v11440 = vadd.f32 %v11055, %v11376
    %v11441 = vadd.f32 %v11056, %v11377
    %v11442 = vadd.f32 %v11057, %v11378
    %v11443 = vadd.f32 %v11058, %v11379
    %v11444 = vadd.f32 %v11059, %v11380
    %v11445 = vadd.f32 %v11060, %v11381
    %v11446 = vadd.f32 %v11061, %v11382
    %v11447 = vadd.f32 %v11062, %v11383
    %v11448 = vadd.f32 %v11063, %v11384
    %v11449 = vadd.f32 %v11064, %v11385
    %v11450 = vadd.f32 %v11065, %v11386
    %v11451 = vadd.f32 %v11066, %v11387
    %v11452 = vadd.f32 %v11067, %v11388
    %v11453 = vadd.f32 %v11068, %v11389
    %v11454 = vadd.f32 %v11069, %v11390
    %v11455 = vadd.f32 %v11070, %v11391
    %v11456 = vadd.f32 %v11071, %v11392
    %v11457 = vadd.f32 %v11072, %v11393
    %v11458 = vadd.f32 %v11073, %v11394
    %v11459 = vadd.f32 %v11074, %v11395
    %v11460 = vadd.f32 %v11075, %v11396
    %v11461 = vadd.f32 %v11076, %v11397
    %v11462 = vadd.f32 %v11077, %v11398
    %v11463 = vadd.f32 %v11078, %v11399
    %v11464 = vadd.f32 %v11079, %v11400
    %v11465 = vadd.f32 %v11080, %v11401
    %v11466 = vadd.f32 %v11081, %v11402
    %v11467 = vadd.f32 %v11082, %v11403
    %v11468 = vadd.f32 %v11083, %v11404
    %v11469 = vadd.f32 %v11084, %v11405
    %v11470 = vadd.f32 %v11085, %v11406
    %v11471 = vadd.f32 %v11086, %v11407
    %v11472 = vld [vmem:[%s1 + $0xa9] ss:$0 sm:$0xff]
    %v11473 = vadd.f32 %v11408, %v11472
    %v11474 = vadd.f32 %v11409, %v11472
    %v11475 = vadd.f32 %v11410, %v11472
    %v11476 = vadd.f32 %v11411, %v11472
    %v11477 = vadd.f32 %v11412, %v11472
    %v11478 = vadd.f32 %v11413, %v11472
    %v11479 = vadd.f32 %v11414, %v11472
    %v11480 = vadd.f32 %v11415, %v11472
    %v11481 = vadd.f32 %v11416, %v11472
    %v11482 = vadd.f32 %v11417, %v11472
    %v11483 = vadd.f32 %v11418, %v11472
    %v11484 = vadd.f32 %v11419, %v11472
    %v11485 = vadd.f32 %v11420, %v11472
    %v11486 = vadd.f32 %v11421, %v11472
    %v11487 = vadd.f32 %v11422, %v11472
    %v11488 = vadd.f32 %v11423, %v11472
    %v11489 = vadd.f32 %v11424, %v11472
    %v11490 = vadd.f32 %v11425, %v11472
    %v11491 = vadd.f32 %v11426, %v11472
    %v11492 = vadd.f32 %v11427, %v11472
    %v11493 = vadd.f32 %v11428, %v11472
    %v11494 = vadd.f32 %v11429, %v11472
    %v11495 = vadd.f32 %v11430, %v11472
    %v11496 = vadd.f32 %v11431, %v11472
    %v11497 = vadd.f32 %v11432, %v11472
    %v11498 = vadd.f32 %v11433, %v11472
    %v11499 = vadd.f32 %v11434, %v11472
    %v11500 = vadd.f32 %v11435, %v11472
    %v11501 = vadd.f32 %v11436, %v11472
    %v11502 = vadd.f32 %v11437, %v11472
    %v11503 = vadd.f32 %v11438, %v11472
    %v11504 = vadd.f32 %v11439, %v11472
    %v11505 = vadd.f32 %v11440, %v11472
    %v11506 = vadd.f32 %v11441, %v11472
    %v11507 = vadd.f32 %v11442, %v11472
    %v11508 = vadd.f32 %v11443, %v11472
    %v11509 = vadd.f32 %v11444, %v11472
    %v11510 = vadd.f32 %v11445, %v11472
    %v11511 = vadd.f32 %v11446, %v11472
    %v11512 = vadd.f32 %v11447, %v11472
    %v11513 = vadd.f32 %v11448, %v11472
    %v11514 = vadd.f32 %v11449, %v11472
    %v11515 = vadd.f32 %v11450, %v11472
    %v11516 = vadd.f32 %v11451, %v11472
    %v11517 = vadd.f32 %v11452, %v11472
    %v11518 = vadd.f32 %v11453, %v11472
    %v11519 = vadd.f32 %v11454, %v11472
    %v11520 = vadd.f32 %v11455, %v11472
    %v11521 = vadd.f32 %v11456, %v11472
    %v11522 = vadd.f32 %v11457, %v11472
    %v11523 = vadd.f32 %v11458, %v11472
    %v11524 = vadd.f32 %v11459, %v11472
    %v11525 = vadd.f32 %v11460, %v11472
    %v11526 = vadd.f32 %v11461, %v11472
    %v11527 = vadd.f32 %v11462, %v11472
    %v11528 = vadd.f32 %v11463, %v11472
    %v11529 = vadd.f32 %v11464, %v11472
    %v11530 = vadd.f32 %v11465, %v11472
    %v11531 = vadd.f32 %v11466, %v11472
    %v11532 = vadd.f32 %v11467, %v11472
    %v11533 = vadd.f32 %v11468, %v11472
    %v11534 = vadd.f32 %v11469, %v11472
    %v11535 = vadd.f32 %v11470, %v11472
    %v11536 = vadd.f32 %v11471, %v11472
    %v11537 = vmax.f32 %v11473, 0.0
    %v11538 = vmax.f32 %v11474, 0.0
    %v11539 = vmax.f32 %v11475, 0.0
    %v11540 = vmax.f32 %v11476, 0.0
    %v11541 = vmax.f32 %v11477, 0.0
    %v11542 = vmax.f32 %v11478, 0.0
    %v11543 = vmax.f32 %v11479, 0.0
    %v11544 = vmax.f32 %v11480, 0.0
    %v11545 = vmax.f32 %v11481, 0.0
    %v11546 = vmax.f32 %v11482, 0.0
    %v11547 = vmax.f32 %v11483, 0.0
    %v11548 = vmax.f32 %v11484, 0.0
    %v11549 = vmax.f32 %v11485, 0.0
    %v11550 = vmax.f32 %v11486, 0.0
    %v11551 = vmax.f32 %v11487, 0.0
    %v11552 = vmax.f32 %v11488, 0.0
    %v11553 = vmax.f32 %v11489, 0.0
    %v11554 = vmax.f32 %v11490, 0.0
    %v11555 = vmax.f32 %v11491, 0.0
    %v11556 = vmax.f32 %v11492, 0.0
    %v11557 = vmax.f32 %v11493, 0.0
    %v11558 = vmax.f32 %v11494, 0.0
    %v11559 = vmax.f32 %v11495, 0.0
    %v11560 = vmax.f32 %v11496, 0.0
    %v11561 = vmax.f32 %v11497, 0.0
    %v11562 = vmax.f32 %v11498, 0.0
    %v11563 = vmax.f32 %v11499, 0.0
    %v11564 = vmax.f32 %v11500, 0.0
    %v11565 = vmax.f32 %v11501, 0.0
    %v11566 = vmax.f32 %v11502, 0.0
    %v11567 = vmax.f32 %v11503, 0.0
    %v11568 = vmax.f32 %v11504, 0.0
    %v11569 = vmax.f32 %v11505, 0.0
    %v11570 = vmax.f32 %v11506, 0.0
    %v11571 = vmax.f32 %v11507, 0.0
    %v11572 = vmax.f32 %v11508, 0.0
    %v11573 = vmax.f32 %v11509, 0.0
    %v11574 = vmax.f32 %v11510, 0.0
    %v11575 = vmax.f32 %v11511, 0.0
    %v11576 = vmax.f32 %v11512, 0.0
    %v11577 = vmax.f32 %v11513, 0.0
    %v11578 = vmax.f32 %v11514, 0.0
    %v11579 = vmax.f32 %v11515, 0.0
    %v11580 = vmax.f32 %v11516, 0.0
    %v11581 = vmax.f32 %v11517, 0.0
    %v11582 = vmax.f32 %v11518, 0.0
    %v11583 = vmax.f32 %v11519, 0.0
    %v11584 = vmax.f32 %v11520, 0.0
    %v11585 = vmax.f32 %v11521, 0.0
    %v11586 = vmax.f32 %v11522, 0.0
    %v11587 = vmax.f32 %v11523, 0.0
    %v11588 = vmax.f32 %v11524, 0.0
    %v11589 = vmax.f32 %v11525, 0.0
    %v11590 = vmax.f32 %v11526, 0.0
    %v11591 = vmax.f32 %v11527, 0.0
    %v11592 = vmax.f32 %v11528, 0.0
    %v11593 = vmax.f32 %v11529, 0.0
    %v11594 = vmax.f32 %v11530, 0.0
    %v11595 = vmax.f32 %v11531, 0.0
    %v11596 = vmax.f32 %v11532, 0.0
    %v11597 = vmax.f32 %v11533, 0.0
    %v11598 = vmax.f32 %v11534, 0.0
    %v11599 = vmax.f32 %v11535, 0.0
    %v11600 = vmax.f32 %v11536, 0.0
    %vm11601 = vcmask 261120
    %v11602 = vsel %vm11601, %v11537, 0.0
    %v11603 = vsel %vm11601, %v11538, 0.0
    %v11604 = vadd.f32 %v11602, %v11603
    %v11605 = vsel %vm11601, %v11539, 0.0
    %v11606 = vadd.f32 %v11604, %v11605
    %v11607 = vsel %vm11601, %v11540, 0.0
    %v11608 = vadd.f32 %v11606, %v11607
    %v11609 = vsel %vm11601, %v11541, 0.0
    %v11610 = vadd.f32 %v11608, %v11609
    %v11611 = vsel %vm11601, %v11542, 0.0
    %v11612 = vadd.f32 %v11610, %v11611
    %v11613 = vsel %vm11601, %v11543, 0.0
    %v11614 = vadd.f32 %v11612, %v11613
    %v11615 = vsel %vm11601, %v11544, 0.0
    %v11616 = vadd.f32 %v11614, %v11615
    %v11617 = vsel %vm11601, %v11545, 0.0
    %v11618 = vadd.f32 %v11616, %v11617
    %v11619 = vsel %vm11601, %v11546, 0.0
    %v11620 = vadd.f32 %v11618, %v11619
    %v11621 = vsel %vm11601, %v11547, 0.0
    %v11622 = vadd.f32 %v11620, %v11621
    %v11623 = vsel %vm11601, %v11548, 0.0
    %v11624 = vadd.f32 %v11622, %v11623
    %v11625 = vsel %vm11601, %v11549, 0.0
    %v11626 = vadd.f32 %v11624, %v11625
    %v11627 = vsel %vm11601, %v11550, 0.0
    %v11628 = vadd.f32 %v11626, %v11627
    %v11629 = vsel %vm11601, %v11551, 0.0
    %v11630 = vadd.f32 %v11628, %v11629
    %v11631 = vsel %vm11601, %v11552, 0.0
    %v11632 = vadd.f32 %v11630, %v11631
    %v11633 = vsel %vm11601, %v11553, 0.0
    %v11634 = vadd.f32 %v11632, %v11633
    %v11635 = vsel %vm11601, %v11554, 0.0
    %v11636 = vadd.f32 %v11634, %v11635
    %v11637 = vsel %vm11601, %v11555, 0.0
    %v11638 = vadd.f32 %v11636, %v11637
    %v11639 = vsel %vm11601, %v11556, 0.0
    %v11640 = vadd.f32 %v11638, %v11639
    %v11641 = vsel %vm11601, %v11557, 0.0
    %v11642 = vadd.f32 %v11640, %v11641
    %v11643 = vsel %vm11601, %v11558, 0.0
    %v11644 = vadd.f32 %v11642, %v11643
    %v11645 = vsel %vm11601, %v11559, 0.0
    %v11646 = vadd.f32 %v11644, %v11645
    %v11647 = vsel %vm11601, %v11560, 0.0
    %v11648 = vadd.f32 %v11646, %v11647
    %v11649 = vsel %vm11601, %v11561, 0.0
    %v11650 = vadd.f32 %v11648, %v11649
    %v11651 = vsel %vm11601, %v11562, 0.0
    %v11652 = vadd.f32 %v11650, %v11651
    %v11653 = vsel %vm11601, %v11563, 0.0
    %v11654 = vadd.f32 %v11652, %v11653
    %v11655 = vsel %vm11601, %v11564, 0.0
    %v11656 = vadd.f32 %v11654, %v11655
    %v11657 = vsel %vm11601, %v11565, 0.0
    %v11658 = vadd.f32 %v11656, %v11657
    %v11659 = vsel %vm11601, %v11566, 0.0
    %v11660 = vadd.f32 %v11658, %v11659
    %v11661 = vsel %vm11601, %v11567, 0.0
    %v11662 = vadd.f32 %v11660, %v11661
    %v11663 = vsel %vm11601, %v11568, 0.0
    %v11664 = vadd.f32 %v11662, %v11663
    %v11665 = vrot.slane %v11664, 4
    %v11666 = vadd.f32 %v11664, %v11665
    %v11667 = vrot.slane %v11666, 2
    %v11668 = vadd.f32 %v11666, %v11667
    %v11669 = vrot.slane %v11668, 1
    %v11670 = vadd.f32 %v11668, %v11669
    %v11671 = vsel %vm11601, %v11569, 0.0
    %v11672 = vsel %vm11601, %v11570, 0.0
    %v11673 = vadd.f32 %v11671, %v11672
    %v11674 = vsel %vm11601, %v11571, 0.0
    %v11675 = vadd.f32 %v11673, %v11674
    %v11676 = vsel %vm11601, %v11572, 0.0
    %v11677 = vadd.f32 %v11675, %v11676
    %v11678 = vsel %vm11601, %v11573, 0.0
    %v11679 = vadd.f32 %v11677, %v11678
    %v11680 = vsel %vm11601, %v11574, 0.0
    %v11681 = vadd.f32 %v11679, %v11680
    %v11682 = vsel %vm11601, %v11575, 0.0
    %v11683 = vadd.f32 %v11681, %v11682
    %v11684 = vsel %vm11601, %v11576, 0.0
    %v11685 = vadd.f32 %v11683, %v11684
    %v11686 = vsel %vm11601, %v11577, 0.0
    %v11687 = vadd.f32 %v11685, %v11686
    %v11688 = vsel %vm11601, %v11578, 0.0
    %v11689 = vadd.f32 %v11687, %v11688
    %v11690 = vsel %vm11601, %v11579, 0.0
    %v11691 = vadd.f32 %v11689, %v11690
    %v11692 = vsel %vm11601, %v11580, 0.0
    %v11693 = vadd.f32 %v11691, %v11692
    %v11694 = vsel %vm11601, %v11581, 0.0
    %v11695 = vadd.f32 %v11693, %v11694
    %v11696 = vsel %vm11601, %v11582, 0.0
    %v11697 = vadd.f32 %v11695, %v11696
    %v11698 = vsel %vm11601, %v11583, 0.0
    %v11699 = vadd.f32 %v11697, %v11698
    %v11700 = vsel %vm11601, %v11584, 0.0
    %v11701 = vadd.f32 %v11699, %v11700
    %v11702 = vsel %vm11601, %v11585, 0.0
    %v11703 = vadd.f32 %v11701, %v11702
    %v11704 = vsel %vm11601, %v11586, 0.0
    %v11705 = vadd.f32 %v11703, %v11704
    %v11706 = vsel %vm11601, %v11587, 0.0
    %v11707 = vadd.f32 %v11705, %v11706
    %v11708 = vsel %vm11601, %v11588, 0.0
    %v11709 = vadd.f32 %v11707, %v11708
    %v11710 = vsel %vm11601, %v11589, 0.0
    %v11711 = vadd.f32 %v11709, %v11710
    %v11712 = vsel %vm11601, %v11590, 0.0
    %v11713 = vadd.f32 %v11711, %v11712
    %v11714 = vsel %vm11601, %v11591, 0.0
    %v11715 = vadd.f32 %v11713, %v11714
    %v11716 = vsel %vm11601, %v11592, 0.0
    %v11717 = vadd.f32 %v11715, %v11716
    %v11718 = vsel %vm11601, %v11593, 0.0
    %v11719 = vadd.f32 %v11717, %v11718
    %v11720 = vsel %vm11601, %v11594, 0.0
    %v11721 = vadd.f32 %v11719, %v11720
    %v11722 = vsel %vm11601, %v11595, 0.0
    %v11723 = vadd.f32 %v11721, %v11722
    %v11724 = vsel %vm11601, %v11596, 0.0
    %v11725 = vadd.f32 %v11723, %v11724
    %v11726 = vsel %vm11601, %v11597, 0.0
    %v11727 = vadd.f32 %v11725, %v11726
    %v11728 = vsel %vm11601, %v11598, 0.0
    %v11729 = vadd.f32 %v11727, %v11728
    %v11730 = vsel %vm11601, %v11599, 0.0
    %v11731 = vadd.f32 %v11729, %v11730
    %v11732 = vsel %vm11601, %v11600, 0.0
    %v11733 = vadd.f32 %v11731, %v11732
    %v11734 = vrot.slane %v11733, 4
    %v11735 = vadd.f32 %v11733, %v11734
    %v11736 = vrot.slane %v11735, 2
    %v11737 = vadd.f32 %v11735, %v11736
    %v11738 = vrot.slane %v11737, 1
    %v11739 = vadd.f32 %v11737, %v11738
    %v11740 = vsel %vm1610, %v11670, %v11739
    %v11741 = vld [vmem:[%s1 + $0x48] sm:$0xff]
    %v11742 = vld [vmem:[%s1 + $0x60] sm:$0xff]
    %v11743 = vld [vmem:[%s1 + $0x78] sm:$0xff]
    %v11744 = vld [vmem:[%s1 + $0x90] sm:$0xff]
    %v11745 = vld [vmem:[%s1 + $0xaa] ss:$0 sm:$0xff]
    %v11747 = vsel %vm11601, %v11740, 0
    %11749 = vmatpush.msra.mxu0 0.0
    %11750 = vmatpush.msra.mxu0 0.0
    %11751 = vmatpush.msra.mxu0 0.0
    %11752 = vmatpush.msra.mxu0 0.0
    %11753 = vmatpush.msra.mxu0 0.0
    %11754 = vmatpush.msra.mxu0 0.0
    %11755 = vmatpush.msra.mxu0 0.0
    %11756 = vmatpush.msra.mxu0 0.0
    %11757 = vmatpush.msra.mxu0 0.0
    %11758 = vmatpush.msra.mxu0 0.0
    %11759 = vmatpush.msra.mxu0 0.0
    %11760 = vmatpush.msra.mxu0 0.0
    %11761 = vmatpush.msra.mxu0 %v11744
    %11762 = vmatpush.msra.mxu0 %v11743
    %11763 = vmatpush.msra.mxu0 %v11742
    %11764 = vmatpush.msra.mxu0 %v11741
    %11765 = vmatmul.f32.gmra.mxu0 %v11747
    %v11766 = vpop.f32.mrf.mxu0
    %v11767 = vadd.f32 %v11745, %v11766
    %11768 = vdwg.mxu0
    %11769 = vst [vmem:[#allocation2] sm:$0x3] %v11767
    // Predicated region
    $region10: #{simplenet_forward.1} parent=1 // pred_check
      _
    $region11: #{simplenet_forward.1} parent=1 // pred_check_branch
      %11771 = sbr.rel (0) target = $region13
    $region12: #{simplenet_forward.1} parent=1 // pred_region
      %11773 = vsyncadd [#allocation3], 0
      %s11775 = sshll.u32 [#allocation2], 4
      %s11776 = int_to_ptr.vmem [resolvable:$true] %s11775
      %s11777 = sshll.u32 %s2, 4
      %s11778 = int_to_ptr.hbm [resolvable:$true] %s11777
      %11780 = dma.vmem_to_hbm [thread:$0]  %s11776, 32, %s11778, [#allocation3]
    $region13: #{simplenet_forward.1} parent=1 // pred_fallthru
      _
    // Predicated region
    $region14: #{simplenet_forward.1} parent=1 // pred_check
      _
    $region15: #{simplenet_forward.1} parent=1 // pred_check_branch
      %11782 = sbr.rel (0) target = $region17
    $region16: #{simplenet_forward.1} parent=1 // pred_region
      %11784 = dma.done [#allocation3], 32
    $region17: #{simplenet_forward.1} parent=1 // pred_fallthru
      _
    %11785 = vsyncpa [#allocation3], 1

</llo_original>
